<compile_context>
chip_gen: v7x
topology: tpu7x:2x2x1
jax: 0.10.0
libtpu: 0.0.40
codegen_flags: <defaults>
</compile_context>

<pallas_src>
import jax
import jax.numpy as jnp
from jax.experimental import pallas as pl
from jax.experimental.pallas import tpu as pltpu


# ----------------------------------------------------------------------------
# Small helpers
# ----------------------------------------------------------------------------
def _largest_divisor_at_most(n, cap):
    cap = max(1, min(n, cap))
    for t in range(cap, 0, -1):
        if n % t == 0:
            return t
    return 1


def _vmem_limit_bytes(nbytes):
    # Requested scoped-VMEM: actual need + headroom, clamped to a value that is
    # valid on every generation (v7x's 64 MiB physical VMEM is the binding one).
    return int(min(max(nbytes + (2 << 20), 4 << 20), 32 << 20))


# ----------------------------------------------------------------------------
# Kernel 1: ConvTranspose2d(kernel_size=2, stride=2), de-interleaved output
# ----------------------------------------------------------------------------
def _upsample2x2_kernel(x_ref, w_ref, b_ref, o_ref):
    # x_ref: (1, tH, W, Cin) bf16    w_ref: (2, Cin, 2*Cup) bf16, last dim = (dx, cout)
    # b_ref: (2, 1, 2*Cup)   f32     o_ref: (1, tH, 2, W, 2*Cup) bf16
    # o[0, h, dy, w, dx*Cup + c] is the transposed-conv output at (2h+dy, 2w+dx, c);
    # the full (B, H, 2, W, 2*Cup) array reshapes row-major (free) to (B, 2H, 2W, Cup).
    _, tH, W, Cin = x_ref.shape
    x2d = x_ref[0].reshape(tH * W, Cin)
    for dy in range(2):
        y = jnp.dot(x2d, w_ref[dy], preferred_element_type=jnp.float32)  # (tH*W, 2*Cup)
        y = y + b_ref[dy]                                                # (+ (1, 2*Cup))
        o_ref[0, :, dy, :, :] = y.reshape(tH, W, -1).astype(o_ref.dtype)


def conv_transpose2x2(x_nhwc, w, b):
    """ConvTranspose2d(k=2, s=2) in NHWC. bf16 in -> bf16 (B, 2H, 2W, Cup) out."""
    B, H, W, Cin = x_nhwc.shape
    F2 = w.shape[-1]              # 2 * Cup (last dim ordered (dx, cout))
    Cup = F2 // 2

    in_bytes = jnp.dtype(x_nhwc.dtype).itemsize
    # H-tile from a ~8 MiB double-buffered budget (fits v7x's 64 MiB VMEM easily).
    row_bytes = W * Cin * in_bytes + 2 * W * F2 * 2
    cap = max(1, (8 << 20) // (2 * max(row_bytes, 1)))
    tH = _largest_divisor_at_most(H, min(cap, 256))

    blk_bytes = tH * row_bytes + 2 * Cin * F2 * 2 + 2 * F2 * 4
    out5 = pl.pallas_call(
        _upsample2x2_kernel,
        out_shape=jax.ShapeDtypeStruct((B, H, 2, W, F2), jnp.bfloat16),
        grid=(B, H // tH),
        in_specs=[
            pl.BlockSpec((1, tH, W, Cin), lambda bb, i: (bb, i, 0, 0)),
            pl.BlockSpec((2, Cin, F2), lambda bb, i: (0, 0, 0)),
            pl.BlockSpec((2, 1, F2), lambda bb, i: (0, 0, 0)),
        ],
        out_specs=pl.BlockSpec((1, tH, 2, W, F2), lambda bb, i: (bb, i, 0, 0, 0)),
        compiler_params=pltpu.CompilerParams(
            dimension_semantics=("parallel", "parallel"),
            vmem_limit_bytes=_vmem_limit_bytes(2 * blk_bytes),
        ),
    )(x_nhwc, w, b)
    # Row-major reshape (no data movement) de-interleaves the 2x2 sub-pixels.
    return out5.reshape(B, 2 * H, 2 * W, Cup)


# ----------------------------------------------------------------------------
# Kernel 2: fused DoubleConv on the implicit concat [x2, up(x1)]
# ----------------------------------------------------------------------------
def _double_conv_kernel(x2_ref, x1u_ref, w1_ref, w2_ref, o_ref, xp_ref, hp_ref):
    # x2_ref : (1, H, W, C2) bf16  -- skip connection (first half of torch.cat)
    # x1u_ref: (1, H, W, Cu) bf16  -- upsampled x1   (second half of torch.cat)
    # w1_ref : (3, 3, C2+Cu, Cm) bf16    w2_ref: (3, 3, Cm, Cout) bf16   (HWIO)
    # o_ref  : (1, H, W, Cout) f32
    # xp_ref : (H+2, W+2, C2+Cu) f32 scratch -- 1-px zero-padded concat input
    # hp_ref : (H+2, W+2, Cm)    f32 scratch -- 1-px zero-padded hidden activation
    _, H, W, _ = x2_ref.shape
    Ctot = xp_ref.shape[-1]
    Cm = w1_ref.shape[-1]
    Cout = w2_ref.shape[-1]

    # torch.cat([x2, x1], dim=1) built once in VMEM, together with the 1-pixel
    # zero halo (the concat never exists in HBM, nor does any XLA-side pad).
    xp_ref[...] = jnp.zeros_like(xp_ref)
    xp_ref[1:H + 1, 1:W + 1, :] = jnp.concatenate(
        [x2_ref[0].astype(xp_ref.dtype), x1u_ref[0].astype(xp_ref.dtype)], axis=-1)

    # conv1 (3x3, pad=1, no bias): one 2-D MXU matmul per tap over the full
    # concatenated Cin, accumulated in f32 values (no scratch RMW).
    acc1 = jnp.zeros((H * W, Cm), jnp.float32)
    for dy in range(3):
        for dx in range(3):
            patch = xp_ref[dy:dy + H, dx:dx + W, :].reshape(H * W, Ctot)
            acc1 = acc1 + jnp.dot(patch.astype(jnp.bfloat16), w1_ref[dy, dx],
                                  preferred_element_type=jnp.float32)

    # Dropout(0.2) is identity in eval; BatchNorm is never applied (header note).
    h = jnp.maximum(acc1, 0.0)                              # ReLU, f32
    hp_ref[...] = jnp.zeros_like(hp_ref)
    hp_ref[1:H + 1, 1:W + 1, :] = h.reshape(H, W, Cm)

    # conv2 (3x3, pad=1, no bias) + ReLU; hidden activation never leaves VMEM.
    acc2 = jnp.zeros((H * W, Cout), jnp.float32)
    for dy in range(3):
        for dx in range(3):
            patch = hp_ref[dy:dy + H, dx:dx + W, :].reshape(H * W, Cm)
            acc2 = acc2 + jnp.dot(patch.astype(jnp.bfloat16), w2_ref[dy, dx],
                                  preferred_element_type=jnp.float32)
    o_ref[0] = jnp.maximum(acc2, 0.0).reshape(H, W, Cout).astype(o_ref.dtype)


def double_conv(x2_nhwc, x1u_nhwc, w1, w2):
    """Fused DoubleConv over the implicit channel-concat [x2, x1u]."""
    B, H, W, C2 = x2_nhwc.shape
    Cu = x1u_nhwc.shape[-1]
    Ctot = C2 + Cu
    Cm = w1.shape[-1]
    Cout = w2.shape[-1]
    assert w1.shape[2] == Ctot, (w1.shape, Ctot)

    scratch = [
        pltpu.VMEM((H + 2, W + 2, Ctot), jnp.float32),  # padded concat input
        pltpu.VMEM((H + 2, W + 2, Cm), jnp.float32),    # padded hidden activation
    ]
    scr_bytes = 4 * (H + 2) * (W + 2) * (Ctot + Cm)
    acc_bytes = 4 * H * W * (Cm + Cout)
    wt_bytes = 9 * (Ctot * Cm + Cm * Cout) * 2
    blk_bytes = H * W * (Ctot * 2 + Cout * 4) + wt_bytes

    # TODO(synk): for large resolutions, add halo-tiling over H (manual DMA windows)
    # so the per-batch block + scratches stay within v7x's 64 MiB VMEM.
    return pl.pallas_call(
        _double_conv_kernel,
        out_shape=jax.ShapeDtypeStruct((B, H, W, Cout), jnp.float32),
        grid=(B,),
        in_specs=[
            pl.BlockSpec((1, H, W, C2), lambda bb: (bb, 0, 0, 0)),
            pl.BlockSpec((1, H, W, Cu), lambda bb: (bb, 0, 0, 0)),
            pl.BlockSpec((3, 3, Ctot, Cm), lambda bb: (0, 0, 0, 0)),
            pl.BlockSpec((3, 3, Cm, Cout), lambda bb: (0, 0, 0, 0)),
        ],
        out_specs=pl.BlockSpec((1, H, W, Cout), lambda bb: (bb, 0, 0, 0)),
        scratch_shapes=scratch,
        compiler_params=pltpu.CompilerParams(
            dimension_semantics=("parallel",),
            vmem_limit_bytes=_vmem_limit_bytes(2 * blk_bytes + scr_bytes + acc_bytes),
        ),
    )(x2_nhwc, x1u_nhwc, w1, w2)


# ----------------------------------------------------------------------------
# Up.forward
# ----------------------------------------------------------------------------
@jax.jit
def up_forward(x1_nchw, x2_nchw, up_w, up_b, w1, w2):
    # NCHW (PyTorch) -> NHWC (kernel layout); the bf16 cast fuses into this
    # transpose pass, so the Pallas kernels read half the HBM bytes.
    x1 = jnp.transpose(x1_nchw, (0, 2, 3, 1)).astype(jnp.bfloat16)
    x2 = jnp.transpose(x2_nchw, (0, 2, 3, 1)).astype(jnp.bfloat16)

    # self.up(x1): ConvTranspose2d(in_ch, in_ch // 2, kernel_size=2, stride=2)
    x1u = conv_transpose2x2(x1, up_w, up_b)

    # F.pad(x1, ...) to match x2's spatial size (no-op when shapes already match).
    diffY = x2.shape[1] - x1u.shape[1]
    diffX = x2.shape[2] - x1u.shape[2]
    if diffY or diffX:
        x1u = jnp.pad(
            x1u,
            ((0, 0),
             (diffY // 2, diffY - diffY // 2),
             (diffX // 2, diffX - diffX // 2),
             (0, 0)))

    # torch.cat([x2, x1], dim=1) + DoubleConv, fused: the concat is built in VMEM
    # inside the kernel and both 3x3 convs run in a single kernel.
    out = double_conv(x2, x1u, w1, w2)

    # NHWC -> NCHW
    return jnp.transpose(out, (0, 3, 1, 2))


# ----------------------------------------------------------------------------
# Deterministic parameter init + demo
# ----------------------------------------------------------------------------
def make_params(key, in_channels, out_channels):
    mid = out_channels            # DoubleConv default: mid_channels = out_channels
    cup = in_channels // 2        # ConvTranspose2d output channels
    k1, k2, k3, k4 = jax.random.split(key, 4)

    # ConvTranspose2d weight in PyTorch layout (Cin, Cout, kH, kW) ->
    # kernel layout (dy, Cin, dx*Cup + cout), bf16.
    w_pt = 0.1 * jax.random.normal(k1, (in_channels, cup, 2, 2), jnp.float32)
    up_w = jnp.transpose(w_pt, (2, 0, 3, 1)).reshape(2, in_channels, 2 * cup)
    up_w = up_w.astype(jnp.bfloat16)
    bias = 0.1 * jax.random.normal(k2, (cup,), jnp.float32)
    up_b = jnp.asarray(jnp.broadcast_to(jnp.tile(bias, 2)[None, None, :],
                                        (2, 1, 2 * cup)), jnp.float32)

    # DoubleConv weights in HWIO (bf16). conv1's Cin dim is ordered exactly like
    # torch.cat([x2, up(x1)], dim=1): first in_channels//2 entries are x2 channels.
    w1 = (0.1 * jax.random.normal(k3, (3, 3, in_channels, mid), jnp.float32)).astype(jnp.bfloat16)
    w2 = (0.1 * jax.random.normal(k4, (3, 3, mid, out_channels), jnp.float32)).astype(jnp.bfloat16)
    return up_w, up_b, w1, w2


if __name__ == "__main__":
    in_channels, out_channels = 8, 4
    B, H, W = 2, 8, 8                                   # x1 spatial; x2 is 2x larger

    key = jax.random.PRNGKey(0)
    kx1, kx2, kp = jax.random.split(key, 3)
    x1 = jax.random.normal(kx1, (B, in_channels, H, W), jnp.float32)             # NCHW
    x2 = jax.random.normal(kx2, (B, in_channels // 2, 2 * H, 2 * W), jnp.float32)

    params = make_params(kp, in_channels, out_channels)

    out = up_forward(x1, x2, *params)
    jax.block_until_ready(out)
    assert out.shape == (B, out_channels, 2 * H, 2 * W), out.shape
    assert bool(jnp.all(jnp.isfinite(out)))
    print("KERNEL_OK")
</pallas_src>

<mosaic_0001>
module attributes {stable_mosaic.version = 11 : i64} {
  func.func @_upsample2x2_kernel(%arg0: i32, %arg1: i32, %arg2: memref<1x8x8x8xbf16, #tpu.memory_space<vmem>>, %arg3: memref<2x8x8xbf16, #tpu.memory_space<vmem>>, %arg4: memref<2x1x8xf32, #tpu.memory_space<vmem>>, %arg5: memref<1x8x2x8x8xbf16, #tpu.memory_space<vmem>>) attributes {dimension_semantics = [#tpu.dimension_semantics<parallel>, #tpu.dimension_semantics<parallel>], iteration_bounds = array<i64: 2, 1>, scalar_prefetch = 0 : i64, scratch_operands = 0 : i64, tpu.core_type = #tpu.core_type<tc>, window_params = [{transform_indices = @transform_0, window_bounds = array<i64: 1, 8, 8, 8>}, {pipeline_mode = #tpu.pipeline_mode<synchronous>, transform_indices = @transform_1, window_bounds = array<i64: 2, 8, 8>}, {pipeline_mode = #tpu.pipeline_mode<synchronous>, transform_indices = @transform_2, window_bounds = array<i64: 2, 1, 8>}, {transform_indices = @transform_3, window_bounds = array<i64: 1, 8, 2, 8, 8>}]} {
    %c0 = arith.constant 0 : index
    %c0_0 = arith.constant 0 : index
    %c0_1 = arith.constant 0 : index
    %c0_2 = arith.constant 0 : index
    %0 = vector.load %arg2[%c0, %c0_0, %c0_1, %c0_2] : memref<1x8x8x8xbf16, #tpu.memory_space<vmem>>, vector<1x8x8x8xbf16>
    %1 = vector.shape_cast %0 : vector<1x8x8x8xbf16> to vector<8x8x8xbf16>
    %2 = vector.shape_cast %1 : vector<8x8x8xbf16> to vector<64x8xbf16>
    %c0_3 = arith.constant 0 : index
    %c0_4 = arith.constant 0 : index
    %c0_5 = arith.constant 0 : index
    %3 = vector.load %arg3[%c0_3, %c0_4, %c0_5] : memref<2x8x8xbf16, #tpu.memory_space<vmem>>, vector<1x8x8xbf16>
    %4 = vector.shape_cast %3 : vector<1x8x8xbf16> to vector<8x8xbf16>
    %cst = arith.constant dense<0.000000e+00> : vector<64x8xf32>
    %5 = tpu.matmul %2, %4, %cst {dimension_numbers = #tpu.dot_dimension_numbers<[1], [0], [0], [1], [0, 0, 1, 1], [], []>} : vector<64x8xbf16>, vector<8x8xbf16>, vector<64x8xf32> -> vector<64x8xf32>
    %c0_6 = arith.constant 0 : index
    %c0_7 = arith.constant 0 : index
    %c0_8 = arith.constant 0 : index
    %6 = vector.load %arg4[%c0_6, %c0_7, %c0_8] : memref<2x1x8xf32, #tpu.memory_space<vmem>>, vector<1x1x8xf32>
    %7 = vector.shape_cast %6 : vector<1x1x8xf32> to vector<1x8xf32>
    %8 = vector.broadcast %7 : vector<1x8xf32> to vector<64x8xf32>
    %9 = arith.addf %5, %8 : vector<64x8xf32>
    %10 = vector.shape_cast %9 : vector<64x8xf32> to vector<8x8x8xf32>
    %11 = arith.truncf %10 : vector<8x8x8xf32> to vector<8x8x8xbf16>
    %c0_9 = arith.constant 0 : index
    %c0_10 = arith.constant 0 : index
    %c0_11 = arith.constant 0 : index
    %c0_12 = arith.constant 0 : index
    %c0_13 = arith.constant 0 : index
    %12 = vector.load %arg5[%c0_9, %c0_10, %c0_11, %c0_12, %c0_13] : memref<1x8x2x8x8xbf16, #tpu.memory_space<vmem>>, vector<1x8x1x8x8xbf16>
    %13 = vector.shape_cast %12 : vector<1x8x1x8x8xbf16> to vector<8x8x8xbf16>
    %14 = vector.shape_cast %11 : vector<8x8x8xbf16> to vector<1x8x1x8x8xbf16>
    tpu.vector_store %arg5[%c0_9, %c0_10, %c0_11, %c0_12, %c0_13], %14 {strides = array<i32>} : memref<1x8x2x8x8xbf16, #tpu.memory_space<vmem>>, vector<1x8x1x8x8xbf16>,
    %c1 = arith.constant 1 : index
    %c0_14 = arith.constant 0 : index
    %c0_15 = arith.constant 0 : index
    %15 = vector.load %arg3[%c1, %c0_14, %c0_15] : memref<2x8x8xbf16, #tpu.memory_space<vmem>>, vector<1x8x8xbf16>
    %16 = vector.shape_cast %15 : vector<1x8x8xbf16> to vector<8x8xbf16>
    %cst_16 = arith.constant dense<0.000000e+00> : vector<64x8xf32>
    %17 = tpu.matmul %2, %16, %cst_16 {dimension_numbers = #tpu.dot_dimension_numbers<[1], [0], [0], [1], [0, 0, 1, 1], [], []>} : vector<64x8xbf16>, vector<8x8xbf16>, vector<64x8xf32> -> vector<64x8xf32>
    %c1_17 = arith.constant 1 : index
    %c0_18 = arith.constant 0 : index
    %c0_19 = arith.constant 0 : index
    %18 = vector.load %arg4[%c1_17, %c0_18, %c0_19] : memref<2x1x8xf32, #tpu.memory_space<vmem>>, vector<1x1x8xf32>
    %19 = vector.shape_cast %18 : vector<1x1x8xf32> to vector<1x8xf32>
    %20 = vector.broadcast %19 : vector<1x8xf32> to vector<64x8xf32>
    %21 = arith.addf %17, %20 : vector<64x8xf32>
    %22 = vector.shape_cast %21 : vector<64x8xf32> to vector<8x8x8xf32>
    %23 = arith.truncf %22 : vector<8x8x8xf32> to vector<8x8x8xbf16>
    %c0_20 = arith.constant 0 : index
    %c0_21 = arith.constant 0 : index
    %c1_22 = arith.constant 1 : index
    %c0_23 = arith.constant 0 : index
    %c0_24 = arith.constant 0 : index
    %24 = vector.load %arg5[%c0_20, %c0_21, %c1_22, %c0_23, %c0_24] : memref<1x8x2x8x8xbf16, #tpu.memory_space<vmem>>, vector<1x8x1x8x8xbf16>
    %25 = vector.shape_cast %24 : vector<1x8x1x8x8xbf16> to vector<8x8x8xbf16>
    %26 = vector.shape_cast %23 : vector<8x8x8xbf16> to vector<1x8x1x8x8xbf16>
    tpu.vector_store %arg5[%c0_20, %c0_21, %c1_22, %c0_23, %c0_24], %26 {strides = array<i32>} : memref<1x8x2x8x8xbf16, #tpu.memory_space<vmem>>, vector<1x8x1x8x8xbf16>,
    return
  }
  func.func @transform_0(%arg0: i32, %arg1: i32) -> (i32, i32, i32, i32) {
    %c0_i32 = arith.constant 0 : i32
    %c0_i32_0 = arith.constant 0 : i32
    %c0_i32_1 = arith.constant 0 : i32
    return %arg0, %arg1, %c0_i32, %c0_i32_0 : i32, i32, i32, i32
  }
  func.func @transform_1(%arg0: i32, %arg1: i32) -> (i32, i32, i32) {
    %c0_i32 = arith.constant 0 : i32
    %c0_i32_0 = arith.constant 0 : i32
    %c0_i32_1 = arith.constant 0 : i32
    %c0_i32_2 = arith.constant 0 : i32
    return %c0_i32, %c0_i32_0, %c0_i32_1 : i32, i32, i32
  }
  func.func @transform_2(%arg0: i32, %arg1: i32) -> (i32, i32, i32) {
    %c0_i32 = arith.constant 0 : i32
    %c0_i32_0 = arith.constant 0 : i32
    %c0_i32_1 = arith.constant 0 : i32
    %c0_i32_2 = arith.constant 0 : i32
    return %c0_i32, %c0_i32_0, %c0_i32_1 : i32, i32, i32
  }
  func.func @transform_3(%arg0: i32, %arg1: i32) -> (i32, i32, i32, i32, i32) {
    %c0_i32 = arith.constant 0 : i32
    %c0_i32_0 = arith.constant 0 : i32
    %c0_i32_1 = arith.constant 0 : i32
    %c0_i32_2 = arith.constant 0 : i32
    return %arg0, %arg1, %c0_i32, %c0_i32_0, %c0_i32_1 : i32, i32, i32, i32, i32
  }
}

module attributes {stable_mosaic.version = 11 : i64} {
  func.func @_double_conv_kernel(%arg0: i32, %arg1: memref<1x16x16x4xbf16, #tpu.memory_space<vmem>>, %arg2: memref<1x16x16x4xbf16, #tpu.memory_space<vmem>>, %arg3: memref<3x3x8x4xbf16, #tpu.memory_space<vmem>>, %arg4: memref<3x3x4x4xbf16, #tpu.memory_space<vmem>>, %arg5: memref<1x16x16x4xf32, #tpu.memory_space<vmem>>, %arg6: memref<18x18x8xf32, #tpu.memory_space<vmem>>, %arg7: memref<18x18x4xf32, #tpu.memory_space<vmem>>) attributes {dimension_semantics = [#tpu.dimension_semantics<parallel>], iteration_bounds = array<i64: 2>, scalar_prefetch = 0 : i64, scratch_operands = 2 : i64, tpu.core_type = #tpu.core_type<tc>, window_params = [{transform_indices = @transform_0, window_bounds = array<i64: 1, 16, 16, 4>}, {transform_indices = @transform_1, window_bounds = array<i64: 1, 16, 16, 4>}, {pipeline_mode = #tpu.pipeline_mode<synchronous>, transform_indices = @transform_2, window_bounds = array<i64: 3, 3, 8, 4>}, {pipeline_mode = #tpu.pipeline_mode<synchronous>, transform_indices = @transform_3, window_bounds = array<i64: 3, 3, 4, 4>}, {transform_indices = @transform_4, window_bounds = array<i64: 1, 16, 16, 4>}]} {
    %cst = arith.constant 0.000000e+00 : f32
    %0 = vector.broadcast %cst : f32 to vector<18x18x8xf32>
    %c0 = arith.constant 0 : index
    %c0_0 = arith.constant 0 : index
    %c0_1 = arith.constant 0 : index
    %1 = vector.load %arg6[%c0, %c0_0, %c0_1] : memref<18x18x8xf32, #tpu.memory_space<vmem>>, vector<18x18x8xf32>
    tpu.vector_store %arg6[%c0, %c0_0, %c0_1], %0 {strides = array<i32>} : memref<18x18x8xf32, #tpu.memory_space<vmem>>, vector<18x18x8xf32>,
    %c0_2 = arith.constant 0 : index
    %c0_3 = arith.constant 0 : index
    %c0_4 = arith.constant 0 : index
    %c0_5 = arith.constant 0 : index
    %2 = vector.load %arg1[%c0_2, %c0_3, %c0_4, %c0_5] : memref<1x16x16x4xbf16, #tpu.memory_space<vmem>>, vector<1x16x16x4xbf16>
    %3 = vector.shape_cast %2 : vector<1x16x16x4xbf16> to vector<16x16x4xbf16>
    %4 = arith.extf %3 : vector<16x16x4xbf16> to vector<16x16x4xf32>
    %c0_6 = arith.constant 0 : index
    %c0_7 = arith.constant 0 : index
    %c0_8 = arith.constant 0 : index
    %c0_9 = arith.constant 0 : index
    %5 = vector.load %arg2[%c0_6, %c0_7, %c0_8, %c0_9] : memref<1x16x16x4xbf16, #tpu.memory_space<vmem>>, vector<1x16x16x4xbf16>
    %6 = vector.shape_cast %5 : vector<1x16x16x4xbf16> to vector<16x16x4xbf16>
    %7 = arith.extf %6 : vector<16x16x4xbf16> to vector<16x16x4xf32>
    %8 = tpu.concatenate %4, %7 in 2 : vector<16x16x4xf32>, vector<16x16x4xf32> -> vector<16x16x8xf32>
    %c1 = arith.constant 1 : index
    %c1_10 = arith.constant 1 : index
    %c0_11 = arith.constant 0 : index
    %9 = vector.load %arg6[%c1, %c1_10, %c0_11] : memref<18x18x8xf32, #tpu.memory_space<vmem>>, vector<16x16x8xf32>
    tpu.vector_store %arg6[%c1, %c1_10, %c0_11], %8 {strides = array<i32>} : memref<18x18x8xf32, #tpu.memory_space<vmem>>, vector<16x16x8xf32>,
    %cst_12 = arith.constant 0.000000e+00 : f32
    %10 = vector.broadcast %cst_12 : f32 to vector<256x4xf32>
    %c0_13 = arith.constant 0 : index
    %c0_14 = arith.constant 0 : index
    %c0_15 = arith.constant 0 : index
    %11 = vector.load %arg6[%c0_13, %c0_14, %c0_15] : memref<18x18x8xf32, #tpu.memory_space<vmem>>, vector<16x16x8xf32>
    %12 = vector.shape_cast %11 : vector<16x16x8xf32> to vector<256x8xf32>
    %13 = arith.truncf %12 : vector<256x8xf32> to vector<256x8xbf16>
    %c0_16 = arith.constant 0 : index
    %c0_17 = arith.constant 0 : index
    %c0_18 = arith.constant 0 : index
    %c0_19 = arith.constant 0 : index
    %14 = vector.load %arg3[%c0_16, %c0_17, %c0_18, %c0_19] : memref<3x3x8x4xbf16, #tpu.memory_space<vmem>>, vector<1x1x8x4xbf16>
    %15 = vector.shape_cast %14 : vector<1x1x8x4xbf16> to vector<8x4xbf16>
    %cst_20 = arith.constant dense<0.000000e+00> : vector<256x4xf32>
    %16 = tpu.matmul %13, %15, %cst_20 {dimension_numbers = #tpu.dot_dimension_numbers<[1], [0], [0], [1], [0, 0, 1, 1], [], []>} : vector<256x8xbf16>, vector<8x4xbf16>, vector<256x4xf32> -> vector<256x4xf32>
    %17 = arith.addf %10, %16 : vector<256x4xf32>
    %c0_21 = arith.constant 0 : index
    %c1_22 = arith.constant 1 : index
    %c0_23 = arith.constant 0 : index
    %18 = vector.load %arg6[%c0_21, %c1_22, %c0_23] : memref<18x18x8xf32, #tpu.memory_space<vmem>>, vector<16x16x8xf32>
    %19 = vector.shape_cast %18 : vector<16x16x8xf32> to vector<256x8xf32>
    %20 = arith.truncf %19 : vector<256x8xf32> to vector<256x8xbf16>
    %c0_24 = arith.constant 0 : index
    %c1_25 = arith.constant 1 : index
    %c0_26 = arith.constant 0 : index
    %c0_27 = arith.constant 0 : index
    %21 = vector.load %arg3[%c0_24, %c1_25, %c0_26, %c0_27] : memref<3x3x8x4xbf16, #tpu.memory_space<vmem>>, vector<1x1x8x4xbf16>
    %22 = vector.shape_cast %21 : vector<1x1x8x4xbf16> to vector<8x4xbf16>
    %cst_28 = arith.constant dense<0.000000e+00> : vector<256x4xf32>
    %23 = tpu.matmul %20, %22, %cst_28 {dimension_numbers = #tpu.dot_dimension_numbers<[1], [0], [0], [1], [0, 0, 1, 1], [], []>} : vector<256x8xbf16>, vector<8x4xbf16>, vector<256x4xf32> -> vector<256x4xf32>
    %24 = arith.addf %17, %23 : vector<256x4xf32>
    %c0_29 = arith.constant 0 : index
    %c2 = arith.constant 2 : index
    %c0_30 = arith.constant 0 : index
    %25 = vector.load %arg6[%c0_29, %c2, %c0_30] : memref<18x18x8xf32, #tpu.memory_space<vmem>>, vector<16x16x8xf32>
    %26 = vector.shape_cast %25 : vector<16x16x8xf32> to vector<256x8xf32>
    %27 = arith.truncf %26 : vector<256x8xf32> to vector<256x8xbf16>
    %c0_31 = arith.constant 0 : index
    %c2_32 = arith.constant 2 : index
    %c0_33 = arith.constant 0 : index
    %c0_34 = arith.constant 0 : index
    %28 = vector.load %arg3[%c0_31, %c2_32, %c0_33, %c0_34] : memref<3x3x8x4xbf16, #tpu.memory_space<vmem>>, vector<1x1x8x4xbf16>
    %29 = vector.shape_cast %28 : vector<1x1x8x4xbf16> to vector<8x4xbf16>
    %cst_35 = arith.constant dense<0.000000e+00> : vector<256x4xf32>
    %30 = tpu.matmul %27, %29, %cst_35 {dimension_numbers = #tpu.dot_dimension_numbers<[1], [0], [0], [1], [0, 0, 1, 1], [], []>} : vector<256x8xbf16>, vector<8x4xbf16>, vector<256x4xf32> -> vector<256x4xf32>
    %31 = arith.addf %24, %30 : vector<256x4xf32>
    %c1_36 = arith.constant 1 : index
    %c0_37 = arith.constant 0 : index
    %c0_38 = arith.constant 0 : index
    %32 = vector.load %arg6[%c1_36, %c0_37, %c0_38] : memref<18x18x8xf32, #tpu.memory_space<vmem>>, vector<16x16x8xf32>
    %33 = vector.shape_cast %32 : vector<16x16x8xf32> to vector<256x8xf32>
    %34 = arith.truncf %33 : vector<256x8xf32> to vector<256x8xbf16>
    %c1_39 = arith.constant 1 : index
    %c0_40 = arith.constant 0 : index
    %c0_41 = arith.constant 0 : index
    %c0_42 = arith.constant 0 : index
    %35 = vector.load %arg3[%c1_39, %c0_40, %c0_41, %c0_42] : memref<3x3x8x4xbf16, #tpu.memory_space<vmem>>, vector<1x1x8x4xbf16>
    %36 = vector.shape_cast %35 : vector<1x1x8x4xbf16> to vector<8x4xbf16>
    %cst_43 = arith.constant dense<0.000000e+00> : vector<256x4xf32>
    %37 = tpu.matmul %34, %36, %cst_43 {dimension_numbers = #tpu.dot_dimension_numbers<[1], [0], [0], [1], [0, 0, 1, 1], [], []>} : vector<256x8xbf16>, vector<8x4xbf16>, vector<256x4xf32> -> vector<256x4xf32>
    %38 = arith.addf %31, %37 : vector<256x4xf32>
    %c1_44 = arith.constant 1 : index
    %c1_45 = arith.constant 1 : index
    %c0_46 = arith.constant 0 : index
    %39 = vector.load %arg6[%c1_44, %c1_45, %c0_46] : memref<18x18x8xf32, #tpu.memory_space<vmem>>, vector<16x16x8xf32>
    %40 = vector.shape_cast %39 : vector<16x16x8xf32> to vector<256x8xf32>
    %41 = arith.truncf %40 : vector<256x8xf32> to vector<256x8xbf16>
    %c1_47 = arith.constant 1 : index
    %c1_48 = arith.constant 1 : index
    %c0_49 = arith.constant 0 : index
    %c0_50 = arith.constant 0 : index
    %42 = vector.load %arg3[%c1_47, %c1_48, %c0_49, %c0_50] : memref<3x3x8x4xbf16, #tpu.memory_space<vmem>>, vector<1x1x8x4xbf16>
    %43 = vector.shape_cast %42 : vector<1x1x8x4xbf16> to vector<8x4xbf16>
    %cst_51 = arith.constant dense<0.000000e+00> : vector<256x4xf32>
    %44 = tpu.matmul %41, %43, %cst_51 {dimension_numbers = #tpu.dot_dimension_numbers<[1], [0], [0], [1], [0, 0, 1, 1], [], []>} : vector<256x8xbf16>, vector<8x4xbf16>, vector<256x4xf32> -> vector<256x4xf32>
    %45 = arith.addf %38, %44 : vector<256x4xf32>
    %c1_52 = arith.constant 1 : index
    %c2_53 = arith.constant 2 : index
    %c0_54 = arith.constant 0 : index
    %46 = vector.load %arg6[%c1_52, %c2_53, %c0_54] : memref<18x18x8xf32, #tpu.memory_space<vmem>>, vector<16x16x8xf32>
    %47 = vector.shape_cast %46 : vector<16x16x8xf32> to vector<256x8xf32>
    %48 = arith.truncf %47 : vector<256x8xf32> to vector<256x8xbf16>
    %c1_55 = arith.constant 1 : index
    %c2_56 = arith.constant 2 : index
    %c0_57 = arith.constant 0 : index
    %c0_58 = arith.constant 0 : index
    %49 = vector.load %arg3[%c1_55, %c2_56, %c0_57, %c0_58] : memref<3x3x8x4xbf16, #tpu.memory_space<vmem>>, vector<1x1x8x4xbf16>
    %50 = vector.shape_cast %49 : vector<1x1x8x4xbf16> to vector<8x4xbf16>
    %cst_59 = arith.constant dense<0.000000e+00> : vector<256x4xf32>
    %51 = tpu.matmul %48, %50, %cst_59 {dimension_numbers = #tpu.dot_dimension_numbers<[1], [0], [0], [1], [0, 0, 1, 1], [], []>} : vector<256x8xbf16>, vector<8x4xbf16>, vector<256x4xf32> -> vector<256x4xf32>
    %52 = arith.addf %45, %51 : vector<256x4xf32>
    %c2_60 = arith.constant 2 : index
    %c0_61 = arith.constant 0 : index
    %c0_62 = arith.constant 0 : index
    %53 = vector.load %arg6[%c2_60, %c0_61, %c0_62] : memref<18x18x8xf32, #tpu.memory_space<vmem>>, vector<16x16x8xf32>
    %54 = vector.shape_cast %53 : vector<16x16x8xf32> to vector<256x8xf32>
    %55 = arith.truncf %54 : vector<256x8xf32> to vector<256x8xbf16>
    %c2_63 = arith.constant 2 : index
    %c0_64 = arith.constant 0 : index
    %c0_65 = arith.constant 0 : index
    %c0_66 = arith.constant 0 : index
    %56 = vector.load %arg3[%c2_63, %c0_64, %c0_65, %c0_66] : memref<3x3x8x4xbf16, #tpu.memory_space<vmem>>, vector<1x1x8x4xbf16>
    %57 = vector.shape_cast %56 : vector<1x1x8x4xbf16> to vector<8x4xbf16>
    %cst_67 = arith.constant dense<0.000000e+00> : vector<256x4xf32>
    %58 = tpu.matmul %55, %57, %cst_67 {dimension_numbers = #tpu.dot_dimension_numbers<[1], [0], [0], [1], [0, 0, 1, 1], [], []>} : vector<256x8xbf16>, vector<8x4xbf16>, vector<256x4xf32> -> vector<256x4xf32>
    %59 = arith.addf %52, %58 : vector<256x4xf32>
    %c2_68 = arith.constant 2 : index
    %c1_69 = arith.constant 1 : index
    %c0_70 = arith.constant 0 : index
    %60 = vector.load %arg6[%c2_68, %c1_69, %c0_70] : memref<18x18x8xf32, #tpu.memory_space<vmem>>, vector<16x16x8xf32>
    %61 = vector.shape_cast %60 : vector<16x16x8xf32> to vector<256x8xf32>
    %62 = arith.truncf %61 : vector<256x8xf32> to vector<256x8xbf16>
    %c2_71 = arith.constant 2 : index
    %c1_72 = arith.constant 1 : index
    %c0_73 = arith.constant 0 : index
    %c0_74 = arith.constant 0 : index
    %63 = vector.load %arg3[%c2_71, %c1_72, %c0_73, %c0_74] : memref<3x3x8x4xbf16, #tpu.memory_space<vmem>>, vector<1x1x8x4xbf16>
    %64 = vector.shape_cast %63 : vector<1x1x8x4xbf16> to vector<8x4xbf16>
    %cst_75 = arith.constant dense<0.000000e+00> : vector<256x4xf32>
    %65 = tpu.matmul %62, %64, %cst_75 {dimension_numbers = #tpu.dot_dimension_numbers<[1], [0], [0], [1], [0, 0, 1, 1], [], []>} : vector<256x8xbf16>, vector<8x4xbf16>, vector<256x4xf32> -> vector<256x4xf32>
    %66 = arith.addf %59, %65 : vector<256x4xf32>
    %c2_76 = arith.constant 2 : index
    %c2_77 = arith.constant 2 : index
    %c0_78 = arith.constant 0 : index
    %67 = vector.load %arg6[%c2_76, %c2_77, %c0_78] : memref<18x18x8xf32, #tpu.memory_space<vmem>>, vector<16x16x8xf32>
    %68 = vector.shape_cast %67 : vector<16x16x8xf32> to vector<256x8xf32>
    %69 = arith.truncf %68 : vector<256x8xf32> to vector<256x8xbf16>
    %c2_79 = arith.constant 2 : index
    %c2_80 = arith.constant 2 : index
    %c0_81 = arith.constant 0 : index
    %c0_82 = arith.constant 0 : index
    %70 = vector.load %arg3[%c2_79, %c2_80, %c0_81, %c0_82] : memref<3x3x8x4xbf16, #tpu.memory_space<vmem>>, vector<1x1x8x4xbf16>
    %71 = vector.shape_cast %70 : vector<1x1x8x4xbf16> to vector<8x4xbf16>
    %cst_83 = arith.constant dense<0.000000e+00> : vector<256x4xf32>
    %72 = tpu.matmul %69, %71, %cst_83 {dimension_numbers = #tpu.dot_dimension_numbers<[1], [0], [0], [1], [0, 0, 1, 1], [], []>} : vector<256x8xbf16>, vector<8x4xbf16>, vector<256x4xf32> -> vector<256x4xf32>
    %73 = arith.addf %66, %72 : vector<256x4xf32>
    %cst_84 = arith.constant 0.000000e+00 : f32
    %74 = vector.broadcast %cst_84 : f32 to vector<256x4xf32>
    %75 = arith.maximumf %73, %74 : vector<256x4xf32>
    %cst_85 = arith.constant 0.000000e+00 : f32
    %76 = vector.broadcast %cst_85 : f32 to vector<18x18x4xf32>
    %c0_86 = arith.constant 0 : index
    %c0_87 = arith.constant 0 : index
    %c0_88 = arith.constant 0 : index
    %77 = vector.load %arg7[%c0_86, %c0_87, %c0_88] : memref<18x18x4xf32, #tpu.memory_space<vmem>>, vector<18x18x4xf32>
    tpu.vector_store %arg7[%c0_86, %c0_87, %c0_88], %76 {strides = array<i32>} : memref<18x18x4xf32, #tpu.memory_space<vmem>>, vector<18x18x4xf32>,
    %78 = vector.shape_cast %75 : vector<256x4xf32> to vector<16x16x4xf32>
    %c1_89 = arith.constant 1 : index
    %c1_90 = arith.constant 1 : index
    %c0_91 = arith.constant 0 : index
    %79 = vector.load %arg7[%c1_89, %c1_90, %c0_91] : memref<18x18x4xf32, #tpu.memory_space<vmem>>, vector<16x16x4xf32>
    tpu.vector_store %arg7[%c1_89, %c1_90, %c0_91], %78 {strides = array<i32>} : memref<18x18x4xf32, #tpu.memory_space<vmem>>, vector<16x16x4xf32>,
    %cst_92 = arith.constant 0.000000e+00 : f32
    %80 = vector.broadcast %cst_92 : f32 to vector<256x4xf32>
    %c0_93 = arith.constant 0 : index
    %c0_94 = arith.constant 0 : index
    %c0_95 = arith.constant 0 : index
    %81 = vector.load %arg7[%c0_93, %c0_94, %c0_95] : memref<18x18x4xf32, #tpu.memory_space<vmem>>, vector<16x16x4xf32>
    %82 = vector.shape_cast %81 : vector<16x16x4xf32> to vector<256x4xf32>
    %83 = arith.truncf %82 : vector<256x4xf32> to vector<256x4xbf16>
    %c0_96 = arith.constant 0 : index
    %c0_97 = arith.constant 0 : index
    %c0_98 = arith.constant 0 : index
    %c0_99 = arith.constant 0 : index
    %84 = vector.load %arg4[%c0_96, %c0_97, %c0_98, %c0_99] : memref<3x3x4x4xbf16, #tpu.memory_space<vmem>>, vector<1x1x4x4xbf16>
    %85 = vector.shape_cast %84 : vector<1x1x4x4xbf16> to vector<4x4xbf16>
    %cst_100 = arith.constant dense<0.000000e+00> : vector<256x4xf32>
    %86 = tpu.matmul %83, %85, %cst_100 {dimension_numbers = #tpu.dot_dimension_numbers<[1], [0], [0], [1], [0, 0, 1, 1], [], []>} : vector<256x4xbf16>, vector<4x4xbf16>, vector<256x4xf32> -> vector<256x4xf32>
    %87 = arith.addf %80, %86 : vector<256x4xf32>
    %c0_101 = arith.constant 0 : index
    %c1_102 = arith.constant 1 : index
    %c0_103 = arith.constant 0 : index
    %88 = vector.load %arg7[%c0_101, %c1_102, %c0_103] : memref<18x18x4xf32, #tpu.memory_space<vmem>>, vector<16x16x4xf32>
    %89 = vector.shape_cast %88 : vector<16x16x4xf32> to vector<256x4xf32>
    %90 = arith.truncf %89 : vector<256x4xf32> to vector<256x4xbf16>
    %c0_104 = arith.constant 0 : index
    %c1_105 = arith.constant 1 : index
    %c0_106 = arith.constant 0 : index
    %c0_107 = arith.constant 0 : index
    %91 = vector.load %arg4[%c0_104, %c1_105, %c0_106, %c0_107] : memref<3x3x4x4xbf16, #tpu.memory_space<vmem>>, vector<1x1x4x4xbf16>
    %92 = vector.shape_cast %91 : vector<1x1x4x4xbf16> to vector<4x4xbf16>
    %cst_108 = arith.constant dense<0.000000e+00> : vector<256x4xf32>
    %93 = tpu.matmul %90, %92, %cst_108 {dimension_numbers = #tpu.dot_dimension_numbers<[1], [0], [0], [1], [0, 0, 1, 1], [], []>} : vector<256x4xbf16>, vector<4x4xbf16>, vector<256x4xf32> -> vector<256x4xf32>
    %94 = arith.addf %87, %93 : vector<256x4xf32>
    %c0_109 = arith.constant 0 : index
    %c2_110 = arith.constant 2 : index
    %c0_111 = arith.constant 0 : index
    %95 = vector.load %arg7[%c0_109, %c2_110, %c0_111] : memref<18x18x4xf32, #tpu.memory_space<vmem>>, vector<16x16x4xf32>
    %96 = vector.shape_cast %95 : vector<16x16x4xf32> to vector<256x4xf32>
    %97 = arith.truncf %96 : vector<256x4xf32> to vector<256x4xbf16>
    %c0_112 = arith.constant 0 : index
    %c2_113 = arith.constant 2 : index
    %c0_114 = arith.constant 0 : index
    %c0_115 = arith.constant 0 : index
    %98 = vector.load %arg4[%c0_112, %c2_113, %c0_114, %c0_115] : memref<3x3x4x4xbf16, #tpu.memory_space<vmem>>, vector<1x1x4x4xbf16>
    %99 = vector.shape_cast %98 : vector<1x1x4x4xbf16> to vector<4x4xbf16>
    %cst_116 = arith.constant dense<0.000000e+00> : vector<256x4xf32>
    %100 = tpu.matmul %97, %99, %cst_116 {dimension_numbers = #tpu.dot_dimension_numbers<[1], [0], [0], [1], [0, 0, 1, 1], [], []>} : vector<256x4xbf16>, vector<4x4xbf16>, vector<256x4xf32> -> vector<256x4xf32>
    %101 = arith.addf %94, %100 : vector<256x4xf32>
    %c1_117 = arith.constant 1 : index
    %c0_118 = arith.constant 0 : index
    %c0_119 = arith.constant 0 : index
    %102 = vector.load %arg7[%c1_117, %c0_118, %c0_119] : memref<18x18x4xf32, #tpu.memory_space<vmem>>, vector<16x16x4xf32>
    %103 = vector.shape_cast %102 : vector<16x16x4xf32> to vector<256x4xf32>
    %104 = arith.truncf %103 : vector<256x4xf32> to vector<256x4xbf16>
    %c1_120 = arith.constant 1 : index
    %c0_121 = arith.constant 0 : index
    %c0_122 = arith.constant 0 : index
    %c0_123 = arith.constant 0 : index
    %105 = vector.load %arg4[%c1_120, %c0_121, %c0_122, %c0_123] : memref<3x3x4x4xbf16, #tpu.memory_space<vmem>>, vector<1x1x4x4xbf16>
    %106 = vector.shape_cast %105 : vector<1x1x4x4xbf16> to vector<4x4xbf16>
    %cst_124 = arith.constant dense<0.000000e+00> : vector<256x4xf32>
    %107 = tpu.matmul %104, %106, %cst_124 {dimension_numbers = #tpu.dot_dimension_numbers<[1], [0], [0], [1], [0, 0, 1, 1], [], []>} : vector<256x4xbf16>, vector<4x4xbf16>, vector<256x4xf32> -> vector<256x4xf32>
    %108 = arith.addf %101, %107 : vector<256x4xf32>
    %c1_125 = arith.constant 1 : index
    %c1_126 = arith.constant 1 : index
    %c0_127 = arith.constant 0 : index
    %109 = vector.load %arg7[%c1_125, %c1_126, %c0_127] : memref<18x18x4xf32, #tpu.memory_space<vmem>>, vector<16x16x4xf32>
    %110 = vector.shape_cast %109 : vector<16x16x4xf32> to vector<256x4xf32>
    %111 = arith.truncf %110 : vector<256x4xf32> to vector<256x4xbf16>
    %c1_128 = arith.constant 1 : index
    %c1_129 = arith.constant 1 : index
    %c0_130 = arith.constant 0 : index
    %c0_131 = arith.constant 0 : index
    %112 = vector.load %arg4[%c1_128, %c1_129, %c0_130, %c0_131] : memref<3x3x4x4xbf16, #tpu.memory_space<vmem>>, vector<1x1x4x4xbf16>
    %113 = vector.shape_cast %112 : vector<1x1x4x4xbf16> to vector<4x4xbf16>
    %cst_132 = arith.constant dense<0.000000e+00> : vector<256x4xf32>
    %114 = tpu.matmul %111, %113, %cst_132 {dimension_numbers = #tpu.dot_dimension_numbers<[1], [0], [0], [1], [0, 0, 1, 1], [], []>} : vector<256x4xbf16>, vector<4x4xbf16>, vector<256x4xf32> -> vector<256x4xf32>
    %115 = arith.addf %108, %114 : vector<256x4xf32>
    %c1_133 = arith.constant 1 : index
    %c2_134 = arith.constant 2 : index
    %c0_135 = arith.constant 0 : index
    %116 = vector.load %arg7[%c1_133, %c2_134, %c0_135] : memref<18x18x4xf32, #tpu.memory_space<vmem>>, vector<16x16x4xf32>
    %117 = vector.shape_cast %116 : vector<16x16x4xf32> to vector<256x4xf32>
    %118 = arith.truncf %117 : vector<256x4xf32> to vector<256x4xbf16>
    %c1_136 = arith.constant 1 : index
    %c2_137 = arith.constant 2 : index
    %c0_138 = arith.constant 0 : index
    %c0_139 = arith.constant 0 : index
    %119 = vector.load %arg4[%c1_136, %c2_137, %c0_138, %c0_139] : memref<3x3x4x4xbf16, #tpu.memory_space<vmem>>, vector<1x1x4x4xbf16>
    %120 = vector.shape_cast %119 : vector<1x1x4x4xbf16> to vector<4x4xbf16>
    %cst_140 = arith.constant dense<0.000000e+00> : vector<256x4xf32>
    %121 = tpu.matmul %118, %120, %cst_140 {dimension_numbers = #tpu.dot_dimension_numbers<[1], [0], [0], [1], [0, 0, 1, 1], [], []>} : vector<256x4xbf16>, vector<4x4xbf16>, vector<256x4xf32> -> vector<256x4xf32>
    %122 = arith.addf %115, %121 : vector<256x4xf32>
    %c2_141 = arith.constant 2 : index
    %c0_142 = arith.constant 0 : index
    %c0_143 = arith.constant 0 : index
    %123 = vector.load %arg7[%c2_141, %c0_142, %c0_143] : memref<18x18x4xf32, #tpu.memory_space<vmem>>, vector<16x16x4xf32>
    %124 = vector.shape_cast %123 : vector<16x16x4xf32> to vector<256x4xf32>
    %125 = arith.truncf %124 : vector<256x4xf32> to vector<256x4xbf16>
    %c2_144 = arith.constant 2 : index
    %c0_145 = arith.constant 0 : index
    %c0_146 = arith.constant 0 : index
    %c0_147 = arith.constant 0 : index
    %126 = vector.load %arg4[%c2_144, %c0_145, %c0_146, %c0_147] : memref<3x3x4x4xbf16, #tpu.memory_space<vmem>>, vector<1x1x4x4xbf16>
    %127 = vector.shape_cast %126 : vector<1x1x4x4xbf16> to vector<4x4xbf16>
    %cst_148 = arith.constant dense<0.000000e+00> : vector<256x4xf32>
    %128 = tpu.matmul %125, %127, %cst_148 {dimension_numbers = #tpu.dot_dimension_numbers<[1], [0], [0], [1], [0, 0, 1, 1], [], []>} : vector<256x4xbf16>, vector<4x4xbf16>, vector<256x4xf32> -> vector<256x4xf32>
    %129 = arith.addf %122, %128 : vector<256x4xf32>
    %c2_149 = arith.constant 2 : index
    %c1_150 = arith.constant 1 : index
    %c0_151 = arith.constant 0 : index
    %130 = vector.load %arg7[%c2_149, %c1_150, %c0_151] : memref<18x18x4xf32, #tpu.memory_space<vmem>>, vector<16x16x4xf32>
    %131 = vector.shape_cast %130 : vector<16x16x4xf32> to vector<256x4xf32>
    %132 = arith.truncf %131 : vector<256x4xf32> to vector<256x4xbf16>
    %c2_152 = arith.constant 2 : index
    %c1_153 = arith.constant 1 : index
    %c0_154 = arith.constant 0 : index
    %c0_155 = arith.constant 0 : index
    %133 = vector.load %arg4[%c2_152, %c1_153, %c0_154, %c0_155] : memref<3x3x4x4xbf16, #tpu.memory_space<vmem>>, vector<1x1x4x4xbf16>
    %134 = vector.shape_cast %133 : vector<1x1x4x4xbf16> to vector<4x4xbf16>
    %cst_156 = arith.constant dense<0.000000e+00> : vector<256x4xf32>
    %135 = tpu.matmul %132, %134, %cst_156 {dimension_numbers = #tpu.dot_dimension_numbers<[1], [0], [0], [1], [0, 0, 1, 1], [], []>} : vector<256x4xbf16>, vector<4x4xbf16>, vector<256x4xf32> -> vector<256x4xf32>
    %136 = arith.addf %129, %135 : vector<256x4xf32>
    %c2_157 = arith.constant 2 : index
    %c2_158 = arith.constant 2 : index
    %c0_159 = arith.constant 0 : index
    %137 = vector.load %arg7[%c2_157, %c2_158, %c0_159] : memref<18x18x4xf32, #tpu.memory_space<vmem>>, vector<16x16x4xf32>
    %138 = vector.shape_cast %137 : vector<16x16x4xf32> to vector<256x4xf32>
    %139 = arith.truncf %138 : vector<256x4xf32> to vector<256x4xbf16>
    %c2_160 = arith.constant 2 : index
    %c2_161 = arith.constant 2 : index
    %c0_162 = arith.constant 0 : index
    %c0_163 = arith.constant 0 : index
    %140 = vector.load %arg4[%c2_160, %c2_161, %c0_162, %c0_163] : memref<3x3x4x4xbf16, #tpu.memory_space<vmem>>, vector<1x1x4x4xbf16>
    %141 = vector.shape_cast %140 : vector<1x1x4x4xbf16> to vector<4x4xbf16>
    %cst_164 = arith.constant dense<0.000000e+00> : vector<256x4xf32>
    %142 = tpu.matmul %139, %141, %cst_164 {dimension_numbers = #tpu.dot_dimension_numbers<[1], [0], [0], [1], [0, 0, 1, 1], [], []>} : vector<256x4xbf16>, vector<4x4xbf16>, vector<256x4xf32> -> vector<256x4xf32>
    %143 = arith.addf %136, %142 : vector<256x4xf32>
    %cst_165 = arith.constant 0.000000e+00 : f32
    %144 = vector.broadcast %cst_165 : f32 to vector<256x4xf32>
    %145 = arith.maximumf %143, %144 : vector<256x4xf32>
    %146 = vector.shape_cast %145 : vector<256x4xf32> to vector<16x16x4xf32>
    %c0_166 = arith.constant 0 : index
    %c0_167 = arith.constant 0 : index
    %c0_168 = arith.constant 0 : index
    %c0_169 = arith.constant 0 : index
    %147 = vector.load %arg5[%c0_166, %c0_167, %c0_168, %c0_169] : memref<1x16x16x4xf32, #tpu.memory_space<vmem>>, vector<1x16x16x4xf32>
    %148 = vector.shape_cast %147 : vector<1x16x16x4xf32> to vector<16x16x4xf32>
    %149 = vector.shape_cast %146 : vector<16x16x4xf32> to vector<1x16x16x4xf32>
    tpu.vector_store %arg5[%c0_166, %c0_167, %c0_168, %c0_169], %149 {strides = array<i32>} : memref<1x16x16x4xf32, #tpu.memory_space<vmem>>, vector<1x16x16x4xf32>,
    return
  }
  func.func @transform_0(%arg0: i32) -> (i32, i32, i32, i32) {
    %c0_i32 = arith.constant 0 : i32
    %c0_i32_0 = arith.constant 0 : i32
    %c0_i32_1 = arith.constant 0 : i32
    %c0_i32_2 = arith.constant 0 : i32
    return %arg0, %c0_i32, %c0_i32_0, %c0_i32_1 : i32, i32, i32, i32
  }
  func.func @transform_1(%arg0: i32) -> (i32, i32, i32, i32) {
    %c0_i32 = arith.constant 0 : i32
    %c0_i32_0 = arith.constant 0 : i32
    %c0_i32_1 = arith.constant 0 : i32
    %c0_i32_2 = arith.constant 0 : i32
    return %arg0, %c0_i32, %c0_i32_0, %c0_i32_1 : i32, i32, i32, i32
  }
  func.func @transform_2(%arg0: i32) -> (i32, i32, i32, i32) {
    %c0_i32 = arith.constant 0 : i32
    %c0_i32_0 = arith.constant 0 : i32
    %c0_i32_1 = arith.constant 0 : i32
    %c0_i32_2 = arith.constant 0 : i32
    %c0_i32_3 = arith.constant 0 : i32
    return %c0_i32, %c0_i32_0, %c0_i32_1, %c0_i32_2 : i32, i32, i32, i32
  }
  func.func @transform_3(%arg0: i32) -> (i32, i32, i32, i32) {
    %c0_i32 = arith.constant 0 : i32
    %c0_i32_0 = arith.constant 0 : i32
    %c0_i32_1 = arith.constant 0 : i32
    %c0_i32_2 = arith.constant 0 : i32
    %c0_i32_3 = arith.constant 0 : i32
    return %c0_i32, %c0_i32_0, %c0_i32_1, %c0_i32_2 : i32, i32, i32, i32
  }
  func.func @transform_4(%arg0: i32) -> (i32, i32, i32, i32) {
    %c0_i32 = arith.constant 0 : i32
    %c0_i32_0 = arith.constant 0 : i32
    %c0_i32_1 = arith.constant 0 : i32
    %c0_i32_2 = arith.constant 0 : i32
    return %arg0, %c0_i32, %c0_i32_0, %c0_i32_1 : i32, i32, i32, i32
  }
}

</mosaic_0001>

<llo_original>
// kernel: up_forward.2
$region0: #{up_forward.2}
  #allocation0 [shape = 'u32[]', space=smem, size = 0x4, offset = 0x4, fixed_abs, tag = 'smem constant byte address 0x4 - core index']
  #allocation1 [shape = 'u32[144,128]{1,0:T(1,128)}', space=vmem, size = 0x12000, scoped, tag = 'internal scratch']
  %s0 = inlined_call_operand.vmem [shape: bf16[2,8,8,8], index: 0, kind: input, shape index: {}]
  %s1 = inlined_call_operand.vmem [shape: bf16[2,8,8], index: 1, kind: input, shape index: {}]
  %s2 = inlined_call_operand.vmem [shape: f32[2,1,8], index: 2, kind: input, shape index: {}]
  %s3 = inlined_call_operand.vmem [shape: bf16[2,8,2,8,8], index: 3, kind: output, shape index: {}]
  %s4 = sld [smem:[#allocation0]]
  $region45: #{up_forward.2} parent=0
    _
  %s6 = ssub.s32 1, %s4
  %s7 = scalar_select 0, %s6, %s4
  loop: start=0, step=1, limit=4
  $region2: #{up_forward.2} parent=0 // loop_pre_header
    _
  $region3: #{up_forward.2} parent=0 // loop_header
    %s9 = sphi 0, %s13
    %p10 = scmp.ge.s32.totalorder %s9, 4
    %s16 = sphi 0, %s28
    %s17 = sphi 0, %s24
    %s18 = sphi 0, %s16
    %s19 = sphi 0, %s17
    %s20 = sphi 0, %s18
    %s21 = sphi 0, %s19
    %s33 = sphi 0, %s35
    %s36 = sphi 0, %s33
    %s37 = sphi 0, %s36
    %s53 = sphi 0, %s37
    %s57 = sphi 0, %s57
    %s59 = sphi 0, %s57
    %s60 = sphi 0, %s59
    %s74 = sphi 0, %s60
    %s78 = sphi 0, %s78
    %s80 = sphi 0, %s78
    %s81 = sphi 0, %s80
    %s95 = sphi 0, %s81
    %s103 = sphi 0, %s105
    %s106 = sphi 0, %s103
    %s107 = sphi 0, %s106
    %s123 = sphi 0, %s107
  $region4: #{up_forward.2} parent=0 // loop_header_branch
    %12 = sbr.rel (%p10) target = $region8
  $region5: #{up_forward.2} parent=0 // loop_body
    %s14 = ssub.s32 %s9, 1
    %s15 = ssub.s32 %s9, 2
    %s22 = sadd.s32 1, %s17
    %p23 = scmp.ge.s32.totalorder %s22, 1
    %s24 = scalar_select %p23, 0, %s22
    %s25 = sadd.s32 1, %s16
    %s26 = scalar_select %p23, %s25, %s16
    %p27 = scmp.ge.s32.totalorder %s26, 2
    %s28 = scalar_select %p27, 0, %s26
    %s29 = ssub.s32 %s16, %s28
    %s30 = ssub.s32 %s17, %s24
    %s31 = sor.u32 %s29, %s30
    %p32 = scmp.eq.s32.totalorder %s31, 0
    %s34 = sadd.s32 %s33, 1
    %s35 = scalar_select %p32, %s33, %s34
    %p38 = pneg %p32
    %p39 = scmp.eq.s32.totalorder %s9, 1
    %p40 = por %p38, %p39
    %p41 = scmp.ne.s32.totalorder %s33, %s36
    %p42 = scmp.eq.s32.totalorder %s9, 0
    %p43 = por %p41, %p42
    %p44 = scmp.ne.s32.totalorder %s33, %s36
    %p45 = scmp.eq.s32.totalorder %s14, 1
    %p46 = por %p44, %p45
    %p47 = scmp.ne.s32.totalorder %s36, %s37
    %p48 = scmp.eq.s32.totalorder %s14, 0
    %p49 = por %p47, %p48
    %p50 = scmp.ne.s32.totalorder %s36, %s37
    %p51 = scmp.eq.s32.totalorder %s15, 1
    %p52 = por %p50, %p51
    %p54 = scmp.ne.s32.totalorder %s37, %s53
    %p55 = scmp.eq.s32.totalorder %s15, 0
    %p56 = por %p54, %p55
    %s58 = sadd.s32 %s57, 1
    %p61 = scmp.eq.s32.totalorder %s9, 1
    %p62 = scmp.ne.s32.totalorder %s57, %s59
    %p63 = scmp.eq.s32.totalorder %s9, 0
    %p64 = por %p62, %p63
    %p65 = scmp.ne.s32.totalorder %s57, %s59
    %p66 = scmp.eq.s32.totalorder %s14, 1
    %p67 = por %p65, %p66
    %p68 = scmp.ne.s32.totalorder %s59, %s60
    %p69 = scmp.eq.s32.totalorder %s14, 0
    %p70 = por %p68, %p69
    %p71 = scmp.ne.s32.totalorder %s59, %s60
    %p72 = scmp.eq.s32.totalorder %s15, 1
    %p73 = por %p71, %p72
    %p75 = scmp.ne.s32.totalorder %s60, %s74
    %p76 = scmp.eq.s32.totalorder %s15, 0
    %p77 = por %p75, %p76
    %s79 = sadd.s32 %s78, 1
    %p82 = scmp.eq.s32.totalorder %s9, 1
    %p83 = scmp.ne.s32.totalorder %s78, %s80
    %p84 = scmp.eq.s32.totalorder %s9, 0
    %p85 = por %p83, %p84
    %p86 = scmp.ne.s32.totalorder %s78, %s80
    %p87 = scmp.eq.s32.totalorder %s14, 1
    %p88 = por %p86, %p87
    %p89 = scmp.ne.s32.totalorder %s80, %s81
    %p90 = scmp.eq.s32.totalorder %s14, 0
    %p91 = por %p89, %p90
    %p92 = scmp.ne.s32.totalorder %s80, %s81
    %p93 = scmp.eq.s32.totalorder %s15, 1
    %p94 = por %p92, %p93
    %p96 = scmp.ne.s32.totalorder %s81, %s95
    %p97 = scmp.eq.s32.totalorder %s15, 0
    %p98 = por %p96, %p97
    %s99 = ssub.s32 %s16, %s28
    %s100 = ssub.s32 %s17, %s24
    %s101 = sor.u32 %s99, %s100
    %p102 = scmp.eq.s32.totalorder %s101, 0
    %s104 = sadd.s32 %s103, 1
    %s105 = scalar_select %p102, %s103, %s104
    %p108 = pneg %p102
    %p109 = scmp.eq.s32.totalorder %s9, 1
    %p110 = por %p108, %p109
    %p111 = scmp.ne.s32.totalorder %s103, %s106
    %p112 = scmp.eq.s32.totalorder %s9, 0
    %p113 = por %p111, %p112
    %p114 = scmp.ne.s32.totalorder %s103, %s106
    %p115 = scmp.eq.s32.totalorder %s14, 1
    %p116 = por %p114, %p115
    %p117 = scmp.ne.s32.totalorder %s106, %s107
    %p118 = scmp.eq.s32.totalorder %s14, 0
    %p119 = por %p117, %p118
    %p120 = scmp.ne.s32.totalorder %s106, %s107
    %p121 = scmp.eq.s32.totalorder %s15, 1
    %p122 = por %p120, %p121
    %p124 = scmp.ne.s32.totalorder %s107, %s123
    %p125 = scmp.eq.s32.totalorder %s15, 0
    %p126 = por %p124, %p125
    %p127 = scmp.le.s32.totalorder 1, %s9
    %p128 = scmp.lt.s32.totalorder %s9, 3
    %p129 = pnand %p127, %p128
    %p130 = pneg %p129
    // Predicated region
    $region9: #{up_forward.2} parent=5 // pred_check
      _
    $region10: #{up_forward.2} parent=5 // pred_check_branch
      %132 = sbr.rel (%p129) target = $region12
    $region11: #{up_forward.2} parent=5 // pred_region
      %s133 = ssub.s32 %s9, 1
      // Predicated region
      $region13: #{up_forward.2} parent=11 // pred_check
        %p134 = pneg %p70
      $region14: #{up_forward.2} parent=11 // pred_check_branch
        %136 = sbr.rel (%p134) target = $region16
      $region15: #{up_forward.2} parent=11 // pred_region
        _
      $region16: #{up_forward.2} parent=11 // pred_fallthru
        _
      // Predicated region
      $region17: #{up_forward.2} parent=11 // pred_check
        %p137 = pneg %p91
      $region18: #{up_forward.2} parent=11 // pred_check_branch
        %139 = sbr.rel (%p137) target = $region20
      $region19: #{up_forward.2} parent=11 // pred_region
        _
      $region20: #{up_forward.2} parent=11 // pred_fallthru
        _
    $region12: #{up_forward.2} parent=5 // pred_fallthru
      _
    %p140 = scmp.lt.s32.totalorder %s9, 2
    // Predicated region
    $region21: #{up_forward.2} parent=5 // pred_check
      %p141 = pneg %p140
    $region22: #{up_forward.2} parent=5 // pred_check_branch
      %143 = sbr.rel (%p141) target = $region24
    $region23: #{up_forward.2} parent=5 // pred_region
      // Predicated region
      $region25: #{up_forward.2} parent=23 // pred_check
        %p144 = pneg %p43
      $region26: #{up_forward.2} parent=23 // pred_check_branch
        %146 = sbr.rel (%p144) target = $region28
      $region27: #{up_forward.2} parent=23 // pred_region
        %s147 = smul.u32 8, %s17
        %p148 = scmp.lt.s32.totalorder %s16, 1
        %s149 = scalar_select %p148, %s16, 1
        %p150 = scmp.lt.s32.totalorder %s147, 7
        %s151 = scalar_select %p150, %s147, 7
        %s152 = smul.addr %s149, 8
        %s153 = sadd.s32 %s151, %s152
        %s154 = smul.addr %s153, 4
        %s155 = scalar_lea.vmem %s0, %s154
        %s156 = smul.u32 8, %s17
      $region28: #{up_forward.2} parent=23 // pred_fallthru
        _
    $region24: #{up_forward.2} parent=5 // pred_fallthru
      _
    %p157 = scmp.le.s32.totalorder 1, %s9
    %p158 = scmp.lt.s32.totalorder %s9, 3
    %p159 = pnand %p157, %p158
    %p160 = pneg %p159
    // Predicated region
    $region29: #{up_forward.2} parent=5 // pred_check
      _
    $region30: #{up_forward.2} parent=5 // pred_check_branch
      %162 = sbr.rel (%p159) target = $region32
    $region31: #{up_forward.2} parent=5 // pred_region
      %s163 = ssub.s32 %s9, 1
      %s164 = smul.u32 8, %s19
      %p165 = scmp.lt.s32.totalorder %s18, 1
      %s166 = scalar_select %p165, %s18, 1
      %p167 = scmp.lt.s32.totalorder %s164, 7
      %s168 = scalar_select %p167, %s164, 7
      %s169 = smul.addr %s166, 8
      %s170 = sadd.s32 %s168, %s169
      %s171 = smul.addr %s170, 4
      %s172 = scalar_lea.vmem %s0, %s171
      %p173 = pneg %p49
      %p174 = pneg %p46
      %p175 = pneg %p70
      %p176 = pneg %p67
      %p177 = pneg %p91
      %p178 = pneg %p88
      %p179 = pneg %p119
      %p180 = pneg %p116
      %s181 = smul.u32 8, %s19
      %p182 = scmp.lt.s32.totalorder %s18, 1
      %s183 = scalar_select %p182, %s18, 1
      %p184 = scmp.lt.s32.totalorder %s181, 7
      %s185 = scalar_select %p184, %s181, 7
      %s186 = smul.addr %s185, 2
      %s187 = smul.addr %s183, 16
      %s188 = sadd.s32 %s186, %s187
      %s189 = smul.addr %s188, 4
      %s190 = scalar_lea.vmem %s3, %s189
      %s191 = smul.u32 8, %s19
      %p192 = scmp.lt.s32.totalorder %s18, 1
      %s193 = scalar_select %p192, %s18, 1
      %p194 = scmp.lt.s32.totalorder %s191, 7
      %s195 = scalar_select %p194, %s191, 7
      %s196 = smul.addr %s193, 8
      %s197 = sadd.s32 %s195, %s196
      %s198 = smul.addr %s197, 4
      %s199 = scalar_lea.vmem %s0, %s198
      %s200 = smul.u32 8, %s19
      %s201 = smul.u32 8, %s19
      %p202 = scmp.lt.s32.totalorder %s18, 1
      %s203 = scalar_select %p202, %s18, 1
      %p204 = scmp.lt.s32.totalorder %s201, 7
      %s205 = scalar_select %p204, %s201, 7
      %s206 = smul.addr %s205, 2
      %s207 = smul.addr %s203, 16
      %s208 = sadd.s32 %s206, %s207
      %s209 = smul.addr %s208, 4
      %s210 = scalar_lea.vmem %s3, %s209
      %s211 = smul.u32 8, %s19
      %v213 = vld [vmem:[%s199] sm:$0xf]
      %v214 = vld [vmem:[%s199 + $0x4] sm:$0xf]
      %v215 = vld [vmem:[%s199 + $0x8] sm:$0xf]
      %v216 = vld [vmem:[%s199 + $0xc] sm:$0xf]
      %v217 = vld [vmem:[%s199 + $0x10] sm:$0xf]
      %v218 = vld [vmem:[%s199 + $0x14] sm:$0xf]
      %v219 = vld [vmem:[%s199 + $0x18] sm:$0xf]
      %v220 = vld [vmem:[%s199 + $0x1c] sm:$0xf]
      %v221 = vld [vmem:[%s1] sm:$0xf]
      %v222 = vld [vmem:[%s2] sm:$0x1]
      %v224 = vlaneseq
      %v225 = vshrl.u32 %v224, 7
      %v226 = vsub.s32 0, %v225
      %v227 = vrot.slane %v222, %v226
      %v237 = vunpack.c.l.b16 %v213
      %v238 = vunpack.c.l.b16 %v214
      %v239 = vunpack.c.l.b16 %v215
      %v240 = vunpack.c.l.b16 %v216
      %v241 = vunpack.c.l.b16 %v217
      %v242 = vunpack.c.l.b16 %v218
      %v243 = vunpack.c.l.b16 %v219
      %v244 = vunpack.c.l.b16 %v220
      %v245 = vpack.c.b16 %v238, %v237
      %v246 = vpack.c.b16 %v240, %v239
      %v247 = vpack.c.b16 %v242, %v241
      %v248 = vpack.c.b16 %v244, %v243
      %vm249 = vcmask 64512
      %v251 = vsel %vm249, %v245, 0
      %v254 = vsel %vm249, %v246, 0
      %v257 = vsel %vm249, %v247, 0
      %v260 = vsel %vm249, %v248, 0
      %vm262 = vcmask 1043456
      %v264 = vsel %vm262, %v221, 0
      %266 = vmatprep.subr.bf16.mxu0 0
      %267 = vmatpush1.bf16.msra.mxu0 %v264
      %268 = vmatprep.subr.bf16.mxu0 0
      %269 = vmatpush1.bf16.msra.mxu0 0
      %270 = vmatprep.subr.bf16.mxu0 0
      %271 = vmatpush1.bf16.msra.mxu0 0
      %272 = vmatprep.subr.bf16.mxu0 0
      %273 = vmatpush1.bf16.msra.mxu0 0
      %274 = vmatprep.subr.bf16.mxu0 0
      %275 = vmatpush1.bf16.msra.mxu0 0
      %276 = vmatprep.subr.bf16.mxu0 0
      %277 = vmatpush1.bf16.msra.mxu0 0
      %278 = vmatprep.subr.bf16.mxu0 0
      %279 = vmatpush1.bf16.msra.mxu0 0
      %280 = vmatprep.subr.bf16.mxu0 0
      %281 = vmatpush1.bf16.msra.mxu0 0
      %282 = vmatprep.subr.bf16.mxu0 0
      %283 = vmatpush1.bf16.msra.mxu0 0
      %284 = vmatprep.subr.bf16.mxu0 0
      %285 = vmatpush1.bf16.msra.mxu0 0
      %286 = vmatprep.subr.bf16.mxu0 0
      %287 = vmatpush1.bf16.msra.mxu0 0
      %288 = vmatprep.subr.bf16.mxu0 0
      %289 = vmatpush1.bf16.msra.mxu0 0
      %290 = vmatprep.subr.bf16.mxu0 0
      %291 = vmatpush1.bf16.msra.mxu0 0
      %292 = vmatprep.subr.bf16.mxu0 0
      %293 = vmatpush1.bf16.msra.mxu0 0
      %294 = vmatprep.subr.bf16.mxu0 0
      %295 = vmatpush1.bf16.msra.mxu0 0
      %296 = vmatprep.subr.bf16.mxu0 0
      %297 = vmatpush1.bf16.msra.mxu0 0
      %298 = vmatprep.mubr.bf16.mxu0 0
      %299 = vmatmul.mubr.bf16.gmra.mrb[0].mxu0 %v251
      %v300 = vpop.f32.mrb[0].mxu0
      %v301 = vadd.f32 %v227, %v300
      %v302 = vpop.f32.mrb[0].mxu0
      %v303 = vpop.f32.mrb[0].mxu0
      %v304 = vadd.f32 %v227, %v303
      %v305 = vpop.f32.mrb[0].mxu0
      %306 = vmatprep.mubr.bf16.mxu0 0
      %307 = vmatmul.mubr.bf16.gmra.mrb[0].mxu0 %v254
      %v308 = vpop.f32.mrb[0].mxu0
      %v309 = vadd.f32 %v227, %v308
      %v310 = vpop.f32.mrb[0].mxu0
      %v311 = vpop.f32.mrb[0].mxu0
      %v312 = vadd.f32 %v227, %v311
      %v313 = vpop.f32.mrb[0].mxu0
      %314 = vmatprep.mubr.bf16.mxu0 0
      %315 = vmatmul.mubr.bf16.gmra.mrb[0].mxu0 %v257
      %v316 = vpop.f32.mrb[0].mxu0
      %v317 = vadd.f32 %v227, %v316
      %v318 = vpop.f32.mrb[0].mxu0
      %v319 = vpop.f32.mrb[0].mxu0
      %v320 = vadd.f32 %v227, %v319
      %v321 = vpop.f32.mrb[0].mxu0
      %322 = vmatprep.mubr.bf16.mxu0 0
      %323 = vmatmul.mubr.bf16.gmra.mrb[0].mxu0 %v260
      %v324 = vpop.f32.mrb[0].mxu0
      %v325 = vadd.f32 %v227, %v324
      %v326 = vpop.f32.mrb[0].mxu0
      %v327 = vpop.f32.mrb[0].mxu0
      %v328 = vadd.f32 %v227, %v327
      %v329 = vpop.f32.mrb[0].mxu0
      %330 = vdwg.mxu0
      %v331 = vpack.c.bf16 %v301, %v301
      %v332 = vpack.c.bf16 %v304, %v304
      %v333 = vpack.c.bf16 %v309, %v309
      %v334 = vpack.c.bf16 %v312, %v312
      %v335 = vpack.c.bf16 %v317, %v317
      %v336 = vpack.c.bf16 %v320, %v320
      %v337 = vpack.c.bf16 %v325, %v325
      %v338 = vpack.c.bf16 %v328, %v328
      %vm339 = vcmask 60416
      %340 = vst.msk [vmem:[%s210] sm:$0xf] %vm339, %v331
      %341 = vst.msk [vmem:[%s210 + $0x8] sm:$0xf] %vm339, %v332
      %342 = vst.msk [vmem:[%s210 + $0x10] sm:$0xf] %vm339, %v333
      %343 = vst.msk [vmem:[%s210 + $0x18] sm:$0xf] %vm339, %v334
      %344 = vst.msk [vmem:[%s210 + $0x20] sm:$0xf] %vm339, %v335
      %345 = vst.msk [vmem:[%s210 + $0x28] sm:$0xf] %vm339, %v336
      %346 = vst.msk [vmem:[%s210 + $0x30] sm:$0xf] %vm339, %v337
      %347 = vst.msk [vmem:[%s210 + $0x38] sm:$0xf] %vm339, %v338
      %s348 = scalar_lea.vmem %s1, 4
      %v349 = vld [vmem:[%s348] sm:$0xf]
      %s350 = scalar_lea.vmem %s2, 1
      %v351 = vld [vmem:[%s350] sm:$0x1]
      %v353 = vlaneseq
      %v354 = vshrl.u32 %v353, 7
      %v355 = vsub.s32 0, %v354
      %v356 = vrot.slane %v351, %v355
      %v359 = vsel %vm262, %v349, 0
      %361 = vmatprep.subr.bf16.mxu0 0
      %362 = vmatpush1.bf16.msra.mxu0 %v359
      %363 = vmatprep.subr.bf16.mxu0 0
      %364 = vmatpush1.bf16.msra.mxu0 0
      %365 = vmatprep.subr.bf16.mxu0 0
      %366 = vmatpush1.bf16.msra.mxu0 0
      %367 = vmatprep.subr.bf16.mxu0 0
      %368 = vmatpush1.bf16.msra.mxu0 0
      %369 = vmatprep.subr.bf16.mxu0 0
      %370 = vmatpush1.bf16.msra.mxu0 0
      %371 = vmatprep.subr.bf16.mxu0 0
      %372 = vmatpush1.bf16.msra.mxu0 0
      %373 = vmatprep.subr.bf16.mxu0 0
      %374 = vmatpush1.bf16.msra.mxu0 0
      %375 = vmatprep.subr.bf16.mxu0 0
      %376 = vmatpush1.bf16.msra.mxu0 0
      %377 = vmatprep.subr.bf16.mxu0 0
      %378 = vmatpush1.bf16.msra.mxu0 0
      %379 = vmatprep.subr.bf16.mxu0 0
      %380 = vmatpush1.bf16.msra.mxu0 0
      %381 = vmatprep.subr.bf16.mxu0 0
      %382 = vmatpush1.bf16.msra.mxu0 0
      %383 = vmatprep.subr.bf16.mxu0 0
      %384 = vmatpush1.bf16.msra.mxu0 0
      %385 = vmatprep.subr.bf16.mxu0 0
      %386 = vmatpush1.bf16.msra.mxu0 0
      %387 = vmatprep.subr.bf16.mxu0 0
      %388 = vmatpush1.bf16.msra.mxu0 0
      %389 = vmatprep.subr.bf16.mxu0 0
      %390 = vmatpush1.bf16.msra.mxu0 0
      %391 = vmatprep.subr.bf16.mxu0 0
      %392 = vmatpush1.bf16.msra.mxu0 0
      %393 = vmatprep.mubr.bf16.mxu0 0
      %394 = vmatmul.mubr.bf16.gmra.mrb[0].mxu0 %v251
      %v395 = vpop.f32.mrb[0].mxu0
      %v396 = vadd.f32 %v356, %v395
      %v397 = vpop.f32.mrb[0].mxu0
      %v398 = vpop.f32.mrb[0].mxu0
      %v399 = vadd.f32 %v356, %v398
      %v400 = vpop.f32.mrb[0].mxu0
      %401 = vmatprep.mubr.bf16.mxu0 0
      %402 = vmatmul.mubr.bf16.gmra.mrb[0].mxu0 %v254
      %v403 = vpop.f32.mrb[0].mxu0
      %v404 = vadd.f32 %v356, %v403
      %v405 = vpop.f32.mrb[0].mxu0
      %v406 = vpop.f32.mrb[0].mxu0
      %v407 = vadd.f32 %v356, %v406
      %v408 = vpop.f32.mrb[0].mxu0
      %409 = vmatprep.mubr.bf16.mxu0 0
      %410 = vmatmul.mubr.bf16.gmra.mrb[0].mxu0 %v257
      %v411 = vpop.f32.mrb[0].mxu0
      %v412 = vadd.f32 %v356, %v411
      %v413 = vpop.f32.mrb[0].mxu0
      %v414 = vpop.f32.mrb[0].mxu0
      %v415 = vadd.f32 %v356, %v414
      %v416 = vpop.f32.mrb[0].mxu0
      %417 = vmatprep.mubr.bf16.mxu0 0
      %418 = vmatmul.mubr.bf16.gmra.mrb[0].mxu0 %v260
      %v419 = vpop.f32.mrb[0].mxu0
      %v420 = vadd.f32 %v356, %v419
      %v421 = vpop.f32.mrb[0].mxu0
      %v422 = vpop.f32.mrb[0].mxu0
      %v423 = vadd.f32 %v356, %v422
      %v424 = vpop.f32.mrb[0].mxu0
      %425 = vdwg.mxu0
      %v426 = vpack.c.bf16 %v396, %v396
      %v427 = vpack.c.bf16 %v399, %v399
      %v428 = vpack.c.bf16 %v404, %v404
      %v429 = vpack.c.bf16 %v407, %v407
      %v430 = vpack.c.bf16 %v412, %v412
      %v431 = vpack.c.bf16 %v415, %v415
      %v432 = vpack.c.bf16 %v420, %v420
      %v433 = vpack.c.bf16 %v423, %v423
      %s434 = scalar_lea.vmem %s210, 4
      %435 = vst.msk [vmem:[%s434] sm:$0xf] %vm339, %v426
      %436 = vst.msk [vmem:[%s434 + $0x8] sm:$0xf] %vm339, %v427
      %437 = vst.msk [vmem:[%s434 + $0x10] sm:$0xf] %vm339, %v428
      %438 = vst.msk [vmem:[%s434 + $0x18] sm:$0xf] %vm339, %v429
      %439 = vst.msk [vmem:[%s434 + $0x20] sm:$0xf] %vm339, %v430
      %440 = vst.msk [vmem:[%s434 + $0x28] sm:$0xf] %vm339, %v431
      %441 = vst.msk [vmem:[%s434 + $0x30] sm:$0xf] %vm339, %v432
      %442 = vst.msk [vmem:[%s434 + $0x38] sm:$0xf] %vm339, %v433
      %s443 = smul.u32 8, %s19
      %p444 = scmp.lt.s32.totalorder %s18, 1
      %s445 = scalar_select %p444, %s18, 1
      %p446 = scmp.lt.s32.totalorder %s443, 7
      %s447 = scalar_select %p446, %s443, 7
      %s448 = smul.addr %s447, 2
      %s449 = smul.addr %s445, 16
      %s450 = sadd.s32 %s448, %s449
      %s451 = smul.addr %s450, 4
      %s452 = scalar_lea.vmem %s3, %s451
      // Predicated region
      $region33: #{up_forward.2} parent=31 // pred_check
        %p453 = pneg %p116
      $region34: #{up_forward.2} parent=31 // pred_check_branch
        %455 = sbr.rel (%p453) target = $region36
      $region35: #{up_forward.2} parent=31 // pred_region
        %s456 = smul.u32 8, %s19
      $region36: #{up_forward.2} parent=31 // pred_fallthru
        _
    $region32: #{up_forward.2} parent=5 // pred_fallthru
      _
    %p457 = scmp.le.s32.totalorder 2, %s9
    // Predicated region
    $region37: #{up_forward.2} parent=5 // pred_check
      %p458 = pneg %p457
    $region38: #{up_forward.2} parent=5 // pred_check_branch
      %460 = sbr.rel (%p458) target = $region40
    $region39: #{up_forward.2} parent=5 // pred_region
      %s461 = ssub.s32 %s9, 2
      // Predicated region
      $region41: #{up_forward.2} parent=39 // pred_check
        %p462 = pneg %p122
      $region42: #{up_forward.2} parent=39 // pred_check_branch
        %464 = sbr.rel (%p462) target = $region44
      $region43: #{up_forward.2} parent=39 // pred_region
        %s465 = smul.u32 8, %s21
        %p466 = scmp.lt.s32.totalorder %s20, 1
        %s467 = scalar_select %p466, %s20, 1
        %p468 = scmp.lt.s32.totalorder %s465, 7
        %s469 = scalar_select %p468, %s465, 7
        %s470 = smul.addr %s469, 2
        %s471 = smul.addr %s467, 16
        %s472 = sadd.s32 %s470, %s471
        %s473 = smul.addr %s472, 4
        %s474 = scalar_lea.vmem %s3, %s473
      $region44: #{up_forward.2} parent=39 // pred_fallthru
        _
    $region40: #{up_forward.2} parent=5 // pred_fallthru
      _
  $region6: #{up_forward.2} parent=0 // loop_footer
    %s13 = sadd.s32 1, %s9
  $region7: #{up_forward.2} parent=0 // loop_footer_branch
    %8 = sbr.rel target = $region3
  $region8: #{up_forward.2} parent=0 // loop_exit
    _

// kernel: up_forward.3
$region0: #{up_forward.3}
  #allocation0 [shape = 'u32[]', space=smem, size = 0x4, offset = 0x4, fixed_abs, tag = 'smem constant byte address 0x4 - core index']
  #allocation1 [shape = 'u32[144,128]{1,0:T(1,128)}', space=vmem, size = 0x12000, scoped, tag = 'internal scratch']
  #allocation2 [shape = 'f32[18,18,8]{2,1,0:T(8,128)}', space=vmem, size = 0x36000, scoped, tag = 'scratch operand']
  #allocation3 [shape = 'f32[18,18,4]{2,1,0:T(8,128)}', space=vmem, size = 0x36000, scoped, tag = 'scratch operand']
  %s0 = inlined_call_operand.vmem [shape: bf16[2,16,16,4], index: 0, kind: input, shape index: {}]
  %s1 = inlined_call_operand.vmem [shape: bf16[2,16,16,4], index: 1, kind: input, shape index: {}]
  %s2 = inlined_call_operand.vmem [shape: bf16[3,3,8,4], index: 2, kind: input, shape index: {}]
  %s3 = inlined_call_operand.vmem [shape: bf16[3,3,4,4], index: 3, kind: input, shape index: {}]
  %s4 = inlined_call_operand.vmem [shape: f32[2,16,16,4], index: 4, kind: output, shape index: {}]
  %s5 = sld [smem:[#allocation0]]
  $region49: #{up_forward.3} parent=0
    _
  %s7 = ssub.s32 1, %s5
  %s8 = scalar_select 0, %s7, %s5
  loop: start=0, step=1, limit=4
  $region2: #{up_forward.3} parent=0 // loop_pre_header
    _
  $region3: #{up_forward.3} parent=0 // loop_header
    %s10 = sphi 0, %s14
    %p11 = scmp.ge.s32.totalorder %s10, 4
    %s20 = sphi 0, %s22
    %s23 = sphi 0, %s20
    %s24 = sphi 0, %s23
    %s40 = sphi 0, %s24
    %s46 = sphi 0, %s48
    %s49 = sphi 0, %s46
    %s50 = sphi 0, %s49
    %s66 = sphi 0, %s50
    %s70 = sphi 0, %s70
    %s72 = sphi 0, %s70
    %s73 = sphi 0, %s72
    %s87 = sphi 0, %s73
    %s91 = sphi 0, %s91
    %s93 = sphi 0, %s91
    %s94 = sphi 0, %s93
    %s108 = sphi 0, %s94
    %s114 = sphi 0, %s116
    %s117 = sphi 0, %s114
    %s118 = sphi 0, %s117
    %s134 = sphi 0, %s118
  $region4: #{up_forward.3} parent=0 // loop_header_branch
    %13 = sbr.rel (%p11) target = $region8
  $region5: #{up_forward.3} parent=0 // loop_body
    %s15 = ssub.s32 %s10, 1
    %s16 = ssub.s32 %s10, 2
    %s17 = sadd.s32 %s10, 1
    %s18 = ssub.s32 %s10, %s17
    %p19 = scmp.eq.s32.totalorder %s18, 0
    %s21 = sadd.s32 %s20, 1
    %s22 = scalar_select %p19, %s20, %s21
    %p25 = pneg %p19
    %p26 = scmp.eq.s32.totalorder %s10, 1
    %p27 = por %p25, %p26
    %p28 = scmp.ne.s32.totalorder %s20, %s23
    %p29 = scmp.eq.s32.totalorder %s10, 0
    %p30 = por %p28, %p29
    %p31 = scmp.ne.s32.totalorder %s20, %s23
    %p32 = scmp.eq.s32.totalorder %s15, 1
    %p33 = por %p31, %p32
    %p34 = scmp.ne.s32.totalorder %s23, %s24
    %p35 = scmp.eq.s32.totalorder %s15, 0
    %p36 = por %p34, %p35
    %p37 = scmp.ne.s32.totalorder %s23, %s24
    %p38 = scmp.eq.s32.totalorder %s16, 1
    %p39 = por %p37, %p38
    %p41 = scmp.ne.s32.totalorder %s24, %s40
    %p42 = scmp.eq.s32.totalorder %s16, 0
    %p43 = por %p41, %p42
    %s44 = ssub.s32 %s10, %s17
    %p45 = scmp.eq.s32.totalorder %s44, 0
    %s47 = sadd.s32 %s46, 1
    %s48 = scalar_select %p45, %s46, %s47
    %p51 = pneg %p45
    %p52 = scmp.eq.s32.totalorder %s10, 1
    %p53 = por %p51, %p52
    %p54 = scmp.ne.s32.totalorder %s46, %s49
    %p55 = scmp.eq.s32.totalorder %s10, 0
    %p56 = por %p54, %p55
    %p57 = scmp.ne.s32.totalorder %s46, %s49
    %p58 = scmp.eq.s32.totalorder %s15, 1
    %p59 = por %p57, %p58
    %p60 = scmp.ne.s32.totalorder %s49, %s50
    %p61 = scmp.eq.s32.totalorder %s15, 0
    %p62 = por %p60, %p61
    %p63 = scmp.ne.s32.totalorder %s49, %s50
    %p64 = scmp.eq.s32.totalorder %s16, 1
    %p65 = por %p63, %p64
    %p67 = scmp.ne.s32.totalorder %s50, %s66
    %p68 = scmp.eq.s32.totalorder %s16, 0
    %p69 = por %p67, %p68
    %s71 = sadd.s32 %s70, 1
    %p74 = scmp.eq.s32.totalorder %s10, 1
    %p75 = scmp.ne.s32.totalorder %s70, %s72
    %p76 = scmp.eq.s32.totalorder %s10, 0
    %p77 = por %p75, %p76
    %p78 = scmp.ne.s32.totalorder %s70, %s72
    %p79 = scmp.eq.s32.totalorder %s15, 1
    %p80 = por %p78, %p79
    %p81 = scmp.ne.s32.totalorder %s72, %s73
    %p82 = scmp.eq.s32.totalorder %s15, 0
    %p83 = por %p81, %p82
    %p84 = scmp.ne.s32.totalorder %s72, %s73
    %p85 = scmp.eq.s32.totalorder %s16, 1
    %p86 = por %p84, %p85
    %p88 = scmp.ne.s32.totalorder %s73, %s87
    %p89 = scmp.eq.s32.totalorder %s16, 0
    %p90 = por %p88, %p89
    %s92 = sadd.s32 %s91, 1
    %p95 = scmp.eq.s32.totalorder %s10, 1
    %p96 = scmp.ne.s32.totalorder %s91, %s93
    %p97 = scmp.eq.s32.totalorder %s10, 0
    %p98 = por %p96, %p97
    %p99 = scmp.ne.s32.totalorder %s91, %s93
    %p100 = scmp.eq.s32.totalorder %s15, 1
    %p101 = por %p99, %p100
    %p102 = scmp.ne.s32.totalorder %s93, %s94
    %p103 = scmp.eq.s32.totalorder %s15, 0
    %p104 = por %p102, %p103
    %p105 = scmp.ne.s32.totalorder %s93, %s94
    %p106 = scmp.eq.s32.totalorder %s16, 1
    %p107 = por %p105, %p106
    %p109 = scmp.ne.s32.totalorder %s94, %s108
    %p110 = scmp.eq.s32.totalorder %s16, 0
    %p111 = por %p109, %p110
    %s112 = ssub.s32 %s10, %s17
    %p113 = scmp.eq.s32.totalorder %s112, 0
    %s115 = sadd.s32 %s114, 1
    %s116 = scalar_select %p113, %s114, %s115
    %p119 = pneg %p113
    %p120 = scmp.eq.s32.totalorder %s10, 1
    %p121 = por %p119, %p120
    %p122 = scmp.ne.s32.totalorder %s114, %s117
    %p123 = scmp.eq.s32.totalorder %s10, 0
    %p124 = por %p122, %p123
    %p125 = scmp.ne.s32.totalorder %s114, %s117
    %p126 = scmp.eq.s32.totalorder %s15, 1
    %p127 = por %p125, %p126
    %p128 = scmp.ne.s32.totalorder %s117, %s118
    %p129 = scmp.eq.s32.totalorder %s15, 0
    %p130 = por %p128, %p129
    %p131 = scmp.ne.s32.totalorder %s117, %s118
    %p132 = scmp.eq.s32.totalorder %s16, 1
    %p133 = por %p131, %p132
    %p135 = scmp.ne.s32.totalorder %s118, %s134
    %p136 = scmp.eq.s32.totalorder %s16, 0
    %p137 = por %p135, %p136
    %p138 = scmp.le.s32.totalorder 1, %s10
    %p139 = scmp.lt.s32.totalorder %s10, 3
    %p140 = pnand %p138, %p139
    %p141 = pneg %p140
    // Predicated region
    $region9: #{up_forward.3} parent=5 // pred_check
      _
    $region10: #{up_forward.3} parent=5 // pred_check_branch
      %143 = sbr.rel (%p140) target = $region12
    $region11: #{up_forward.3} parent=5 // pred_region
      %s144 = ssub.s32 %s10, 1
      // Predicated region
      $region13: #{up_forward.3} parent=11 // pred_check
        %p145 = pneg %p83
      $region14: #{up_forward.3} parent=11 // pred_check_branch
        %147 = sbr.rel (%p145) target = $region16
      $region15: #{up_forward.3} parent=11 // pred_region
        _
      $region16: #{up_forward.3} parent=11 // pred_fallthru
        _
      // Predicated region
      $region17: #{up_forward.3} parent=11 // pred_check
        %p148 = pneg %p104
      $region18: #{up_forward.3} parent=11 // pred_check_branch
        %150 = sbr.rel (%p148) target = $region20
      $region19: #{up_forward.3} parent=11 // pred_region
        _
      $region20: #{up_forward.3} parent=11 // pred_fallthru
        _
    $region12: #{up_forward.3} parent=5 // pred_fallthru
      _
    %p151 = scmp.lt.s32.totalorder %s10, 2
    // Predicated region
    $region21: #{up_forward.3} parent=5 // pred_check
      %p152 = pneg %p151
    $region22: #{up_forward.3} parent=5 // pred_check_branch
      %154 = sbr.rel (%p152) target = $region24
    $region23: #{up_forward.3} parent=5 // pred_region
      // Predicated region
      $region25: #{up_forward.3} parent=23 // pred_check
        %p155 = pneg %p30
      $region26: #{up_forward.3} parent=23 // pred_check_branch
        %157 = sbr.rel (%p155) target = $region28
      $region27: #{up_forward.3} parent=23 // pred_region
        %p158 = scmp.lt.s32.totalorder %s10, 1
        %s159 = scalar_select %p158, %s10, 1
        %s160 = smul.addr %s159, 32
        %s161 = smul.addr %s160, 4
        %s162 = scalar_lea.vmem %s0, %s161
      $region28: #{up_forward.3} parent=23 // pred_fallthru
        _
      // Predicated region
      $region29: #{up_forward.3} parent=23 // pred_check
        %p163 = pneg %p56
      $region30: #{up_forward.3} parent=23 // pred_check_branch
        %165 = sbr.rel (%p163) target = $region32
      $region31: #{up_forward.3} parent=23 // pred_region
        %p166 = scmp.lt.s32.totalorder %s10, 1
        %s167 = scalar_select %p166, %s10, 1
        %s168 = smul.addr %s167, 32
        %s169 = smul.addr %s168, 4
        %s170 = scalar_lea.vmem %s1, %s169
      $region32: #{up_forward.3} parent=23 // pred_fallthru
        _
    $region24: #{up_forward.3} parent=5 // pred_fallthru
      _
    %p171 = scmp.le.s32.totalorder 1, %s10
    %p172 = scmp.lt.s32.totalorder %s10, 3
    %p173 = pnand %p171, %p172
    %p174 = pneg %p173
    // Predicated region
    $region33: #{up_forward.3} parent=5 // pred_check
      _
    $region34: #{up_forward.3} parent=5 // pred_check_branch
      %176 = sbr.rel (%p173) target = $region36
    $region35: #{up_forward.3} parent=5 // pred_region
      %s177 = ssub.s32 %s10, 1
      %p178 = scmp.lt.s32.totalorder %s15, 1
      %s179 = scalar_select %p178, %s15, 1
      %s180 = smul.addr %s179, 32
      %s181 = smul.addr %s180, 4
      %s182 = scalar_lea.vmem %s0, %s181
      %p183 = pneg %p36
      %p184 = pneg %p33
      %p185 = scmp.lt.s32.totalorder %s15, 1
      %s186 = scalar_select %p185, %s15, 1
      %s187 = smul.addr %s186, 32
      %s188 = smul.addr %s187, 4
      %s189 = scalar_lea.vmem %s1, %s188
      %p190 = pneg %p62
      %p191 = pneg %p59
      %p192 = pneg %p83
      %p193 = pneg %p80
      %p194 = pneg %p104
      %p195 = pneg %p101
      %p196 = pneg %p130
      %p197 = pneg %p127
      %p198 = scmp.lt.s32.totalorder %s15, 1
      %s199 = scalar_select %p198, %s15, 1
      %s200 = smul.addr %s199, 32
      %s201 = smul.addr %s200, 8
      %s202 = scalar_lea.vmem %s4, %s201
      %p203 = scmp.lt.s32.totalorder %s15, 1
      %s204 = scalar_select %p203, %s15, 1
      %s205 = smul.addr %s204, 32
      %s206 = smul.addr %s205, 4
      %s207 = scalar_lea.vmem %s0, %s206
      %p208 = scmp.lt.s32.totalorder %s15, 1
      %s209 = scalar_select %p208, %s15, 1
      %s210 = smul.addr %s209, 32
      %s211 = smul.addr %s210, 4
      %s212 = scalar_lea.vmem %s1, %s211
      %p213 = scmp.lt.s32.totalorder %s15, 1
      %s214 = scalar_select %p213, %s15, 1
      %s215 = smul.addr %s214, 32
      %s216 = smul.addr %s215, 8
      %s217 = scalar_lea.vmem %s4, %s216
      %vm219 = vcmask 64512
      %220 = vst.msk [vmem:[#allocation2] sm:$0xff] %vm219, 0.0
      %221 = vst.msk [vmem:[#allocation2 + $0x8] sm:$0xff] %vm219, 0.0
      %vm222 = vcmask 58368
      %223 = vst.msk [vmem:[#allocation2 + $0x10] sm:$0x3] %vm222, 0.0
      %224 = vst.msk [vmem:[#allocation2 + $0x18] sm:$0xff] %vm219, 0.0
      %225 = vst.msk [vmem:[#allocation2 + $0x20] sm:$0xff] %vm219, 0.0
      %226 = vst.msk [vmem:[#allocation2 + $0x28] sm:$0x3] %vm222, 0.0
      %227 = vst.msk [vmem:[#allocation2 + $0x30] sm:$0xff] %vm219, 0.0
      %228 = vst.msk [vmem:[#allocation2 + $0x38] sm:$0xff] %vm219, 0.0
      %229 = vst.msk [vmem:[#allocation2 + $0x40] sm:$0x3] %vm222, 0.0
      %230 = vst.msk [vmem:[#allocation2 + $0x48] sm:$0xff] %vm219, 0.0
      %231 = vst.msk [vmem:[#allocation2 + $0x50] sm:$0xff] %vm219, 0.0
      %232 = vst.msk [vmem:[#allocation2 + $0x58] sm:$0x3] %vm222, 0.0
      %233 = vst.msk [vmem:[#allocation2 + $0x60] sm:$0xff] %vm219, 0.0
      %234 = vst.msk [vmem:[#allocation2 + $0x68] sm:$0xff] %vm219, 0.0
      %235 = vst.msk [vmem:[#allocation2 + $0x70] sm:$0x3] %vm222, 0.0
      %236 = vst.msk [vmem:[#allocation2 + $0x78] sm:$0xff] %vm219, 0.0
      %237 = vst.msk [vmem:[#allocation2 + $0x80] sm:$0xff] %vm219, 0.0
      %238 = vst.msk [vmem:[#allocation2 + $0x88] sm:$0x3] %vm222, 0.0
      %239 = vst.msk [vmem:[#allocation2 + $0x90] sm:$0xff] %vm219, 0.0
      %240 = vst.msk [vmem:[#allocation2 + $0x98] sm:$0xff] %vm219, 0.0
      %241 = vst.msk [vmem:[#allocation2 + $0xa0] sm:$0x3] %vm222, 0.0
      %242 = vst.msk [vmem:[#allocation2 + $0xa8] sm:$0xff] %vm219, 0.0
      %243 = vst.msk [vmem:[#allocation2 + $0xb0] sm:$0xff] %vm219, 0.0
      %244 = vst.msk [vmem:[#allocation2 + $0xb8] sm:$0x3] %vm222, 0.0
      %245 = vst.msk [vmem:[#allocation2 + $0xc0] sm:$0xff] %vm219, 0.0
      %246 = vst.msk [vmem:[#allocation2 + $0xc8] sm:$0xff] %vm219, 0.0
      %247 = vst.msk [vmem:[#allocation2 + $0xd0] sm:$0x3] %vm222, 0.0
      %248 = vst.msk [vmem:[#allocation2 + $0xd8] sm:$0xff] %vm219, 0.0
      %249 = vst.msk [vmem:[#allocation2 + $0xe0] sm:$0xff] %vm219, 0.0
      %250 = vst.msk [vmem:[#allocation2 + $0xe8] sm:$0x3] %vm222, 0.0
      %251 = vst.msk [vmem:[#allocation2 + $0xf0] sm:$0xff] %vm219, 0.0
      %252 = vst.msk [vmem:[#allocation2 + $0xf8] sm:$0xff] %vm219, 0.0
      %253 = vst.msk [vmem:[#allocation2 + $0x100] sm:$0x3] %vm222, 0.0
      %254 = vst.msk [vmem:[#allocation2 + $0x108] sm:$0xff] %vm219, 0.0
      %255 = vst.msk [vmem:[#allocation2 + $0x110] sm:$0xff] %vm219, 0.0
      %256 = vst.msk [vmem:[#allocation2 + $0x118] sm:$0x3] %vm222, 0.0
      %257 = vst.msk [vmem:[#allocation2 + $0x120] sm:$0xff] %vm219, 0.0
      %258 = vst.msk [vmem:[#allocation2 + $0x128] sm:$0xff] %vm219, 0.0
      %259 = vst.msk [vmem:[#allocation2 + $0x130] sm:$0x3] %vm222, 0.0
      %260 = vst.msk [vmem:[#allocation2 + $0x138] sm:$0xff] %vm219, 0.0
      %261 = vst.msk [vmem:[#allocation2 + $0x140] sm:$0xff] %vm219, 0.0
      %262 = vst.msk [vmem:[#allocation2 + $0x148] sm:$0x3] %vm222, 0.0
      %263 = vst.msk [vmem:[#allocation2 + $0x150] sm:$0xff] %vm219, 0.0
      %264 = vst.msk [vmem:[#allocation2 + $0x158] sm:$0xff] %vm219, 0.0
      %265 = vst.msk [vmem:[#allocation2 + $0x160] sm:$0x3] %vm222, 0.0
      %266 = vst.msk [vmem:[#allocation2 + $0x168] sm:$0xff] %vm219, 0.0
      %267 = vst.msk [vmem:[#allocation2 + $0x170] sm:$0xff] %vm219, 0.0
      %268 = vst.msk [vmem:[#allocation2 + $0x178] sm:$0x3] %vm222, 0.0
      %269 = vst.msk [vmem:[#allocation2 + $0x180] sm:$0xff] %vm219, 0.0
      %270 = vst.msk [vmem:[#allocation2 + $0x188] sm:$0xff] %vm219, 0.0
      %271 = vst.msk [vmem:[#allocation2 + $0x190] sm:$0x3] %vm222, 0.0
      %272 = vst.msk [vmem:[#allocation2 + $0x198] sm:$0xff] %vm219, 0.0
      %273 = vst.msk [vmem:[#allocation2 + $0x1a0] sm:$0xff] %vm219, 0.0
      %274 = vst.msk [vmem:[#allocation2 + $0x1a8] sm:$0x3] %vm222, 0.0
      %v275 = vld [vmem:[%s207] sm:$0xf]
      %v276 = vld [vmem:[%s207 + $0x4] sm:$0xf]
      %v277 = vld [vmem:[%s207 + $0x8] sm:$0xf]
      %v278 = vld [vmem:[%s207 + $0xc] sm:$0xf]
      %v279 = vld [vmem:[%s207 + $0x10] sm:$0xf]
      %v280 = vld [vmem:[%s207 + $0x14] sm:$0xf]
      %v281 = vld [vmem:[%s207 + $0x18] sm:$0xf]
      %v282 = vld [vmem:[%s207 + $0x1c] sm:$0xf]
      %v283 = vld [vmem:[%s207 + $0x20] sm:$0xf]
      %v284 = vld [vmem:[%s207 + $0x24] sm:$0xf]
      %v285 = vld [vmem:[%s207 + $0x28] sm:$0xf]
      %v286 = vld [vmem:[%s207 + $0x2c] sm:$0xf]
      %v287 = vld [vmem:[%s207 + $0x30] sm:$0xf]
      %v288 = vld [vmem:[%s207 + $0x34] sm:$0xf]
      %v289 = vld [vmem:[%s207 + $0x38] sm:$0xf]
      %v290 = vld [vmem:[%s207 + $0x3c] sm:$0xf]
      %v291 = vld [vmem:[%s207 + $0x40] sm:$0xf]
      %v292 = vld [vmem:[%s207 + $0x44] sm:$0xf]
      %v293 = vld [vmem:[%s207 + $0x48] sm:$0xf]
      %v294 = vld [vmem:[%s207 + $0x4c] sm:$0xf]
      %v295 = vld [vmem:[%s207 + $0x50] sm:$0xf]
      %v296 = vld [vmem:[%s207 + $0x54] sm:$0xf]
      %v297 = vld [vmem:[%s207 + $0x58] sm:$0xf]
      %v298 = vld [vmem:[%s207 + $0x5c] sm:$0xf]
      %v299 = vld [vmem:[%s207 + $0x60] sm:$0xf]
      %v300 = vld [vmem:[%s207 + $0x64] sm:$0xf]
      %v301 = vld [vmem:[%s207 + $0x68] sm:$0xf]
      %v302 = vld [vmem:[%s207 + $0x6c] sm:$0xf]
      %v303 = vld [vmem:[%s207 + $0x70] sm:$0xf]
      %v304 = vld [vmem:[%s207 + $0x74] sm:$0xf]
      %v305 = vld [vmem:[%s207 + $0x78] sm:$0xf]
      %v306 = vld [vmem:[%s207 + $0x7c] sm:$0xf]
      %v307 = vunpack.c.l.bf16 %v275
      %v308 = vunpack.c.l.bf16 %v276
      %v309 = vunpack.c.l.bf16 %v277
      %v310 = vunpack.c.l.bf16 %v278
      %v311 = vunpack.c.l.bf16 %v279
      %v312 = vunpack.c.l.bf16 %v280
      %v313 = vunpack.c.l.bf16 %v281
      %v314 = vunpack.c.l.bf16 %v282
      %v315 = vunpack.c.l.bf16 %v283
      %v316 = vunpack.c.l.bf16 %v284
      %v317 = vunpack.c.l.bf16 %v285
      %v318 = vunpack.c.l.bf16 %v286
      %v319 = vunpack.c.l.bf16 %v287
      %v320 = vunpack.c.l.bf16 %v288
      %v321 = vunpack.c.l.bf16 %v289
      %v322 = vunpack.c.l.bf16 %v290
      %v323 = vunpack.c.l.bf16 %v291
      %v324 = vunpack.c.l.bf16 %v292
      %v325 = vunpack.c.l.bf16 %v293
      %v326 = vunpack.c.l.bf16 %v294
      %v327 = vunpack.c.l.bf16 %v295
      %v328 = vunpack.c.l.bf16 %v296
      %v329 = vunpack.c.l.bf16 %v297
      %v330 = vunpack.c.l.bf16 %v298
      %v331 = vunpack.c.l.bf16 %v299
      %v332 = vunpack.c.l.bf16 %v300
      %v333 = vunpack.c.l.bf16 %v301
      %v334 = vunpack.c.l.bf16 %v302
      %v335 = vunpack.c.l.bf16 %v303
      %v336 = vunpack.c.l.bf16 %v304
      %v337 = vunpack.c.l.bf16 %v305
      %v338 = vunpack.c.l.bf16 %v306
      %v339 = vld [vmem:[%s212] sm:$0xf]
      %v340 = vld [vmem:[%s212 + $0x4] sm:$0xf]
      %v341 = vld [vmem:[%s212 + $0x8] sm:$0xf]
      %v342 = vld [vmem:[%s212 + $0xc] sm:$0xf]
      %v343 = vld [vmem:[%s212 + $0x10] sm:$0xf]
      %v344 = vld [vmem:[%s212 + $0x14] sm:$0xf]
      %v345 = vld [vmem:[%s212 + $0x18] sm:$0xf]
      %v346 = vld [vmem:[%s212 + $0x1c] sm:$0xf]
      %v347 = vld [vmem:[%s212 + $0x20] sm:$0xf]
      %v348 = vld [vmem:[%s212 + $0x24] sm:$0xf]
      %v349 = vld [vmem:[%s212 + $0x28] sm:$0xf]
      %v350 = vld [vmem:[%s212 + $0x2c] sm:$0xf]
      %v351 = vld [vmem:[%s212 + $0x30] sm:$0xf]
      %v352 = vld [vmem:[%s212 + $0x34] sm:$0xf]
      %v353 = vld [vmem:[%s212 + $0x38] sm:$0xf]
      %v354 = vld [vmem:[%s212 + $0x3c] sm:$0xf]
      %v355 = vld [vmem:[%s212 + $0x40] sm:$0xf]
      %v356 = vld [vmem:[%s212 + $0x44] sm:$0xf]
      %v357 = vld [vmem:[%s212 + $0x48] sm:$0xf]
      %v358 = vld [vmem:[%s212 + $0x4c] sm:$0xf]
      %v359 = vld [vmem:[%s212 + $0x50] sm:$0xf]
      %v360 = vld [vmem:[%s212 + $0x54] sm:$0xf]
      %v361 = vld [vmem:[%s212 + $0x58] sm:$0xf]
      %v362 = vld [vmem:[%s212 + $0x5c] sm:$0xf]
      %v363 = vld [vmem:[%s212 + $0x60] sm:$0xf]
      %v364 = vld [vmem:[%s212 + $0x64] sm:$0xf]
      %v365 = vld [vmem:[%s212 + $0x68] sm:$0xf]
      %v366 = vld [vmem:[%s212 + $0x6c] sm:$0xf]
      %v367 = vld [vmem:[%s212 + $0x70] sm:$0xf]
      %v368 = vld [vmem:[%s212 + $0x74] sm:$0xf]
      %v369 = vld [vmem:[%s212 + $0x78] sm:$0xf]
      %v370 = vld [vmem:[%s212 + $0x7c] sm:$0xf]
      %v371 = vunpack.c.l.bf16 %v339
      %v372 = vunpack.c.l.bf16 %v340
      %v373 = vunpack.c.l.bf16 %v341
      %v374 = vunpack.c.l.bf16 %v342
      %v375 = vunpack.c.l.bf16 %v343
      %v376 = vunpack.c.l.bf16 %v344
      %v377 = vunpack.c.l.bf16 %v345
      %v378 = vunpack.c.l.bf16 %v346
      %v379 = vunpack.c.l.bf16 %v347
      %v380 = vunpack.c.l.bf16 %v348
      %v381 = vunpack.c.l.bf16 %v349
      %v382 = vunpack.c.l.bf16 %v350
      %v383 = vunpack.c.l.bf16 %v351
      %v384 = vunpack.c.l.bf16 %v352
      %v385 = vunpack.c.l.bf16 %v353
      %v386 = vunpack.c.l.bf16 %v354
      %v387 = vunpack.c.l.bf16 %v355
      %v388 = vunpack.c.l.bf16 %v356
      %v389 = vunpack.c.l.bf16 %v357
      %v390 = vunpack.c.l.bf16 %v358
      %v391 = vunpack.c.l.bf16 %v359
      %v392 = vunpack.c.l.bf16 %v360
      %v393 = vunpack.c.l.bf16 %v361
      %v394 = vunpack.c.l.bf16 %v362
      %v395 = vunpack.c.l.bf16 %v363
      %v396 = vunpack.c.l.bf16 %v364
      %v397 = vunpack.c.l.bf16 %v365
      %v398 = vunpack.c.l.bf16 %v366
      %v399 = vunpack.c.l.bf16 %v367
      %v400 = vunpack.c.l.bf16 %v368
      %v401 = vunpack.c.l.bf16 %v369
      %v402 = vunpack.c.l.bf16 %v370
      %435 = vrot.lane.b32.xlu0 %v371, 4
      %v436 = vpop.permute.xlu0 %435
      %437 = vrot.lane.b32.xlu0 %v372, 4
      %v438 = vpop.permute.xlu0 %437
      %439 = vrot.lane.b32.xlu0 %v373, 4
      %v440 = vpop.permute.xlu0 %439
      %441 = vrot.lane.b32.xlu0 %v374, 4
      %v442 = vpop.permute.xlu0 %441
      %443 = vrot.lane.b32.xlu0 %v375, 4
      %v444 = vpop.permute.xlu0 %443
      %445 = vrot.lane.b32.xlu0 %v376, 4
      %v446 = vpop.permute.xlu0 %445
      %447 = vrot.lane.b32.xlu0 %v377, 4
      %v448 = vpop.permute.xlu0 %447
      %449 = vrot.lane.b32.xlu0 %v378, 4
      %v450 = vpop.permute.xlu0 %449
      %451 = vrot.lane.b32.xlu0 %v379, 4
      %v452 = vpop.permute.xlu0 %451
      %453 = vrot.lane.b32.xlu0 %v380, 4
      %v454 = vpop.permute.xlu0 %453
      %455 = vrot.lane.b32.xlu0 %v381, 4
      %v456 = vpop.permute.xlu0 %455
      %457 = vrot.lane.b32.xlu0 %v382, 4
      %v458 = vpop.permute.xlu0 %457
      %459 = vrot.lane.b32.xlu0 %v383, 4
      %v460 = vpop.permute.xlu0 %459
      %461 = vrot.lane.b32.xlu0 %v384, 4
      %v462 = vpop.permute.xlu0 %461
      %463 = vrot.lane.b32.xlu0 %v385, 4
      %v464 = vpop.permute.xlu0 %463
      %465 = vrot.lane.b32.xlu0 %v386, 4
      %v466 = vpop.permute.xlu0 %465
      %467 = vrot.lane.b32.xlu0 %v387, 4
      %v468 = vpop.permute.xlu0 %467
      %469 = vrot.lane.b32.xlu0 %v388, 4
      %v470 = vpop.permute.xlu0 %469
      %471 = vrot.lane.b32.xlu0 %v389, 4
      %v472 = vpop.permute.xlu0 %471
      %473 = vrot.lane.b32.xlu0 %v390, 4
      %v474 = vpop.permute.xlu0 %473
      %475 = vrot.lane.b32.xlu0 %v391, 4
      %v476 = vpop.permute.xlu0 %475
      %477 = vrot.lane.b32.xlu0 %v392, 4
      %v478 = vpop.permute.xlu0 %477
      %479 = vrot.lane.b32.xlu0 %v393, 4
      %v480 = vpop.permute.xlu0 %479
      %481 = vrot.lane.b32.xlu0 %v394, 4
      %v482 = vpop.permute.xlu0 %481
      %483 = vrot.lane.b32.xlu0 %v395, 4
      %v484 = vpop.permute.xlu0 %483
      %485 = vrot.lane.b32.xlu0 %v396, 4
      %v486 = vpop.permute.xlu0 %485
      %487 = vrot.lane.b32.xlu0 %v397, 4
      %v488 = vpop.permute.xlu0 %487
      %489 = vrot.lane.b32.xlu0 %v398, 4
      %v490 = vpop.permute.xlu0 %489
      %491 = vrot.lane.b32.xlu0 %v399, 4
      %v492 = vpop.permute.xlu0 %491
      %493 = vrot.lane.b32.xlu0 %v400, 4
      %v494 = vpop.permute.xlu0 %493
      %495 = vrot.lane.b32.xlu0 %v401, 4
      %v496 = vpop.permute.xlu0 %495
      %497 = vrot.lane.b32.xlu0 %v402, 4
      %v498 = vpop.permute.xlu0 %497
      %vm531 = vcmask 31744
      %v532 = vsel %vm531, %v307, %v436
      %v533 = vsel %vm531, %v308, %v438
      %v534 = vsel %vm531, %v309, %v440
      %v535 = vsel %vm531, %v310, %v442
      %v536 = vsel %vm531, %v311, %v444
      %v537 = vsel %vm531, %v312, %v446
      %v538 = vsel %vm531, %v313, %v448
      %v539 = vsel %vm531, %v314, %v450
      %v540 = vsel %vm531, %v315, %v452
      %v541 = vsel %vm531, %v316, %v454
      %v542 = vsel %vm531, %v317, %v456
      %v543 = vsel %vm531, %v318, %v458
      %v544 = vsel %vm531, %v319, %v460
      %v545 = vsel %vm531, %v320, %v462
      %v546 = vsel %vm531, %v321, %v464
      %v547 = vsel %vm531, %v322, %v466
      %v548 = vsel %vm531, %v323, %v468
      %v549 = vsel %vm531, %v324, %v470
      %v550 = vsel %vm531, %v325, %v472
      %v551 = vsel %vm531, %v326, %v474
      %v552 = vsel %vm531, %v327, %v476
      %v553 = vsel %vm531, %v328, %v478
      %v554 = vsel %vm531, %v329, %v480
      %v555 = vsel %vm531, %v330, %v482
      %v556 = vsel %vm531, %v331, %v484
      %v557 = vsel %vm531, %v332, %v486
      %v558 = vsel %vm531, %v333, %v488
      %v559 = vsel %vm531, %v334, %v490
      %v560 = vsel %vm531, %v335, %v492
      %v561 = vsel %vm531, %v336, %v494
      %v562 = vsel %vm531, %v337, %v496
      %v563 = vsel %vm531, %v338, %v498
      %s564 = scalar_lea.vmem [#allocation2], 24
      %565 = vst.msk [vmem:[%s564 + $0x1] sm:$0xff] %vm219, %v532
      %566 = vst.msk [vmem:[%s564 + $0x9] sm:$0xff] %vm219, %v533
      %567 = vst.msk [vmem:[%s564 + $0x19] sm:$0xff] %vm219, %v534
      %568 = vst.msk [vmem:[%s564 + $0x21] sm:$0xff] %vm219, %v535
      %569 = vst.msk [vmem:[%s564 + $0x31] sm:$0xff] %vm219, %v536
      %570 = vst.msk [vmem:[%s564 + $0x39] sm:$0xff] %vm219, %v537
      %571 = vst.msk [vmem:[%s564 + $0x49] sm:$0xff] %vm219, %v538
      %572 = vst.msk [vmem:[%s564 + $0x51] sm:$0xff] %vm219, %v539
      %573 = vst.msk [vmem:[%s564 + $0x61] sm:$0xff] %vm219, %v540
      %574 = vst.msk [vmem:[%s564 + $0x69] sm:$0xff] %vm219, %v541
      %575 = vst.msk [vmem:[%s564 + $0x79] sm:$0xff] %vm219, %v542
      %576 = vst.msk [vmem:[%s564 + $0x81] sm:$0xff] %vm219, %v543
      %577 = vst.msk [vmem:[%s564 + $0x91] sm:$0xff] %vm219, %v544
      %578 = vst.msk [vmem:[%s564 + $0x99] sm:$0xff] %vm219, %v545
      %579 = vst.msk [vmem:[%s564 + $0xa9] sm:$0xff] %vm219, %v546
      %580 = vst.msk [vmem:[%s564 + $0xb1] sm:$0xff] %vm219, %v547
      %581 = vst.msk [vmem:[%s564 + $0xc1] sm:$0xff] %vm219, %v548
      %582 = vst.msk [vmem:[%s564 + $0xc9] sm:$0xff] %vm219, %v549
      %583 = vst.msk [vmem:[%s564 + $0xd9] sm:$0xff] %vm219, %v550
      %584 = vst.msk [vmem:[%s564 + $0xe1] sm:$0xff] %vm219, %v551
      %585 = vst.msk [vmem:[%s564 + $0xf1] sm:$0xff] %vm219, %v552
      %586 = vst.msk [vmem:[%s564 + $0xf9] sm:$0xff] %vm219, %v553
      %587 = vst.msk [vmem:[%s564 + $0x109] sm:$0xff] %vm219, %v554
      %588 = vst.msk [vmem:[%s564 + $0x111] sm:$0xff] %vm219, %v555
      %589 = vst.msk [vmem:[%s564 + $0x121] sm:$0xff] %vm219, %v556
      %590 = vst.msk [vmem:[%s564 + $0x129] sm:$0xff] %vm219, %v557
      %591 = vst.msk [vmem:[%s564 + $0x139] sm:$0xff] %vm219, %v558
      %592 = vst.msk [vmem:[%s564 + $0x141] sm:$0xff] %vm219, %v559
      %593 = vst.msk [vmem:[%s564 + $0x151] sm:$0xff] %vm219, %v560
      %594 = vst.msk [vmem:[%s564 + $0x159] sm:$0xff] %vm219, %v561
      %595 = vst.msk [vmem:[%s564 + $0x169] sm:$0xff] %vm219, %v562
      %596 = vst.msk [vmem:[%s564 + $0x171] sm:$0xff] %vm219, %v563
      %v597 = vld [vmem:[#allocation2] sm:$0xff]
      %v598 = vld [vmem:[#allocation2 + $0x8] sm:$0xff]
      %v599 = vld [vmem:[#allocation2 + $0x18] sm:$0xff]
      %v600 = vld [vmem:[#allocation2 + $0x20] sm:$0xff]
      %v601 = vld [vmem:[#allocation2 + $0x30] sm:$0xff]
      %v602 = vld [vmem:[#allocation2 + $0x38] sm:$0xff]
      %v603 = vld [vmem:[#allocation2 + $0x48] sm:$0xff]
      %v604 = vld [vmem:[#allocation2 + $0x50] sm:$0xff]
      %v605 = vld [vmem:[#allocation2 + $0x60] sm:$0xff]
      %v606 = vld [vmem:[#allocation2 + $0x68] sm:$0xff]
      %v607 = vld [vmem:[#allocation2 + $0x78] sm:$0xff]
      %v608 = vld [vmem:[#allocation2 + $0x80] sm:$0xff]
      %v609 = vld [vmem:[#allocation2 + $0x90] sm:$0xff]
      %v610 = vld [vmem:[#allocation2 + $0x98] sm:$0xff]
      %v611 = vld [vmem:[#allocation2 + $0xa8] sm:$0xff]
      %v612 = vld [vmem:[#allocation2 + $0xb0] sm:$0xff]
      %v613 = vld [vmem:[#allocation2 + $0xc0] sm:$0xff]
      %v614 = vld [vmem:[#allocation2 + $0xc8] sm:$0xff]
      %v615 = vld [vmem:[#allocation2 + $0xd8] sm:$0xff]
      %v616 = vld [vmem:[#allocation2 + $0xe0] sm:$0xff]
      %v617 = vld [vmem:[#allocation2 + $0xf0] sm:$0xff]
      %v618 = vld [vmem:[#allocation2 + $0xf8] sm:$0xff]
      %v619 = vld [vmem:[#allocation2 + $0x108] sm:$0xff]
      %v620 = vld [vmem:[#allocation2 + $0x110] sm:$0xff]
      %v621 = vld [vmem:[#allocation2 + $0x120] sm:$0xff]
      %v622 = vld [vmem:[#allocation2 + $0x128] sm:$0xff]
      %v623 = vld [vmem:[#allocation2 + $0x138] sm:$0xff]
      %v624 = vld [vmem:[#allocation2 + $0x140] sm:$0xff]
      %v625 = vld [vmem:[#allocation2 + $0x150] sm:$0xff]
      %v626 = vld [vmem:[#allocation2 + $0x158] sm:$0xff]
      %v627 = vld [vmem:[#allocation2 + $0x168] sm:$0xff]
      %v628 = vld [vmem:[#allocation2 + $0x170] sm:$0xff]
      %v629 = vpack.c.bf16 %v598, %v597
      %v630 = vpack.c.bf16 %v600, %v599
      %v631 = vpack.c.bf16 %v602, %v601
      %v632 = vpack.c.bf16 %v604, %v603
      %v633 = vpack.c.bf16 %v606, %v605
      %v634 = vpack.c.bf16 %v608, %v607
      %v635 = vpack.c.bf16 %v610, %v609
      %v636 = vpack.c.bf16 %v612, %v611
      %v637 = vpack.c.bf16 %v614, %v613
      %v638 = vpack.c.bf16 %v616, %v615
      %v639 = vpack.c.bf16 %v618, %v617
      %v640 = vpack.c.bf16 %v620, %v619
      %v641 = vpack.c.bf16 %v622, %v621
      %v642 = vpack.c.bf16 %v624, %v623
      %v643 = vpack.c.bf16 %v626, %v625
      %v644 = vpack.c.bf16 %v628, %v627
      %v645 = vld [vmem:[%s2] sm:$0xf]
      %v646 = vld [vmem:[#allocation2 + $0x1] sm:$0xff]
      %v647 = vld [vmem:[#allocation2 + $0x9] sm:$0xff]
      %v648 = vld [vmem:[#allocation2 + $0x19] sm:$0xff]
      %v649 = vld [vmem:[#allocation2 + $0x21] sm:$0xff]
      %v650 = vld [vmem:[#allocation2 + $0x31] sm:$0xff]
      %v651 = vld [vmem:[#allocation2 + $0x39] sm:$0xff]
      %v652 = vld [vmem:[#allocation2 + $0x49] sm:$0xff]
      %v653 = vld [vmem:[#allocation2 + $0x51] sm:$0xff]
      %v654 = vld [vmem:[#allocation2 + $0x61] sm:$0xff]
      %v655 = vld [vmem:[#allocation2 + $0x69] sm:$0xff]
      %v656 = vld [vmem:[#allocation2 + $0x79] sm:$0xff]
      %v657 = vld [vmem:[#allocation2 + $0x81] sm:$0xff]
      %v658 = vld [vmem:[#allocation2 + $0x91] sm:$0xff]
      %v659 = vld [vmem:[#allocation2 + $0x99] sm:$0xff]
      %v660 = vld [vmem:[#allocation2 + $0xa9] sm:$0xff]
      %v661 = vld [vmem:[#allocation2 + $0xb1] sm:$0xff]
      %v662 = vld [vmem:[#allocation2 + $0xc1] sm:$0xff]
      %v663 = vld [vmem:[#allocation2 + $0xc9] sm:$0xff]
      %v664 = vld [vmem:[#allocation2 + $0xd9] sm:$0xff]
      %v665 = vld [vmem:[#allocation2 + $0xe1] sm:$0xff]
      %v666 = vld [vmem:[#allocation2 + $0xf1] sm:$0xff]
      %v667 = vld [vmem:[#allocation2 + $0xf9] sm:$0xff]
      %v668 = vld [vmem:[#allocation2 + $0x109] sm:$0xff]
      %v669 = vld [vmem:[#allocation2 + $0x111] sm:$0xff]
      %v670 = vld [vmem:[#allocation2 + $0x121] sm:$0xff]
      %v671 = vld [vmem:[#allocation2 + $0x129] sm:$0xff]
      %v672 = vld [vmem:[#allocation2 + $0x139] sm:$0xff]
      %v673 = vld [vmem:[#allocation2 + $0x141] sm:$0xff]
      %v674 = vld [vmem:[#allocation2 + $0x151] sm:$0xff]
      %v675 = vld [vmem:[#allocation2 + $0x159] sm:$0xff]
      %v676 = vld [vmem:[#allocation2 + $0x169] sm:$0xff]
      %v677 = vld [vmem:[#allocation2 + $0x171] sm:$0xff]
      %v678 = vpack.c.bf16 %v647, %v646
      %v679 = vpack.c.bf16 %v649, %v648
      %v680 = vpack.c.bf16 %v651, %v650
      %v681 = vpack.c.bf16 %v653, %v652
      %v682 = vpack.c.bf16 %v655, %v654
      %v683 = vpack.c.bf16 %v657, %v656
      %v684 = vpack.c.bf16 %v659, %v658
      %v685 = vpack.c.bf16 %v661, %v660
      %v686 = vpack.c.bf16 %v663, %v662
      %v687 = vpack.c.bf16 %v665, %v664
      %v688 = vpack.c.bf16 %v667, %v666
      %v689 = vpack.c.bf16 %v669, %v668
      %v690 = vpack.c.bf16 %v671, %v670
      %v691 = vpack.c.bf16 %v673, %v672
      %v692 = vpack.c.bf16 %v675, %v674
      %v693 = vpack.c.bf16 %v677, %v676
      %s694 = scalar_lea.vmem %s2, 4
      %v695 = vld [vmem:[%s694] sm:$0xf]
      %v697 = vsel %vm219, %v678, 0
      %v700 = vsel %vm219, %v679, 0
      %v703 = vsel %vm219, %v680, 0
      %v706 = vsel %vm219, %v681, 0
      %v709 = vsel %vm219, %v682, 0
      %v712 = vsel %vm219, %v683, 0
      %v715 = vsel %vm219, %v684, 0
      %v718 = vsel %vm219, %v685, 0
      %v721 = vsel %vm219, %v686, 0
      %v724 = vsel %vm219, %v687, 0
      %v727 = vsel %vm219, %v688, 0
      %v730 = vsel %vm219, %v689, 0
      %v733 = vsel %vm219, %v690, 0
      %v736 = vsel %vm219, %v691, 0
      %v739 = vsel %vm219, %v692, 0
      %v742 = vsel %vm219, %v693, 0
      %vm744 = vcmask 1043456
      %v746 = vsel %vm744, %v695, 0
      %748 = vmatprep.subr.bf16.mxu0 0
      %749 = vmatpush1.bf16.msra.mxu0 %v746
      %750 = vmatprep.subr.bf16.mxu0 0
      %751 = vmatpush1.bf16.msra.mxu0 0
      %752 = vmatprep.subr.bf16.mxu0 0
      %753 = vmatpush1.bf16.msra.mxu0 0
      %754 = vmatprep.subr.bf16.mxu0 0
      %755 = vmatpush1.bf16.msra.mxu0 0
      %756 = vmatprep.subr.bf16.mxu0 0
      %757 = vmatpush1.bf16.msra.mxu0 0
      %758 = vmatprep.subr.bf16.mxu0 0
      %759 = vmatpush1.bf16.msra.mxu0 0
      %760 = vmatprep.subr.bf16.mxu0 0
      %761 = vmatpush1.bf16.msra.mxu0 0
      %762 = vmatprep.subr.bf16.mxu0 0
      %763 = vmatpush1.bf16.msra.mxu0 0
      %764 = vmatprep.subr.bf16.mxu0 0
      %765 = vmatpush1.bf16.msra.mxu0 0
      %766 = vmatprep.subr.bf16.mxu0 0
      %767 = vmatpush1.bf16.msra.mxu0 0
      %768 = vmatprep.subr.bf16.mxu0 0
      %769 = vmatpush1.bf16.msra.mxu0 0
      %770 = vmatprep.subr.bf16.mxu0 0
      %771 = vmatpush1.bf16.msra.mxu0 0
      %772 = vmatprep.subr.bf16.mxu0 0
      %773 = vmatpush1.bf16.msra.mxu0 0
      %774 = vmatprep.subr.bf16.mxu0 0
      %775 = vmatpush1.bf16.msra.mxu0 0
      %776 = vmatprep.subr.bf16.mxu0 0
      %777 = vmatpush1.bf16.msra.mxu0 0
      %778 = vmatprep.subr.bf16.mxu0 0
      %779 = vmatpush1.bf16.msra.mxu0 0
      %780 = vmatprep.mubr.bf16.mxu0 0
      %781 = vmatmul.mubr.bf16.gmra.mrb[0].mxu0 %v697
      %v782 = vpop.f32.mrb[0].mxu0
      %v783 = vadd.f32 0.0, %v782
      %v784 = vpop.f32.mrb[0].mxu0
      %v785 = vpop.f32.mrb[0].mxu0
      %v786 = vadd.f32 0.0, %v785
      %v787 = vpop.f32.mrb[0].mxu0
      %788 = vmatprep.mubr.bf16.mxu0 0
      %789 = vmatmul.mubr.bf16.gmra.mrb[0].mxu0 %v700
      %v790 = vpop.f32.mrb[0].mxu0
      %v791 = vadd.f32 0.0, %v790
      %v792 = vpop.f32.mrb[0].mxu0
      %v793 = vpop.f32.mrb[0].mxu0
      %v794 = vadd.f32 0.0, %v793
      %v795 = vpop.f32.mrb[0].mxu0
      %796 = vmatprep.mubr.bf16.mxu0 0
      %797 = vmatmul.mubr.bf16.gmra.mrb[0].mxu0 %v703
      %v798 = vpop.f32.mrb[0].mxu0
      %v799 = vadd.f32 0.0, %v798
      %v800 = vpop.f32.mrb[0].mxu0
      %v801 = vpop.f32.mrb[0].mxu0
      %v802 = vadd.f32 0.0, %v801
      %v803 = vpop.f32.mrb[0].mxu0
      %804 = vmatprep.mubr.bf16.mxu0 0
      %805 = vmatmul.mubr.bf16.gmra.mrb[0].mxu0 %v706
      %v806 = vpop.f32.mrb[0].mxu0
      %v807 = vadd.f32 0.0, %v806
      %v808 = vpop.f32.mrb[0].mxu0
      %v809 = vpop.f32.mrb[0].mxu0
      %v810 = vadd.f32 0.0, %v809
      %v811 = vpop.f32.mrb[0].mxu0
      %812 = vmatprep.mubr.bf16.mxu0 0
      %813 = vmatmul.mubr.bf16.gmra.mrb[0].mxu0 %v709
      %v814 = vpop.f32.mrb[0].mxu0
      %v815 = vadd.f32 0.0, %v814
      %v816 = vpop.f32.mrb[0].mxu0
      %v817 = vpop.f32.mrb[0].mxu0
      %v818 = vadd.f32 0.0, %v817
      %v819 = vpop.f32.mrb[0].mxu0
      %820 = vmatprep.mubr.bf16.mxu0 0
      %821 = vmatmul.mubr.bf16.gmra.mrb[0].mxu0 %v712
      %v822 = vpop.f32.mrb[0].mxu0
      %v823 = vadd.f32 0.0, %v822
      %v824 = vpop.f32.mrb[0].mxu0
      %v825 = vpop.f32.mrb[0].mxu0
      %v826 = vadd.f32 0.0, %v825
      %v827 = vpop.f32.mrb[0].mxu0
      %828 = vmatprep.mubr.bf16.mxu0 0
      %829 = vmatmul.mubr.bf16.gmra.mrb[0].mxu0 %v715
      %v830 = vpop.f32.mrb[0].mxu0
      %v831 = vadd.f32 0.0, %v830
      %v832 = vpop.f32.mrb[0].mxu0
      %v833 = vpop.f32.mrb[0].mxu0
      %v834 = vadd.f32 0.0, %v833
      %v835 = vpop.f32.mrb[0].mxu0
      %836 = vmatprep.mubr.bf16.mxu0 0
      %837 = vmatmul.mubr.bf16.gmra.mrb[0].mxu0 %v718
      %v838 = vpop.f32.mrb[0].mxu0
      %v839 = vadd.f32 0.0, %v838
      %v840 = vpop.f32.mrb[0].mxu0
      %v841 = vpop.f32.mrb[0].mxu0
      %v842 = vadd.f32 0.0, %v841
      %v843 = vpop.f32.mrb[0].mxu0
      %844 = vmatprep.mubr.bf16.mxu0 0
      %845 = vmatmul.mubr.bf16.gmra.mrb[0].mxu0 %v721
      %v846 = vpop.f32.mrb[0].mxu0
      %v847 = vadd.f32 0.0, %v846
      %v848 = vpop.f32.mrb[0].mxu0
      %v849 = vpop.f32.mrb[0].mxu0
      %v850 = vadd.f32 0.0, %v849
      %v851 = vpop.f32.mrb[0].mxu0
      %852 = vmatprep.mubr.bf16.mxu0 0
      %853 = vmatmul.mubr.bf16.gmra.mrb[0].mxu0 %v724
      %v854 = vpop.f32.mrb[0].mxu0
      %v855 = vadd.f32 0.0, %v854
      %v856 = vpop.f32.mrb[0].mxu0
      %v857 = vpop.f32.mrb[0].mxu0
      %v858 = vadd.f32 0.0, %v857
      %v859 = vpop.f32.mrb[0].mxu0
      %860 = vmatprep.mubr.bf16.mxu0 0
      %861 = vmatmul.mubr.bf16.gmra.mrb[0].mxu0 %v727
      %v862 = vpop.f32.mrb[0].mxu0
      %v863 = vadd.f32 0.0, %v862
      %v864 = vpop.f32.mrb[0].mxu0
      %v865 = vpop.f32.mrb[0].mxu0
      %v866 = vadd.f32 0.0, %v865
      %v867 = vpop.f32.mrb[0].mxu0
      %868 = vmatprep.mubr.bf16.mxu0 0
      %869 = vmatmul.mubr.bf16.gmra.mrb[0].mxu0 %v730
      %v870 = vpop.f32.mrb[0].mxu0
      %v871 = vadd.f32 0.0, %v870
      %v872 = vpop.f32.mrb[0].mxu0
      %v873 = vpop.f32.mrb[0].mxu0
      %v874 = vadd.f32 0.0, %v873
      %v875 = vpop.f32.mrb[0].mxu0
      %876 = vmatprep.mubr.bf16.mxu0 0
      %877 = vmatmul.mubr.bf16.gmra.mrb[0].mxu0 %v733
      %v878 = vpop.f32.mrb[0].mxu0
      %v879 = vadd.f32 0.0, %v878
      %v880 = vpop.f32.mrb[0].mxu0
      %v881 = vpop.f32.mrb[0].mxu0
      %v882 = vadd.f32 0.0, %v881
      %v883 = vpop.f32.mrb[0].mxu0
      %884 = vmatprep.mubr.bf16.mxu0 0
      %885 = vmatmul.mubr.bf16.gmra.mrb[0].mxu0 %v736
      %v886 = vpop.f32.mrb[0].mxu0
      %v887 = vadd.f32 0.0, %v886
      %v888 = vpop.f32.mrb[0].mxu0
      %v889 = vpop.f32.mrb[0].mxu0
      %v890 = vadd.f32 0.0, %v889
      %v891 = vpop.f32.mrb[0].mxu0
      %892 = vmatprep.mubr.bf16.mxu0 0
      %893 = vmatmul.mubr.bf16.gmra.mrb[0].mxu0 %v739
      %v894 = vpop.f32.mrb[0].mxu0
      %v895 = vadd.f32 0.0, %v894
      %v896 = vpop.f32.mrb[0].mxu0
      %v897 = vpop.f32.mrb[0].mxu0
      %v898 = vadd.f32 0.0, %v897
      %v899 = vpop.f32.mrb[0].mxu0
      %900 = vmatprep.mubr.bf16.mxu0 0
      %901 = vmatmul.mubr.bf16.gmra.mrb[0].mxu0 %v742
      %v902 = vpop.f32.mrb[0].mxu0
      %v903 = vadd.f32 0.0, %v902
      %v904 = vpop.f32.mrb[0].mxu0
      %v905 = vpop.f32.mrb[0].mxu0
      %v906 = vadd.f32 0.0, %v905
      %v907 = vpop.f32.mrb[0].mxu0
      %908 = vdwg.mxu0
      %v910 = vsel %vm219, %v629, 0
      %v913 = vsel %vm219, %v630, 0
      %v916 = vsel %vm219, %v631, 0
      %v919 = vsel %vm219, %v632, 0
      %v922 = vsel %vm219, %v633, 0
      %v925 = vsel %vm219, %v634, 0
      %v928 = vsel %vm219, %v635, 0
      %v931 = vsel %vm219, %v636, 0
      %v934 = vsel %vm219, %v637, 0
      %v937 = vsel %vm219, %v638, 0
      %v940 = vsel %vm219, %v639, 0
      %v943 = vsel %vm219, %v640, 0
      %v946 = vsel %vm219, %v641, 0
      %v949 = vsel %vm219, %v642, 0
      %v952 = vsel %vm219, %v643, 0
      %v955 = vsel %vm219, %v644, 0
      %v958 = vsel %vm744, %v645, 0
      %960 = vmatprep.subr.bf16.mxu0 0
      %961 = vmatpush1.bf16.msra.mxu0 %v958
      %962 = vmatprep.subr.bf16.mxu0 0
      %963 = vmatpush1.bf16.msra.mxu0 0
      %964 = vmatprep.subr.bf16.mxu0 0
      %965 = vmatpush1.bf16.msra.mxu0 0
      %966 = vmatprep.subr.bf16.mxu0 0
      %967 = vmatpush1.bf16.msra.mxu0 0
      %968 = vmatprep.subr.bf16.mxu0 0
      %969 = vmatpush1.bf16.msra.mxu0 0
      %970 = vmatprep.subr.bf16.mxu0 0
      %971 = vmatpush1.bf16.msra.mxu0 0
      %972 = vmatprep.subr.bf16.mxu0 0
      %973 = vmatpush1.bf16.msra.mxu0 0
      %974 = vmatprep.subr.bf16.mxu0 0
      %975 = vmatpush1.bf16.msra.mxu0 0
      %976 = vmatprep.subr.bf16.mxu0 0
      %977 = vmatpush1.bf16.msra.mxu0 0
      %978 = vmatprep.subr.bf16.mxu0 0
      %979 = vmatpush1.bf16.msra.mxu0 0
      %980 = vmatprep.subr.bf16.mxu0 0
      %981 = vmatpush1.bf16.msra.mxu0 0
      %982 = vmatprep.subr.bf16.mxu0 0
      %983 = vmatpush1.bf16.msra.mxu0 0
      %984 = vmatprep.subr.bf16.mxu0 0
      %985 = vmatpush1.bf16.msra.mxu0 0
      %986 = vmatprep.subr.bf16.mxu0 0
      %987 = vmatpush1.bf16.msra.mxu0 0
      %988 = vmatprep.subr.bf16.mxu0 0
      %989 = vmatpush1.bf16.msra.mxu0 0
      %990 = vmatprep.subr.bf16.mxu0 0
      %991 = vmatpush1.bf16.msra.mxu0 0
      %992 = vmatprep.mubr.bf16.mxu0 0
      %993 = vmatmul.mubr.bf16.gmra.mrb[0].mxu0 %v910
      %v994 = vpop.f32.mrb[0].mxu0
      %v995 = vadd.f32 %v783, %v994
      %v996 = vpop.f32.mrb[0].mxu0
      %v997 = vpop.f32.mrb[0].mxu0
      %v998 = vadd.f32 %v786, %v997
      %v999 = vpop.f32.mrb[0].mxu0
      %1000 = vmatprep.mubr.bf16.mxu0 0
      %1001 = vmatmul.mubr.bf16.gmra.mrb[0].mxu0 %v913
      %v1002 = vpop.f32.mrb[0].mxu0
      %v1003 = vadd.f32 %v791, %v1002
      %v1004 = vpop.f32.mrb[0].mxu0
      %v1005 = vpop.f32.mrb[0].mxu0
      %v1006 = vadd.f32 %v794, %v1005
      %v1007 = vpop.f32.mrb[0].mxu0
      %1008 = vmatprep.mubr.bf16.mxu0 0
      %1009 = vmatmul.mubr.bf16.gmra.mrb[0].mxu0 %v916
      %v1010 = vpop.f32.mrb[0].mxu0
      %v1011 = vadd.f32 %v799, %v1010
      %v1012 = vpop.f32.mrb[0].mxu0
      %v1013 = vpop.f32.mrb[0].mxu0
      %v1014 = vadd.f32 %v802, %v1013
      %v1015 = vpop.f32.mrb[0].mxu0
      %1016 = vmatprep.mubr.bf16.mxu0 0
      %1017 = vmatmul.mubr.bf16.gmra.mrb[0].mxu0 %v919
      %v1018 = vpop.f32.mrb[0].mxu0
      %v1019 = vadd.f32 %v807, %v1018
      %v1020 = vpop.f32.mrb[0].mxu0
      %v1021 = vpop.f32.mrb[0].mxu0
      %v1022 = vadd.f32 %v810, %v1021
      %v1023 = vpop.f32.mrb[0].mxu0
      %1024 = vmatprep.mubr.bf16.mxu0 0
      %1025 = vmatmul.mubr.bf16.gmra.mrb[0].mxu0 %v922
      %v1026 = vpop.f32.mrb[0].mxu0
      %v1027 = vadd.f32 %v815, %v1026
      %v1028 = vpop.f32.mrb[0].mxu0
      %v1029 = vpop.f32.mrb[0].mxu0
      %v1030 = vadd.f32 %v818, %v1029
      %v1031 = vpop.f32.mrb[0].mxu0
      %1032 = vmatprep.mubr.bf16.mxu0 0
      %1033 = vmatmul.mubr.bf16.gmra.mrb[0].mxu0 %v925
      %v1034 = vpop.f32.mrb[0].mxu0
      %v1035 = vadd.f32 %v823, %v1034
      %v1036 = vpop.f32.mrb[0].mxu0
      %v1037 = vpop.f32.mrb[0].mxu0
      %v1038 = vadd.f32 %v826, %v1037
      %v1039 = vpop.f32.mrb[0].mxu0
      %1040 = vmatprep.mubr.bf16.mxu0 0
      %1041 = vmatmul.mubr.bf16.gmra.mrb[0].mxu0 %v928
      %v1042 = vpop.f32.mrb[0].mxu0
      %v1043 = vadd.f32 %v831, %v1042
      %v1044 = vpop.f32.mrb[0].mxu0
      %v1045 = vpop.f32.mrb[0].mxu0
      %v1046 = vadd.f32 %v834, %v1045
      %v1047 = vpop.f32.mrb[0].mxu0
      %1048 = vmatprep.mubr.bf16.mxu0 0
      %1049 = vmatmul.mubr.bf16.gmra.mrb[0].mxu0 %v931
      %v1050 = vpop.f32.mrb[0].mxu0
      %v1051 = vadd.f32 %v839, %v1050
      %v1052 = vpop.f32.mrb[0].mxu0
      %v1053 = vpop.f32.mrb[0].mxu0
      %v1054 = vadd.f32 %v842, %v1053
      %v1055 = vpop.f32.mrb[0].mxu0
      %1056 = vmatprep.mubr.bf16.mxu0 0
      %1057 = vmatmul.mubr.bf16.gmra.mrb[0].mxu0 %v934
      %v1058 = vpop.f32.mrb[0].mxu0
      %v1059 = vadd.f32 %v847, %v1058
      %v1060 = vpop.f32.mrb[0].mxu0
      %v1061 = vpop.f32.mrb[0].mxu0
      %v1062 = vadd.f32 %v850, %v1061
      %v1063 = vpop.f32.mrb[0].mxu0
      %1064 = vmatprep.mubr.bf16.mxu0 0
      %1065 = vmatmul.mubr.bf16.gmra.mrb[0].mxu0 %v937
      %v1066 = vpop.f32.mrb[0].mxu0
      %v1067 = vadd.f32 %v855, %v1066
      %v1068 = vpop.f32.mrb[0].mxu0
      %v1069 = vpop.f32.mrb[0].mxu0
      %v1070 = vadd.f32 %v858, %v1069
      %v1071 = vpop.f32.mrb[0].mxu0
      %1072 = vmatprep.mubr.bf16.mxu0 0
      %1073 = vmatmul.mubr.bf16.gmra.mrb[0].mxu0 %v940
      %v1074 = vpop.f32.mrb[0].mxu0
      %v1075 = vadd.f32 %v863, %v1074
      %v1076 = vpop.f32.mrb[0].mxu0
      %v1077 = vpop.f32.mrb[0].mxu0
      %v1078 = vadd.f32 %v866, %v1077
      %v1079 = vpop.f32.mrb[0].mxu0
      %1080 = vmatprep.mubr.bf16.mxu0 0
      %1081 = vmatmul.mubr.bf16.gmra.mrb[0].mxu0 %v943
      %v1082 = vpop.f32.mrb[0].mxu0
      %v1083 = vadd.f32 %v871, %v1082
      %v1084 = vpop.f32.mrb[0].mxu0
      %v1085 = vpop.f32.mrb[0].mxu0
      %v1086 = vadd.f32 %v874, %v1085
      %v1087 = vpop.f32.mrb[0].mxu0
      %1088 = vmatprep.mubr.bf16.mxu0 0
      %1089 = vmatmul.mubr.bf16.gmra.mrb[0].mxu0 %v946
      %v1090 = vpop.f32.mrb[0].mxu0
      %v1091 = vadd.f32 %v879, %v1090
      %v1092 = vpop.f32.mrb[0].mxu0
      %v1093 = vpop.f32.mrb[0].mxu0
      %v1094 = vadd.f32 %v882, %v1093
      %v1095 = vpop.f32.mrb[0].mxu0
      %1096 = vmatprep.mubr.bf16.mxu0 0
      %1097 = vmatmul.mubr.bf16.gmra.mrb[0].mxu0 %v949
      %v1098 = vpop.f32.mrb[0].mxu0
      %v1099 = vadd.f32 %v887, %v1098
      %v1100 = vpop.f32.mrb[0].mxu0
      %v1101 = vpop.f32.mrb[0].mxu0
      %v1102 = vadd.f32 %v890, %v1101
      %v1103 = vpop.f32.mrb[0].mxu0
      %1104 = vmatprep.mubr.bf16.mxu0 0
      %1105 = vmatmul.mubr.bf16.gmra.mrb[0].mxu0 %v952
      %v1106 = vpop.f32.mrb[0].mxu0
      %v1107 = vadd.f32 %v895, %v1106
      %v1108 = vpop.f32.mrb[0].mxu0
      %v1109 = vpop.f32.mrb[0].mxu0
      %v1110 = vadd.f32 %v898, %v1109
      %v1111 = vpop.f32.mrb[0].mxu0
      %1112 = vmatprep.mubr.bf16.mxu0 0
      %1113 = vmatmul.mubr.bf16.gmra.mrb[0].mxu0 %v955
      %v1114 = vpop.f32.mrb[0].mxu0
      %v1115 = vadd.f32 %v903, %v1114
      %v1116 = vpop.f32.mrb[0].mxu0
      %v1117 = vpop.f32.mrb[0].mxu0
      %v1118 = vadd.f32 %v906, %v1117
      %v1119 = vpop.f32.mrb[0].mxu0
      %1120 = vdwg.mxu0
      %v1121 = vld [vmem:[#allocation2 + $0x2] sm:$0xff]
      %v1122 = vld [vmem:[#allocation2 + $0xa] sm:$0xff]
      %v1123 = vld [vmem:[#allocation2 + $0x1a] sm:$0xff]
      %v1124 = vld [vmem:[#allocation2 + $0x22] sm:$0xff]
      %v1125 = vld [vmem:[#allocation2 + $0x32] sm:$0xff]
      %v1126 = vld [vmem:[#allocation2 + $0x3a] sm:$0xff]
      %v1127 = vld [vmem:[#allocation2 + $0x4a] sm:$0xff]
      %v1128 = vld [vmem:[#allocation2 + $0x52] sm:$0xff]
      %v1129 = vld [vmem:[#allocation2 + $0x62] sm:$0xff]
      %v1130 = vld [vmem:[#allocation2 + $0x6a] sm:$0xff]
      %v1131 = vld [vmem:[#allocation2 + $0x7a] sm:$0xff]
      %v1132 = vld [vmem:[#allocation2 + $0x82] sm:$0xff]
      %v1133 = vld [vmem:[#allocation2 + $0x92] sm:$0xff]
      %v1134 = vld [vmem:[#allocation2 + $0x9a] sm:$0xff]
      %v1135 = vld [vmem:[#allocation2 + $0xaa] sm:$0xff]
      %v1136 = vld [vmem:[#allocation2 + $0xb2] sm:$0xff]
      %v1137 = vld [vmem:[#allocation2 + $0xc2] sm:$0xff]
      %v1138 = vld [vmem:[#allocation2 + $0xca] sm:$0xff]
      %v1139 = vld [vmem:[#allocation2 + $0xda] sm:$0xff]
      %v1140 = vld [vmem:[#allocation2 + $0xe2] sm:$0xff]
      %v1141 = vld [vmem:[#allocation2 + $0xf2] sm:$0xff]
      %v1142 = vld [vmem:[#allocation2 + $0xfa] sm:$0xff]
      %v1143 = vld [vmem:[#allocation2 + $0x10a] sm:$0xff]
      %v1144 = vld [vmem:[#allocation2 + $0x112] sm:$0xff]
      %v1145 = vld [vmem:[#allocation2 + $0x122] sm:$0xff]
      %v1146 = vld [vmem:[#allocation2 + $0x12a] sm:$0xff]
      %v1147 = vld [vmem:[#allocation2 + $0x13a] sm:$0xff]
      %v1148 = vld [vmem:[#allocation2 + $0x142] sm:$0xff]
      %v1149 = vld [vmem:[#allocation2 + $0x152] sm:$0xff]
      %v1150 = vld [vmem:[#allocation2 + $0x15a] sm:$0xff]
      %v1151 = vld [vmem:[#allocation2 + $0x16a] sm:$0xff]
      %v1152 = vld [vmem:[#allocation2 + $0x172] sm:$0xff]
      %v1153 = vpack.c.bf16 %v1122, %v1121
      %v1154 = vpack.c.bf16 %v1124, %v1123
      %v1155 = vpack.c.bf16 %v1126, %v1125
      %v1156 = vpack.c.bf16 %v1128, %v1127
      %v1157 = vpack.c.bf16 %v1130, %v1129
      %v1158 = vpack.c.bf16 %v1132, %v1131
      %v1159 = vpack.c.bf16 %v1134, %v1133
      %v1160 = vpack.c.bf16 %v1136, %v1135
      %v1161 = vpack.c.bf16 %v1138, %v1137
      %v1162 = vpack.c.bf16 %v1140, %v1139
      %v1163 = vpack.c.bf16 %v1142, %v1141
      %v1164 = vpack.c.bf16 %v1144, %v1143
      %v1165 = vpack.c.bf16 %v1146, %v1145
      %v1166 = vpack.c.bf16 %v1148, %v1147
      %v1167 = vpack.c.bf16 %v1150, %v1149
      %v1168 = vpack.c.bf16 %v1152, %v1151
      %s1169 = scalar_lea.vmem %s2, 8
      %v1170 = vld [vmem:[%s1169] sm:$0xf]
      %v1172 = vsel %vm219, %v1153, 0
      %v1175 = vsel %vm219, %v1154, 0
      %v1178 = vsel %vm219, %v1155, 0
      %v1181 = vsel %vm219, %v1156, 0
      %v1184 = vsel %vm219, %v1157, 0
      %v1187 = vsel %vm219, %v1158, 0
      %v1190 = vsel %vm219, %v1159, 0
      %v1193 = vsel %vm219, %v1160, 0
      %v1196 = vsel %vm219, %v1161, 0
      %v1199 = vsel %vm219, %v1162, 0
      %v1202 = vsel %vm219, %v1163, 0
      %v1205 = vsel %vm219, %v1164, 0
      %v1208 = vsel %vm219, %v1165, 0
      %v1211 = vsel %vm219, %v1166, 0
      %v1214 = vsel %vm219, %v1167, 0
      %v1217 = vsel %vm219, %v1168, 0
      %v1220 = vsel %vm744, %v1170, 0
      %1222 = vmatprep.subr.bf16.mxu0 0
      %1223 = vmatpush1.bf16.msra.mxu0 %v1220
      %1224 = vmatprep.subr.bf16.mxu0 0
      %1225 = vmatpush1.bf16.msra.mxu0 0
      %1226 = vmatprep.subr.bf16.mxu0 0
      %1227 = vmatpush1.bf16.msra.mxu0 0
      %1228 = vmatprep.subr.bf16.mxu0 0
      %1229 = vmatpush1.bf16.msra.mxu0 0
      %1230 = vmatprep.subr.bf16.mxu0 0
      %1231 = vmatpush1.bf16.msra.mxu0 0
      %1232 = vmatprep.subr.bf16.mxu0 0
      %1233 = vmatpush1.bf16.msra.mxu0 0
      %1234 = vmatprep.subr.bf16.mxu0 0
      %1235 = vmatpush1.bf16.msra.mxu0 0
      %1236 = vmatprep.subr.bf16.mxu0 0
      %1237 = vmatpush1.bf16.msra.mxu0 0
      %1238 = vmatprep.subr.bf16.mxu0 0
      %1239 = vmatpush1.bf16.msra.mxu0 0
      %1240 = vmatprep.subr.bf16.mxu0 0
      %1241 = vmatpush1.bf16.msra.mxu0 0
      %1242 = vmatprep.subr.bf16.mxu0 0
      %1243 = vmatpush1.bf16.msra.mxu0 0
      %1244 = vmatprep.subr.bf16.mxu0 0
      %1245 = vmatpush1.bf16.msra.mxu0 0
      %1246 = vmatprep.subr.bf16.mxu0 0
      %1247 = vmatpush1.bf16.msra.mxu0 0
      %1248 = vmatprep.subr.bf16.mxu0 0
      %1249 = vmatpush1.bf16.msra.mxu0 0
      %1250 = vmatprep.subr.bf16.mxu0 0
      %1251 = vmatpush1.bf16.msra.mxu0 0
      %1252 = vmatprep.subr.bf16.mxu0 0
      %1253 = vmatpush1.bf16.msra.mxu0 0
      %1254 = vmatprep.mubr.bf16.mxu0 0
      %1255 = vmatmul.mubr.bf16.gmra.mrb[0].mxu0 %v1172
      %v1256 = vpop.f32.mrb[0].mxu0
      %v1257 = vadd.f32 0.0, %v1256
      %v1258 = vpop.f32.mrb[0].mxu0
      %v1259 = vpop.f32.mrb[0].mxu0
      %v1260 = vadd.f32 0.0, %v1259
      %v1261 = vpop.f32.mrb[0].mxu0
      %1262 = vmatprep.mubr.bf16.mxu0 0
      %1263 = vmatmul.mubr.bf16.gmra.mrb[0].mxu0 %v1175
      %v1264 = vpop.f32.mrb[0].mxu0
      %v1265 = vadd.f32 0.0, %v1264
      %v1266 = vpop.f32.mrb[0].mxu0
      %v1267 = vpop.f32.mrb[0].mxu0
      %v1268 = vadd.f32 0.0, %v1267
      %v1269 = vpop.f32.mrb[0].mxu0
      %1270 = vmatprep.mubr.bf16.mxu0 0
      %1271 = vmatmul.mubr.bf16.gmra.mrb[0].mxu0 %v1178
      %v1272 = vpop.f32.mrb[0].mxu0
      %v1273 = vadd.f32 0.0, %v1272
      %v1274 = vpop.f32.mrb[0].mxu0
      %v1275 = vpop.f32.mrb[0].mxu0
      %v1276 = vadd.f32 0.0, %v1275
      %v1277 = vpop.f32.mrb[0].mxu0
      %1278 = vmatprep.mubr.bf16.mxu0 0
      %1279 = vmatmul.mubr.bf16.gmra.mrb[0].mxu0 %v1181
      %v1280 = vpop.f32.mrb[0].mxu0
      %v1281 = vadd.f32 0.0, %v1280
      %v1282 = vpop.f32.mrb[0].mxu0
      %v1283 = vpop.f32.mrb[0].mxu0
      %v1284 = vadd.f32 0.0, %v1283
      %v1285 = vpop.f32.mrb[0].mxu0
      %1286 = vmatprep.mubr.bf16.mxu0 0
      %1287 = vmatmul.mubr.bf16.gmra.mrb[0].mxu0 %v1184
      %v1288 = vpop.f32.mrb[0].mxu0
      %v1289 = vadd.f32 0.0, %v1288
      %v1290 = vpop.f32.mrb[0].mxu0
      %v1291 = vpop.f32.mrb[0].mxu0
      %v1292 = vadd.f32 0.0, %v1291
      %v1293 = vpop.f32.mrb[0].mxu0
      %1294 = vmatprep.mubr.bf16.mxu0 0
      %1295 = vmatmul.mubr.bf16.gmra.mrb[0].mxu0 %v1187
      %v1296 = vpop.f32.mrb[0].mxu0
      %v1297 = vadd.f32 0.0, %v1296
      %v1298 = vpop.f32.mrb[0].mxu0
      %v1299 = vpop.f32.mrb[0].mxu0
      %v1300 = vadd.f32 0.0, %v1299
      %v1301 = vpop.f32.mrb[0].mxu0
      %1302 = vmatprep.mubr.bf16.mxu0 0
      %1303 = vmatmul.mubr.bf16.gmra.mrb[0].mxu0 %v1190
      %v1304 = vpop.f32.mrb[0].mxu0
      %v1305 = vadd.f32 0.0, %v1304
      %v1306 = vpop.f32.mrb[0].mxu0
      %v1307 = vpop.f32.mrb[0].mxu0
      %v1308 = vadd.f32 0.0, %v1307
      %v1309 = vpop.f32.mrb[0].mxu0
      %1310 = vmatprep.mubr.bf16.mxu0 0
      %1311 = vmatmul.mubr.bf16.gmra.mrb[0].mxu0 %v1193
      %v1312 = vpop.f32.mrb[0].mxu0
      %v1313 = vadd.f32 0.0, %v1312
      %v1314 = vpop.f32.mrb[0].mxu0
      %v1315 = vpop.f32.mrb[0].mxu0
      %v1316 = vadd.f32 0.0, %v1315
      %v1317 = vpop.f32.mrb[0].mxu0
      %1318 = vmatprep.mubr.bf16.mxu0 0
      %1319 = vmatmul.mubr.bf16.gmra.mrb[0].mxu0 %v1196
      %v1320 = vpop.f32.mrb[0].mxu0
      %v1321 = vadd.f32 0.0, %v1320
      %v1322 = vpop.f32.mrb[0].mxu0
      %v1323 = vpop.f32.mrb[0].mxu0
      %v1324 = vadd.f32 0.0, %v1323
      %v1325 = vpop.f32.mrb[0].mxu0
      %1326 = vmatprep.mubr.bf16.mxu0 0
      %1327 = vmatmul.mubr.bf16.gmra.mrb[0].mxu0 %v1199
      %v1328 = vpop.f32.mrb[0].mxu0
      %v1329 = vadd.f32 0.0, %v1328
      %v1330 = vpop.f32.mrb[0].mxu0
      %v1331 = vpop.f32.mrb[0].mxu0
      %v1332 = vadd.f32 0.0, %v1331
      %v1333 = vpop.f32.mrb[0].mxu0
      %1334 = vmatprep.mubr.bf16.mxu0 0
      %1335 = vmatmul.mubr.bf16.gmra.mrb[0].mxu0 %v1202
      %v1336 = vpop.f32.mrb[0].mxu0
      %v1337 = vadd.f32 0.0, %v1336
      %v1338 = vpop.f32.mrb[0].mxu0
      %v1339 = vpop.f32.mrb[0].mxu0
      %v1340 = vadd.f32 0.0, %v1339
      %v1341 = vpop.f32.mrb[0].mxu0
      %1342 = vmatprep.mubr.bf16.mxu0 0
      %1343 = vmatmul.mubr.bf16.gmra.mrb[0].mxu0 %v1205
      %v1344 = vpop.f32.mrb[0].mxu0
      %v1345 = vadd.f32 0.0, %v1344
      %v1346 = vpop.f32.mrb[0].mxu0
      %v1347 = vpop.f32.mrb[0].mxu0
      %v1348 = vadd.f32 0.0, %v1347
      %v1349 = vpop.f32.mrb[0].mxu0
      %1350 = vmatprep.mubr.bf16.mxu0 0
      %1351 = vmatmul.mubr.bf16.gmra.mrb[0].mxu0 %v1208
      %v1352 = vpop.f32.mrb[0].mxu0
      %v1353 = vadd.f32 0.0, %v1352
      %v1354 = vpop.f32.mrb[0].mxu0
      %v1355 = vpop.f32.mrb[0].mxu0
      %v1356 = vadd.f32 0.0, %v1355
      %v1357 = vpop.f32.mrb[0].mxu0
      %1358 = vmatprep.mubr.bf16.mxu0 0
      %1359 = vmatmul.mubr.bf16.gmra.mrb[0].mxu0 %v1211
      %v1360 = vpop.f32.mrb[0].mxu0
      %v1361 = vadd.f32 0.0, %v1360
      %v1362 = vpop.f32.mrb[0].mxu0
      %v1363 = vpop.f32.mrb[0].mxu0
      %v1364 = vadd.f32 0.0, %v1363
      %v1365 = vpop.f32.mrb[0].mxu0
      %1366 = vmatprep.mubr.bf16.mxu0 0
      %1367 = vmatmul.mubr.bf16.gmra.mrb[0].mxu0 %v1214
      %v1368 = vpop.f32.mrb[0].mxu0
      %v1369 = vadd.f32 0.0, %v1368
      %v1370 = vpop.f32.mrb[0].mxu0
      %v1371 = vpop.f32.mrb[0].mxu0
      %v1372 = vadd.f32 0.0, %v1371
      %v1373 = vpop.f32.mrb[0].mxu0
      %1374 = vmatprep.mubr.bf16.mxu0 0
      %1375 = vmatmul.mubr.bf16.gmra.mrb[0].mxu0 %v1217
      %v1376 = vpop.f32.mrb[0].mxu0
      %v1377 = vadd.f32 0.0, %v1376
      %v1378 = vpop.f32.mrb[0].mxu0
      %v1379 = vpop.f32.mrb[0].mxu0
      %v1380 = vadd.f32 0.0, %v1379
      %v1381 = vpop.f32.mrb[0].mxu0
      %1382 = vdwg.mxu0
      %v1383 = vadd.f32 %v995, %v1257
      %v1384 = vadd.f32 %v998, %v1260
      %v1385 = vadd.f32 %v1003, %v1265
      %v1386 = vadd.f32 %v1006, %v1268
      %v1387 = vadd.f32 %v1011, %v1273
      %v1388 = vadd.f32 %v1014, %v1276
      %v1389 = vadd.f32 %v1019, %v1281
      %v1390 = vadd.f32 %v1022, %v1284
      %v1391 = vadd.f32 %v1027, %v1289
      %v1392 = vadd.f32 %v1030, %v1292
      %v1393 = vadd.f32 %v1035, %v1297
      %v1394 = vadd.f32 %v1038, %v1300
      %v1395 = vadd.f32 %v1043, %v1305
      %v1396 = vadd.f32 %v1046, %v1308
      %v1397 = vadd.f32 %v1051, %v1313
      %v1398 = vadd.f32 %v1054, %v1316
      %v1399 = vadd.f32 %v1059, %v1321
      %v1400 = vadd.f32 %v1062, %v1324
      %v1401 = vadd.f32 %v1067, %v1329
      %v1402 = vadd.f32 %v1070, %v1332
      %v1403 = vadd.f32 %v1075, %v1337
      %v1404 = vadd.f32 %v1078, %v1340
      %v1405 = vadd.f32 %v1083, %v1345
      %v1406 = vadd.f32 %v1086, %v1348
      %v1407 = vadd.f32 %v1091, %v1353
      %v1408 = vadd.f32 %v1094, %v1356
      %v1409 = vadd.f32 %v1099, %v1361
      %v1410 = vadd.f32 %v1102, %v1364
      %v1411 = vadd.f32 %v1107, %v1369
      %v1412 = vadd.f32 %v1110, %v1372
      %v1413 = vadd.f32 %v1115, %v1377
      %v1414 = vadd.f32 %v1118, %v1380
      %v1415 = vld [vmem:[%s564] sm:$0xff]
      %v1416 = vld [vmem:[%s564 + $0x8] sm:$0xff]
      %v1417 = vld [vmem:[%s564 + $0x18] sm:$0xff]
      %v1418 = vld [vmem:[%s564 + $0x20] sm:$0xff]
      %v1419 = vld [vmem:[%s564 + $0x30] sm:$0xff]
      %v1420 = vld [vmem:[%s564 + $0x38] sm:$0xff]
      %v1421 = vld [vmem:[%s564 + $0x48] sm:$0xff]
      %v1422 = vld [vmem:[%s564 + $0x50] sm:$0xff]
      %v1423 = vld [vmem:[%s564 + $0x60] sm:$0xff]
      %v1424 = vld [vmem:[%s564 + $0x68] sm:$0xff]
      %v1425 = vld [vmem:[%s564 + $0x78] sm:$0xff]
      %v1426 = vld [vmem:[%s564 + $0x80] sm:$0xff]
      %v1427 = vld [vmem:[%s564 + $0x90] sm:$0xff]
      %v1428 = vld [vmem:[%s564 + $0x98] sm:$0xff]
      %v1429 = vld [vmem:[%s564 + $0xa8] sm:$0xff]
      %v1430 = vld [vmem:[%s564 + $0xb0] sm:$0xff]
      %v1431 = vld [vmem:[%s564 + $0xc0] sm:$0xff]
      %v1432 = vld [vmem:[%s564 + $0xc8] sm:$0xff]
      %v1433 = vld [vmem:[%s564 + $0xd8] sm:$0xff]
      %v1434 = vld [vmem:[%s564 + $0xe0] sm:$0xff]
      %v1435 = vld [vmem:[%s564 + $0xf0] sm:$0xff]
      %v1436 = vld [vmem:[%s564 + $0xf8] sm:$0xff]
      %v1437 = vld [vmem:[%s564 + $0x108] sm:$0xff]
      %v1438 = vld [vmem:[%s564 + $0x110] sm:$0xff]
      %v1439 = vld [vmem:[%s564 + $0x120] sm:$0xff]
      %v1440 = vld [vmem:[%s564 + $0x128] sm:$0xff]
      %v1441 = vld [vmem:[%s564 + $0x138] sm:$0xff]
      %v1442 = vld [vmem:[%s564 + $0x140] sm:$0xff]
      %v1443 = vld [vmem:[%s564 + $0x150] sm:$0xff]
      %v1444 = vld [vmem:[%s564 + $0x158] sm:$0xff]
      %v1445 = vld [vmem:[%s564 + $0x168] sm:$0xff]
      %v1446 = vld [vmem:[%s564 + $0x170] sm:$0xff]
      %v1447 = vpack.c.bf16 %v1416, %v1415
      %v1448 = vpack.c.bf16 %v1418, %v1417
      %v1449 = vpack.c.bf16 %v1420, %v1419
      %v1450 = vpack.c.bf16 %v1422, %v1421
      %v1451 = vpack.c.bf16 %v1424, %v1423
      %v1452 = vpack.c.bf16 %v1426, %v1425
      %v1453 = vpack.c.bf16 %v1428, %v1427
      %v1454 = vpack.c.bf16 %v1430, %v1429
      %v1455 = vpack.c.bf16 %v1432, %v1431
      %v1456 = vpack.c.bf16 %v1434, %v1433
      %v1457 = vpack.c.bf16 %v1436, %v1435
      %v1458 = vpack.c.bf16 %v1438, %v1437
      %v1459 = vpack.c.bf16 %v1440, %v1439
      %v1460 = vpack.c.bf16 %v1442, %v1441
      %v1461 = vpack.c.bf16 %v1444, %v1443
      %v1462 = vpack.c.bf16 %v1446, %v1445
      %s1463 = scalar_lea.vmem %s2, 12
      %v1464 = vld [vmem:[%s1463] sm:$0xf]
      %v1466 = vsel %vm219, %v1447, 0
      %v1469 = vsel %vm219, %v1448, 0
      %v1472 = vsel %vm219, %v1449, 0
      %v1475 = vsel %vm219, %v1450, 0
      %v1478 = vsel %vm219, %v1451, 0
      %v1481 = vsel %vm219, %v1452, 0
      %v1484 = vsel %vm219, %v1453, 0
      %v1487 = vsel %vm219, %v1454, 0
      %v1490 = vsel %vm219, %v1455, 0
      %v1493 = vsel %vm219, %v1456, 0
      %v1496 = vsel %vm219, %v1457, 0
      %v1499 = vsel %vm219, %v1458, 0
      %v1502 = vsel %vm219, %v1459, 0
      %v1505 = vsel %vm219, %v1460, 0
      %v1508 = vsel %vm219, %v1461, 0
      %v1511 = vsel %vm219, %v1462, 0
      %v1514 = vsel %vm744, %v1464, 0
      %1516 = vmatprep.subr.bf16.mxu0 0
      %1517 = vmatpush1.bf16.msra.mxu0 %v1514
      %1518 = vmatprep.subr.bf16.mxu0 0
      %1519 = vmatpush1.bf16.msra.mxu0 0
      %1520 = vmatprep.subr.bf16.mxu0 0
      %1521 = vmatpush1.bf16.msra.mxu0 0
      %1522 = vmatprep.subr.bf16.mxu0 0
      %1523 = vmatpush1.bf16.msra.mxu0 0
      %1524 = vmatprep.subr.bf16.mxu0 0
      %1525 = vmatpush1.bf16.msra.mxu0 0
      %1526 = vmatprep.subr.bf16.mxu0 0
      %1527 = vmatpush1.bf16.msra.mxu0 0
      %1528 = vmatprep.subr.bf16.mxu0 0
      %1529 = vmatpush1.bf16.msra.mxu0 0
      %1530 = vmatprep.subr.bf16.mxu0 0
      %1531 = vmatpush1.bf16.msra.mxu0 0
      %1532 = vmatprep.subr.bf16.mxu0 0
      %1533 = vmatpush1.bf16.msra.mxu0 0
      %1534 = vmatprep.subr.bf16.mxu0 0
      %1535 = vmatpush1.bf16.msra.mxu0 0
      %1536 = vmatprep.subr.bf16.mxu0 0
      %1537 = vmatpush1.bf16.msra.mxu0 0
      %1538 = vmatprep.subr.bf16.mxu0 0
      %1539 = vmatpush1.bf16.msra.mxu0 0
      %1540 = vmatprep.subr.bf16.mxu0 0
      %1541 = vmatpush1.bf16.msra.mxu0 0
      %1542 = vmatprep.subr.bf16.mxu0 0
      %1543 = vmatpush1.bf16.msra.mxu0 0
      %1544 = vmatprep.subr.bf16.mxu0 0
      %1545 = vmatpush1.bf16.msra.mxu0 0
      %1546 = vmatprep.subr.bf16.mxu0 0
      %1547 = vmatpush1.bf16.msra.mxu0 0
      %1548 = vmatprep.mubr.bf16.mxu0 0
      %1549 = vmatmul.mubr.bf16.gmra.mrb[0].mxu0 %v1466
      %v1550 = vpop.f32.mrb[0].mxu0
      %v1551 = vadd.f32 0.0, %v1550
      %v1552 = vpop.f32.mrb[0].mxu0
      %v1553 = vpop.f32.mrb[0].mxu0
      %v1554 = vadd.f32 0.0, %v1553
      %v1555 = vpop.f32.mrb[0].mxu0
      %1556 = vmatprep.mubr.bf16.mxu0 0
      %1557 = vmatmul.mubr.bf16.gmra.mrb[0].mxu0 %v1469
      %v1558 = vpop.f32.mrb[0].mxu0
      %v1559 = vadd.f32 0.0, %v1558
      %v1560 = vpop.f32.mrb[0].mxu0
      %v1561 = vpop.f32.mrb[0].mxu0
      %v1562 = vadd.f32 0.0, %v1561
      %v1563 = vpop.f32.mrb[0].mxu0
      %1564 = vmatprep.mubr.bf16.mxu0 0
      %1565 = vmatmul.mubr.bf16.gmra.mrb[0].mxu0 %v1472
      %v1566 = vpop.f32.mrb[0].mxu0
      %v1567 = vadd.f32 0.0, %v1566
      %v1568 = vpop.f32.mrb[0].mxu0
      %v1569 = vpop.f32.mrb[0].mxu0
      %v1570 = vadd.f32 0.0, %v1569
      %v1571 = vpop.f32.mrb[0].mxu0
      %1572 = vmatprep.mubr.bf16.mxu0 0
      %1573 = vmatmul.mubr.bf16.gmra.mrb[0].mxu0 %v1475
      %v1574 = vpop.f32.mrb[0].mxu0
      %v1575 = vadd.f32 0.0, %v1574
      %v1576 = vpop.f32.mrb[0].mxu0
      %v1577 = vpop.f32.mrb[0].mxu0
      %v1578 = vadd.f32 0.0, %v1577
      %v1579 = vpop.f32.mrb[0].mxu0
      %1580 = vmatprep.mubr.bf16.mxu0 0
      %1581 = vmatmul.mubr.bf16.gmra.mrb[0].mxu0 %v1478
      %v1582 = vpop.f32.mrb[0].mxu0
      %v1583 = vadd.f32 0.0, %v1582
      %v1584 = vpop.f32.mrb[0].mxu0
      %v1585 = vpop.f32.mrb[0].mxu0
      %v1586 = vadd.f32 0.0, %v1585
      %v1587 = vpop.f32.mrb[0].mxu0
      %1588 = vmatprep.mubr.bf16.mxu0 0
      %1589 = vmatmul.mubr.bf16.gmra.mrb[0].mxu0 %v1481
      %v1590 = vpop.f32.mrb[0].mxu0
      %v1591 = vadd.f32 0.0, %v1590
      %v1592 = vpop.f32.mrb[0].mxu0
      %v1593 = vpop.f32.mrb[0].mxu0
      %v1594 = vadd.f32 0.0, %v1593
      %v1595 = vpop.f32.mrb[0].mxu0
      %1596 = vmatprep.mubr.bf16.mxu0 0
      %1597 = vmatmul.mubr.bf16.gmra.mrb[0].mxu0 %v1484
      %v1598 = vpop.f32.mrb[0].mxu0
      %v1599 = vadd.f32 0.0, %v1598
      %v1600 = vpop.f32.mrb[0].mxu0
      %v1601 = vpop.f32.mrb[0].mxu0
      %v1602 = vadd.f32 0.0, %v1601
      %v1603 = vpop.f32.mrb[0].mxu0
      %1604 = vmatprep.mubr.bf16.mxu0 0
      %1605 = vmatmul.mubr.bf16.gmra.mrb[0].mxu0 %v1487
      %v1606 = vpop.f32.mrb[0].mxu0
      %v1607 = vadd.f32 0.0, %v1606
      %v1608 = vpop.f32.mrb[0].mxu0
      %v1609 = vpop.f32.mrb[0].mxu0
      %v1610 = vadd.f32 0.0, %v1609
      %v1611 = vpop.f32.mrb[0].mxu0
      %1612 = vmatprep.mubr.bf16.mxu0 0
      %1613 = vmatmul.mubr.bf16.gmra.mrb[0].mxu0 %v1490
      %v1614 = vpop.f32.mrb[0].mxu0
      %v1615 = vadd.f32 0.0, %v1614
      %v1616 = vpop.f32.mrb[0].mxu0
      %v1617 = vpop.f32.mrb[0].mxu0
      %v1618 = vadd.f32 0.0, %v1617
      %v1619 = vpop.f32.mrb[0].mxu0
      %1620 = vmatprep.mubr.bf16.mxu0 0
      %1621 = vmatmul.mubr.bf16.gmra.mrb[0].mxu0 %v1493
      %v1622 = vpop.f32.mrb[0].mxu0
      %v1623 = vadd.f32 0.0, %v1622
      %v1624 = vpop.f32.mrb[0].mxu0
      %v1625 = vpop.f32.mrb[0].mxu0
      %v1626 = vadd.f32 0.0, %v1625
      %v1627 = vpop.f32.mrb[0].mxu0
      %1628 = vmatprep.mubr.bf16.mxu0 0
      %1629 = vmatmul.mubr.bf16.gmra.mrb[0].mxu0 %v1496
      %v1630 = vpop.f32.mrb[0].mxu0
      %v1631 = vadd.f32 0.0, %v1630
      %v1632 = vpop.f32.mrb[0].mxu0
      %v1633 = vpop.f32.mrb[0].mxu0
      %v1634 = vadd.f32 0.0, %v1633
      %v1635 = vpop.f32.mrb[0].mxu0
      %1636 = vmatprep.mubr.bf16.mxu0 0
      %1637 = vmatmul.mubr.bf16.gmra.mrb[0].mxu0 %v1499
      %v1638 = vpop.f32.mrb[0].mxu0
      %v1639 = vadd.f32 0.0, %v1638
      %v1640 = vpop.f32.mrb[0].mxu0
      %v1641 = vpop.f32.mrb[0].mxu0
      %v1642 = vadd.f32 0.0, %v1641
      %v1643 = vpop.f32.mrb[0].mxu0
      %1644 = vmatprep.mubr.bf16.mxu0 0
      %1645 = vmatmul.mubr.bf16.gmra.mrb[0].mxu0 %v1502
      %v1646 = vpop.f32.mrb[0].mxu0
      %v1647 = vadd.f32 0.0, %v1646
      %v1648 = vpop.f32.mrb[0].mxu0
      %v1649 = vpop.f32.mrb[0].mxu0
      %v1650 = vadd.f32 0.0, %v1649
      %v1651 = vpop.f32.mrb[0].mxu0
      %1652 = vmatprep.mubr.bf16.mxu0 0
      %1653 = vmatmul.mubr.bf16.gmra.mrb[0].mxu0 %v1505
      %v1654 = vpop.f32.mrb[0].mxu0
      %v1655 = vadd.f32 0.0, %v1654
      %v1656 = vpop.f32.mrb[0].mxu0
      %v1657 = vpop.f32.mrb[0].mxu0
      %v1658 = vadd.f32 0.0, %v1657
      %v1659 = vpop.f32.mrb[0].mxu0
      %1660 = vmatprep.mubr.bf16.mxu0 0
      %1661 = vmatmul.mubr.bf16.gmra.mrb[0].mxu0 %v1508
      %v1662 = vpop.f32.mrb[0].mxu0
      %v1663 = vadd.f32 0.0, %v1662
      %v1664 = vpop.f32.mrb[0].mxu0
      %v1665 = vpop.f32.mrb[0].mxu0
      %v1666 = vadd.f32 0.0, %v1665
      %v1667 = vpop.f32.mrb[0].mxu0
      %1668 = vmatprep.mubr.bf16.mxu0 0
      %1669 = vmatmul.mubr.bf16.gmra.mrb[0].mxu0 %v1511
      %v1670 = vpop.f32.mrb[0].mxu0
      %v1671 = vadd.f32 0.0, %v1670
      %v1672 = vpop.f32.mrb[0].mxu0
      %v1673 = vpop.f32.mrb[0].mxu0
      %v1674 = vadd.f32 0.0, %v1673
      %v1675 = vpop.f32.mrb[0].mxu0
      %1676 = vdwg.mxu0
      %v1677 = vadd.f32 %v1383, %v1551
      %v1678 = vadd.f32 %v1384, %v1554
      %v1679 = vadd.f32 %v1385, %v1559
      %v1680 = vadd.f32 %v1386, %v1562
      %v1681 = vadd.f32 %v1387, %v1567
      %v1682 = vadd.f32 %v1388, %v1570
      %v1683 = vadd.f32 %v1389, %v1575
      %v1684 = vadd.f32 %v1390, %v1578
      %v1685 = vadd.f32 %v1391, %v1583
      %v1686 = vadd.f32 %v1392, %v1586
      %v1687 = vadd.f32 %v1393, %v1591
      %v1688 = vadd.f32 %v1394, %v1594
      %v1689 = vadd.f32 %v1395, %v1599
      %v1690 = vadd.f32 %v1396, %v1602
      %v1691 = vadd.f32 %v1397, %v1607
      %v1692 = vadd.f32 %v1398, %v1610
      %v1693 = vadd.f32 %v1399, %v1615
      %v1694 = vadd.f32 %v1400, %v1618
      %v1695 = vadd.f32 %v1401, %v1623
      %v1696 = vadd.f32 %v1402, %v1626
      %v1697 = vadd.f32 %v1403, %v1631
      %v1698 = vadd.f32 %v1404, %v1634
      %v1699 = vadd.f32 %v1405, %v1639
      %v1700 = vadd.f32 %v1406, %v1642
      %v1701 = vadd.f32 %v1407, %v1647
      %v1702 = vadd.f32 %v1408, %v1650
      %v1703 = vadd.f32 %v1409, %v1655
      %v1704 = vadd.f32 %v1410, %v1658
      %v1705 = vadd.f32 %v1411, %v1663
      %v1706 = vadd.f32 %v1412, %v1666
      %v1707 = vadd.f32 %v1413, %v1671
      %v1708 = vadd.f32 %v1414, %v1674
      %v1709 = vld [vmem:[%s564 + $0x1] sm:$0xff]
      %v1710 = vld [vmem:[%s564 + $0x9] sm:$0xff]
      %v1711 = vld [vmem:[%s564 + $0x19] sm:$0xff]
      %v1712 = vld [vmem:[%s564 + $0x21] sm:$0xff]
      %v1713 = vld [vmem:[%s564 + $0x31] sm:$0xff]
      %v1714 = vld [vmem:[%s564 + $0x39] sm:$0xff]
      %v1715 = vld [vmem:[%s564 + $0x49] sm:$0xff]
      %v1716 = vld [vmem:[%s564 + $0x51] sm:$0xff]
      %v1717 = vld [vmem:[%s564 + $0x61] sm:$0xff]
      %v1718 = vld [vmem:[%s564 + $0x69] sm:$0xff]
      %v1719 = vld [vmem:[%s564 + $0x79] sm:$0xff]
      %v1720 = vld [vmem:[%s564 + $0x81] sm:$0xff]
      %v1721 = vld [vmem:[%s564 + $0x91] sm:$0xff]
      %v1722 = vld [vmem:[%s564 + $0x99] sm:$0xff]
      %v1723 = vld [vmem:[%s564 + $0xa9] sm:$0xff]
      %v1724 = vld [vmem:[%s564 + $0xb1] sm:$0xff]
      %v1725 = vld [vmem:[%s564 + $0xc1] sm:$0xff]
      %v1726 = vld [vmem:[%s564 + $0xc9] sm:$0xff]
      %v1727 = vld [vmem:[%s564 + $0xd9] sm:$0xff]
      %v1728 = vld [vmem:[%s564 + $0xe1] sm:$0xff]
      %v1729 = vld [vmem:[%s564 + $0xf1] sm:$0xff]
      %v1730 = vld [vmem:[%s564 + $0xf9] sm:$0xff]
      %v1731 = vld [vmem:[%s564 + $0x109] sm:$0xff]
      %v1732 = vld [vmem:[%s564 + $0x111] sm:$0xff]
      %v1733 = vld [vmem:[%s564 + $0x121] sm:$0xff]
      %v1734 = vld [vmem:[%s564 + $0x129] sm:$0xff]
      %v1735 = vld [vmem:[%s564 + $0x139] sm:$0xff]
      %v1736 = vld [vmem:[%s564 + $0x141] sm:$0xff]
      %v1737 = vld [vmem:[%s564 + $0x151] sm:$0xff]
      %v1738 = vld [vmem:[%s564 + $0x159] sm:$0xff]
      %v1739 = vld [vmem:[%s564 + $0x169] sm:$0xff]
      %v1740 = vld [vmem:[%s564 + $0x171] sm:$0xff]
      %v1741 = vpack.c.bf16 %v1710, %v1709
      %v1742 = vpack.c.bf16 %v1712, %v1711
      %v1743 = vpack.c.bf16 %v1714, %v1713
      %v1744 = vpack.c.bf16 %v1716, %v1715
      %v1745 = vpack.c.bf16 %v1718, %v1717
      %v1746 = vpack.c.bf16 %v1720, %v1719
      %v1747 = vpack.c.bf16 %v1722, %v1721
      %v1748 = vpack.c.bf16 %v1724, %v1723
      %v1749 = vpack.c.bf16 %v1726, %v1725
      %v1750 = vpack.c.bf16 %v1728, %v1727
      %v1751 = vpack.c.bf16 %v1730, %v1729
      %v1752 = vpack.c.bf16 %v1732, %v1731
      %v1753 = vpack.c.bf16 %v1734, %v1733
      %v1754 = vpack.c.bf16 %v1736, %v1735
      %v1755 = vpack.c.bf16 %v1738, %v1737
      %v1756 = vpack.c.bf16 %v1740, %v1739
      %s1757 = scalar_lea.vmem %s2, 16
      %v1758 = vld [vmem:[%s1757] sm:$0xf]
      %v1760 = vsel %vm219, %v1741, 0
      %v1763 = vsel %vm219, %v1742, 0
      %v1766 = vsel %vm219, %v1743, 0
      %v1769 = vsel %vm219, %v1744, 0
      %v1772 = vsel %vm219, %v1745, 0
      %v1775 = vsel %vm219, %v1746, 0
      %v1778 = vsel %vm219, %v1747, 0
      %v1781 = vsel %vm219, %v1748, 0
      %v1784 = vsel %vm219, %v1749, 0
      %v1787 = vsel %vm219, %v1750, 0
      %v1790 = vsel %vm219, %v1751, 0
      %v1793 = vsel %vm219, %v1752, 0
      %v1796 = vsel %vm219, %v1753, 0
      %v1799 = vsel %vm219, %v1754, 0
      %v1802 = vsel %vm219, %v1755, 0
      %v1805 = vsel %vm219, %v1756, 0
      %v1808 = vsel %vm744, %v1758, 0
      %1810 = vmatprep.subr.bf16.mxu0 0
      %1811 = vmatpush1.bf16.msra.mxu0 %v1808
      %1812 = vmatprep.subr.bf16.mxu0 0
      %1813 = vmatpush1.bf16.msra.mxu0 0
      %1814 = vmatprep.subr.bf16.mxu0 0
      %1815 = vmatpush1.bf16.msra.mxu0 0
      %1816 = vmatprep.subr.bf16.mxu0 0
      %1817 = vmatpush1.bf16.msra.mxu0 0
      %1818 = vmatprep.subr.bf16.mxu0 0
      %1819 = vmatpush1.bf16.msra.mxu0 0
      %1820 = vmatprep.subr.bf16.mxu0 0
      %1821 = vmatpush1.bf16.msra.mxu0 0
      %1822 = vmatprep.subr.bf16.mxu0 0
      %1823 = vmatpush1.bf16.msra.mxu0 0
      %1824 = vmatprep.subr.bf16.mxu0 0
      %1825 = vmatpush1.bf16.msra.mxu0 0
      %1826 = vmatprep.subr.bf16.mxu0 0
      %1827 = vmatpush1.bf16.msra.mxu0 0
      %1828 = vmatprep.subr.bf16.mxu0 0
      %1829 = vmatpush1.bf16.msra.mxu0 0
      %1830 = vmatprep.subr.bf16.mxu0 0
      %1831 = vmatpush1.bf16.msra.mxu0 0
      %1832 = vmatprep.subr.bf16.mxu0 0
      %1833 = vmatpush1.bf16.msra.mxu0 0
      %1834 = vmatprep.subr.bf16.mxu0 0
      %1835 = vmatpush1.bf16.msra.mxu0 0
      %1836 = vmatprep.subr.bf16.mxu0 0
      %1837 = vmatpush1.bf16.msra.mxu0 0
      %1838 = vmatprep.subr.bf16.mxu0 0
      %1839 = vmatpush1.bf16.msra.mxu0 0
      %1840 = vmatprep.subr.bf16.mxu0 0
      %1841 = vmatpush1.bf16.msra.mxu0 0
      %1842 = vmatprep.mubr.bf16.mxu0 0
      %1843 = vmatmul.mubr.bf16.gmra.mrb[0].mxu0 %v1760
      %v1844 = vpop.f32.mrb[0].mxu0
      %v1845 = vadd.f32 0.0, %v1844
      %v1846 = vpop.f32.mrb[0].mxu0
      %v1847 = vpop.f32.mrb[0].mxu0
      %v1848 = vadd.f32 0.0, %v1847
      %v1849 = vpop.f32.mrb[0].mxu0
      %1850 = vmatprep.mubr.bf16.mxu0 0
      %1851 = vmatmul.mubr.bf16.gmra.mrb[0].mxu0 %v1763
      %v1852 = vpop.f32.mrb[0].mxu0
      %v1853 = vadd.f32 0.0, %v1852
      %v1854 = vpop.f32.mrb[0].mxu0
      %v1855 = vpop.f32.mrb[0].mxu0
      %v1856 = vadd.f32 0.0, %v1855
      %v1857 = vpop.f32.mrb[0].mxu0
      %1858 = vmatprep.mubr.bf16.mxu0 0
      %1859 = vmatmul.mubr.bf16.gmra.mrb[0].mxu0 %v1766
      %v1860 = vpop.f32.mrb[0].mxu0
      %v1861 = vadd.f32 0.0, %v1860
      %v1862 = vpop.f32.mrb[0].mxu0
      %v1863 = vpop.f32.mrb[0].mxu0
      %v1864 = vadd.f32 0.0, %v1863
      %v1865 = vpop.f32.mrb[0].mxu0
      %1866 = vmatprep.mubr.bf16.mxu0 0
      %1867 = vmatmul.mubr.bf16.gmra.mrb[0].mxu0 %v1769
      %v1868 = vpop.f32.mrb[0].mxu0
      %v1869 = vadd.f32 0.0, %v1868
      %v1870 = vpop.f32.mrb[0].mxu0
      %v1871 = vpop.f32.mrb[0].mxu0
      %v1872 = vadd.f32 0.0, %v1871
      %v1873 = vpop.f32.mrb[0].mxu0
      %1874 = vmatprep.mubr.bf16.mxu0 0
      %1875 = vmatmul.mubr.bf16.gmra.mrb[0].mxu0 %v1772
      %v1876 = vpop.f32.mrb[0].mxu0
      %v1877 = vadd.f32 0.0, %v1876
      %v1878 = vpop.f32.mrb[0].mxu0
      %v1879 = vpop.f32.mrb[0].mxu0
      %v1880 = vadd.f32 0.0, %v1879
      %v1881 = vpop.f32.mrb[0].mxu0
      %1882 = vmatprep.mubr.bf16.mxu0 0
      %1883 = vmatmul.mubr.bf16.gmra.mrb[0].mxu0 %v1775
      %v1884 = vpop.f32.mrb[0].mxu0
      %v1885 = vadd.f32 0.0, %v1884
      %v1886 = vpop.f32.mrb[0].mxu0
      %v1887 = vpop.f32.mrb[0].mxu0
      %v1888 = vadd.f32 0.0, %v1887
      %v1889 = vpop.f32.mrb[0].mxu0
      %1890 = vmatprep.mubr.bf16.mxu0 0
      %1891 = vmatmul.mubr.bf16.gmra.mrb[0].mxu0 %v1778
      %v1892 = vpop.f32.mrb[0].mxu0
      %v1893 = vadd.f32 0.0, %v1892
      %v1894 = vpop.f32.mrb[0].mxu0
      %v1895 = vpop.f32.mrb[0].mxu0
      %v1896 = vadd.f32 0.0, %v1895
      %v1897 = vpop.f32.mrb[0].mxu0
      %1898 = vmatprep.mubr.bf16.mxu0 0
      %1899 = vmatmul.mubr.bf16.gmra.mrb[0].mxu0 %v1781
      %v1900 = vpop.f32.mrb[0].mxu0
      %v1901 = vadd.f32 0.0, %v1900
      %v1902 = vpop.f32.mrb[0].mxu0
      %v1903 = vpop.f32.mrb[0].mxu0
      %v1904 = vadd.f32 0.0, %v1903
      %v1905 = vpop.f32.mrb[0].mxu0
      %1906 = vmatprep.mubr.bf16.mxu0 0
      %1907 = vmatmul.mubr.bf16.gmra.mrb[0].mxu0 %v1784
      %v1908 = vpop.f32.mrb[0].mxu0
      %v1909 = vadd.f32 0.0, %v1908
      %v1910 = vpop.f32.mrb[0].mxu0
      %v1911 = vpop.f32.mrb[0].mxu0
      %v1912 = vadd.f32 0.0, %v1911
      %v1913 = vpop.f32.mrb[0].mxu0
      %1914 = vmatprep.mubr.bf16.mxu0 0
      %1915 = vmatmul.mubr.bf16.gmra.mrb[0].mxu0 %v1787
      %v1916 = vpop.f32.mrb[0].mxu0
      %v1917 = vadd.f32 0.0, %v1916
      %v1918 = vpop.f32.mrb[0].mxu0
      %v1919 = vpop.f32.mrb[0].mxu0
      %v1920 = vadd.f32 0.0, %v1919
      %v1921 = vpop.f32.mrb[0].mxu0
      %1922 = vmatprep.mubr.bf16.mxu0 0
      %1923 = vmatmul.mubr.bf16.gmra.mrb[0].mxu0 %v1790
      %v1924 = vpop.f32.mrb[0].mxu0
      %v1925 = vadd.f32 0.0, %v1924
      %v1926 = vpop.f32.mrb[0].mxu0
      %v1927 = vpop.f32.mrb[0].mxu0
      %v1928 = vadd.f32 0.0, %v1927
      %v1929 = vpop.f32.mrb[0].mxu0
      %1930 = vmatprep.mubr.bf16.mxu0 0
      %1931 = vmatmul.mubr.bf16.gmra.mrb[0].mxu0 %v1793
      %v1932 = vpop.f32.mrb[0].mxu0
      %v1933 = vadd.f32 0.0, %v1932
      %v1934 = vpop.f32.mrb[0].mxu0
      %v1935 = vpop.f32.mrb[0].mxu0
      %v1936 = vadd.f32 0.0, %v1935
      %v1937 = vpop.f32.mrb[0].mxu0
      %1938 = vmatprep.mubr.bf16.mxu0 0
      %1939 = vmatmul.mubr.bf16.gmra.mrb[0].mxu0 %v1796
      %v1940 = vpop.f32.mrb[0].mxu0
      %v1941 = vadd.f32 0.0, %v1940
      %v1942 = vpop.f32.mrb[0].mxu0
      %v1943 = vpop.f32.mrb[0].mxu0
      %v1944 = vadd.f32 0.0, %v1943
      %v1945 = vpop.f32.mrb[0].mxu0
      %1946 = vmatprep.mubr.bf16.mxu0 0
      %1947 = vmatmul.mubr.bf16.gmra.mrb[0].mxu0 %v1799
      %v1948 = vpop.f32.mrb[0].mxu0
      %v1949 = vadd.f32 0.0, %v1948
      %v1950 = vpop.f32.mrb[0].mxu0
      %v1951 = vpop.f32.mrb[0].mxu0
      %v1952 = vadd.f32 0.0, %v1951
      %v1953 = vpop.f32.mrb[0].mxu0
      %1954 = vmatprep.mubr.bf16.mxu0 0
      %1955 = vmatmul.mubr.bf16.gmra.mrb[0].mxu0 %v1802
      %v1956 = vpop.f32.mrb[0].mxu0
      %v1957 = vadd.f32 0.0, %v1956
      %v1958 = vpop.f32.mrb[0].mxu0
      %v1959 = vpop.f32.mrb[0].mxu0
      %v1960 = vadd.f32 0.0, %v1959
      %v1961 = vpop.f32.mrb[0].mxu0
      %1962 = vmatprep.mubr.bf16.mxu0 0
      %1963 = vmatmul.mubr.bf16.gmra.mrb[0].mxu0 %v1805
      %v1964 = vpop.f32.mrb[0].mxu0
      %v1965 = vadd.f32 0.0, %v1964
      %v1966 = vpop.f32.mrb[0].mxu0
      %v1967 = vpop.f32.mrb[0].mxu0
      %v1968 = vadd.f32 0.0, %v1967
      %v1969 = vpop.f32.mrb[0].mxu0
      %1970 = vdwg.mxu0
      %v1971 = vadd.f32 %v1677, %v1845
      %v1972 = vadd.f32 %v1678, %v1848
      %v1973 = vadd.f32 %v1679, %v1853
      %v1974 = vadd.f32 %v1680, %v1856
      %v1975 = vadd.f32 %v1681, %v1861
      %v1976 = vadd.f32 %v1682, %v1864
      %v1977 = vadd.f32 %v1683, %v1869
      %v1978 = vadd.f32 %v1684, %v1872
      %v1979 = vadd.f32 %v1685, %v1877
      %v1980 = vadd.f32 %v1686, %v1880
      %v1981 = vadd.f32 %v1687, %v1885
      %v1982 = vadd.f32 %v1688, %v1888
      %v1983 = vadd.f32 %v1689, %v1893
      %v1984 = vadd.f32 %v1690, %v1896
      %v1985 = vadd.f32 %v1691, %v1901
      %v1986 = vadd.f32 %v1692, %v1904
      %v1987 = vadd.f32 %v1693, %v1909
      %v1988 = vadd.f32 %v1694, %v1912
      %v1989 = vadd.f32 %v1695, %v1917
      %v1990 = vadd.f32 %v1696, %v1920
      %v1991 = vadd.f32 %v1697, %v1925
      %v1992 = vadd.f32 %v1698, %v1928
      %v1993 = vadd.f32 %v1699, %v1933
      %v1994 = vadd.f32 %v1700, %v1936
      %v1995 = vadd.f32 %v1701, %v1941
      %v1996 = vadd.f32 %v1702, %v1944
      %v1997 = vadd.f32 %v1703, %v1949
      %v1998 = vadd.f32 %v1704, %v1952
      %v1999 = vadd.f32 %v1705, %v1957
      %v2000 = vadd.f32 %v1706, %v1960
      %v2001 = vadd.f32 %v1707, %v1965
      %v2002 = vadd.f32 %v1708, %v1968
      %v2003 = vld [vmem:[%s564 + $0x2] sm:$0xff]
      %v2004 = vld [vmem:[%s564 + $0xa] sm:$0xff]
      %v2005 = vld [vmem:[%s564 + $0x1a] sm:$0xff]
      %v2006 = vld [vmem:[%s564 + $0x22] sm:$0xff]
      %v2007 = vld [vmem:[%s564 + $0x32] sm:$0xff]
      %v2008 = vld [vmem:[%s564 + $0x3a] sm:$0xff]
      %v2009 = vld [vmem:[%s564 + $0x4a] sm:$0xff]
      %v2010 = vld [vmem:[%s564 + $0x52] sm:$0xff]
      %v2011 = vld [vmem:[%s564 + $0x62] sm:$0xff]
      %v2012 = vld [vmem:[%s564 + $0x6a] sm:$0xff]
      %v2013 = vld [vmem:[%s564 + $0x7a] sm:$0xff]
      %v2014 = vld [vmem:[%s564 + $0x82] sm:$0xff]
      %v2015 = vld [vmem:[%s564 + $0x92] sm:$0xff]
      %v2016 = vld [vmem:[%s564 + $0x9a] sm:$0xff]
      %v2017 = vld [vmem:[%s564 + $0xaa] sm:$0xff]
      %v2018 = vld [vmem:[%s564 + $0xb2] sm:$0xff]
      %v2019 = vld [vmem:[%s564 + $0xc2] sm:$0xff]
      %v2020 = vld [vmem:[%s564 + $0xca] sm:$0xff]
      %v2021 = vld [vmem:[%s564 + $0xda] sm:$0xff]
      %v2022 = vld [vmem:[%s564 + $0xe2] sm:$0xff]
      %v2023 = vld [vmem:[%s564 + $0xf2] sm:$0xff]
      %v2024 = vld [vmem:[%s564 + $0xfa] sm:$0xff]
      %v2025 = vld [vmem:[%s564 + $0x10a] sm:$0xff]
      %v2026 = vld [vmem:[%s564 + $0x112] sm:$0xff]
      %v2027 = vld [vmem:[%s564 + $0x122] sm:$0xff]
      %v2028 = vld [vmem:[%s564 + $0x12a] sm:$0xff]
      %v2029 = vld [vmem:[%s564 + $0x13a] sm:$0xff]
      %v2030 = vld [vmem:[%s564 + $0x142] sm:$0xff]
      %v2031 = vld [vmem:[%s564 + $0x152] sm:$0xff]
      %v2032 = vld [vmem:[%s564 + $0x15a] sm:$0xff]
      %v2033 = vld [vmem:[%s564 + $0x16a] sm:$0xff]
      %v2034 = vld [vmem:[%s564 + $0x172] sm:$0xff]
      %v2035 = vpack.c.bf16 %v2004, %v2003
      %v2036 = vpack.c.bf16 %v2006, %v2005
      %v2037 = vpack.c.bf16 %v2008, %v2007
      %v2038 = vpack.c.bf16 %v2010, %v2009
      %v2039 = vpack.c.bf16 %v2012, %v2011
      %v2040 = vpack.c.bf16 %v2014, %v2013
      %v2041 = vpack.c.bf16 %v2016, %v2015
      %v2042 = vpack.c.bf16 %v2018, %v2017
      %v2043 = vpack.c.bf16 %v2020, %v2019
      %v2044 = vpack.c.bf16 %v2022, %v2021
      %v2045 = vpack.c.bf16 %v2024, %v2023
      %v2046 = vpack.c.bf16 %v2026, %v2025
      %v2047 = vpack.c.bf16 %v2028, %v2027
      %v2048 = vpack.c.bf16 %v2030, %v2029
      %v2049 = vpack.c.bf16 %v2032, %v2031
      %v2050 = vpack.c.bf16 %v2034, %v2033
      %s2051 = scalar_lea.vmem %s2, 20
      %v2052 = vld [vmem:[%s2051] sm:$0xf]
      %v2054 = vsel %vm219, %v2035, 0
      %v2057 = vsel %vm219, %v2036, 0
      %v2060 = vsel %vm219, %v2037, 0
      %v2063 = vsel %vm219, %v2038, 0
      %v2066 = vsel %vm219, %v2039, 0
      %v2069 = vsel %vm219, %v2040, 0
      %v2072 = vsel %vm219, %v2041, 0
      %v2075 = vsel %vm219, %v2042, 0
      %v2078 = vsel %vm219, %v2043, 0
      %v2081 = vsel %vm219, %v2044, 0
      %v2084 = vsel %vm219, %v2045, 0
      %v2087 = vsel %vm219, %v2046, 0
      %v2090 = vsel %vm219, %v2047, 0
      %v2093 = vsel %vm219, %v2048, 0
      %v2096 = vsel %vm219, %v2049, 0
      %v2099 = vsel %vm219, %v2050, 0
      %v2102 = vsel %vm744, %v2052, 0
      %2104 = vmatprep.subr.bf16.mxu0 0
      %2105 = vmatpush1.bf16.msra.mxu0 %v2102
      %2106 = vmatprep.subr.bf16.mxu0 0
      %2107 = vmatpush1.bf16.msra.mxu0 0
      %2108 = vmatprep.subr.bf16.mxu0 0
      %2109 = vmatpush1.bf16.msra.mxu0 0
      %2110 = vmatprep.subr.bf16.mxu0 0
      %2111 = vmatpush1.bf16.msra.mxu0 0
      %2112 = vmatprep.subr.bf16.mxu0 0
      %2113 = vmatpush1.bf16.msra.mxu0 0
      %2114 = vmatprep.subr.bf16.mxu0 0
      %2115 = vmatpush1.bf16.msra.mxu0 0
      %2116 = vmatprep.subr.bf16.mxu0 0
      %2117 = vmatpush1.bf16.msra.mxu0 0
      %2118 = vmatprep.subr.bf16.mxu0 0
      %2119 = vmatpush1.bf16.msra.mxu0 0
      %2120 = vmatprep.subr.bf16.mxu0 0
      %2121 = vmatpush1.bf16.msra.mxu0 0
      %2122 = vmatprep.subr.bf16.mxu0 0
      %2123 = vmatpush1.bf16.msra.mxu0 0
      %2124 = vmatprep.subr.bf16.mxu0 0
      %2125 = vmatpush1.bf16.msra.mxu0 0
      %2126 = vmatprep.subr.bf16.mxu0 0
      %2127 = vmatpush1.bf16.msra.mxu0 0
      %2128 = vmatprep.subr.bf16.mxu0 0
      %2129 = vmatpush1.bf16.msra.mxu0 0
      %2130 = vmatprep.subr.bf16.mxu0 0
      %2131 = vmatpush1.bf16.msra.mxu0 0
      %2132 = vmatprep.subr.bf16.mxu0 0
      %2133 = vmatpush1.bf16.msra.mxu0 0
      %2134 = vmatprep.subr.bf16.mxu0 0
      %2135 = vmatpush1.bf16.msra.mxu0 0
      %2136 = vmatprep.mubr.bf16.mxu0 0
      %2137 = vmatmul.mubr.bf16.gmra.mrb[0].mxu0 %v2054
      %v2138 = vpop.f32.mrb[0].mxu0
      %v2139 = vadd.f32 0.0, %v2138
      %v2140 = vpop.f32.mrb[0].mxu0
      %v2141 = vpop.f32.mrb[0].mxu0
      %v2142 = vadd.f32 0.0, %v2141
      %v2143 = vpop.f32.mrb[0].mxu0
      %2144 = vmatprep.mubr.bf16.mxu0 0
      %2145 = vmatmul.mubr.bf16.gmra.mrb[0].mxu0 %v2057
      %v2146 = vpop.f32.mrb[0].mxu0
      %v2147 = vadd.f32 0.0, %v2146
      %v2148 = vpop.f32.mrb[0].mxu0
      %v2149 = vpop.f32.mrb[0].mxu0
      %v2150 = vadd.f32 0.0, %v2149
      %v2151 = vpop.f32.mrb[0].mxu0
      %2152 = vmatprep.mubr.bf16.mxu0 0
      %2153 = vmatmul.mubr.bf16.gmra.mrb[0].mxu0 %v2060
      %v2154 = vpop.f32.mrb[0].mxu0
      %v2155 = vadd.f32 0.0, %v2154
      %v2156 = vpop.f32.mrb[0].mxu0
      %v2157 = vpop.f32.mrb[0].mxu0
      %v2158 = vadd.f32 0.0, %v2157
      %v2159 = vpop.f32.mrb[0].mxu0
      %2160 = vmatprep.mubr.bf16.mxu0 0
      %2161 = vmatmul.mubr.bf16.gmra.mrb[0].mxu0 %v2063
      %v2162 = vpop.f32.mrb[0].mxu0
      %v2163 = vadd.f32 0.0, %v2162
      %v2164 = vpop.f32.mrb[0].mxu0
      %v2165 = vpop.f32.mrb[0].mxu0
      %v2166 = vadd.f32 0.0, %v2165
      %v2167 = vpop.f32.mrb[0].mxu0
      %2168 = vmatprep.mubr.bf16.mxu0 0
      %2169 = vmatmul.mubr.bf16.gmra.mrb[0].mxu0 %v2066
      %v2170 = vpop.f32.mrb[0].mxu0
      %v2171 = vadd.f32 0.0, %v2170
      %v2172 = vpop.f32.mrb[0].mxu0
      %v2173 = vpop.f32.mrb[0].mxu0
      %v2174 = vadd.f32 0.0, %v2173
      %v2175 = vpop.f32.mrb[0].mxu0
      %2176 = vmatprep.mubr.bf16.mxu0 0
      %2177 = vmatmul.mubr.bf16.gmra.mrb[0].mxu0 %v2069
      %v2178 = vpop.f32.mrb[0].mxu0
      %v2179 = vadd.f32 0.0, %v2178
      %v2180 = vpop.f32.mrb[0].mxu0
      %v2181 = vpop.f32.mrb[0].mxu0
      %v2182 = vadd.f32 0.0, %v2181
      %v2183 = vpop.f32.mrb[0].mxu0
      %2184 = vmatprep.mubr.bf16.mxu0 0
      %2185 = vmatmul.mubr.bf16.gmra.mrb[0].mxu0 %v2072
      %v2186 = vpop.f32.mrb[0].mxu0
      %v2187 = vadd.f32 0.0, %v2186
      %v2188 = vpop.f32.mrb[0].mxu0
      %v2189 = vpop.f32.mrb[0].mxu0
      %v2190 = vadd.f32 0.0, %v2189
      %v2191 = vpop.f32.mrb[0].mxu0
      %2192 = vmatprep.mubr.bf16.mxu0 0
      %2193 = vmatmul.mubr.bf16.gmra.mrb[0].mxu0 %v2075
      %v2194 = vpop.f32.mrb[0].mxu0
      %v2195 = vadd.f32 0.0, %v2194
      %v2196 = vpop.f32.mrb[0].mxu0
      %v2197 = vpop.f32.mrb[0].mxu0
      %v2198 = vadd.f32 0.0, %v2197
      %v2199 = vpop.f32.mrb[0].mxu0
      %2200 = vmatprep.mubr.bf16.mxu0 0
      %2201 = vmatmul.mubr.bf16.gmra.mrb[0].mxu0 %v2078
      %v2202 = vpop.f32.mrb[0].mxu0
      %v2203 = vadd.f32 0.0, %v2202
      %v2204 = vpop.f32.mrb[0].mxu0
      %v2205 = vpop.f32.mrb[0].mxu0
      %v2206 = vadd.f32 0.0, %v2205
      %v2207 = vpop.f32.mrb[0].mxu0
      %2208 = vmatprep.mubr.bf16.mxu0 0
      %2209 = vmatmul.mubr.bf16.gmra.mrb[0].mxu0 %v2081
      %v2210 = vpop.f32.mrb[0].mxu0
      %v2211 = vadd.f32 0.0, %v2210
      %v2212 = vpop.f32.mrb[0].mxu0
      %v2213 = vpop.f32.mrb[0].mxu0
      %v2214 = vadd.f32 0.0, %v2213
      %v2215 = vpop.f32.mrb[0].mxu0
      %2216 = vmatprep.mubr.bf16.mxu0 0
      %2217 = vmatmul.mubr.bf16.gmra.mrb[0].mxu0 %v2084
      %v2218 = vpop.f32.mrb[0].mxu0
      %v2219 = vadd.f32 0.0, %v2218
      %v2220 = vpop.f32.mrb[0].mxu0
      %v2221 = vpop.f32.mrb[0].mxu0
      %v2222 = vadd.f32 0.0, %v2221
      %v2223 = vpop.f32.mrb[0].mxu0
      %2224 = vmatprep.mubr.bf16.mxu0 0
      %2225 = vmatmul.mubr.bf16.gmra.mrb[0].mxu0 %v2087
      %v2226 = vpop.f32.mrb[0].mxu0
      %v2227 = vadd.f32 0.0, %v2226
      %v2228 = vpop.f32.mrb[0].mxu0
      %v2229 = vpop.f32.mrb[0].mxu0
      %v2230 = vadd.f32 0.0, %v2229
      %v2231 = vpop.f32.mrb[0].mxu0
      %2232 = vmatprep.mubr.bf16.mxu0 0
      %2233 = vmatmul.mubr.bf16.gmra.mrb[0].mxu0 %v2090
      %v2234 = vpop.f32.mrb[0].mxu0
      %v2235 = vadd.f32 0.0, %v2234
      %v2236 = vpop.f32.mrb[0].mxu0
      %v2237 = vpop.f32.mrb[0].mxu0
      %v2238 = vadd.f32 0.0, %v2237
      %v2239 = vpop.f32.mrb[0].mxu0
      %2240 = vmatprep.mubr.bf16.mxu0 0
      %2241 = vmatmul.mubr.bf16.gmra.mrb[0].mxu0 %v2093
      %v2242 = vpop.f32.mrb[0].mxu0
      %v2243 = vadd.f32 0.0, %v2242
      %v2244 = vpop.f32.mrb[0].mxu0
      %v2245 = vpop.f32.mrb[0].mxu0
      %v2246 = vadd.f32 0.0, %v2245
      %v2247 = vpop.f32.mrb[0].mxu0
      %2248 = vmatprep.mubr.bf16.mxu0 0
      %2249 = vmatmul.mubr.bf16.gmra.mrb[0].mxu0 %v2096
      %v2250 = vpop.f32.mrb[0].mxu0
      %v2251 = vadd.f32 0.0, %v2250
      %v2252 = vpop.f32.mrb[0].mxu0
      %v2253 = vpop.f32.mrb[0].mxu0
      %v2254 = vadd.f32 0.0, %v2253
      %v2255 = vpop.f32.mrb[0].mxu0
      %2256 = vmatprep.mubr.bf16.mxu0 0
      %2257 = vmatmul.mubr.bf16.gmra.mrb[0].mxu0 %v2099
      %v2258 = vpop.f32.mrb[0].mxu0
      %v2259 = vadd.f32 0.0, %v2258
      %v2260 = vpop.f32.mrb[0].mxu0
      %v2261 = vpop.f32.mrb[0].mxu0
      %v2262 = vadd.f32 0.0, %v2261
      %v2263 = vpop.f32.mrb[0].mxu0
      %2264 = vdwg.mxu0
      %v2265 = vadd.f32 %v1971, %v2139
      %v2266 = vadd.f32 %v1972, %v2142
      %v2267 = vadd.f32 %v1973, %v2147
      %v2268 = vadd.f32 %v1974, %v2150
      %v2269 = vadd.f32 %v1975, %v2155
      %v2270 = vadd.f32 %v1976, %v2158
      %v2271 = vadd.f32 %v1977, %v2163
      %v2272 = vadd.f32 %v1978, %v2166
      %v2273 = vadd.f32 %v1979, %v2171
      %v2274 = vadd.f32 %v1980, %v2174
      %v2275 = vadd.f32 %v1981, %v2179
      %v2276 = vadd.f32 %v1982, %v2182
      %v2277 = vadd.f32 %v1983, %v2187
      %v2278 = vadd.f32 %v1984, %v2190
      %v2279 = vadd.f32 %v1985, %v2195
      %v2280 = vadd.f32 %v1986, %v2198
      %v2281 = vadd.f32 %v1987, %v2203
      %v2282 = vadd.f32 %v1988, %v2206
      %v2283 = vadd.f32 %v1989, %v2211
      %v2284 = vadd.f32 %v1990, %v2214
      %v2285 = vadd.f32 %v1991, %v2219
      %v2286 = vadd.f32 %v1992, %v2222
      %v2287 = vadd.f32 %v1993, %v2227
      %v2288 = vadd.f32 %v1994, %v2230
      %v2289 = vadd.f32 %v1995, %v2235
      %v2290 = vadd.f32 %v1996, %v2238
      %v2291 = vadd.f32 %v1997, %v2243
      %v2292 = vadd.f32 %v1998, %v2246
      %v2293 = vadd.f32 %v1999, %v2251
      %v2294 = vadd.f32 %v2000, %v2254
      %v2295 = vadd.f32 %v2001, %v2259
      %v2296 = vadd.f32 %v2002, %v2262
      %s2297 = scalar_lea.vmem [#allocation2], 48
      %v2298 = vld [vmem:[%s2297] sm:$0xff]
      %v2299 = vld [vmem:[%s2297 + $0x8] sm:$0xff]
      %v2300 = vld [vmem:[%s2297 + $0x18] sm:$0xff]
      %v2301 = vld [vmem:[%s2297 + $0x20] sm:$0xff]
      %v2302 = vld [vmem:[%s2297 + $0x30] sm:$0xff]
      %v2303 = vld [vmem:[%s2297 + $0x38] sm:$0xff]
      %v2304 = vld [vmem:[%s2297 + $0x48] sm:$0xff]
      %v2305 = vld [vmem:[%s2297 + $0x50] sm:$0xff]
      %v2306 = vld [vmem:[%s2297 + $0x60] sm:$0xff]
      %v2307 = vld [vmem:[%s2297 + $0x68] sm:$0xff]
      %v2308 = vld [vmem:[%s2297 + $0x78] sm:$0xff]
      %v2309 = vld [vmem:[%s2297 + $0x80] sm:$0xff]
      %v2310 = vld [vmem:[%s2297 + $0x90] sm:$0xff]
      %v2311 = vld [vmem:[%s2297 + $0x98] sm:$0xff]
      %v2312 = vld [vmem:[%s2297 + $0xa8] sm:$0xff]
      %v2313 = vld [vmem:[%s2297 + $0xb0] sm:$0xff]
      %v2314 = vld [vmem:[%s2297 + $0xc0] sm:$0xff]
      %v2315 = vld [vmem:[%s2297 + $0xc8] sm:$0xff]
      %v2316 = vld [vmem:[%s2297 + $0xd8] sm:$0xff]
      %v2317 = vld [vmem:[%s2297 + $0xe0] sm:$0xff]
      %v2318 = vld [vmem:[%s2297 + $0xf0] sm:$0xff]
      %v2319 = vld [vmem:[%s2297 + $0xf8] sm:$0xff]
      %v2320 = vld [vmem:[%s2297 + $0x108] sm:$0xff]
      %v2321 = vld [vmem:[%s2297 + $0x110] sm:$0xff]
      %v2322 = vld [vmem:[%s2297 + $0x120] sm:$0xff]
      %v2323 = vld [vmem:[%s2297 + $0x128] sm:$0xff]
      %v2324 = vld [vmem:[%s2297 + $0x138] sm:$0xff]
      %v2325 = vld [vmem:[%s2297 + $0x140] sm:$0xff]
      %v2326 = vld [vmem:[%s2297 + $0x150] sm:$0xff]
      %v2327 = vld [vmem:[%s2297 + $0x158] sm:$0xff]
      %v2328 = vld [vmem:[%s2297 + $0x168] sm:$0xff]
      %v2329 = vld [vmem:[%s2297 + $0x170] sm:$0xff]
      %v2330 = vpack.c.bf16 %v2299, %v2298
      %v2331 = vpack.c.bf16 %v2301, %v2300
      %v2332 = vpack.c.bf16 %v2303, %v2302
      %v2333 = vpack.c.bf16 %v2305, %v2304
      %v2334 = vpack.c.bf16 %v2307, %v2306
      %v2335 = vpack.c.bf16 %v2309, %v2308
      %v2336 = vpack.c.bf16 %v2311, %v2310
      %v2337 = vpack.c.bf16 %v2313, %v2312
      %v2338 = vpack.c.bf16 %v2315, %v2314
      %v2339 = vpack.c.bf16 %v2317, %v2316
      %v2340 = vpack.c.bf16 %v2319, %v2318
      %v2341 = vpack.c.bf16 %v2321, %v2320
      %v2342 = vpack.c.bf16 %v2323, %v2322
      %v2343 = vpack.c.bf16 %v2325, %v2324
      %v2344 = vpack.c.bf16 %v2327, %v2326
      %v2345 = vpack.c.bf16 %v2329, %v2328
      %s2346 = scalar_lea.vmem %s2, 24
      %v2347 = vld [vmem:[%s2346] sm:$0xf]
      %v2349 = vsel %vm219, %v2330, 0
      %v2352 = vsel %vm219, %v2331, 0
      %v2355 = vsel %vm219, %v2332, 0
      %v2358 = vsel %vm219, %v2333, 0
      %v2361 = vsel %vm219, %v2334, 0
      %v2364 = vsel %vm219, %v2335, 0
      %v2367 = vsel %vm219, %v2336, 0
      %v2370 = vsel %vm219, %v2337, 0
      %v2373 = vsel %vm219, %v2338, 0
      %v2376 = vsel %vm219, %v2339, 0
      %v2379 = vsel %vm219, %v2340, 0
      %v2382 = vsel %vm219, %v2341, 0
      %v2385 = vsel %vm219, %v2342, 0
      %v2388 = vsel %vm219, %v2343, 0
      %v2391 = vsel %vm219, %v2344, 0
      %v2394 = vsel %vm219, %v2345, 0
      %v2397 = vsel %vm744, %v2347, 0
      %2399 = vmatprep.subr.bf16.mxu0 0
      %2400 = vmatpush1.bf16.msra.mxu0 %v2397
      %2401 = vmatprep.subr.bf16.mxu0 0
      %2402 = vmatpush1.bf16.msra.mxu0 0
      %2403 = vmatprep.subr.bf16.mxu0 0
      %2404 = vmatpush1.bf16.msra.mxu0 0
      %2405 = vmatprep.subr.bf16.mxu0 0
      %2406 = vmatpush1.bf16.msra.mxu0 0
      %2407 = vmatprep.subr.bf16.mxu0 0
      %2408 = vmatpush1.bf16.msra.mxu0 0
      %2409 = vmatprep.subr.bf16.mxu0 0
      %2410 = vmatpush1.bf16.msra.mxu0 0
      %2411 = vmatprep.subr.bf16.mxu0 0
      %2412 = vmatpush1.bf16.msra.mxu0 0
      %2413 = vmatprep.subr.bf16.mxu0 0
      %2414 = vmatpush1.bf16.msra.mxu0 0
      %2415 = vmatprep.subr.bf16.mxu0 0
      %2416 = vmatpush1.bf16.msra.mxu0 0
      %2417 = vmatprep.subr.bf16.mxu0 0
      %2418 = vmatpush1.bf16.msra.mxu0 0
      %2419 = vmatprep.subr.bf16.mxu0 0
      %2420 = vmatpush1.bf16.msra.mxu0 0
      %2421 = vmatprep.subr.bf16.mxu0 0
      %2422 = vmatpush1.bf16.msra.mxu0 0
      %2423 = vmatprep.subr.bf16.mxu0 0
      %2424 = vmatpush1.bf16.msra.mxu0 0
      %2425 = vmatprep.subr.bf16.mxu0 0
      %2426 = vmatpush1.bf16.msra.mxu0 0
      %2427 = vmatprep.subr.bf16.mxu0 0
      %2428 = vmatpush1.bf16.msra.mxu0 0
      %2429 = vmatprep.subr.bf16.mxu0 0
      %2430 = vmatpush1.bf16.msra.mxu0 0
      %2431 = vmatprep.mubr.bf16.mxu0 0
      %2432 = vmatmul.mubr.bf16.gmra.mrb[0].mxu0 %v2349
      %v2433 = vpop.f32.mrb[0].mxu0
      %v2434 = vadd.f32 0.0, %v2433
      %v2435 = vpop.f32.mrb[0].mxu0
      %v2436 = vpop.f32.mrb[0].mxu0
      %v2437 = vadd.f32 0.0, %v2436
      %v2438 = vpop.f32.mrb[0].mxu0
      %2439 = vmatprep.mubr.bf16.mxu0 0
      %2440 = vmatmul.mubr.bf16.gmra.mrb[0].mxu0 %v2352
      %v2441 = vpop.f32.mrb[0].mxu0
      %v2442 = vadd.f32 0.0, %v2441
      %v2443 = vpop.f32.mrb[0].mxu0
      %v2444 = vpop.f32.mrb[0].mxu0
      %v2445 = vadd.f32 0.0, %v2444
      %v2446 = vpop.f32.mrb[0].mxu0
      %2447 = vmatprep.mubr.bf16.mxu0 0
      %2448 = vmatmul.mubr.bf16.gmra.mrb[0].mxu0 %v2355
      %v2449 = vpop.f32.mrb[0].mxu0
      %v2450 = vadd.f32 0.0, %v2449
      %v2451 = vpop.f32.mrb[0].mxu0
      %v2452 = vpop.f32.mrb[0].mxu0
      %v2453 = vadd.f32 0.0, %v2452
      %v2454 = vpop.f32.mrb[0].mxu0
      %2455 = vmatprep.mubr.bf16.mxu0 0
      %2456 = vmatmul.mubr.bf16.gmra.mrb[0].mxu0 %v2358
      %v2457 = vpop.f32.mrb[0].mxu0
      %v2458 = vadd.f32 0.0, %v2457
      %v2459 = vpop.f32.mrb[0].mxu0
      %v2460 = vpop.f32.mrb[0].mxu0
      %v2461 = vadd.f32 0.0, %v2460
      %v2462 = vpop.f32.mrb[0].mxu0
      %2463 = vmatprep.mubr.bf16.mxu0 0
      %2464 = vmatmul.mubr.bf16.gmra.mrb[0].mxu0 %v2361
      %v2465 = vpop.f32.mrb[0].mxu0
      %v2466 = vadd.f32 0.0, %v2465
      %v2467 = vpop.f32.mrb[0].mxu0
      %v2468 = vpop.f32.mrb[0].mxu0
      %v2469 = vadd.f32 0.0, %v2468
      %v2470 = vpop.f32.mrb[0].mxu0
      %2471 = vmatprep.mubr.bf16.mxu0 0
      %2472 = vmatmul.mubr.bf16.gmra.mrb[0].mxu0 %v2364
      %v2473 = vpop.f32.mrb[0].mxu0
      %v2474 = vadd.f32 0.0, %v2473
      %v2475 = vpop.f32.mrb[0].mxu0
      %v2476 = vpop.f32.mrb[0].mxu0
      %v2477 = vadd.f32 0.0, %v2476
      %v2478 = vpop.f32.mrb[0].mxu0
      %2479 = vmatprep.mubr.bf16.mxu0 0
      %2480 = vmatmul.mubr.bf16.gmra.mrb[0].mxu0 %v2367
      %v2481 = vpop.f32.mrb[0].mxu0
      %v2482 = vadd.f32 0.0, %v2481
      %v2483 = vpop.f32.mrb[0].mxu0
      %v2484 = vpop.f32.mrb[0].mxu0
      %v2485 = vadd.f32 0.0, %v2484
      %v2486 = vpop.f32.mrb[0].mxu0
      %2487 = vmatprep.mubr.bf16.mxu0 0
      %2488 = vmatmul.mubr.bf16.gmra.mrb[0].mxu0 %v2370
      %v2489 = vpop.f32.mrb[0].mxu0
      %v2490 = vadd.f32 0.0, %v2489
      %v2491 = vpop.f32.mrb[0].mxu0
      %v2492 = vpop.f32.mrb[0].mxu0
      %v2493 = vadd.f32 0.0, %v2492
      %v2494 = vpop.f32.mrb[0].mxu0
      %2495 = vmatprep.mubr.bf16.mxu0 0
      %2496 = vmatmul.mubr.bf16.gmra.mrb[0].mxu0 %v2373
      %v2497 = vpop.f32.mrb[0].mxu0
      %v2498 = vadd.f32 0.0, %v2497
      %v2499 = vpop.f32.mrb[0].mxu0
      %v2500 = vpop.f32.mrb[0].mxu0
      %v2501 = vadd.f32 0.0, %v2500
      %v2502 = vpop.f32.mrb[0].mxu0
      %2503 = vmatprep.mubr.bf16.mxu0 0
      %2504 = vmatmul.mubr.bf16.gmra.mrb[0].mxu0 %v2376
      %v2505 = vpop.f32.mrb[0].mxu0
      %v2506 = vadd.f32 0.0, %v2505
      %v2507 = vpop.f32.mrb[0].mxu0
      %v2508 = vpop.f32.mrb[0].mxu0
      %v2509 = vadd.f32 0.0, %v2508
      %v2510 = vpop.f32.mrb[0].mxu0
      %2511 = vmatprep.mubr.bf16.mxu0 0
      %2512 = vmatmul.mubr.bf16.gmra.mrb[0].mxu0 %v2379
      %v2513 = vpop.f32.mrb[0].mxu0
      %v2514 = vadd.f32 0.0, %v2513
      %v2515 = vpop.f32.mrb[0].mxu0
      %v2516 = vpop.f32.mrb[0].mxu0
      %v2517 = vadd.f32 0.0, %v2516
      %v2518 = vpop.f32.mrb[0].mxu0
      %2519 = vmatprep.mubr.bf16.mxu0 0
      %2520 = vmatmul.mubr.bf16.gmra.mrb[0].mxu0 %v2382
      %v2521 = vpop.f32.mrb[0].mxu0
      %v2522 = vadd.f32 0.0, %v2521
      %v2523 = vpop.f32.mrb[0].mxu0
      %v2524 = vpop.f32.mrb[0].mxu0
      %v2525 = vadd.f32 0.0, %v2524
      %v2526 = vpop.f32.mrb[0].mxu0
      %2527 = vmatprep.mubr.bf16.mxu0 0
      %2528 = vmatmul.mubr.bf16.gmra.mrb[0].mxu0 %v2385
      %v2529 = vpop.f32.mrb[0].mxu0
      %v2530 = vadd.f32 0.0, %v2529
      %v2531 = vpop.f32.mrb[0].mxu0
      %v2532 = vpop.f32.mrb[0].mxu0
      %v2533 = vadd.f32 0.0, %v2532
      %v2534 = vpop.f32.mrb[0].mxu0
      %2535 = vmatprep.mubr.bf16.mxu0 0
      %2536 = vmatmul.mubr.bf16.gmra.mrb[0].mxu0 %v2388
      %v2537 = vpop.f32.mrb[0].mxu0
      %v2538 = vadd.f32 0.0, %v2537
      %v2539 = vpop.f32.mrb[0].mxu0
      %v2540 = vpop.f32.mrb[0].mxu0
      %v2541 = vadd.f32 0.0, %v2540
      %v2542 = vpop.f32.mrb[0].mxu0
      %2543 = vmatprep.mubr.bf16.mxu0 0
      %2544 = vmatmul.mubr.bf16.gmra.mrb[0].mxu0 %v2391
      %v2545 = vpop.f32.mrb[0].mxu0
      %v2546 = vadd.f32 0.0, %v2545
      %v2547 = vpop.f32.mrb[0].mxu0
      %v2548 = vpop.f32.mrb[0].mxu0
      %v2549 = vadd.f32 0.0, %v2548
      %v2550 = vpop.f32.mrb[0].mxu0
      %2551 = vmatprep.mubr.bf16.mxu0 0
      %2552 = vmatmul.mubr.bf16.gmra.mrb[0].mxu0 %v2394
      %v2553 = vpop.f32.mrb[0].mxu0
      %v2554 = vadd.f32 0.0, %v2553
      %v2555 = vpop.f32.mrb[0].mxu0
      %v2556 = vpop.f32.mrb[0].mxu0
      %v2557 = vadd.f32 0.0, %v2556
      %v2558 = vpop.f32.mrb[0].mxu0
      %2559 = vdwg.mxu0
      %v2560 = vadd.f32 %v2265, %v2434
      %v2561 = vadd.f32 %v2266, %v2437
      %v2562 = vadd.f32 %v2267, %v2442
      %v2563 = vadd.f32 %v2268, %v2445
      %v2564 = vadd.f32 %v2269, %v2450
      %v2565 = vadd.f32 %v2270, %v2453
      %v2566 = vadd.f32 %v2271, %v2458
      %v2567 = vadd.f32 %v2272, %v2461
      %v2568 = vadd.f32 %v2273, %v2466
      %v2569 = vadd.f32 %v2274, %v2469
      %v2570 = vadd.f32 %v2275, %v2474
      %v2571 = vadd.f32 %v2276, %v2477
      %v2572 = vadd.f32 %v2277, %v2482
      %v2573 = vadd.f32 %v2278, %v2485
      %v2574 = vadd.f32 %v2279, %v2490
      %v2575 = vadd.f32 %v2280, %v2493
      %v2576 = vadd.f32 %v2281, %v2498
      %v2577 = vadd.f32 %v2282, %v2501
      %v2578 = vadd.f32 %v2283, %v2506
      %v2579 = vadd.f32 %v2284, %v2509
      %v2580 = vadd.f32 %v2285, %v2514
      %v2581 = vadd.f32 %v2286, %v2517
      %v2582 = vadd.f32 %v2287, %v2522
      %v2583 = vadd.f32 %v2288, %v2525
      %v2584 = vadd.f32 %v2289, %v2530
      %v2585 = vadd.f32 %v2290, %v2533
      %v2586 = vadd.f32 %v2291, %v2538
      %v2587 = vadd.f32 %v2292, %v2541
      %v2588 = vadd.f32 %v2293, %v2546
      %v2589 = vadd.f32 %v2294, %v2549
      %v2590 = vadd.f32 %v2295, %v2554
      %v2591 = vadd.f32 %v2296, %v2557
      %v2592 = vld [vmem:[%s2297 + $0x1] sm:$0xff]
      %v2593 = vld [vmem:[%s2297 + $0x9] sm:$0xff]
      %v2594 = vld [vmem:[%s2297 + $0x19] sm:$0xff]
      %v2595 = vld [vmem:[%s2297 + $0x21] sm:$0xff]
      %v2596 = vld [vmem:[%s2297 + $0x31] sm:$0xff]
      %v2597 = vld [vmem:[%s2297 + $0x39] sm:$0xff]
      %v2598 = vld [vmem:[%s2297 + $0x49] sm:$0xff]
      %v2599 = vld [vmem:[%s2297 + $0x51] sm:$0xff]
      %v2600 = vld [vmem:[%s2297 + $0x61] sm:$0xff]
      %v2601 = vld [vmem:[%s2297 + $0x69] sm:$0xff]
      %v2602 = vld [vmem:[%s2297 + $0x79] sm:$0xff]
      %v2603 = vld [vmem:[%s2297 + $0x81] sm:$0xff]
      %v2604 = vld [vmem:[%s2297 + $0x91] sm:$0xff]
      %v2605 = vld [vmem:[%s2297 + $0x99] sm:$0xff]
      %v2606 = vld [vmem:[%s2297 + $0xa9] sm:$0xff]
      %v2607 = vld [vmem:[%s2297 + $0xb1] sm:$0xff]
      %v2608 = vld [vmem:[%s2297 + $0xc1] sm:$0xff]
      %v2609 = vld [vmem:[%s2297 + $0xc9] sm:$0xff]
      %v2610 = vld [vmem:[%s2297 + $0xd9] sm:$0xff]
      %v2611 = vld [vmem:[%s2297 + $0xe1] sm:$0xff]
      %v2612 = vld [vmem:[%s2297 + $0xf1] sm:$0xff]
      %v2613 = vld [vmem:[%s2297 + $0xf9] sm:$0xff]
      %v2614 = vld [vmem:[%s2297 + $0x109] sm:$0xff]
      %v2615 = vld [vmem:[%s2297 + $0x111] sm:$0xff]
      %v2616 = vld [vmem:[%s2297 + $0x121] sm:$0xff]
      %v2617 = vld [vmem:[%s2297 + $0x129] sm:$0xff]
      %v2618 = vld [vmem:[%s2297 + $0x139] sm:$0xff]
      %v2619 = vld [vmem:[%s2297 + $0x141] sm:$0xff]
      %v2620 = vld [vmem:[%s2297 + $0x151] sm:$0xff]
      %v2621 = vld [vmem:[%s2297 + $0x159] sm:$0xff]
      %v2622 = vld [vmem:[%s2297 + $0x169] sm:$0xff]
      %v2623 = vld [vmem:[%s2297 + $0x171] sm:$0xff]
      %v2624 = vpack.c.bf16 %v2593, %v2592
      %v2625 = vpack.c.bf16 %v2595, %v2594
      %v2626 = vpack.c.bf16 %v2597, %v2596
      %v2627 = vpack.c.bf16 %v2599, %v2598
      %v2628 = vpack.c.bf16 %v2601, %v2600
      %v2629 = vpack.c.bf16 %v2603, %v2602
      %v2630 = vpack.c.bf16 %v2605, %v2604
      %v2631 = vpack.c.bf16 %v2607, %v2606
      %v2632 = vpack.c.bf16 %v2609, %v2608
      %v2633 = vpack.c.bf16 %v2611, %v2610
      %v2634 = vpack.c.bf16 %v2613, %v2612
      %v2635 = vpack.c.bf16 %v2615, %v2614
      %v2636 = vpack.c.bf16 %v2617, %v2616
      %v2637 = vpack.c.bf16 %v2619, %v2618
      %v2638 = vpack.c.bf16 %v2621, %v2620
      %v2639 = vpack.c.bf16 %v2623, %v2622
      %s2640 = scalar_lea.vmem %s2, 28
      %v2641 = vld [vmem:[%s2640] sm:$0xf]
      %v2643 = vsel %vm219, %v2624, 0
      %v2646 = vsel %vm219, %v2625, 0
      %v2649 = vsel %vm219, %v2626, 0
      %v2652 = vsel %vm219, %v2627, 0
      %v2655 = vsel %vm219, %v2628, 0
      %v2658 = vsel %vm219, %v2629, 0
      %v2661 = vsel %vm219, %v2630, 0
      %v2664 = vsel %vm219, %v2631, 0
      %v2667 = vsel %vm219, %v2632, 0
      %v2670 = vsel %vm219, %v2633, 0
      %v2673 = vsel %vm219, %v2634, 0
      %v2676 = vsel %vm219, %v2635, 0
      %v2679 = vsel %vm219, %v2636, 0
      %v2682 = vsel %vm219, %v2637, 0
      %v2685 = vsel %vm219, %v2638, 0
      %v2688 = vsel %vm219, %v2639, 0
      %v2691 = vsel %vm744, %v2641, 0
      %2693 = vmatprep.subr.bf16.mxu0 0
      %2694 = vmatpush1.bf16.msra.mxu0 %v2691
      %2695 = vmatprep.subr.bf16.mxu0 0
      %2696 = vmatpush1.bf16.msra.mxu0 0
      %2697 = vmatprep.subr.bf16.mxu0 0
      %2698 = vmatpush1.bf16.msra.mxu0 0
      %2699 = vmatprep.subr.bf16.mxu0 0
      %2700 = vmatpush1.bf16.msra.mxu0 0
      %2701 = vmatprep.subr.bf16.mxu0 0
      %2702 = vmatpush1.bf16.msra.mxu0 0
      %2703 = vmatprep.subr.bf16.mxu0 0
      %2704 = vmatpush1.bf16.msra.mxu0 0
      %2705 = vmatprep.subr.bf16.mxu0 0
      %2706 = vmatpush1.bf16.msra.mxu0 0
      %2707 = vmatprep.subr.bf16.mxu0 0
      %2708 = vmatpush1.bf16.msra.mxu0 0
      %2709 = vmatprep.subr.bf16.mxu0 0
      %2710 = vmatpush1.bf16.msra.mxu0 0
      %2711 = vmatprep.subr.bf16.mxu0 0
      %2712 = vmatpush1.bf16.msra.mxu0 0
      %2713 = vmatprep.subr.bf16.mxu0 0
      %2714 = vmatpush1.bf16.msra.mxu0 0
      %2715 = vmatprep.subr.bf16.mxu0 0
      %2716 = vmatpush1.bf16.msra.mxu0 0
      %2717 = vmatprep.subr.bf16.mxu0 0
      %2718 = vmatpush1.bf16.msra.mxu0 0
      %2719 = vmatprep.subr.bf16.mxu0 0
      %2720 = vmatpush1.bf16.msra.mxu0 0
      %2721 = vmatprep.subr.bf16.mxu0 0
      %2722 = vmatpush1.bf16.msra.mxu0 0
      %2723 = vmatprep.subr.bf16.mxu0 0
      %2724 = vmatpush1.bf16.msra.mxu0 0
      %2725 = vmatprep.mubr.bf16.mxu0 0
      %2726 = vmatmul.mubr.bf16.gmra.mrb[0].mxu0 %v2643
      %v2727 = vpop.f32.mrb[0].mxu0
      %v2728 = vadd.f32 0.0, %v2727
      %v2729 = vpop.f32.mrb[0].mxu0
      %v2730 = vpop.f32.mrb[0].mxu0
      %v2731 = vadd.f32 0.0, %v2730
      %v2732 = vpop.f32.mrb[0].mxu0
      %2733 = vmatprep.mubr.bf16.mxu0 0
      %2734 = vmatmul.mubr.bf16.gmra.mrb[0].mxu0 %v2646
      %v2735 = vpop.f32.mrb[0].mxu0
      %v2736 = vadd.f32 0.0, %v2735
      %v2737 = vpop.f32.mrb[0].mxu0
      %v2738 = vpop.f32.mrb[0].mxu0
      %v2739 = vadd.f32 0.0, %v2738
      %v2740 = vpop.f32.mrb[0].mxu0
      %2741 = vmatprep.mubr.bf16.mxu0 0
      %2742 = vmatmul.mubr.bf16.gmra.mrb[0].mxu0 %v2649
      %v2743 = vpop.f32.mrb[0].mxu0
      %v2744 = vadd.f32 0.0, %v2743
      %v2745 = vpop.f32.mrb[0].mxu0
      %v2746 = vpop.f32.mrb[0].mxu0
      %v2747 = vadd.f32 0.0, %v2746
      %v2748 = vpop.f32.mrb[0].mxu0
      %2749 = vmatprep.mubr.bf16.mxu0 0
      %2750 = vmatmul.mubr.bf16.gmra.mrb[0].mxu0 %v2652
      %v2751 = vpop.f32.mrb[0].mxu0
      %v2752 = vadd.f32 0.0, %v2751
      %v2753 = vpop.f32.mrb[0].mxu0
      %v2754 = vpop.f32.mrb[0].mxu0
      %v2755 = vadd.f32 0.0, %v2754
      %v2756 = vpop.f32.mrb[0].mxu0
      %2757 = vmatprep.mubr.bf16.mxu0 0
      %2758 = vmatmul.mubr.bf16.gmra.mrb[0].mxu0 %v2655
      %v2759 = vpop.f32.mrb[0].mxu0
      %v2760 = vadd.f32 0.0, %v2759
      %v2761 = vpop.f32.mrb[0].mxu0
      %v2762 = vpop.f32.mrb[0].mxu0
      %v2763 = vadd.f32 0.0, %v2762
      %v2764 = vpop.f32.mrb[0].mxu0
      %2765 = vmatprep.mubr.bf16.mxu0 0
      %2766 = vmatmul.mubr.bf16.gmra.mrb[0].mxu0 %v2658
      %v2767 = vpop.f32.mrb[0].mxu0
      %v2768 = vadd.f32 0.0, %v2767
      %v2769 = vpop.f32.mrb[0].mxu0
      %v2770 = vpop.f32.mrb[0].mxu0
      %v2771 = vadd.f32 0.0, %v2770
      %v2772 = vpop.f32.mrb[0].mxu0
      %2773 = vmatprep.mubr.bf16.mxu0 0
      %2774 = vmatmul.mubr.bf16.gmra.mrb[0].mxu0 %v2661
      %v2775 = vpop.f32.mrb[0].mxu0
      %v2776 = vadd.f32 0.0, %v2775
      %v2777 = vpop.f32.mrb[0].mxu0
      %v2778 = vpop.f32.mrb[0].mxu0
      %v2779 = vadd.f32 0.0, %v2778
      %v2780 = vpop.f32.mrb[0].mxu0
      %2781 = vmatprep.mubr.bf16.mxu0 0
      %2782 = vmatmul.mubr.bf16.gmra.mrb[0].mxu0 %v2664
      %v2783 = vpop.f32.mrb[0].mxu0
      %v2784 = vadd.f32 0.0, %v2783
      %v2785 = vpop.f32.mrb[0].mxu0
      %v2786 = vpop.f32.mrb[0].mxu0
      %v2787 = vadd.f32 0.0, %v2786
      %v2788 = vpop.f32.mrb[0].mxu0
      %2789 = vmatprep.mubr.bf16.mxu0 0
      %2790 = vmatmul.mubr.bf16.gmra.mrb[0].mxu0 %v2667
      %v2791 = vpop.f32.mrb[0].mxu0
      %v2792 = vadd.f32 0.0, %v2791
      %v2793 = vpop.f32.mrb[0].mxu0
      %v2794 = vpop.f32.mrb[0].mxu0
      %v2795 = vadd.f32 0.0, %v2794
      %v2796 = vpop.f32.mrb[0].mxu0
      %2797 = vmatprep.mubr.bf16.mxu0 0
      %2798 = vmatmul.mubr.bf16.gmra.mrb[0].mxu0 %v2670
      %v2799 = vpop.f32.mrb[0].mxu0
      %v2800 = vadd.f32 0.0, %v2799
      %v2801 = vpop.f32.mrb[0].mxu0
      %v2802 = vpop.f32.mrb[0].mxu0
      %v2803 = vadd.f32 0.0, %v2802
      %v2804 = vpop.f32.mrb[0].mxu0
      %2805 = vmatprep.mubr.bf16.mxu0 0
      %2806 = vmatmul.mubr.bf16.gmra.mrb[0].mxu0 %v2673
      %v2807 = vpop.f32.mrb[0].mxu0
      %v2808 = vadd.f32 0.0, %v2807
      %v2809 = vpop.f32.mrb[0].mxu0
      %v2810 = vpop.f32.mrb[0].mxu0
      %v2811 = vadd.f32 0.0, %v2810
      %v2812 = vpop.f32.mrb[0].mxu0
      %2813 = vmatprep.mubr.bf16.mxu0 0
      %2814 = vmatmul.mubr.bf16.gmra.mrb[0].mxu0 %v2676
      %v2815 = vpop.f32.mrb[0].mxu0
      %v2816 = vadd.f32 0.0, %v2815
      %v2817 = vpop.f32.mrb[0].mxu0
      %v2818 = vpop.f32.mrb[0].mxu0
      %v2819 = vadd.f32 0.0, %v2818
      %v2820 = vpop.f32.mrb[0].mxu0
      %2821 = vmatprep.mubr.bf16.mxu0 0
      %2822 = vmatmul.mubr.bf16.gmra.mrb[0].mxu0 %v2679
      %v2823 = vpop.f32.mrb[0].mxu0
      %v2824 = vadd.f32 0.0, %v2823
      %v2825 = vpop.f32.mrb[0].mxu0
      %v2826 = vpop.f32.mrb[0].mxu0
      %v2827 = vadd.f32 0.0, %v2826
      %v2828 = vpop.f32.mrb[0].mxu0
      %2829 = vmatprep.mubr.bf16.mxu0 0
      %2830 = vmatmul.mubr.bf16.gmra.mrb[0].mxu0 %v2682
      %v2831 = vpop.f32.mrb[0].mxu0
      %v2832 = vadd.f32 0.0, %v2831
      %v2833 = vpop.f32.mrb[0].mxu0
      %v2834 = vpop.f32.mrb[0].mxu0
      %v2835 = vadd.f32 0.0, %v2834
      %v2836 = vpop.f32.mrb[0].mxu0
      %2837 = vmatprep.mubr.bf16.mxu0 0
      %2838 = vmatmul.mubr.bf16.gmra.mrb[0].mxu0 %v2685
      %v2839 = vpop.f32.mrb[0].mxu0
      %v2840 = vadd.f32 0.0, %v2839
      %v2841 = vpop.f32.mrb[0].mxu0
      %v2842 = vpop.f32.mrb[0].mxu0
      %v2843 = vadd.f32 0.0, %v2842
      %v2844 = vpop.f32.mrb[0].mxu0
      %2845 = vmatprep.mubr.bf16.mxu0 0
      %2846 = vmatmul.mubr.bf16.gmra.mrb[0].mxu0 %v2688
      %v2847 = vpop.f32.mrb[0].mxu0
      %v2848 = vadd.f32 0.0, %v2847
      %v2849 = vpop.f32.mrb[0].mxu0
      %v2850 = vpop.f32.mrb[0].mxu0
      %v2851 = vadd.f32 0.0, %v2850
      %v2852 = vpop.f32.mrb[0].mxu0
      %2853 = vdwg.mxu0
      %v2854 = vadd.f32 %v2560, %v2728
      %v2855 = vadd.f32 %v2561, %v2731
      %v2856 = vadd.f32 %v2562, %v2736
      %v2857 = vadd.f32 %v2563, %v2739
      %v2858 = vadd.f32 %v2564, %v2744
      %v2859 = vadd.f32 %v2565, %v2747
      %v2860 = vadd.f32 %v2566, %v2752
      %v2861 = vadd.f32 %v2567, %v2755
      %v2862 = vadd.f32 %v2568, %v2760
      %v2863 = vadd.f32 %v2569, %v2763
      %v2864 = vadd.f32 %v2570, %v2768
      %v2865 = vadd.f32 %v2571, %v2771
      %v2866 = vadd.f32 %v2572, %v2776
      %v2867 = vadd.f32 %v2573, %v2779
      %v2868 = vadd.f32 %v2574, %v2784
      %v2869 = vadd.f32 %v2575, %v2787
      %v2870 = vadd.f32 %v2576, %v2792
      %v2871 = vadd.f32 %v2577, %v2795
      %v2872 = vadd.f32 %v2578, %v2800
      %v2873 = vadd.f32 %v2579, %v2803
      %v2874 = vadd.f32 %v2580, %v2808
      %v2875 = vadd.f32 %v2581, %v2811
      %v2876 = vadd.f32 %v2582, %v2816
      %v2877 = vadd.f32 %v2583, %v2819
      %v2878 = vadd.f32 %v2584, %v2824
      %v2879 = vadd.f32 %v2585, %v2827
      %v2880 = vadd.f32 %v2586, %v2832
      %v2881 = vadd.f32 %v2587, %v2835
      %v2882 = vadd.f32 %v2588, %v2840
      %v2883 = vadd.f32 %v2589, %v2843
      %v2884 = vadd.f32 %v2590, %v2848
      %v2885 = vadd.f32 %v2591, %v2851
      %v2886 = vld [vmem:[%s2297 + $0x2] sm:$0xff]
      %v2887 = vld [vmem:[%s2297 + $0xa] sm:$0xff]
      %v2888 = vld [vmem:[%s2297 + $0x1a] sm:$0xff]
      %v2889 = vld [vmem:[%s2297 + $0x22] sm:$0xff]
      %v2890 = vld [vmem:[%s2297 + $0x32] sm:$0xff]
      %v2891 = vld [vmem:[%s2297 + $0x3a] sm:$0xff]
      %v2892 = vld [vmem:[%s2297 + $0x4a] sm:$0xff]
      %v2893 = vld [vmem:[%s2297 + $0x52] sm:$0xff]
      %v2894 = vld [vmem:[%s2297 + $0x62] sm:$0xff]
      %v2895 = vld [vmem:[%s2297 + $0x6a] sm:$0xff]
      %v2896 = vld [vmem:[%s2297 + $0x7a] sm:$0xff]
      %v2897 = vld [vmem:[%s2297 + $0x82] sm:$0xff]
      %v2898 = vld [vmem:[%s2297 + $0x92] sm:$0xff]
      %v2899 = vld [vmem:[%s2297 + $0x9a] sm:$0xff]
      %v2900 = vld [vmem:[%s2297 + $0xaa] sm:$0xff]
      %v2901 = vld [vmem:[%s2297 + $0xb2] sm:$0xff]
      %v2902 = vld [vmem:[%s2297 + $0xc2] sm:$0xff]
      %v2903 = vld [vmem:[%s2297 + $0xca] sm:$0xff]
      %v2904 = vld [vmem:[%s2297 + $0xda] sm:$0xff]
      %v2905 = vld [vmem:[%s2297 + $0xe2] sm:$0xff]
      %v2906 = vld [vmem:[%s2297 + $0xf2] sm:$0xff]
      %v2907 = vld [vmem:[%s2297 + $0xfa] sm:$0xff]
      %v2908 = vld [vmem:[%s2297 + $0x10a] sm:$0xff]
      %v2909 = vld [vmem:[%s2297 + $0x112] sm:$0xff]
      %v2910 = vld [vmem:[%s2297 + $0x122] sm:$0xff]
      %v2911 = vld [vmem:[%s2297 + $0x12a] sm:$0xff]
      %v2912 = vld [vmem:[%s2297 + $0x13a] sm:$0xff]
      %v2913 = vld [vmem:[%s2297 + $0x142] sm:$0xff]
      %v2914 = vld [vmem:[%s2297 + $0x152] sm:$0xff]
      %v2915 = vld [vmem:[%s2297 + $0x15a] sm:$0xff]
      %v2916 = vld [vmem:[%s2297 + $0x16a] sm:$0xff]
      %v2917 = vld [vmem:[%s2297 + $0x172] sm:$0xff]
      %v2918 = vpack.c.bf16 %v2887, %v2886
      %v2919 = vpack.c.bf16 %v2889, %v2888
      %v2920 = vpack.c.bf16 %v2891, %v2890
      %v2921 = vpack.c.bf16 %v2893, %v2892
      %v2922 = vpack.c.bf16 %v2895, %v2894
      %v2923 = vpack.c.bf16 %v2897, %v2896
      %v2924 = vpack.c.bf16 %v2899, %v2898
      %v2925 = vpack.c.bf16 %v2901, %v2900
      %v2926 = vpack.c.bf16 %v2903, %v2902
      %v2927 = vpack.c.bf16 %v2905, %v2904
      %v2928 = vpack.c.bf16 %v2907, %v2906
      %v2929 = vpack.c.bf16 %v2909, %v2908
      %v2930 = vpack.c.bf16 %v2911, %v2910
      %v2931 = vpack.c.bf16 %v2913, %v2912
      %v2932 = vpack.c.bf16 %v2915, %v2914
      %v2933 = vpack.c.bf16 %v2917, %v2916
      %s2934 = scalar_lea.vmem %s2, 32
      %v2935 = vld [vmem:[%s2934] sm:$0xf]
      %v2937 = vsel %vm219, %v2918, 0
      %v2940 = vsel %vm219, %v2919, 0
      %v2943 = vsel %vm219, %v2920, 0
      %v2946 = vsel %vm219, %v2921, 0
      %v2949 = vsel %vm219, %v2922, 0
      %v2952 = vsel %vm219, %v2923, 0
      %v2955 = vsel %vm219, %v2924, 0
      %v2958 = vsel %vm219, %v2925, 0
      %v2961 = vsel %vm219, %v2926, 0
      %v2964 = vsel %vm219, %v2927, 0
      %v2967 = vsel %vm219, %v2928, 0
      %v2970 = vsel %vm219, %v2929, 0
      %v2973 = vsel %vm219, %v2930, 0
      %v2976 = vsel %vm219, %v2931, 0
      %v2979 = vsel %vm219, %v2932, 0
      %v2982 = vsel %vm219, %v2933, 0
      %v2985 = vsel %vm744, %v2935, 0
      %2987 = vmatprep.subr.bf16.mxu0 0
      %2988 = vmatpush1.bf16.msra.mxu0 %v2985
      %2989 = vmatprep.subr.bf16.mxu0 0
      %2990 = vmatpush1.bf16.msra.mxu0 0
      %2991 = vmatprep.subr.bf16.mxu0 0
      %2992 = vmatpush1.bf16.msra.mxu0 0
      %2993 = vmatprep.subr.bf16.mxu0 0
      %2994 = vmatpush1.bf16.msra.mxu0 0
      %2995 = vmatprep.subr.bf16.mxu0 0
      %2996 = vmatpush1.bf16.msra.mxu0 0
      %2997 = vmatprep.subr.bf16.mxu0 0
      %2998 = vmatpush1.bf16.msra.mxu0 0
      %2999 = vmatprep.subr.bf16.mxu0 0
      %3000 = vmatpush1.bf16.msra.mxu0 0
      %3001 = vmatprep.subr.bf16.mxu0 0
      %3002 = vmatpush1.bf16.msra.mxu0 0
      %3003 = vmatprep.subr.bf16.mxu0 0
      %3004 = vmatpush1.bf16.msra.mxu0 0
      %3005 = vmatprep.subr.bf16.mxu0 0
      %3006 = vmatpush1.bf16.msra.mxu0 0
      %3007 = vmatprep.subr.bf16.mxu0 0
      %3008 = vmatpush1.bf16.msra.mxu0 0
      %3009 = vmatprep.subr.bf16.mxu0 0
      %3010 = vmatpush1.bf16.msra.mxu0 0
      %3011 = vmatprep.subr.bf16.mxu0 0
      %3012 = vmatpush1.bf16.msra.mxu0 0
      %3013 = vmatprep.subr.bf16.mxu0 0
      %3014 = vmatpush1.bf16.msra.mxu0 0
      %3015 = vmatprep.subr.bf16.mxu0 0
      %3016 = vmatpush1.bf16.msra.mxu0 0
      %3017 = vmatprep.subr.bf16.mxu0 0
      %3018 = vmatpush1.bf16.msra.mxu0 0
      %3019 = vmatprep.mubr.bf16.mxu0 0
      %3020 = vmatmul.mubr.bf16.gmra.mrb[0].mxu0 %v2937
      %v3021 = vpop.f32.mrb[0].mxu0
      %v3022 = vadd.f32 0.0, %v3021
      %v3023 = vpop.f32.mrb[0].mxu0
      %v3024 = vpop.f32.mrb[0].mxu0
      %v3025 = vadd.f32 0.0, %v3024
      %v3026 = vpop.f32.mrb[0].mxu0
      %3027 = vmatprep.mubr.bf16.mxu0 0
      %3028 = vmatmul.mubr.bf16.gmra.mrb[0].mxu0 %v2940
      %v3029 = vpop.f32.mrb[0].mxu0
      %v3030 = vadd.f32 0.0, %v3029
      %v3031 = vpop.f32.mrb[0].mxu0
      %v3032 = vpop.f32.mrb[0].mxu0
      %v3033 = vadd.f32 0.0, %v3032
      %v3034 = vpop.f32.mrb[0].mxu0
      %3035 = vmatprep.mubr.bf16.mxu0 0
      %3036 = vmatmul.mubr.bf16.gmra.mrb[0].mxu0 %v2943
      %v3037 = vpop.f32.mrb[0].mxu0
      %v3038 = vadd.f32 0.0, %v3037
      %v3039 = vpop.f32.mrb[0].mxu0
      %v3040 = vpop.f32.mrb[0].mxu0
      %v3041 = vadd.f32 0.0, %v3040
      %v3042 = vpop.f32.mrb[0].mxu0
      %3043 = vmatprep.mubr.bf16.mxu0 0
      %3044 = vmatmul.mubr.bf16.gmra.mrb[0].mxu0 %v2946
      %v3045 = vpop.f32.mrb[0].mxu0
      %v3046 = vadd.f32 0.0, %v3045
      %v3047 = vpop.f32.mrb[0].mxu0
      %v3048 = vpop.f32.mrb[0].mxu0
      %v3049 = vadd.f32 0.0, %v3048
      %v3050 = vpop.f32.mrb[0].mxu0
      %3051 = vmatprep.mubr.bf16.mxu0 0
      %3052 = vmatmul.mubr.bf16.gmra.mrb[0].mxu0 %v2949
      %v3053 = vpop.f32.mrb[0].mxu0
      %v3054 = vadd.f32 0.0, %v3053
      %v3055 = vpop.f32.mrb[0].mxu0
      %v3056 = vpop.f32.mrb[0].mxu0
      %v3057 = vadd.f32 0.0, %v3056
      %v3058 = vpop.f32.mrb[0].mxu0
      %3059 = vmatprep.mubr.bf16.mxu0 0
      %3060 = vmatmul.mubr.bf16.gmra.mrb[0].mxu0 %v2952
      %v3061 = vpop.f32.mrb[0].mxu0
      %v3062 = vadd.f32 0.0, %v3061
      %v3063 = vpop.f32.mrb[0].mxu0
      %v3064 = vpop.f32.mrb[0].mxu0
      %v3065 = vadd.f32 0.0, %v3064
      %v3066 = vpop.f32.mrb[0].mxu0
      %3067 = vmatprep.mubr.bf16.mxu0 0
      %3068 = vmatmul.mubr.bf16.gmra.mrb[0].mxu0 %v2955
      %v3069 = vpop.f32.mrb[0].mxu0
      %v3070 = vadd.f32 0.0, %v3069
      %v3071 = vpop.f32.mrb[0].mxu0
      %v3072 = vpop.f32.mrb[0].mxu0
      %v3073 = vadd.f32 0.0, %v3072
      %v3074 = vpop.f32.mrb[0].mxu0
      %3075 = vmatprep.mubr.bf16.mxu0 0
      %3076 = vmatmul.mubr.bf16.gmra.mrb[0].mxu0 %v2958
      %v3077 = vpop.f32.mrb[0].mxu0
      %v3078 = vadd.f32 0.0, %v3077
      %v3079 = vpop.f32.mrb[0].mxu0
      %v3080 = vpop.f32.mrb[0].mxu0
      %v3081 = vadd.f32 0.0, %v3080
      %v3082 = vpop.f32.mrb[0].mxu0
      %3083 = vmatprep.mubr.bf16.mxu0 0
      %3084 = vmatmul.mubr.bf16.gmra.mrb[0].mxu0 %v2961
      %v3085 = vpop.f32.mrb[0].mxu0
      %v3086 = vadd.f32 0.0, %v3085
      %v3087 = vpop.f32.mrb[0].mxu0
      %v3088 = vpop.f32.mrb[0].mxu0
      %v3089 = vadd.f32 0.0, %v3088
      %v3090 = vpop.f32.mrb[0].mxu0
      %3091 = vmatprep.mubr.bf16.mxu0 0
      %3092 = vmatmul.mubr.bf16.gmra.mrb[0].mxu0 %v2964
      %v3093 = vpop.f32.mrb[0].mxu0
      %v3094 = vadd.f32 0.0, %v3093
      %v3095 = vpop.f32.mrb[0].mxu0
      %v3096 = vpop.f32.mrb[0].mxu0
      %v3097 = vadd.f32 0.0, %v3096
      %v3098 = vpop.f32.mrb[0].mxu0
      %3099 = vmatprep.mubr.bf16.mxu0 0
      %3100 = vmatmul.mubr.bf16.gmra.mrb[0].mxu0 %v2967
      %v3101 = vpop.f32.mrb[0].mxu0
      %v3102 = vadd.f32 0.0, %v3101
      %v3103 = vpop.f32.mrb[0].mxu0
      %v3104 = vpop.f32.mrb[0].mxu0
      %v3105 = vadd.f32 0.0, %v3104
      %v3106 = vpop.f32.mrb[0].mxu0
      %3107 = vmatprep.mubr.bf16.mxu0 0
      %3108 = vmatmul.mubr.bf16.gmra.mrb[0].mxu0 %v2970
      %v3109 = vpop.f32.mrb[0].mxu0
      %v3110 = vadd.f32 0.0, %v3109
      %v3111 = vpop.f32.mrb[0].mxu0
      %v3112 = vpop.f32.mrb[0].mxu0
      %v3113 = vadd.f32 0.0, %v3112
      %v3114 = vpop.f32.mrb[0].mxu0
      %3115 = vmatprep.mubr.bf16.mxu0 0
      %3116 = vmatmul.mubr.bf16.gmra.mrb[0].mxu0 %v2973
      %v3117 = vpop.f32.mrb[0].mxu0
      %v3118 = vadd.f32 0.0, %v3117
      %v3119 = vpop.f32.mrb[0].mxu0
      %v3120 = vpop.f32.mrb[0].mxu0
      %v3121 = vadd.f32 0.0, %v3120
      %v3122 = vpop.f32.mrb[0].mxu0
      %3123 = vmatprep.mubr.bf16.mxu0 0
      %3124 = vmatmul.mubr.bf16.gmra.mrb[0].mxu0 %v2976
      %v3125 = vpop.f32.mrb[0].mxu0
      %v3126 = vadd.f32 0.0, %v3125
      %v3127 = vpop.f32.mrb[0].mxu0
      %v3128 = vpop.f32.mrb[0].mxu0
      %v3129 = vadd.f32 0.0, %v3128
      %v3130 = vpop.f32.mrb[0].mxu0
      %3131 = vmatprep.mubr.bf16.mxu0 0
      %3132 = vmatmul.mubr.bf16.gmra.mrb[0].mxu0 %v2979
      %v3133 = vpop.f32.mrb[0].mxu0
      %v3134 = vadd.f32 0.0, %v3133
      %v3135 = vpop.f32.mrb[0].mxu0
      %v3136 = vpop.f32.mrb[0].mxu0
      %v3137 = vadd.f32 0.0, %v3136
      %v3138 = vpop.f32.mrb[0].mxu0
      %3139 = vmatprep.mubr.bf16.mxu0 0
      %3140 = vmatmul.mubr.bf16.gmra.mrb[0].mxu0 %v2982
      %v3141 = vpop.f32.mrb[0].mxu0
      %v3142 = vadd.f32 0.0, %v3141
      %v3143 = vpop.f32.mrb[0].mxu0
      %v3144 = vpop.f32.mrb[0].mxu0
      %v3145 = vadd.f32 0.0, %v3144
      %v3146 = vpop.f32.mrb[0].mxu0
      %3147 = vdwg.mxu0
      %v3148 = vadd.f32 %v2854, %v3022
      %v3149 = vadd.f32 %v2855, %v3025
      %v3150 = vadd.f32 %v2856, %v3030
      %v3151 = vadd.f32 %v2857, %v3033
      %v3152 = vadd.f32 %v2858, %v3038
      %v3153 = vadd.f32 %v2859, %v3041
      %v3154 = vadd.f32 %v2860, %v3046
      %v3155 = vadd.f32 %v2861, %v3049
      %v3156 = vadd.f32 %v2862, %v3054
      %v3157 = vadd.f32 %v2863, %v3057
      %v3158 = vadd.f32 %v2864, %v3062
      %v3159 = vadd.f32 %v2865, %v3065
      %v3160 = vadd.f32 %v2866, %v3070
      %v3161 = vadd.f32 %v2867, %v3073
      %v3162 = vadd.f32 %v2868, %v3078
      %v3163 = vadd.f32 %v2869, %v3081
      %v3164 = vadd.f32 %v2870, %v3086
      %v3165 = vadd.f32 %v2871, %v3089
      %v3166 = vadd.f32 %v2872, %v3094
      %v3167 = vadd.f32 %v2873, %v3097
      %v3168 = vadd.f32 %v2874, %v3102
      %v3169 = vadd.f32 %v2875, %v3105
      %v3170 = vadd.f32 %v2876, %v3110
      %v3171 = vadd.f32 %v2877, %v3113
      %v3172 = vadd.f32 %v2878, %v3118
      %v3173 = vadd.f32 %v2879, %v3121
      %v3174 = vadd.f32 %v2880, %v3126
      %v3175 = vadd.f32 %v2881, %v3129
      %v3176 = vadd.f32 %v2882, %v3134
      %v3177 = vadd.f32 %v2883, %v3137
      %v3178 = vadd.f32 %v2884, %v3142
      %v3179 = vadd.f32 %v2885, %v3145
      %v3180 = vmax.f32 %v3148, 0.0
      %v3181 = vmax.f32 %v3149, 0.0
      %v3182 = vmax.f32 %v3150, 0.0
      %v3183 = vmax.f32 %v3151, 0.0
      %v3184 = vmax.f32 %v3152, 0.0
      %v3185 = vmax.f32 %v3153, 0.0
      %v3186 = vmax.f32 %v3154, 0.0
      %v3187 = vmax.f32 %v3155, 0.0
      %v3188 = vmax.f32 %v3156, 0.0
      %v3189 = vmax.f32 %v3157, 0.0
      %v3190 = vmax.f32 %v3158, 0.0
      %v3191 = vmax.f32 %v3159, 0.0
      %v3192 = vmax.f32 %v3160, 0.0
      %v3193 = vmax.f32 %v3161, 0.0
      %v3194 = vmax.f32 %v3162, 0.0
      %v3195 = vmax.f32 %v3163, 0.0
      %v3196 = vmax.f32 %v3164, 0.0
      %v3197 = vmax.f32 %v3165, 0.0
      %v3198 = vmax.f32 %v3166, 0.0
      %v3199 = vmax.f32 %v3167, 0.0
      %v3200 = vmax.f32 %v3168, 0.0
      %v3201 = vmax.f32 %v3169, 0.0
      %v3202 = vmax.f32 %v3170, 0.0
      %v3203 = vmax.f32 %v3171, 0.0
      %v3204 = vmax.f32 %v3172, 0.0
      %v3205 = vmax.f32 %v3173, 0.0
      %v3206 = vmax.f32 %v3174, 0.0
      %v3207 = vmax.f32 %v3175, 0.0
      %v3208 = vmax.f32 %v3176, 0.0
      %v3209 = vmax.f32 %v3177, 0.0
      %v3210 = vmax.f32 %v3178, 0.0
      %v3211 = vmax.f32 %v3179, 0.0
      %3212 = vst.msk [vmem:[#allocation3] sm:$0xff] %vm531, 0.0
      %3213 = vst.msk [vmem:[#allocation3 + $0x8] sm:$0xff] %vm531, 0.0
      %vm3214 = vcmask 25600
      %3215 = vst.msk [vmem:[#allocation3 + $0x10] sm:$0x3] %vm3214, 0.0
      %3216 = vst.msk [vmem:[#allocation3 + $0x18] sm:$0xff] %vm531, 0.0
      %3217 = vst.msk [vmem:[#allocation3 + $0x20] sm:$0xff] %vm531, 0.0
      %3218 = vst.msk [vmem:[#allocation3 + $0x28] sm:$0x3] %vm3214, 0.0
      %3219 = vst.msk [vmem:[#allocation3 + $0x30] sm:$0xff] %vm531, 0.0
      %3220 = vst.msk [vmem:[#allocation3 + $0x38] sm:$0xff] %vm531, 0.0
      %3221 = vst.msk [vmem:[#allocation3 + $0x40] sm:$0x3] %vm3214, 0.0
      %3222 = vst.msk [vmem:[#allocation3 + $0x48] sm:$0xff] %vm531, 0.0
      %3223 = vst.msk [vmem:[#allocation3 + $0x50] sm:$0xff] %vm531, 0.0
      %3224 = vst.msk [vmem:[#allocation3 + $0x58] sm:$0x3] %vm3214, 0.0
      %3225 = vst.msk [vmem:[#allocation3 + $0x60] sm:$0xff] %vm531, 0.0
      %3226 = vst.msk [vmem:[#allocation3 + $0x68] sm:$0xff] %vm531, 0.0
      %3227 = vst.msk [vmem:[#allocation3 + $0x70] sm:$0x3] %vm3214, 0.0
      %3228 = vst.msk [vmem:[#allocation3 + $0x78] sm:$0xff] %vm531, 0.0
      %3229 = vst.msk [vmem:[#allocation3 + $0x80] sm:$0xff] %vm531, 0.0
      %3230 = vst.msk [vmem:[#allocation3 + $0x88] sm:$0x3] %vm3214, 0.0
      %3231 = vst.msk [vmem:[#allocation3 + $0x90] sm:$0xff] %vm531, 0.0
      %3232 = vst.msk [vmem:[#allocation3 + $0x98] sm:$0xff] %vm531, 0.0
      %3233 = vst.msk [vmem:[#allocation3 + $0xa0] sm:$0x3] %vm3214, 0.0
      %3234 = vst.msk [vmem:[#allocation3 + $0xa8] sm:$0xff] %vm531, 0.0
      %3235 = vst.msk [vmem:[#allocation3 + $0xb0] sm:$0xff] %vm531, 0.0
      %3236 = vst.msk [vmem:[#allocation3 + $0xb8] sm:$0x3] %vm3214, 0.0
      %3237 = vst.msk [vmem:[#allocation3 + $0xc0] sm:$0xff] %vm531, 0.0
      %3238 = vst.msk [vmem:[#allocation3 + $0xc8] sm:$0xff] %vm531, 0.0
      %3239 = vst.msk [vmem:[#allocation3 + $0xd0] sm:$0x3] %vm3214, 0.0
      %3240 = vst.msk [vmem:[#allocation3 + $0xd8] sm:$0xff] %vm531, 0.0
      %3241 = vst.msk [vmem:[#allocation3 + $0xe0] sm:$0xff] %vm531, 0.0
      %3242 = vst.msk [vmem:[#allocation3 + $0xe8] sm:$0x3] %vm3214, 0.0
      %3243 = vst.msk [vmem:[#allocation3 + $0xf0] sm:$0xff] %vm531, 0.0
      %3244 = vst.msk [vmem:[#allocation3 + $0xf8] sm:$0xff] %vm531, 0.0
      %3245 = vst.msk [vmem:[#allocation3 + $0x100] sm:$0x3] %vm3214, 0.0
      %3246 = vst.msk [vmem:[#allocation3 + $0x108] sm:$0xff] %vm531, 0.0
      %3247 = vst.msk [vmem:[#allocation3 + $0x110] sm:$0xff] %vm531, 0.0
      %3248 = vst.msk [vmem:[#allocation3 + $0x118] sm:$0x3] %vm3214, 0.0
      %3249 = vst.msk [vmem:[#allocation3 + $0x120] sm:$0xff] %vm531, 0.0
      %3250 = vst.msk [vmem:[#allocation3 + $0x128] sm:$0xff] %vm531, 0.0
      %3251 = vst.msk [vmem:[#allocation3 + $0x130] sm:$0x3] %vm3214, 0.0
      %3252 = vst.msk [vmem:[#allocation3 + $0x138] sm:$0xff] %vm531, 0.0
      %3253 = vst.msk [vmem:[#allocation3 + $0x140] sm:$0xff] %vm531, 0.0
      %3254 = vst.msk [vmem:[#allocation3 + $0x148] sm:$0x3] %vm3214, 0.0
      %3255 = vst.msk [vmem:[#allocation3 + $0x150] sm:$0xff] %vm531, 0.0
      %3256 = vst.msk [vmem:[#allocation3 + $0x158] sm:$0xff] %vm531, 0.0
      %3257 = vst.msk [vmem:[#allocation3 + $0x160] sm:$0x3] %vm3214, 0.0
      %3258 = vst.msk [vmem:[#allocation3 + $0x168] sm:$0xff] %vm531, 0.0
      %3259 = vst.msk [vmem:[#allocation3 + $0x170] sm:$0xff] %vm531, 0.0
      %3260 = vst.msk [vmem:[#allocation3 + $0x178] sm:$0x3] %vm3214, 0.0
      %3261 = vst.msk [vmem:[#allocation3 + $0x180] sm:$0xff] %vm531, 0.0
      %3262 = vst.msk [vmem:[#allocation3 + $0x188] sm:$0xff] %vm531, 0.0
      %3263 = vst.msk [vmem:[#allocation3 + $0x190] sm:$0x3] %vm3214, 0.0
      %3264 = vst.msk [vmem:[#allocation3 + $0x198] sm:$0xff] %vm531, 0.0
      %3265 = vst.msk [vmem:[#allocation3 + $0x1a0] sm:$0xff] %vm531, 0.0
      %3266 = vst.msk [vmem:[#allocation3 + $0x1a8] sm:$0x3] %vm3214, 0.0
      %s3267 = scalar_lea.vmem [#allocation3], 24
      %3268 = vst.msk [vmem:[%s3267 + $0x1] sm:$0xff] %vm531, %v3180
      %3269 = vst.msk [vmem:[%s3267 + $0x9] sm:$0xff] %vm531, %v3181
      %3270 = vst.msk [vmem:[%s3267 + $0x19] sm:$0xff] %vm531, %v3182
      %3271 = vst.msk [vmem:[%s3267 + $0x21] sm:$0xff] %vm531, %v3183
      %3272 = vst.msk [vmem:[%s3267 + $0x31] sm:$0xff] %vm531, %v3184
      %3273 = vst.msk [vmem:[%s3267 + $0x39] sm:$0xff] %vm531, %v3185
      %3274 = vst.msk [vmem:[%s3267 + $0x49] sm:$0xff] %vm531, %v3186
      %3275 = vst.msk [vmem:[%s3267 + $0x51] sm:$0xff] %vm531, %v3187
      %3276 = vst.msk [vmem:[%s3267 + $0x61] sm:$0xff] %vm531, %v3188
      %3277 = vst.msk [vmem:[%s3267 + $0x69] sm:$0xff] %vm531, %v3189
      %3278 = vst.msk [vmem:[%s3267 + $0x79] sm:$0xff] %vm531, %v3190
      %3279 = vst.msk [vmem:[%s3267 + $0x81] sm:$0xff] %vm531, %v3191
      %3280 = vst.msk [vmem:[%s3267 + $0x91] sm:$0xff] %vm531, %v3192
      %3281 = vst.msk [vmem:[%s3267 + $0x99] sm:$0xff] %vm531, %v3193
      %3282 = vst.msk [vmem:[%s3267 + $0xa9] sm:$0xff] %vm531, %v3194
      %3283 = vst.msk [vmem:[%s3267 + $0xb1] sm:$0xff] %vm531, %v3195
      %3284 = vst.msk [vmem:[%s3267 + $0xc1] sm:$0xff] %vm531, %v3196
      %3285 = vst.msk [vmem:[%s3267 + $0xc9] sm:$0xff] %vm531, %v3197
      %3286 = vst.msk [vmem:[%s3267 + $0xd9] sm:$0xff] %vm531, %v3198
      %3287 = vst.msk [vmem:[%s3267 + $0xe1] sm:$0xff] %vm531, %v3199
      %3288 = vst.msk [vmem:[%s3267 + $0xf1] sm:$0xff] %vm531, %v3200
      %3289 = vst.msk [vmem:[%s3267 + $0xf9] sm:$0xff] %vm531, %v3201
      %3290 = vst.msk [vmem:[%s3267 + $0x109] sm:$0xff] %vm531, %v3202
      %3291 = vst.msk [vmem:[%s3267 + $0x111] sm:$0xff] %vm531, %v3203
      %3292 = vst.msk [vmem:[%s3267 + $0x121] sm:$0xff] %vm531, %v3204
      %3293 = vst.msk [vmem:[%s3267 + $0x129] sm:$0xff] %vm531, %v3205
      %3294 = vst.msk [vmem:[%s3267 + $0x139] sm:$0xff] %vm531, %v3206
      %3295 = vst.msk [vmem:[%s3267 + $0x141] sm:$0xff] %vm531, %v3207
      %3296 = vst.msk [vmem:[%s3267 + $0x151] sm:$0xff] %vm531, %v3208
      %3297 = vst.msk [vmem:[%s3267 + $0x159] sm:$0xff] %vm531, %v3209
      %3298 = vst.msk [vmem:[%s3267 + $0x169] sm:$0xff] %vm531, %v3210
      %3299 = vst.msk [vmem:[%s3267 + $0x171] sm:$0xff] %vm531, %v3211
      %v3300 = vld [vmem:[#allocation3] sm:$0xff]
      %v3301 = vld [vmem:[#allocation3 + $0x8] sm:$0xff]
      %v3302 = vld [vmem:[#allocation3 + $0x18] sm:$0xff]
      %v3303 = vld [vmem:[#allocation3 + $0x20] sm:$0xff]
      %v3304 = vld [vmem:[#allocation3 + $0x30] sm:$0xff]
      %v3305 = vld [vmem:[#allocation3 + $0x38] sm:$0xff]
      %v3306 = vld [vmem:[#allocation3 + $0x48] sm:$0xff]
      %v3307 = vld [vmem:[#allocation3 + $0x50] sm:$0xff]
      %v3308 = vld [vmem:[#allocation3 + $0x60] sm:$0xff]
      %v3309 = vld [vmem:[#allocation3 + $0x68] sm:$0xff]
      %v3310 = vld [vmem:[#allocation3 + $0x78] sm:$0xff]
      %v3311 = vld [vmem:[#allocation3 + $0x80] sm:$0xff]
      %v3312 = vld [vmem:[#allocation3 + $0x90] sm:$0xff]
      %v3313 = vld [vmem:[#allocation3 + $0x98] sm:$0xff]
      %v3314 = vld [vmem:[#allocation3 + $0xa8] sm:$0xff]
      %v3315 = vld [vmem:[#allocation3 + $0xb0] sm:$0xff]
      %v3316 = vld [vmem:[#allocation3 + $0xc0] sm:$0xff]
      %v3317 = vld [vmem:[#allocation3 + $0xc8] sm:$0xff]
      %v3318 = vld [vmem:[#allocation3 + $0xd8] sm:$0xff]
      %v3319 = vld [vmem:[#allocation3 + $0xe0] sm:$0xff]
      %v3320 = vld [vmem:[#allocation3 + $0xf0] sm:$0xff]
      %v3321 = vld [vmem:[#allocation3 + $0xf8] sm:$0xff]
      %v3322 = vld [vmem:[#allocation3 + $0x108] sm:$0xff]
      %v3323 = vld [vmem:[#allocation3 + $0x110] sm:$0xff]
      %v3324 = vld [vmem:[#allocation3 + $0x120] sm:$0xff]
      %v3325 = vld [vmem:[#allocation3 + $0x128] sm:$0xff]
      %v3326 = vld [vmem:[#allocation3 + $0x138] sm:$0xff]
      %v3327 = vld [vmem:[#allocation3 + $0x140] sm:$0xff]
      %v3328 = vld [vmem:[#allocation3 + $0x150] sm:$0xff]
      %v3329 = vld [vmem:[#allocation3 + $0x158] sm:$0xff]
      %v3330 = vld [vmem:[#allocation3 + $0x168] sm:$0xff]
      %v3331 = vld [vmem:[#allocation3 + $0x170] sm:$0xff]
      %v3332 = vpack.c.bf16 %v3301, %v3300
      %v3333 = vpack.c.bf16 %v3303, %v3302
      %v3334 = vpack.c.bf16 %v3305, %v3304
      %v3335 = vpack.c.bf16 %v3307, %v3306
      %v3336 = vpack.c.bf16 %v3309, %v3308
      %v3337 = vpack.c.bf16 %v3311, %v3310
      %v3338 = vpack.c.bf16 %v3313, %v3312
      %v3339 = vpack.c.bf16 %v3315, %v3314
      %v3340 = vpack.c.bf16 %v3317, %v3316
      %v3341 = vpack.c.bf16 %v3319, %v3318
      %v3342 = vpack.c.bf16 %v3321, %v3320
      %v3343 = vpack.c.bf16 %v3323, %v3322
      %v3344 = vpack.c.bf16 %v3325, %v3324
      %v3345 = vpack.c.bf16 %v3327, %v3326
      %v3346 = vpack.c.bf16 %v3329, %v3328
      %v3347 = vpack.c.bf16 %v3331, %v3330
      %v3348 = vld [vmem:[%s3] sm:$0x3]
      %v3349 = vld [vmem:[#allocation3 + $0x1] sm:$0xff]
      %v3350 = vld [vmem:[#allocation3 + $0x9] sm:$0xff]
      %v3351 = vld [vmem:[#allocation3 + $0x19] sm:$0xff]
      %v3352 = vld [vmem:[#allocation3 + $0x21] sm:$0xff]
      %v3353 = vld [vmem:[#allocation3 + $0x31] sm:$0xff]
      %v3354 = vld [vmem:[#allocation3 + $0x39] sm:$0xff]
      %v3355 = vld [vmem:[#allocation3 + $0x49] sm:$0xff]
      %v3356 = vld [vmem:[#allocation3 + $0x51] sm:$0xff]
      %v3357 = vld [vmem:[#allocation3 + $0x61] sm:$0xff]
      %v3358 = vld [vmem:[#allocation3 + $0x69] sm:$0xff]
      %v3359 = vld [vmem:[#allocation3 + $0x79] sm:$0xff]
      %v3360 = vld [vmem:[#allocation3 + $0x81] sm:$0xff]
      %v3361 = vld [vmem:[#allocation3 + $0x91] sm:$0xff]
      %v3362 = vld [vmem:[#allocation3 + $0x99] sm:$0xff]
      %v3363 = vld [vmem:[#allocation3 + $0xa9] sm:$0xff]
      %v3364 = vld [vmem:[#allocation3 + $0xb1] sm:$0xff]
      %v3365 = vld [vmem:[#allocation3 + $0xc1] sm:$0xff]
      %v3366 = vld [vmem:[#allocation3 + $0xc9] sm:$0xff]
      %v3367 = vld [vmem:[#allocation3 + $0xd9] sm:$0xff]
      %v3368 = vld [vmem:[#allocation3 + $0xe1] sm:$0xff]
      %v3369 = vld [vmem:[#allocation3 + $0xf1] sm:$0xff]
      %v3370 = vld [vmem:[#allocation3 + $0xf9] sm:$0xff]
      %v3371 = vld [vmem:[#allocation3 + $0x109] sm:$0xff]
      %v3372 = vld [vmem:[#allocation3 + $0x111] sm:$0xff]
      %v3373 = vld [vmem:[#allocation3 + $0x121] sm:$0xff]
      %v3374 = vld [vmem:[#allocation3 + $0x129] sm:$0xff]
      %v3375 = vld [vmem:[#allocation3 + $0x139] sm:$0xff]
      %v3376 = vld [vmem:[#allocation3 + $0x141] sm:$0xff]
      %v3377 = vld [vmem:[#allocation3 + $0x151] sm:$0xff]
      %v3378 = vld [vmem:[#allocation3 + $0x159] sm:$0xff]
      %v3379 = vld [vmem:[#allocation3 + $0x169] sm:$0xff]
      %v3380 = vld [vmem:[#allocation3 + $0x171] sm:$0xff]
      %v3381 = vpack.c.bf16 %v3350, %v3349
      %v3382 = vpack.c.bf16 %v3352, %v3351
      %v3383 = vpack.c.bf16 %v3354, %v3353
      %v3384 = vpack.c.bf16 %v3356, %v3355
      %v3385 = vpack.c.bf16 %v3358, %v3357
      %v3386 = vpack.c.bf16 %v3360, %v3359
      %v3387 = vpack.c.bf16 %v3362, %v3361
      %v3388 = vpack.c.bf16 %v3364, %v3363
      %v3389 = vpack.c.bf16 %v3366, %v3365
      %v3390 = vpack.c.bf16 %v3368, %v3367
      %v3391 = vpack.c.bf16 %v3370, %v3369
      %v3392 = vpack.c.bf16 %v3372, %v3371
      %v3393 = vpack.c.bf16 %v3374, %v3373
      %v3394 = vpack.c.bf16 %v3376, %v3375
      %v3395 = vpack.c.bf16 %v3378, %v3377
      %v3396 = vpack.c.bf16 %v3380, %v3379
      %s3397 = scalar_lea.vmem %s3, 2
      %v3398 = vld [vmem:[%s3397] sm:$0x3]
      %v3400 = vsel %vm531, %v3381, 0
      %v3403 = vsel %vm531, %v3382, 0
      %v3406 = vsel %vm531, %v3383, 0
      %v3409 = vsel %vm531, %v3384, 0
      %v3412 = vsel %vm531, %v3385, 0
      %v3415 = vsel %vm531, %v3386, 0
      %v3418 = vsel %vm531, %v3387, 0
      %v3421 = vsel %vm531, %v3388, 0
      %v3424 = vsel %vm531, %v3389, 0
      %v3427 = vsel %vm531, %v3390, 0
      %v3430 = vsel %vm531, %v3391, 0
      %v3433 = vsel %vm531, %v3392, 0
      %v3436 = vsel %vm531, %v3393, 0
      %v3439 = vsel %vm531, %v3394, 0
      %v3442 = vsel %vm531, %v3395, 0
      %v3445 = vsel %vm531, %v3396, 0
      %vm3447 = vcmask 1041408
      %v3449 = vsel %vm3447, %v3398, 0
      %3451 = vmatprep.subr.bf16.mxu0 0
      %3452 = vmatpush1.bf16.msra.mxu0 %v3449
      %3453 = vmatprep.subr.bf16.mxu0 0
      %3454 = vmatpush1.bf16.msra.mxu0 0
      %3455 = vmatprep.subr.bf16.mxu0 0
      %3456 = vmatpush1.bf16.msra.mxu0 0
      %3457 = vmatprep.subr.bf16.mxu0 0
      %3458 = vmatpush1.bf16.msra.mxu0 0
      %3459 = vmatprep.subr.bf16.mxu0 0
      %3460 = vmatpush1.bf16.msra.mxu0 0
      %3461 = vmatprep.subr.bf16.mxu0 0
      %3462 = vmatpush1.bf16.msra.mxu0 0
      %3463 = vmatprep.subr.bf16.mxu0 0
      %3464 = vmatpush1.bf16.msra.mxu0 0
      %3465 = vmatprep.subr.bf16.mxu0 0
      %3466 = vmatpush1.bf16.msra.mxu0 0
      %3467 = vmatprep.subr.bf16.mxu0 0
      %3468 = vmatpush1.bf16.msra.mxu0 0
      %3469 = vmatprep.subr.bf16.mxu0 0
      %3470 = vmatpush1.bf16.msra.mxu0 0
      %3471 = vmatprep.subr.bf16.mxu0 0
      %3472 = vmatpush1.bf16.msra.mxu0 0
      %3473 = vmatprep.subr.bf16.mxu0 0
      %3474 = vmatpush1.bf16.msra.mxu0 0
      %3475 = vmatprep.subr.bf16.mxu0 0
      %3476 = vmatpush1.bf16.msra.mxu0 0
      %3477 = vmatprep.subr.bf16.mxu0 0
      %3478 = vmatpush1.bf16.msra.mxu0 0
      %3479 = vmatprep.subr.bf16.mxu0 0
      %3480 = vmatpush1.bf16.msra.mxu0 0
      %3481 = vmatprep.subr.bf16.mxu0 0
      %3482 = vmatpush1.bf16.msra.mxu0 0
      %3483 = vmatprep.mubr.bf16.mxu0 0
      %3484 = vmatmul.mubr.bf16.gmra.mrb[0].mxu0 %v3400
      %v3485 = vpop.f32.mrb[0].mxu0
      %v3486 = vadd.f32 0.0, %v3485
      %v3487 = vpop.f32.mrb[0].mxu0
      %v3488 = vpop.f32.mrb[0].mxu0
      %v3489 = vadd.f32 0.0, %v3488
      %v3490 = vpop.f32.mrb[0].mxu0
      %3491 = vmatprep.mubr.bf16.mxu0 0
      %3492 = vmatmul.mubr.bf16.gmra.mrb[0].mxu0 %v3403
      %v3493 = vpop.f32.mrb[0].mxu0
      %v3494 = vadd.f32 0.0, %v3493
      %v3495 = vpop.f32.mrb[0].mxu0
      %v3496 = vpop.f32.mrb[0].mxu0
      %v3497 = vadd.f32 0.0, %v3496
      %v3498 = vpop.f32.mrb[0].mxu0
      %3499 = vmatprep.mubr.bf16.mxu0 0
      %3500 = vmatmul.mubr.bf16.gmra.mrb[0].mxu0 %v3406
      %v3501 = vpop.f32.mrb[0].mxu0
      %v3502 = vadd.f32 0.0, %v3501
      %v3503 = vpop.f32.mrb[0].mxu0
      %v3504 = vpop.f32.mrb[0].mxu0
      %v3505 = vadd.f32 0.0, %v3504
      %v3506 = vpop.f32.mrb[0].mxu0
      %3507 = vmatprep.mubr.bf16.mxu0 0
      %3508 = vmatmul.mubr.bf16.gmra.mrb[0].mxu0 %v3409
      %v3509 = vpop.f32.mrb[0].mxu0
      %v3510 = vadd.f32 0.0, %v3509
      %v3511 = vpop.f32.mrb[0].mxu0
      %v3512 = vpop.f32.mrb[0].mxu0
      %v3513 = vadd.f32 0.0, %v3512
      %v3514 = vpop.f32.mrb[0].mxu0
      %3515 = vmatprep.mubr.bf16.mxu0 0
      %3516 = vmatmul.mubr.bf16.gmra.mrb[0].mxu0 %v3412
      %v3517 = vpop.f32.mrb[0].mxu0
      %v3518 = vadd.f32 0.0, %v3517
      %v3519 = vpop.f32.mrb[0].mxu0
      %v3520 = vpop.f32.mrb[0].mxu0
      %v3521 = vadd.f32 0.0, %v3520
      %v3522 = vpop.f32.mrb[0].mxu0
      %3523 = vmatprep.mubr.bf16.mxu0 0
      %3524 = vmatmul.mubr.bf16.gmra.mrb[0].mxu0 %v3415
      %v3525 = vpop.f32.mrb[0].mxu0
      %v3526 = vadd.f32 0.0, %v3525
      %v3527 = vpop.f32.mrb[0].mxu0
      %v3528 = vpop.f32.mrb[0].mxu0
      %v3529 = vadd.f32 0.0, %v3528
      %v3530 = vpop.f32.mrb[0].mxu0
      %3531 = vmatprep.mubr.bf16.mxu0 0
      %3532 = vmatmul.mubr.bf16.gmra.mrb[0].mxu0 %v3418
      %v3533 = vpop.f32.mrb[0].mxu0
      %v3534 = vadd.f32 0.0, %v3533
      %v3535 = vpop.f32.mrb[0].mxu0
      %v3536 = vpop.f32.mrb[0].mxu0
      %v3537 = vadd.f32 0.0, %v3536
      %v3538 = vpop.f32.mrb[0].mxu0
      %3539 = vmatprep.mubr.bf16.mxu0 0
      %3540 = vmatmul.mubr.bf16.gmra.mrb[0].mxu0 %v3421
      %v3541 = vpop.f32.mrb[0].mxu0
      %v3542 = vadd.f32 0.0, %v3541
      %v3543 = vpop.f32.mrb[0].mxu0
      %v3544 = vpop.f32.mrb[0].mxu0
      %v3545 = vadd.f32 0.0, %v3544
      %v3546 = vpop.f32.mrb[0].mxu0
      %3547 = vmatprep.mubr.bf16.mxu0 0
      %3548 = vmatmul.mubr.bf16.gmra.mrb[0].mxu0 %v3424
      %v3549 = vpop.f32.mrb[0].mxu0
      %v3550 = vadd.f32 0.0, %v3549
      %v3551 = vpop.f32.mrb[0].mxu0
      %v3552 = vpop.f32.mrb[0].mxu0
      %v3553 = vadd.f32 0.0, %v3552
      %v3554 = vpop.f32.mrb[0].mxu0
      %3555 = vmatprep.mubr.bf16.mxu0 0
      %3556 = vmatmul.mubr.bf16.gmra.mrb[0].mxu0 %v3427
      %v3557 = vpop.f32.mrb[0].mxu0
      %v3558 = vadd.f32 0.0, %v3557
      %v3559 = vpop.f32.mrb[0].mxu0
      %v3560 = vpop.f32.mrb[0].mxu0
      %v3561 = vadd.f32 0.0, %v3560
      %v3562 = vpop.f32.mrb[0].mxu0
      %3563 = vmatprep.mubr.bf16.mxu0 0
      %3564 = vmatmul.mubr.bf16.gmra.mrb[0].mxu0 %v3430
      %v3565 = vpop.f32.mrb[0].mxu0
      %v3566 = vadd.f32 0.0, %v3565
      %v3567 = vpop.f32.mrb[0].mxu0
      %v3568 = vpop.f32.mrb[0].mxu0
      %v3569 = vadd.f32 0.0, %v3568
      %v3570 = vpop.f32.mrb[0].mxu0
      %3571 = vmatprep.mubr.bf16.mxu0 0
      %3572 = vmatmul.mubr.bf16.gmra.mrb[0].mxu0 %v3433
      %v3573 = vpop.f32.mrb[0].mxu0
      %v3574 = vadd.f32 0.0, %v3573
      %v3575 = vpop.f32.mrb[0].mxu0
      %v3576 = vpop.f32.mrb[0].mxu0
      %v3577 = vadd.f32 0.0, %v3576
      %v3578 = vpop.f32.mrb[0].mxu0
      %3579 = vmatprep.mubr.bf16.mxu0 0
      %3580 = vmatmul.mubr.bf16.gmra.mrb[0].mxu0 %v3436
      %v3581 = vpop.f32.mrb[0].mxu0
      %v3582 = vadd.f32 0.0, %v3581
      %v3583 = vpop.f32.mrb[0].mxu0
      %v3584 = vpop.f32.mrb[0].mxu0
      %v3585 = vadd.f32 0.0, %v3584
      %v3586 = vpop.f32.mrb[0].mxu0
      %3587 = vmatprep.mubr.bf16.mxu0 0
      %3588 = vmatmul.mubr.bf16.gmra.mrb[0].mxu0 %v3439
      %v3589 = vpop.f32.mrb[0].mxu0
      %v3590 = vadd.f32 0.0, %v3589
      %v3591 = vpop.f32.mrb[0].mxu0
      %v3592 = vpop.f32.mrb[0].mxu0
      %v3593 = vadd.f32 0.0, %v3592
      %v3594 = vpop.f32.mrb[0].mxu0
      %3595 = vmatprep.mubr.bf16.mxu0 0
      %3596 = vmatmul.mubr.bf16.gmra.mrb[0].mxu0 %v3442
      %v3597 = vpop.f32.mrb[0].mxu0
      %v3598 = vadd.f32 0.0, %v3597
      %v3599 = vpop.f32.mrb[0].mxu0
      %v3600 = vpop.f32.mrb[0].mxu0
      %v3601 = vadd.f32 0.0, %v3600
      %v3602 = vpop.f32.mrb[0].mxu0
      %3603 = vmatprep.mubr.bf16.mxu0 0
      %3604 = vmatmul.mubr.bf16.gmra.mrb[0].mxu0 %v3445
      %v3605 = vpop.f32.mrb[0].mxu0
      %v3606 = vadd.f32 0.0, %v3605
      %v3607 = vpop.f32.mrb[0].mxu0
      %v3608 = vpop.f32.mrb[0].mxu0
      %v3609 = vadd.f32 0.0, %v3608
      %v3610 = vpop.f32.mrb[0].mxu0
      %3611 = vdwg.mxu0
      %v3613 = vsel %vm531, %v3332, 0
      %v3616 = vsel %vm531, %v3333, 0
      %v3619 = vsel %vm531, %v3334, 0
      %v3622 = vsel %vm531, %v3335, 0
      %v3625 = vsel %vm531, %v3336, 0
      %v3628 = vsel %vm531, %v3337, 0
      %v3631 = vsel %vm531, %v3338, 0
      %v3634 = vsel %vm531, %v3339, 0
      %v3637 = vsel %vm531, %v3340, 0
      %v3640 = vsel %vm531, %v3341, 0
      %v3643 = vsel %vm531, %v3342, 0
      %v3646 = vsel %vm531, %v3343, 0
      %v3649 = vsel %vm531, %v3344, 0
      %v3652 = vsel %vm531, %v3345, 0
      %v3655 = vsel %vm531, %v3346, 0
      %v3658 = vsel %vm531, %v3347, 0
      %v3661 = vsel %vm3447, %v3348, 0
      %3663 = vmatprep.subr.bf16.mxu0 0
      %3664 = vmatpush1.bf16.msra.mxu0 %v3661
      %3665 = vmatprep.subr.bf16.mxu0 0
      %3666 = vmatpush1.bf16.msra.mxu0 0
      %3667 = vmatprep.subr.bf16.mxu0 0
      %3668 = vmatpush1.bf16.msra.mxu0 0
      %3669 = vmatprep.subr.bf16.mxu0 0
      %3670 = vmatpush1.bf16.msra.mxu0 0
      %3671 = vmatprep.subr.bf16.mxu0 0
      %3672 = vmatpush1.bf16.msra.mxu0 0
      %3673 = vmatprep.subr.bf16.mxu0 0
      %3674 = vmatpush1.bf16.msra.mxu0 0
      %3675 = vmatprep.subr.bf16.mxu0 0
      %3676 = vmatpush1.bf16.msra.mxu0 0
      %3677 = vmatprep.subr.bf16.mxu0 0
      %3678 = vmatpush1.bf16.msra.mxu0 0
      %3679 = vmatprep.subr.bf16.mxu0 0
      %3680 = vmatpush1.bf16.msra.mxu0 0
      %3681 = vmatprep.subr.bf16.mxu0 0
      %3682 = vmatpush1.bf16.msra.mxu0 0
      %3683 = vmatprep.subr.bf16.mxu0 0
      %3684 = vmatpush1.bf16.msra.mxu0 0
      %3685 = vmatprep.subr.bf16.mxu0 0
      %3686 = vmatpush1.bf16.msra.mxu0 0
      %3687 = vmatprep.subr.bf16.mxu0 0
      %3688 = vmatpush1.bf16.msra.mxu0 0
      %3689 = vmatprep.subr.bf16.mxu0 0
      %3690 = vmatpush1.bf16.msra.mxu0 0
      %3691 = vmatprep.subr.bf16.mxu0 0
      %3692 = vmatpush1.bf16.msra.mxu0 0
      %3693 = vmatprep.subr.bf16.mxu0 0
      %3694 = vmatpush1.bf16.msra.mxu0 0
      %3695 = vmatprep.mubr.bf16.mxu0 0
      %3696 = vmatmul.mubr.bf16.gmra.mrb[0].mxu0 %v3613
      %v3697 = vpop.f32.mrb[0].mxu0
      %v3698 = vadd.f32 %v3486, %v3697
      %v3699 = vpop.f32.mrb[0].mxu0
      %v3700 = vpop.f32.mrb[0].mxu0
      %v3701 = vadd.f32 %v3489, %v3700
      %v3702 = vpop.f32.mrb[0].mxu0
      %3703 = vmatprep.mubr.bf16.mxu0 0
      %3704 = vmatmul.mubr.bf16.gmra.mrb[0].mxu0 %v3616
      %v3705 = vpop.f32.mrb[0].mxu0
      %v3706 = vadd.f32 %v3494, %v3705
      %v3707 = vpop.f32.mrb[0].mxu0
      %v3708 = vpop.f32.mrb[0].mxu0
      %v3709 = vadd.f32 %v3497, %v3708
      %v3710 = vpop.f32.mrb[0].mxu0
      %3711 = vmatprep.mubr.bf16.mxu0 0
      %3712 = vmatmul.mubr.bf16.gmra.mrb[0].mxu0 %v3619
      %v3713 = vpop.f32.mrb[0].mxu0
      %v3714 = vadd.f32 %v3502, %v3713
      %v3715 = vpop.f32.mrb[0].mxu0
      %v3716 = vpop.f32.mrb[0].mxu0
      %v3717 = vadd.f32 %v3505, %v3716
      %v3718 = vpop.f32.mrb[0].mxu0
      %3719 = vmatprep.mubr.bf16.mxu0 0
      %3720 = vmatmul.mubr.bf16.gmra.mrb[0].mxu0 %v3622
      %v3721 = vpop.f32.mrb[0].mxu0
      %v3722 = vadd.f32 %v3510, %v3721
      %v3723 = vpop.f32.mrb[0].mxu0
      %v3724 = vpop.f32.mrb[0].mxu0
      %v3725 = vadd.f32 %v3513, %v3724
      %v3726 = vpop.f32.mrb[0].mxu0
      %3727 = vmatprep.mubr.bf16.mxu0 0
      %3728 = vmatmul.mubr.bf16.gmra.mrb[0].mxu0 %v3625
      %v3729 = vpop.f32.mrb[0].mxu0
      %v3730 = vadd.f32 %v3518, %v3729
      %v3731 = vpop.f32.mrb[0].mxu0
      %v3732 = vpop.f32.mrb[0].mxu0
      %v3733 = vadd.f32 %v3521, %v3732
      %v3734 = vpop.f32.mrb[0].mxu0
      %3735 = vmatprep.mubr.bf16.mxu0 0
      %3736 = vmatmul.mubr.bf16.gmra.mrb[0].mxu0 %v3628
      %v3737 = vpop.f32.mrb[0].mxu0
      %v3738 = vadd.f32 %v3526, %v3737
      %v3739 = vpop.f32.mrb[0].mxu0
      %v3740 = vpop.f32.mrb[0].mxu0
      %v3741 = vadd.f32 %v3529, %v3740
      %v3742 = vpop.f32.mrb[0].mxu0
      %3743 = vmatprep.mubr.bf16.mxu0 0
      %3744 = vmatmul.mubr.bf16.gmra.mrb[0].mxu0 %v3631
      %v3745 = vpop.f32.mrb[0].mxu0
      %v3746 = vadd.f32 %v3534, %v3745
      %v3747 = vpop.f32.mrb[0].mxu0
      %v3748 = vpop.f32.mrb[0].mxu0
      %v3749 = vadd.f32 %v3537, %v3748
      %v3750 = vpop.f32.mrb[0].mxu0
      %3751 = vmatprep.mubr.bf16.mxu0 0
      %3752 = vmatmul.mubr.bf16.gmra.mrb[0].mxu0 %v3634
      %v3753 = vpop.f32.mrb[0].mxu0
      %v3754 = vadd.f32 %v3542, %v3753
      %v3755 = vpop.f32.mrb[0].mxu0
      %v3756 = vpop.f32.mrb[0].mxu0
      %v3757 = vadd.f32 %v3545, %v3756
      %v3758 = vpop.f32.mrb[0].mxu0
      %3759 = vmatprep.mubr.bf16.mxu0 0
      %3760 = vmatmul.mubr.bf16.gmra.mrb[0].mxu0 %v3637
      %v3761 = vpop.f32.mrb[0].mxu0
      %v3762 = vadd.f32 %v3550, %v3761
      %v3763 = vpop.f32.mrb[0].mxu0
      %v3764 = vpop.f32.mrb[0].mxu0
      %v3765 = vadd.f32 %v3553, %v3764
      %v3766 = vpop.f32.mrb[0].mxu0
      %3767 = vmatprep.mubr.bf16.mxu0 0
      %3768 = vmatmul.mubr.bf16.gmra.mrb[0].mxu0 %v3640
      %v3769 = vpop.f32.mrb[0].mxu0
      %v3770 = vadd.f32 %v3558, %v3769
      %v3771 = vpop.f32.mrb[0].mxu0
      %v3772 = vpop.f32.mrb[0].mxu0
      %v3773 = vadd.f32 %v3561, %v3772
      %v3774 = vpop.f32.mrb[0].mxu0
      %3775 = vmatprep.mubr.bf16.mxu0 0
      %3776 = vmatmul.mubr.bf16.gmra.mrb[0].mxu0 %v3643
      %v3777 = vpop.f32.mrb[0].mxu0
      %v3778 = vadd.f32 %v3566, %v3777
      %v3779 = vpop.f32.mrb[0].mxu0
      %v3780 = vpop.f32.mrb[0].mxu0
      %v3781 = vadd.f32 %v3569, %v3780
      %v3782 = vpop.f32.mrb[0].mxu0
      %3783 = vmatprep.mubr.bf16.mxu0 0
      %3784 = vmatmul.mubr.bf16.gmra.mrb[0].mxu0 %v3646
      %v3785 = vpop.f32.mrb[0].mxu0
      %v3786 = vadd.f32 %v3574, %v3785
      %v3787 = vpop.f32.mrb[0].mxu0
      %v3788 = vpop.f32.mrb[0].mxu0
      %v3789 = vadd.f32 %v3577, %v3788
      %v3790 = vpop.f32.mrb[0].mxu0
      %3791 = vmatprep.mubr.bf16.mxu0 0
      %3792 = vmatmul.mubr.bf16.gmra.mrb[0].mxu0 %v3649
      %v3793 = vpop.f32.mrb[0].mxu0
      %v3794 = vadd.f32 %v3582, %v3793
      %v3795 = vpop.f32.mrb[0].mxu0
      %v3796 = vpop.f32.mrb[0].mxu0
      %v3797 = vadd.f32 %v3585, %v3796
      %v3798 = vpop.f32.mrb[0].mxu0
      %3799 = vmatprep.mubr.bf16.mxu0 0
      %3800 = vmatmul.mubr.bf16.gmra.mrb[0].mxu0 %v3652
      %v3801 = vpop.f32.mrb[0].mxu0
      %v3802 = vadd.f32 %v3590, %v3801
      %v3803 = vpop.f32.mrb[0].mxu0
      %v3804 = vpop.f32.mrb[0].mxu0
      %v3805 = vadd.f32 %v3593, %v3804
      %v3806 = vpop.f32.mrb[0].mxu0
      %3807 = vmatprep.mubr.bf16.mxu0 0
      %3808 = vmatmul.mubr.bf16.gmra.mrb[0].mxu0 %v3655
      %v3809 = vpop.f32.mrb[0].mxu0
      %v3810 = vadd.f32 %v3598, %v3809
      %v3811 = vpop.f32.mrb[0].mxu0
      %v3812 = vpop.f32.mrb[0].mxu0
      %v3813 = vadd.f32 %v3601, %v3812
      %v3814 = vpop.f32.mrb[0].mxu0
      %3815 = vmatprep.mubr.bf16.mxu0 0
      %3816 = vmatmul.mubr.bf16.gmra.mrb[0].mxu0 %v3658
      %v3817 = vpop.f32.mrb[0].mxu0
      %v3818 = vadd.f32 %v3606, %v3817
      %v3819 = vpop.f32.mrb[0].mxu0
      %v3820 = vpop.f32.mrb[0].mxu0
      %v3821 = vadd.f32 %v3609, %v3820
      %v3822 = vpop.f32.mrb[0].mxu0
      %3823 = vdwg.mxu0
      %v3824 = vld [vmem:[#allocation3 + $0x2] sm:$0xff]
      %v3825 = vld [vmem:[#allocation3 + $0xa] sm:$0xff]
      %v3826 = vld [vmem:[#allocation3 + $0x1a] sm:$0xff]
      %v3827 = vld [vmem:[#allocation3 + $0x22] sm:$0xff]
      %v3828 = vld [vmem:[#allocation3 + $0x32] sm:$0xff]
      %v3829 = vld [vmem:[#allocation3 + $0x3a] sm:$0xff]
      %v3830 = vld [vmem:[#allocation3 + $0x4a] sm:$0xff]
      %v3831 = vld [vmem:[#allocation3 + $0x52] sm:$0xff]
      %v3832 = vld [vmem:[#allocation3 + $0x62] sm:$0xff]
      %v3833 = vld [vmem:[#allocation3 + $0x6a] sm:$0xff]
      %v3834 = vld [vmem:[#allocation3 + $0x7a] sm:$0xff]
      %v3835 = vld [vmem:[#allocation3 + $0x82] sm:$0xff]
      %v3836 = vld [vmem:[#allocation3 + $0x92] sm:$0xff]
      %v3837 = vld [vmem:[#allocation3 + $0x9a] sm:$0xff]
      %v3838 = vld [vmem:[#allocation3 + $0xaa] sm:$0xff]
      %v3839 = vld [vmem:[#allocation3 + $0xb2] sm:$0xff]
      %v3840 = vld [vmem:[#allocation3 + $0xc2] sm:$0xff]
      %v3841 = vld [vmem:[#allocation3 + $0xca] sm:$0xff]
      %v3842 = vld [vmem:[#allocation3 + $0xda] sm:$0xff]
      %v3843 = vld [vmem:[#allocation3 + $0xe2] sm:$0xff]
      %v3844 = vld [vmem:[#allocation3 + $0xf2] sm:$0xff]
      %v3845 = vld [vmem:[#allocation3 + $0xfa] sm:$0xff]
      %v3846 = vld [vmem:[#allocation3 + $0x10a] sm:$0xff]
      %v3847 = vld [vmem:[#allocation3 + $0x112] sm:$0xff]
      %v3848 = vld [vmem:[#allocation3 + $0x122] sm:$0xff]
      %v3849 = vld [vmem:[#allocation3 + $0x12a] sm:$0xff]
      %v3850 = vld [vmem:[#allocation3 + $0x13a] sm:$0xff]
      %v3851 = vld [vmem:[#allocation3 + $0x142] sm:$0xff]
      %v3852 = vld [vmem:[#allocation3 + $0x152] sm:$0xff]
      %v3853 = vld [vmem:[#allocation3 + $0x15a] sm:$0xff]
      %v3854 = vld [vmem:[#allocation3 + $0x16a] sm:$0xff]
      %v3855 = vld [vmem:[#allocation3 + $0x172] sm:$0xff]
      %v3856 = vpack.c.bf16 %v3825, %v3824
      %v3857 = vpack.c.bf16 %v3827, %v3826
      %v3858 = vpack.c.bf16 %v3829, %v3828
      %v3859 = vpack.c.bf16 %v3831, %v3830
      %v3860 = vpack.c.bf16 %v3833, %v3832
      %v3861 = vpack.c.bf16 %v3835, %v3834
      %v3862 = vpack.c.bf16 %v3837, %v3836
      %v3863 = vpack.c.bf16 %v3839, %v3838
      %v3864 = vpack.c.bf16 %v3841, %v3840
      %v3865 = vpack.c.bf16 %v3843, %v3842
      %v3866 = vpack.c.bf16 %v3845, %v3844
      %v3867 = vpack.c.bf16 %v3847, %v3846
      %v3868 = vpack.c.bf16 %v3849, %v3848
      %v3869 = vpack.c.bf16 %v3851, %v3850
      %v3870 = vpack.c.bf16 %v3853, %v3852
      %v3871 = vpack.c.bf16 %v3855, %v3854
      %s3872 = scalar_lea.vmem %s3, 4
      %v3873 = vld [vmem:[%s3872] sm:$0x3]
      %v3875 = vsel %vm531, %v3856, 0
      %v3878 = vsel %vm531, %v3857, 0
      %v3881 = vsel %vm531, %v3858, 0
      %v3884 = vsel %vm531, %v3859, 0
      %v3887 = vsel %vm531, %v3860, 0
      %v3890 = vsel %vm531, %v3861, 0
      %v3893 = vsel %vm531, %v3862, 0
      %v3896 = vsel %vm531, %v3863, 0
      %v3899 = vsel %vm531, %v3864, 0
      %v3902 = vsel %vm531, %v3865, 0
      %v3905 = vsel %vm531, %v3866, 0
      %v3908 = vsel %vm531, %v3867, 0
      %v3911 = vsel %vm531, %v3868, 0
      %v3914 = vsel %vm531, %v3869, 0
      %v3917 = vsel %vm531, %v3870, 0
      %v3920 = vsel %vm531, %v3871, 0
      %v3923 = vsel %vm3447, %v3873, 0
      %3925 = vmatprep.subr.bf16.mxu0 0
      %3926 = vmatpush1.bf16.msra.mxu0 %v3923
      %3927 = vmatprep.subr.bf16.mxu0 0
      %3928 = vmatpush1.bf16.msra.mxu0 0
      %3929 = vmatprep.subr.bf16.mxu0 0
      %3930 = vmatpush1.bf16.msra.mxu0 0
      %3931 = vmatprep.subr.bf16.mxu0 0
      %3932 = vmatpush1.bf16.msra.mxu0 0
      %3933 = vmatprep.subr.bf16.mxu0 0
      %3934 = vmatpush1.bf16.msra.mxu0 0
      %3935 = vmatprep.subr.bf16.mxu0 0
      %3936 = vmatpush1.bf16.msra.mxu0 0
      %3937 = vmatprep.subr.bf16.mxu0 0
      %3938 = vmatpush1.bf16.msra.mxu0 0
      %3939 = vmatprep.subr.bf16.mxu0 0
      %3940 = vmatpush1.bf16.msra.mxu0 0
      %3941 = vmatprep.subr.bf16.mxu0 0
      %3942 = vmatpush1.bf16.msra.mxu0 0
      %3943 = vmatprep.subr.bf16.mxu0 0
      %3944 = vmatpush1.bf16.msra.mxu0 0
      %3945 = vmatprep.subr.bf16.mxu0 0
      %3946 = vmatpush1.bf16.msra.mxu0 0
      %3947 = vmatprep.subr.bf16.mxu0 0
      %3948 = vmatpush1.bf16.msra.mxu0 0
      %3949 = vmatprep.subr.bf16.mxu0 0
      %3950 = vmatpush1.bf16.msra.mxu0 0
      %3951 = vmatprep.subr.bf16.mxu0 0
      %3952 = vmatpush1.bf16.msra.mxu0 0
      %3953 = vmatprep.subr.bf16.mxu0 0
      %3954 = vmatpush1.bf16.msra.mxu0 0
      %3955 = vmatprep.subr.bf16.mxu0 0
      %3956 = vmatpush1.bf16.msra.mxu0 0
      %3957 = vmatprep.mubr.bf16.mxu0 0
      %3958 = vmatmul.mubr.bf16.gmra.mrb[0].mxu0 %v3875
      %v3959 = vpop.f32.mrb[0].mxu0
      %v3960 = vadd.f32 0.0, %v3959
      %v3961 = vpop.f32.mrb[0].mxu0
      %v3962 = vpop.f32.mrb[0].mxu0
      %v3963 = vadd.f32 0.0, %v3962
      %v3964 = vpop.f32.mrb[0].mxu0
      %3965 = vmatprep.mubr.bf16.mxu0 0
      %3966 = vmatmul.mubr.bf16.gmra.mrb[0].mxu0 %v3878
      %v3967 = vpop.f32.mrb[0].mxu0
      %v3968 = vadd.f32 0.0, %v3967
      %v3969 = vpop.f32.mrb[0].mxu0
      %v3970 = vpop.f32.mrb[0].mxu0
      %v3971 = vadd.f32 0.0, %v3970
      %v3972 = vpop.f32.mrb[0].mxu0
      %3973 = vmatprep.mubr.bf16.mxu0 0
      %3974 = vmatmul.mubr.bf16.gmra.mrb[0].mxu0 %v3881
      %v3975 = vpop.f32.mrb[0].mxu0
      %v3976 = vadd.f32 0.0, %v3975
      %v3977 = vpop.f32.mrb[0].mxu0
      %v3978 = vpop.f32.mrb[0].mxu0
      %v3979 = vadd.f32 0.0, %v3978
      %v3980 = vpop.f32.mrb[0].mxu0
      %3981 = vmatprep.mubr.bf16.mxu0 0
      %3982 = vmatmul.mubr.bf16.gmra.mrb[0].mxu0 %v3884
      %v3983 = vpop.f32.mrb[0].mxu0
      %v3984 = vadd.f32 0.0, %v3983
      %v3985 = vpop.f32.mrb[0].mxu0
      %v3986 = vpop.f32.mrb[0].mxu0
      %v3987 = vadd.f32 0.0, %v3986
      %v3988 = vpop.f32.mrb[0].mxu0
      %3989 = vmatprep.mubr.bf16.mxu0 0
      %3990 = vmatmul.mubr.bf16.gmra.mrb[0].mxu0 %v3887
      %v3991 = vpop.f32.mrb[0].mxu0
      %v3992 = vadd.f32 0.0, %v3991
      %v3993 = vpop.f32.mrb[0].mxu0
      %v3994 = vpop.f32.mrb[0].mxu0
      %v3995 = vadd.f32 0.0, %v3994
      %v3996 = vpop.f32.mrb[0].mxu0
      %3997 = vmatprep.mubr.bf16.mxu0 0
      %3998 = vmatmul.mubr.bf16.gmra.mrb[0].mxu0 %v3890
      %v3999 = vpop.f32.mrb[0].mxu0
      %v4000 = vadd.f32 0.0, %v3999
      %v4001 = vpop.f32.mrb[0].mxu0
      %v4002 = vpop.f32.mrb[0].mxu0
      %v4003 = vadd.f32 0.0, %v4002
      %v4004 = vpop.f32.mrb[0].mxu0
      %4005 = vmatprep.mubr.bf16.mxu0 0
      %4006 = vmatmul.mubr.bf16.gmra.mrb[0].mxu0 %v3893
      %v4007 = vpop.f32.mrb[0].mxu0
      %v4008 = vadd.f32 0.0, %v4007
      %v4009 = vpop.f32.mrb[0].mxu0
      %v4010 = vpop.f32.mrb[0].mxu0
      %v4011 = vadd.f32 0.0, %v4010
      %v4012 = vpop.f32.mrb[0].mxu0
      %4013 = vmatprep.mubr.bf16.mxu0 0
      %4014 = vmatmul.mubr.bf16.gmra.mrb[0].mxu0 %v3896
      %v4015 = vpop.f32.mrb[0].mxu0
      %v4016 = vadd.f32 0.0, %v4015
      %v4017 = vpop.f32.mrb[0].mxu0
      %v4018 = vpop.f32.mrb[0].mxu0
      %v4019 = vadd.f32 0.0, %v4018
      %v4020 = vpop.f32.mrb[0].mxu0
      %4021 = vmatprep.mubr.bf16.mxu0 0
      %4022 = vmatmul.mubr.bf16.gmra.mrb[0].mxu0 %v3899
      %v4023 = vpop.f32.mrb[0].mxu0
      %v4024 = vadd.f32 0.0, %v4023
      %v4025 = vpop.f32.mrb[0].mxu0
      %v4026 = vpop.f32.mrb[0].mxu0
      %v4027 = vadd.f32 0.0, %v4026
      %v4028 = vpop.f32.mrb[0].mxu0
      %4029 = vmatprep.mubr.bf16.mxu0 0
      %4030 = vmatmul.mubr.bf16.gmra.mrb[0].mxu0 %v3902
      %v4031 = vpop.f32.mrb[0].mxu0
      %v4032 = vadd.f32 0.0, %v4031
      %v4033 = vpop.f32.mrb[0].mxu0
      %v4034 = vpop.f32.mrb[0].mxu0
      %v4035 = vadd.f32 0.0, %v4034
      %v4036 = vpop.f32.mrb[0].mxu0
      %4037 = vmatprep.mubr.bf16.mxu0 0
      %4038 = vmatmul.mubr.bf16.gmra.mrb[0].mxu0 %v3905
      %v4039 = vpop.f32.mrb[0].mxu0
      %v4040 = vadd.f32 0.0, %v4039
      %v4041 = vpop.f32.mrb[0].mxu0
      %v4042 = vpop.f32.mrb[0].mxu0
      %v4043 = vadd.f32 0.0, %v4042
      %v4044 = vpop.f32.mrb[0].mxu0
      %4045 = vmatprep.mubr.bf16.mxu0 0
      %4046 = vmatmul.mubr.bf16.gmra.mrb[0].mxu0 %v3908
      %v4047 = vpop.f32.mrb[0].mxu0
      %v4048 = vadd.f32 0.0, %v4047
      %v4049 = vpop.f32.mrb[0].mxu0
      %v4050 = vpop.f32.mrb[0].mxu0
      %v4051 = vadd.f32 0.0, %v4050
      %v4052 = vpop.f32.mrb[0].mxu0
      %4053 = vmatprep.mubr.bf16.mxu0 0
      %4054 = vmatmul.mubr.bf16.gmra.mrb[0].mxu0 %v3911
      %v4055 = vpop.f32.mrb[0].mxu0
      %v4056 = vadd.f32 0.0, %v4055
      %v4057 = vpop.f32.mrb[0].mxu0
      %v4058 = vpop.f32.mrb[0].mxu0
      %v4059 = vadd.f32 0.0, %v4058
      %v4060 = vpop.f32.mrb[0].mxu0
      %4061 = vmatprep.mubr.bf16.mxu0 0
      %4062 = vmatmul.mubr.bf16.gmra.mrb[0].mxu0 %v3914
      %v4063 = vpop.f32.mrb[0].mxu0
      %v4064 = vadd.f32 0.0, %v4063
      %v4065 = vpop.f32.mrb[0].mxu0
      %v4066 = vpop.f32.mrb[0].mxu0
      %v4067 = vadd.f32 0.0, %v4066
      %v4068 = vpop.f32.mrb[0].mxu0
      %4069 = vmatprep.mubr.bf16.mxu0 0
      %4070 = vmatmul.mubr.bf16.gmra.mrb[0].mxu0 %v3917
      %v4071 = vpop.f32.mrb[0].mxu0
      %v4072 = vadd.f32 0.0, %v4071
      %v4073 = vpop.f32.mrb[0].mxu0
      %v4074 = vpop.f32.mrb[0].mxu0
      %v4075 = vadd.f32 0.0, %v4074
      %v4076 = vpop.f32.mrb[0].mxu0
      %4077 = vmatprep.mubr.bf16.mxu0 0
      %4078 = vmatmul.mubr.bf16.gmra.mrb[0].mxu0 %v3920
      %v4079 = vpop.f32.mrb[0].mxu0
      %v4080 = vadd.f32 0.0, %v4079
      %v4081 = vpop.f32.mrb[0].mxu0
      %v4082 = vpop.f32.mrb[0].mxu0
      %v4083 = vadd.f32 0.0, %v4082
      %v4084 = vpop.f32.mrb[0].mxu0
      %4085 = vdwg.mxu0
      %v4086 = vadd.f32 %v3698, %v3960
      %v4087 = vadd.f32 %v3701, %v3963
      %v4088 = vadd.f32 %v3706, %v3968
      %v4089 = vadd.f32 %v3709, %v3971
      %v4090 = vadd.f32 %v3714, %v3976
      %v4091 = vadd.f32 %v3717, %v3979
      %v4092 = vadd.f32 %v3722, %v3984
      %v4093 = vadd.f32 %v3725, %v3987
      %v4094 = vadd.f32 %v3730, %v3992
      %v4095 = vadd.f32 %v3733, %v3995
      %v4096 = vadd.f32 %v3738, %v4000
      %v4097 = vadd.f32 %v3741, %v4003
      %v4098 = vadd.f32 %v3746, %v4008
      %v4099 = vadd.f32 %v3749, %v4011
      %v4100 = vadd.f32 %v3754, %v4016
      %v4101 = vadd.f32 %v3757, %v4019
      %v4102 = vadd.f32 %v3762, %v4024
      %v4103 = vadd.f32 %v3765, %v4027
      %v4104 = vadd.f32 %v3770, %v4032
      %v4105 = vadd.f32 %v3773, %v4035
      %v4106 = vadd.f32 %v3778, %v4040
      %v4107 = vadd.f32 %v3781, %v4043
      %v4108 = vadd.f32 %v3786, %v4048
      %v4109 = vadd.f32 %v3789, %v4051
      %v4110 = vadd.f32 %v3794, %v4056
      %v4111 = vadd.f32 %v3797, %v4059
      %v4112 = vadd.f32 %v3802, %v4064
      %v4113 = vadd.f32 %v3805, %v4067
      %v4114 = vadd.f32 %v3810, %v4072
      %v4115 = vadd.f32 %v3813, %v4075
      %v4116 = vadd.f32 %v3818, %v4080
      %v4117 = vadd.f32 %v3821, %v4083
      %v4118 = vld [vmem:[%s3267] sm:$0xff]
      %v4119 = vld [vmem:[%s3267 + $0x8] sm:$0xff]
      %v4120 = vld [vmem:[%s3267 + $0x18] sm:$0xff]
      %v4121 = vld [vmem:[%s3267 + $0x20] sm:$0xff]
      %v4122 = vld [vmem:[%s3267 + $0x30] sm:$0xff]
      %v4123 = vld [vmem:[%s3267 + $0x38] sm:$0xff]
      %v4124 = vld [vmem:[%s3267 + $0x48] sm:$0xff]
      %v4125 = vld [vmem:[%s3267 + $0x50] sm:$0xff]
      %v4126 = vld [vmem:[%s3267 + $0x60] sm:$0xff]
      %v4127 = vld [vmem:[%s3267 + $0x68] sm:$0xff]
      %v4128 = vld [vmem:[%s3267 + $0x78] sm:$0xff]
      %v4129 = vld [vmem:[%s3267 + $0x80] sm:$0xff]
      %v4130 = vld [vmem:[%s3267 + $0x90] sm:$0xff]
      %v4131 = vld [vmem:[%s3267 + $0x98] sm:$0xff]
      %v4132 = vld [vmem:[%s3267 + $0xa8] sm:$0xff]
      %v4133 = vld [vmem:[%s3267 + $0xb0] sm:$0xff]
      %v4134 = vld [vmem:[%s3267 + $0xc0] sm:$0xff]
      %v4135 = vld [vmem:[%s3267 + $0xc8] sm:$0xff]
      %v4136 = vld [vmem:[%s3267 + $0xd8] sm:$0xff]
      %v4137 = vld [vmem:[%s3267 + $0xe0] sm:$0xff]
      %v4138 = vld [vmem:[%s3267 + $0xf0] sm:$0xff]
      %v4139 = vld [vmem:[%s3267 + $0xf8] sm:$0xff]
      %v4140 = vld [vmem:[%s3267 + $0x108] sm:$0xff]
      %v4141 = vld [vmem:[%s3267 + $0x110] sm:$0xff]
      %v4142 = vld [vmem:[%s3267 + $0x120] sm:$0xff]
      %v4143 = vld [vmem:[%s3267 + $0x128] sm:$0xff]
      %v4144 = vld [vmem:[%s3267 + $0x138] sm:$0xff]
      %v4145 = vld [vmem:[%s3267 + $0x140] sm:$0xff]
      %v4146 = vld [vmem:[%s3267 + $0x150] sm:$0xff]
      %v4147 = vld [vmem:[%s3267 + $0x158] sm:$0xff]
      %v4148 = vld [vmem:[%s3267 + $0x168] sm:$0xff]
      %v4149 = vld [vmem:[%s3267 + $0x170] sm:$0xff]
      %v4150 = vpack.c.bf16 %v4119, %v4118
      %v4151 = vpack.c.bf16 %v4121, %v4120
      %v4152 = vpack.c.bf16 %v4123, %v4122
      %v4153 = vpack.c.bf16 %v4125, %v4124
      %v4154 = vpack.c.bf16 %v4127, %v4126
      %v4155 = vpack.c.bf16 %v4129, %v4128
      %v4156 = vpack.c.bf16 %v4131, %v4130
      %v4157 = vpack.c.bf16 %v4133, %v4132
      %v4158 = vpack.c.bf16 %v4135, %v4134
      %v4159 = vpack.c.bf16 %v4137, %v4136
      %v4160 = vpack.c.bf16 %v4139, %v4138
      %v4161 = vpack.c.bf16 %v4141, %v4140
      %v4162 = vpack.c.bf16 %v4143, %v4142
      %v4163 = vpack.c.bf16 %v4145, %v4144
      %v4164 = vpack.c.bf16 %v4147, %v4146
      %v4165 = vpack.c.bf16 %v4149, %v4148
      %s4166 = scalar_lea.vmem %s3, 6
      %v4167 = vld [vmem:[%s4166] sm:$0x3]
      %v4169 = vsel %vm531, %v4150, 0
      %v4172 = vsel %vm531, %v4151, 0
      %v4175 = vsel %vm531, %v4152, 0
      %v4178 = vsel %vm531, %v4153, 0
      %v4181 = vsel %vm531, %v4154, 0
      %v4184 = vsel %vm531, %v4155, 0
      %v4187 = vsel %vm531, %v4156, 0
      %v4190 = vsel %vm531, %v4157, 0
      %v4193 = vsel %vm531, %v4158, 0
      %v4196 = vsel %vm531, %v4159, 0
      %v4199 = vsel %vm531, %v4160, 0
      %v4202 = vsel %vm531, %v4161, 0
      %v4205 = vsel %vm531, %v4162, 0
      %v4208 = vsel %vm531, %v4163, 0
      %v4211 = vsel %vm531, %v4164, 0
      %v4214 = vsel %vm531, %v4165, 0
      %v4217 = vsel %vm3447, %v4167, 0
      %4219 = vmatprep.subr.bf16.mxu0 0
      %4220 = vmatpush1.bf16.msra.mxu0 %v4217
      %4221 = vmatprep.subr.bf16.mxu0 0
      %4222 = vmatpush1.bf16.msra.mxu0 0
      %4223 = vmatprep.subr.bf16.mxu0 0
      %4224 = vmatpush1.bf16.msra.mxu0 0
      %4225 = vmatprep.subr.bf16.mxu0 0
      %4226 = vmatpush1.bf16.msra.mxu0 0
      %4227 = vmatprep.subr.bf16.mxu0 0
      %4228 = vmatpush1.bf16.msra.mxu0 0
      %4229 = vmatprep.subr.bf16.mxu0 0
      %4230 = vmatpush1.bf16.msra.mxu0 0
      %4231 = vmatprep.subr.bf16.mxu0 0
      %4232 = vmatpush1.bf16.msra.mxu0 0
      %4233 = vmatprep.subr.bf16.mxu0 0
      %4234 = vmatpush1.bf16.msra.mxu0 0
      %4235 = vmatprep.subr.bf16.mxu0 0
      %4236 = vmatpush1.bf16.msra.mxu0 0
      %4237 = vmatprep.subr.bf16.mxu0 0
      %4238 = vmatpush1.bf16.msra.mxu0 0
      %4239 = vmatprep.subr.bf16.mxu0 0
      %4240 = vmatpush1.bf16.msra.mxu0 0
      %4241 = vmatprep.subr.bf16.mxu0 0
      %4242 = vmatpush1.bf16.msra.mxu0 0
      %4243 = vmatprep.subr.bf16.mxu0 0
      %4244 = vmatpush1.bf16.msra.mxu0 0
      %4245 = vmatprep.subr.bf16.mxu0 0
      %4246 = vmatpush1.bf16.msra.mxu0 0
      %4247 = vmatprep.subr.bf16.mxu0 0
      %4248 = vmatpush1.bf16.msra.mxu0 0
      %4249 = vmatprep.subr.bf16.mxu0 0
      %4250 = vmatpush1.bf16.msra.mxu0 0
      %4251 = vmatprep.mubr.bf16.mxu0 0
      %4252 = vmatmul.mubr.bf16.gmra.mrb[0].mxu0 %v4169
      %v4253 = vpop.f32.mrb[0].mxu0
      %v4254 = vadd.f32 0.0, %v4253
      %v4255 = vpop.f32.mrb[0].mxu0
      %v4256 = vpop.f32.mrb[0].mxu0
      %v4257 = vadd.f32 0.0, %v4256
      %v4258 = vpop.f32.mrb[0].mxu0
      %4259 = vmatprep.mubr.bf16.mxu0 0
      %4260 = vmatmul.mubr.bf16.gmra.mrb[0].mxu0 %v4172
      %v4261 = vpop.f32.mrb[0].mxu0
      %v4262 = vadd.f32 0.0, %v4261
      %v4263 = vpop.f32.mrb[0].mxu0
      %v4264 = vpop.f32.mrb[0].mxu0
      %v4265 = vadd.f32 0.0, %v4264
      %v4266 = vpop.f32.mrb[0].mxu0
      %4267 = vmatprep.mubr.bf16.mxu0 0
      %4268 = vmatmul.mubr.bf16.gmra.mrb[0].mxu0 %v4175
      %v4269 = vpop.f32.mrb[0].mxu0
      %v4270 = vadd.f32 0.0, %v4269
      %v4271 = vpop.f32.mrb[0].mxu0
      %v4272 = vpop.f32.mrb[0].mxu0
      %v4273 = vadd.f32 0.0, %v4272
      %v4274 = vpop.f32.mrb[0].mxu0
      %4275 = vmatprep.mubr.bf16.mxu0 0
      %4276 = vmatmul.mubr.bf16.gmra.mrb[0].mxu0 %v4178
      %v4277 = vpop.f32.mrb[0].mxu0
      %v4278 = vadd.f32 0.0, %v4277
      %v4279 = vpop.f32.mrb[0].mxu0
      %v4280 = vpop.f32.mrb[0].mxu0
      %v4281 = vadd.f32 0.0, %v4280
      %v4282 = vpop.f32.mrb[0].mxu0
      %4283 = vmatprep.mubr.bf16.mxu0 0
      %4284 = vmatmul.mubr.bf16.gmra.mrb[0].mxu0 %v4181
      %v4285 = vpop.f32.mrb[0].mxu0
      %v4286 = vadd.f32 0.0, %v4285
      %v4287 = vpop.f32.mrb[0].mxu0
      %v4288 = vpop.f32.mrb[0].mxu0
      %v4289 = vadd.f32 0.0, %v4288
      %v4290 = vpop.f32.mrb[0].mxu0
      %4291 = vmatprep.mubr.bf16.mxu0 0
      %4292 = vmatmul.mubr.bf16.gmra.mrb[0].mxu0 %v4184
      %v4293 = vpop.f32.mrb[0].mxu0
      %v4294 = vadd.f32 0.0, %v4293
      %v4295 = vpop.f32.mrb[0].mxu0
      %v4296 = vpop.f32.mrb[0].mxu0
      %v4297 = vadd.f32 0.0, %v4296
      %v4298 = vpop.f32.mrb[0].mxu0
      %4299 = vmatprep.mubr.bf16.mxu0 0
      %4300 = vmatmul.mubr.bf16.gmra.mrb[0].mxu0 %v4187
      %v4301 = vpop.f32.mrb[0].mxu0
      %v4302 = vadd.f32 0.0, %v4301
      %v4303 = vpop.f32.mrb[0].mxu0
      %v4304 = vpop.f32.mrb[0].mxu0
      %v4305 = vadd.f32 0.0, %v4304
      %v4306 = vpop.f32.mrb[0].mxu0
      %4307 = vmatprep.mubr.bf16.mxu0 0
      %4308 = vmatmul.mubr.bf16.gmra.mrb[0].mxu0 %v4190
      %v4309 = vpop.f32.mrb[0].mxu0
      %v4310 = vadd.f32 0.0, %v4309
      %v4311 = vpop.f32.mrb[0].mxu0
      %v4312 = vpop.f32.mrb[0].mxu0
      %v4313 = vadd.f32 0.0, %v4312
      %v4314 = vpop.f32.mrb[0].mxu0
      %4315 = vmatprep.mubr.bf16.mxu0 0
      %4316 = vmatmul.mubr.bf16.gmra.mrb[0].mxu0 %v4193
      %v4317 = vpop.f32.mrb[0].mxu0
      %v4318 = vadd.f32 0.0, %v4317
      %v4319 = vpop.f32.mrb[0].mxu0
      %v4320 = vpop.f32.mrb[0].mxu0
      %v4321 = vadd.f32 0.0, %v4320
      %v4322 = vpop.f32.mrb[0].mxu0
      %4323 = vmatprep.mubr.bf16.mxu0 0
      %4324 = vmatmul.mubr.bf16.gmra.mrb[0].mxu0 %v4196
      %v4325 = vpop.f32.mrb[0].mxu0
      %v4326 = vadd.f32 0.0, %v4325
      %v4327 = vpop.f32.mrb[0].mxu0
      %v4328 = vpop.f32.mrb[0].mxu0
      %v4329 = vadd.f32 0.0, %v4328
      %v4330 = vpop.f32.mrb[0].mxu0
      %4331 = vmatprep.mubr.bf16.mxu0 0
      %4332 = vmatmul.mubr.bf16.gmra.mrb[0].mxu0 %v4199
      %v4333 = vpop.f32.mrb[0].mxu0
      %v4334 = vadd.f32 0.0, %v4333
      %v4335 = vpop.f32.mrb[0].mxu0
      %v4336 = vpop.f32.mrb[0].mxu0
      %v4337 = vadd.f32 0.0, %v4336
      %v4338 = vpop.f32.mrb[0].mxu0
      %4339 = vmatprep.mubr.bf16.mxu0 0
      %4340 = vmatmul.mubr.bf16.gmra.mrb[0].mxu0 %v4202
      %v4341 = vpop.f32.mrb[0].mxu0
      %v4342 = vadd.f32 0.0, %v4341
      %v4343 = vpop.f32.mrb[0].mxu0
      %v4344 = vpop.f32.mrb[0].mxu0
      %v4345 = vadd.f32 0.0, %v4344
      %v4346 = vpop.f32.mrb[0].mxu0
      %4347 = vmatprep.mubr.bf16.mxu0 0
      %4348 = vmatmul.mubr.bf16.gmra.mrb[0].mxu0 %v4205
      %v4349 = vpop.f32.mrb[0].mxu0
      %v4350 = vadd.f32 0.0, %v4349
      %v4351 = vpop.f32.mrb[0].mxu0
      %v4352 = vpop.f32.mrb[0].mxu0
      %v4353 = vadd.f32 0.0, %v4352
      %v4354 = vpop.f32.mrb[0].mxu0
      %4355 = vmatprep.mubr.bf16.mxu0 0
      %4356 = vmatmul.mubr.bf16.gmra.mrb[0].mxu0 %v4208
      %v4357 = vpop.f32.mrb[0].mxu0
      %v4358 = vadd.f32 0.0, %v4357
      %v4359 = vpop.f32.mrb[0].mxu0
      %v4360 = vpop.f32.mrb[0].mxu0
      %v4361 = vadd.f32 0.0, %v4360
      %v4362 = vpop.f32.mrb[0].mxu0
      %4363 = vmatprep.mubr.bf16.mxu0 0
      %4364 = vmatmul.mubr.bf16.gmra.mrb[0].mxu0 %v4211
      %v4365 = vpop.f32.mrb[0].mxu0
      %v4366 = vadd.f32 0.0, %v4365
      %v4367 = vpop.f32.mrb[0].mxu0
      %v4368 = vpop.f32.mrb[0].mxu0
      %v4369 = vadd.f32 0.0, %v4368
      %v4370 = vpop.f32.mrb[0].mxu0
      %4371 = vmatprep.mubr.bf16.mxu0 0
      %4372 = vmatmul.mubr.bf16.gmra.mrb[0].mxu0 %v4214
      %v4373 = vpop.f32.mrb[0].mxu0
      %v4374 = vadd.f32 0.0, %v4373
      %v4375 = vpop.f32.mrb[0].mxu0
      %v4376 = vpop.f32.mrb[0].mxu0
      %v4377 = vadd.f32 0.0, %v4376
      %v4378 = vpop.f32.mrb[0].mxu0
      %4379 = vdwg.mxu0
      %v4380 = vadd.f32 %v4086, %v4254
      %v4381 = vadd.f32 %v4087, %v4257
      %v4382 = vadd.f32 %v4088, %v4262
      %v4383 = vadd.f32 %v4089, %v4265
      %v4384 = vadd.f32 %v4090, %v4270
      %v4385 = vadd.f32 %v4091, %v4273
      %v4386 = vadd.f32 %v4092, %v4278
      %v4387 = vadd.f32 %v4093, %v4281
      %v4388 = vadd.f32 %v4094, %v4286
      %v4389 = vadd.f32 %v4095, %v4289
      %v4390 = vadd.f32 %v4096, %v4294
      %v4391 = vadd.f32 %v4097, %v4297
      %v4392 = vadd.f32 %v4098, %v4302
      %v4393 = vadd.f32 %v4099, %v4305
      %v4394 = vadd.f32 %v4100, %v4310
      %v4395 = vadd.f32 %v4101, %v4313
      %v4396 = vadd.f32 %v4102, %v4318
      %v4397 = vadd.f32 %v4103, %v4321
      %v4398 = vadd.f32 %v4104, %v4326
      %v4399 = vadd.f32 %v4105, %v4329
      %v4400 = vadd.f32 %v4106, %v4334
      %v4401 = vadd.f32 %v4107, %v4337
      %v4402 = vadd.f32 %v4108, %v4342
      %v4403 = vadd.f32 %v4109, %v4345
      %v4404 = vadd.f32 %v4110, %v4350
      %v4405 = vadd.f32 %v4111, %v4353
      %v4406 = vadd.f32 %v4112, %v4358
      %v4407 = vadd.f32 %v4113, %v4361
      %v4408 = vadd.f32 %v4114, %v4366
      %v4409 = vadd.f32 %v4115, %v4369
      %v4410 = vadd.f32 %v4116, %v4374
      %v4411 = vadd.f32 %v4117, %v4377
      %v4412 = vld [vmem:[%s3267 + $0x1] sm:$0xff]
      %v4413 = vld [vmem:[%s3267 + $0x9] sm:$0xff]
      %v4414 = vld [vmem:[%s3267 + $0x19] sm:$0xff]
      %v4415 = vld [vmem:[%s3267 + $0x21] sm:$0xff]
      %v4416 = vld [vmem:[%s3267 + $0x31] sm:$0xff]
      %v4417 = vld [vmem:[%s3267 + $0x39] sm:$0xff]
      %v4418 = vld [vmem:[%s3267 + $0x49] sm:$0xff]
      %v4419 = vld [vmem:[%s3267 + $0x51] sm:$0xff]
      %v4420 = vld [vmem:[%s3267 + $0x61] sm:$0xff]
      %v4421 = vld [vmem:[%s3267 + $0x69] sm:$0xff]
      %v4422 = vld [vmem:[%s3267 + $0x79] sm:$0xff]
      %v4423 = vld [vmem:[%s3267 + $0x81] sm:$0xff]
      %v4424 = vld [vmem:[%s3267 + $0x91] sm:$0xff]
      %v4425 = vld [vmem:[%s3267 + $0x99] sm:$0xff]
      %v4426 = vld [vmem:[%s3267 + $0xa9] sm:$0xff]
      %v4427 = vld [vmem:[%s3267 + $0xb1] sm:$0xff]
      %v4428 = vld [vmem:[%s3267 + $0xc1] sm:$0xff]
      %v4429 = vld [vmem:[%s3267 + $0xc9] sm:$0xff]
      %v4430 = vld [vmem:[%s3267 + $0xd9] sm:$0xff]
      %v4431 = vld [vmem:[%s3267 + $0xe1] sm:$0xff]
      %v4432 = vld [vmem:[%s3267 + $0xf1] sm:$0xff]
      %v4433 = vld [vmem:[%s3267 + $0xf9] sm:$0xff]
      %v4434 = vld [vmem:[%s3267 + $0x109] sm:$0xff]
      %v4435 = vld [vmem:[%s3267 + $0x111] sm:$0xff]
      %v4436 = vld [vmem:[%s3267 + $0x121] sm:$0xff]
      %v4437 = vld [vmem:[%s3267 + $0x129] sm:$0xff]
      %v4438 = vld [vmem:[%s3267 + $0x139] sm:$0xff]
      %v4439 = vld [vmem:[%s3267 + $0x141] sm:$0xff]
      %v4440 = vld [vmem:[%s3267 + $0x151] sm:$0xff]
      %v4441 = vld [vmem:[%s3267 + $0x159] sm:$0xff]
      %v4442 = vld [vmem:[%s3267 + $0x169] sm:$0xff]
      %v4443 = vld [vmem:[%s3267 + $0x171] sm:$0xff]
      %v4444 = vpack.c.bf16 %v4413, %v4412
      %v4445 = vpack.c.bf16 %v4415, %v4414
      %v4446 = vpack.c.bf16 %v4417, %v4416
      %v4447 = vpack.c.bf16 %v4419, %v4418
      %v4448 = vpack.c.bf16 %v4421, %v4420
      %v4449 = vpack.c.bf16 %v4423, %v4422
      %v4450 = vpack.c.bf16 %v4425, %v4424
      %v4451 = vpack.c.bf16 %v4427, %v4426
      %v4452 = vpack.c.bf16 %v4429, %v4428
      %v4453 = vpack.c.bf16 %v4431, %v4430
      %v4454 = vpack.c.bf16 %v4433, %v4432
      %v4455 = vpack.c.bf16 %v4435, %v4434
      %v4456 = vpack.c.bf16 %v4437, %v4436
      %v4457 = vpack.c.bf16 %v4439, %v4438
      %v4458 = vpack.c.bf16 %v4441, %v4440
      %v4459 = vpack.c.bf16 %v4443, %v4442
      %s4460 = scalar_lea.vmem %s3, 8
      %v4461 = vld [vmem:[%s4460] sm:$0x3]
      %v4463 = vsel %vm531, %v4444, 0
      %v4466 = vsel %vm531, %v4445, 0
      %v4469 = vsel %vm531, %v4446, 0
      %v4472 = vsel %vm531, %v4447, 0
      %v4475 = vsel %vm531, %v4448, 0
      %v4478 = vsel %vm531, %v4449, 0
      %v4481 = vsel %vm531, %v4450, 0
      %v4484 = vsel %vm531, %v4451, 0
      %v4487 = vsel %vm531, %v4452, 0
      %v4490 = vsel %vm531, %v4453, 0
      %v4493 = vsel %vm531, %v4454, 0
      %v4496 = vsel %vm531, %v4455, 0
      %v4499 = vsel %vm531, %v4456, 0
      %v4502 = vsel %vm531, %v4457, 0
      %v4505 = vsel %vm531, %v4458, 0
      %v4508 = vsel %vm531, %v4459, 0
      %v4511 = vsel %vm3447, %v4461, 0
      %4513 = vmatprep.subr.bf16.mxu0 0
      %4514 = vmatpush1.bf16.msra.mxu0 %v4511
      %4515 = vmatprep.subr.bf16.mxu0 0
      %4516 = vmatpush1.bf16.msra.mxu0 0
      %4517 = vmatprep.subr.bf16.mxu0 0
      %4518 = vmatpush1.bf16.msra.mxu0 0
      %4519 = vmatprep.subr.bf16.mxu0 0
      %4520 = vmatpush1.bf16.msra.mxu0 0
      %4521 = vmatprep.subr.bf16.mxu0 0
      %4522 = vmatpush1.bf16.msra.mxu0 0
      %4523 = vmatprep.subr.bf16.mxu0 0
      %4524 = vmatpush1.bf16.msra.mxu0 0
      %4525 = vmatprep.subr.bf16.mxu0 0
      %4526 = vmatpush1.bf16.msra.mxu0 0
      %4527 = vmatprep.subr.bf16.mxu0 0
      %4528 = vmatpush1.bf16.msra.mxu0 0
      %4529 = vmatprep.subr.bf16.mxu0 0
      %4530 = vmatpush1.bf16.msra.mxu0 0
      %4531 = vmatprep.subr.bf16.mxu0 0
      %4532 = vmatpush1.bf16.msra.mxu0 0
      %4533 = vmatprep.subr.bf16.mxu0 0
      %4534 = vmatpush1.bf16.msra.mxu0 0
      %4535 = vmatprep.subr.bf16.mxu0 0
      %4536 = vmatpush1.bf16.msra.mxu0 0
      %4537 = vmatprep.subr.bf16.mxu0 0
      %4538 = vmatpush1.bf16.msra.mxu0 0
      %4539 = vmatprep.subr.bf16.mxu0 0
      %4540 = vmatpush1.bf16.msra.mxu0 0
      %4541 = vmatprep.subr.bf16.mxu0 0
      %4542 = vmatpush1.bf16.msra.mxu0 0
      %4543 = vmatprep.subr.bf16.mxu0 0
      %4544 = vmatpush1.bf16.msra.mxu0 0
      %4545 = vmatprep.mubr.bf16.mxu0 0
      %4546 = vmatmul.mubr.bf16.gmra.mrb[0].mxu0 %v4463
      %v4547 = vpop.f32.mrb[0].mxu0
      %v4548 = vadd.f32 0.0, %v4547
      %v4549 = vpop.f32.mrb[0].mxu0
      %v4550 = vpop.f32.mrb[0].mxu0
      %v4551 = vadd.f32 0.0, %v4550
      %v4552 = vpop.f32.mrb[0].mxu0
      %4553 = vmatprep.mubr.bf16.mxu0 0
      %4554 = vmatmul.mubr.bf16.gmra.mrb[0].mxu0 %v4466
      %v4555 = vpop.f32.mrb[0].mxu0
      %v4556 = vadd.f32 0.0, %v4555
      %v4557 = vpop.f32.mrb[0].mxu0
      %v4558 = vpop.f32.mrb[0].mxu0
      %v4559 = vadd.f32 0.0, %v4558
      %v4560 = vpop.f32.mrb[0].mxu0
      %4561 = vmatprep.mubr.bf16.mxu0 0
      %4562 = vmatmul.mubr.bf16.gmra.mrb[0].mxu0 %v4469
      %v4563 = vpop.f32.mrb[0].mxu0
      %v4564 = vadd.f32 0.0, %v4563
      %v4565 = vpop.f32.mrb[0].mxu0
      %v4566 = vpop.f32.mrb[0].mxu0
      %v4567 = vadd.f32 0.0, %v4566
      %v4568 = vpop.f32.mrb[0].mxu0
      %4569 = vmatprep.mubr.bf16.mxu0 0
      %4570 = vmatmul.mubr.bf16.gmra.mrb[0].mxu0 %v4472
      %v4571 = vpop.f32.mrb[0].mxu0
      %v4572 = vadd.f32 0.0, %v4571
      %v4573 = vpop.f32.mrb[0].mxu0
      %v4574 = vpop.f32.mrb[0].mxu0
      %v4575 = vadd.f32 0.0, %v4574
      %v4576 = vpop.f32.mrb[0].mxu0
      %4577 = vmatprep.mubr.bf16.mxu0 0
      %4578 = vmatmul.mubr.bf16.gmra.mrb[0].mxu0 %v4475
      %v4579 = vpop.f32.mrb[0].mxu0
      %v4580 = vadd.f32 0.0, %v4579
      %v4581 = vpop.f32.mrb[0].mxu0
      %v4582 = vpop.f32.mrb[0].mxu0
      %v4583 = vadd.f32 0.0, %v4582
      %v4584 = vpop.f32.mrb[0].mxu0
      %4585 = vmatprep.mubr.bf16.mxu0 0
      %4586 = vmatmul.mubr.bf16.gmra.mrb[0].mxu0 %v4478
      %v4587 = vpop.f32.mrb[0].mxu0
      %v4588 = vadd.f32 0.0, %v4587
      %v4589 = vpop.f32.mrb[0].mxu0
      %v4590 = vpop.f32.mrb[0].mxu0
      %v4591 = vadd.f32 0.0, %v4590
      %v4592 = vpop.f32.mrb[0].mxu0
      %4593 = vmatprep.mubr.bf16.mxu0 0
      %4594 = vmatmul.mubr.bf16.gmra.mrb[0].mxu0 %v4481
      %v4595 = vpop.f32.mrb[0].mxu0
      %v4596 = vadd.f32 0.0, %v4595
      %v4597 = vpop.f32.mrb[0].mxu0
      %v4598 = vpop.f32.mrb[0].mxu0
      %v4599 = vadd.f32 0.0, %v4598
      %v4600 = vpop.f32.mrb[0].mxu0
      %4601 = vmatprep.mubr.bf16.mxu0 0
      %4602 = vmatmul.mubr.bf16.gmra.mrb[0].mxu0 %v4484
      %v4603 = vpop.f32.mrb[0].mxu0
      %v4604 = vadd.f32 0.0, %v4603
      %v4605 = vpop.f32.mrb[0].mxu0
      %v4606 = vpop.f32.mrb[0].mxu0
      %v4607 = vadd.f32 0.0, %v4606
      %v4608 = vpop.f32.mrb[0].mxu0
      %4609 = vmatprep.mubr.bf16.mxu0 0
      %4610 = vmatmul.mubr.bf16.gmra.mrb[0].mxu0 %v4487
      %v4611 = vpop.f32.mrb[0].mxu0
      %v4612 = vadd.f32 0.0, %v4611
      %v4613 = vpop.f32.mrb[0].mxu0
      %v4614 = vpop.f32.mrb[0].mxu0
      %v4615 = vadd.f32 0.0, %v4614
      %v4616 = vpop.f32.mrb[0].mxu0
      %4617 = vmatprep.mubr.bf16.mxu0 0
      %4618 = vmatmul.mubr.bf16.gmra.mrb[0].mxu0 %v4490
      %v4619 = vpop.f32.mrb[0].mxu0
      %v4620 = vadd.f32 0.0, %v4619
      %v4621 = vpop.f32.mrb[0].mxu0
      %v4622 = vpop.f32.mrb[0].mxu0
      %v4623 = vadd.f32 0.0, %v4622
      %v4624 = vpop.f32.mrb[0].mxu0
      %4625 = vmatprep.mubr.bf16.mxu0 0
      %4626 = vmatmul.mubr.bf16.gmra.mrb[0].mxu0 %v4493
      %v4627 = vpop.f32.mrb[0].mxu0
      %v4628 = vadd.f32 0.0, %v4627
      %v4629 = vpop.f32.mrb[0].mxu0
      %v4630 = vpop.f32.mrb[0].mxu0
      %v4631 = vadd.f32 0.0, %v4630
      %v4632 = vpop.f32.mrb[0].mxu0
      %4633 = vmatprep.mubr.bf16.mxu0 0
      %4634 = vmatmul.mubr.bf16.gmra.mrb[0].mxu0 %v4496
      %v4635 = vpop.f32.mrb[0].mxu0
      %v4636 = vadd.f32 0.0, %v4635
      %v4637 = vpop.f32.mrb[0].mxu0
      %v4638 = vpop.f32.mrb[0].mxu0
      %v4639 = vadd.f32 0.0, %v4638
      %v4640 = vpop.f32.mrb[0].mxu0
      %4641 = vmatprep.mubr.bf16.mxu0 0
      %4642 = vmatmul.mubr.bf16.gmra.mrb[0].mxu0 %v4499
      %v4643 = vpop.f32.mrb[0].mxu0
      %v4644 = vadd.f32 0.0, %v4643
      %v4645 = vpop.f32.mrb[0].mxu0
      %v4646 = vpop.f32.mrb[0].mxu0
      %v4647 = vadd.f32 0.0, %v4646
      %v4648 = vpop.f32.mrb[0].mxu0
      %4649 = vmatprep.mubr.bf16.mxu0 0
      %4650 = vmatmul.mubr.bf16.gmra.mrb[0].mxu0 %v4502
      %v4651 = vpop.f32.mrb[0].mxu0
      %v4652 = vadd.f32 0.0, %v4651
      %v4653 = vpop.f32.mrb[0].mxu0
      %v4654 = vpop.f32.mrb[0].mxu0
      %v4655 = vadd.f32 0.0, %v4654
      %v4656 = vpop.f32.mrb[0].mxu0
      %4657 = vmatprep.mubr.bf16.mxu0 0
      %4658 = vmatmul.mubr.bf16.gmra.mrb[0].mxu0 %v4505
      %v4659 = vpop.f32.mrb[0].mxu0
      %v4660 = vadd.f32 0.0, %v4659
      %v4661 = vpop.f32.mrb[0].mxu0
      %v4662 = vpop.f32.mrb[0].mxu0
      %v4663 = vadd.f32 0.0, %v4662
      %v4664 = vpop.f32.mrb[0].mxu0
      %4665 = vmatprep.mubr.bf16.mxu0 0
      %4666 = vmatmul.mubr.bf16.gmra.mrb[0].mxu0 %v4508
      %v4667 = vpop.f32.mrb[0].mxu0
      %v4668 = vadd.f32 0.0, %v4667
      %v4669 = vpop.f32.mrb[0].mxu0
      %v4670 = vpop.f32.mrb[0].mxu0
      %v4671 = vadd.f32 0.0, %v4670
      %v4672 = vpop.f32.mrb[0].mxu0
      %4673 = vdwg.mxu0
      %v4674 = vadd.f32 %v4380, %v4548
      %v4675 = vadd.f32 %v4381, %v4551
      %v4676 = vadd.f32 %v4382, %v4556
      %v4677 = vadd.f32 %v4383, %v4559
      %v4678 = vadd.f32 %v4384, %v4564
      %v4679 = vadd.f32 %v4385, %v4567
      %v4680 = vadd.f32 %v4386, %v4572
      %v4681 = vadd.f32 %v4387, %v4575
      %v4682 = vadd.f32 %v4388, %v4580
      %v4683 = vadd.f32 %v4389, %v4583
      %v4684 = vadd.f32 %v4390, %v4588
      %v4685 = vadd.f32 %v4391, %v4591
      %v4686 = vadd.f32 %v4392, %v4596
      %v4687 = vadd.f32 %v4393, %v4599
      %v4688 = vadd.f32 %v4394, %v4604
      %v4689 = vadd.f32 %v4395, %v4607
      %v4690 = vadd.f32 %v4396, %v4612
      %v4691 = vadd.f32 %v4397, %v4615
      %v4692 = vadd.f32 %v4398, %v4620
      %v4693 = vadd.f32 %v4399, %v4623
      %v4694 = vadd.f32 %v4400, %v4628
      %v4695 = vadd.f32 %v4401, %v4631
      %v4696 = vadd.f32 %v4402, %v4636
      %v4697 = vadd.f32 %v4403, %v4639
      %v4698 = vadd.f32 %v4404, %v4644
      %v4699 = vadd.f32 %v4405, %v4647
      %v4700 = vadd.f32 %v4406, %v4652
      %v4701 = vadd.f32 %v4407, %v4655
      %v4702 = vadd.f32 %v4408, %v4660
      %v4703 = vadd.f32 %v4409, %v4663
      %v4704 = vadd.f32 %v4410, %v4668
      %v4705 = vadd.f32 %v4411, %v4671
      %v4706 = vld [vmem:[%s3267 + $0x2] sm:$0xff]
      %v4707 = vld [vmem:[%s3267 + $0xa] sm:$0xff]
      %v4708 = vld [vmem:[%s3267 + $0x1a] sm:$0xff]
      %v4709 = vld [vmem:[%s3267 + $0x22] sm:$0xff]
      %v4710 = vld [vmem:[%s3267 + $0x32] sm:$0xff]
      %v4711 = vld [vmem:[%s3267 + $0x3a] sm:$0xff]
      %v4712 = vld [vmem:[%s3267 + $0x4a] sm:$0xff]
      %v4713 = vld [vmem:[%s3267 + $0x52] sm:$0xff]
      %v4714 = vld [vmem:[%s3267 + $0x62] sm:$0xff]
      %v4715 = vld [vmem:[%s3267 + $0x6a] sm:$0xff]
      %v4716 = vld [vmem:[%s3267 + $0x7a] sm:$0xff]
      %v4717 = vld [vmem:[%s3267 + $0x82] sm:$0xff]
      %v4718 = vld [vmem:[%s3267 + $0x92] sm:$0xff]
      %v4719 = vld [vmem:[%s3267 + $0x9a] sm:$0xff]
      %v4720 = vld [vmem:[%s3267 + $0xaa] sm:$0xff]
      %v4721 = vld [vmem:[%s3267 + $0xb2] sm:$0xff]
      %v4722 = vld [vmem:[%s3267 + $0xc2] sm:$0xff]
      %v4723 = vld [vmem:[%s3267 + $0xca] sm:$0xff]
      %v4724 = vld [vmem:[%s3267 + $0xda] sm:$0xff]
      %v4725 = vld [vmem:[%s3267 + $0xe2] sm:$0xff]
      %v4726 = vld [vmem:[%s3267 + $0xf2] sm:$0xff]
      %v4727 = vld [vmem:[%s3267 + $0xfa] sm:$0xff]
      %v4728 = vld [vmem:[%s3267 + $0x10a] sm:$0xff]
      %v4729 = vld [vmem:[%s3267 + $0x112] sm:$0xff]
      %v4730 = vld [vmem:[%s3267 + $0x122] sm:$0xff]
      %v4731 = vld [vmem:[%s3267 + $0x12a] sm:$0xff]
      %v4732 = vld [vmem:[%s3267 + $0x13a] sm:$0xff]
      %v4733 = vld [vmem:[%s3267 + $0x142] sm:$0xff]
      %v4734 = vld [vmem:[%s3267 + $0x152] sm:$0xff]
      %v4735 = vld [vmem:[%s3267 + $0x15a] sm:$0xff]
      %v4736 = vld [vmem:[%s3267 + $0x16a] sm:$0xff]
      %v4737 = vld [vmem:[%s3267 + $0x172] sm:$0xff]
      %v4738 = vpack.c.bf16 %v4707, %v4706
      %v4739 = vpack.c.bf16 %v4709, %v4708
      %v4740 = vpack.c.bf16 %v4711, %v4710
      %v4741 = vpack.c.bf16 %v4713, %v4712
      %v4742 = vpack.c.bf16 %v4715, %v4714
      %v4743 = vpack.c.bf16 %v4717, %v4716
      %v4744 = vpack.c.bf16 %v4719, %v4718
      %v4745 = vpack.c.bf16 %v4721, %v4720
      %v4746 = vpack.c.bf16 %v4723, %v4722
      %v4747 = vpack.c.bf16 %v4725, %v4724
      %v4748 = vpack.c.bf16 %v4727, %v4726
      %v4749 = vpack.c.bf16 %v4729, %v4728
      %v4750 = vpack.c.bf16 %v4731, %v4730
      %v4751 = vpack.c.bf16 %v4733, %v4732
      %v4752 = vpack.c.bf16 %v4735, %v4734
      %v4753 = vpack.c.bf16 %v4737, %v4736
      %s4754 = scalar_lea.vmem %s3, 10
      %v4755 = vld [vmem:[%s4754] sm:$0x3]
      %v4757 = vsel %vm531, %v4738, 0
      %v4760 = vsel %vm531, %v4739, 0
      %v4763 = vsel %vm531, %v4740, 0
      %v4766 = vsel %vm531, %v4741, 0
      %v4769 = vsel %vm531, %v4742, 0
      %v4772 = vsel %vm531, %v4743, 0
      %v4775 = vsel %vm531, %v4744, 0
      %v4778 = vsel %vm531, %v4745, 0
      %v4781 = vsel %vm531, %v4746, 0
      %v4784 = vsel %vm531, %v4747, 0
      %v4787 = vsel %vm531, %v4748, 0
      %v4790 = vsel %vm531, %v4749, 0
      %v4793 = vsel %vm531, %v4750, 0
      %v4796 = vsel %vm531, %v4751, 0
      %v4799 = vsel %vm531, %v4752, 0
      %v4802 = vsel %vm531, %v4753, 0
      %v4805 = vsel %vm3447, %v4755, 0
      %4807 = vmatprep.subr.bf16.mxu0 0
      %4808 = vmatpush1.bf16.msra.mxu0 %v4805
      %4809 = vmatprep.subr.bf16.mxu0 0
      %4810 = vmatpush1.bf16.msra.mxu0 0
      %4811 = vmatprep.subr.bf16.mxu0 0
      %4812 = vmatpush1.bf16.msra.mxu0 0
      %4813 = vmatprep.subr.bf16.mxu0 0
      %4814 = vmatpush1.bf16.msra.mxu0 0
      %4815 = vmatprep.subr.bf16.mxu0 0
      %4816 = vmatpush1.bf16.msra.mxu0 0
      %4817 = vmatprep.subr.bf16.mxu0 0
      %4818 = vmatpush1.bf16.msra.mxu0 0
      %4819 = vmatprep.subr.bf16.mxu0 0
      %4820 = vmatpush1.bf16.msra.mxu0 0
      %4821 = vmatprep.subr.bf16.mxu0 0
      %4822 = vmatpush1.bf16.msra.mxu0 0
      %4823 = vmatprep.subr.bf16.mxu0 0
      %4824 = vmatpush1.bf16.msra.mxu0 0
      %4825 = vmatprep.subr.bf16.mxu0 0
      %4826 = vmatpush1.bf16.msra.mxu0 0
      %4827 = vmatprep.subr.bf16.mxu0 0
      %4828 = vmatpush1.bf16.msra.mxu0 0
      %4829 = vmatprep.subr.bf16.mxu0 0
      %4830 = vmatpush1.bf16.msra.mxu0 0
      %4831 = vmatprep.subr.bf16.mxu0 0
      %4832 = vmatpush1.bf16.msra.mxu0 0
      %4833 = vmatprep.subr.bf16.mxu0 0
      %4834 = vmatpush1.bf16.msra.mxu0 0
      %4835 = vmatprep.subr.bf16.mxu0 0
      %4836 = vmatpush1.bf16.msra.mxu0 0
      %4837 = vmatprep.subr.bf16.mxu0 0
      %4838 = vmatpush1.bf16.msra.mxu0 0
      %4839 = vmatprep.mubr.bf16.mxu0 0
      %4840 = vmatmul.mubr.bf16.gmra.mrb[0].mxu0 %v4757
      %v4841 = vpop.f32.mrb[0].mxu0
      %v4842 = vadd.f32 0.0, %v4841
      %v4843 = vpop.f32.mrb[0].mxu0
      %v4844 = vpop.f32.mrb[0].mxu0
      %v4845 = vadd.f32 0.0, %v4844
      %v4846 = vpop.f32.mrb[0].mxu0
      %4847 = vmatprep.mubr.bf16.mxu0 0
      %4848 = vmatmul.mubr.bf16.gmra.mrb[0].mxu0 %v4760
      %v4849 = vpop.f32.mrb[0].mxu0
      %v4850 = vadd.f32 0.0, %v4849
      %v4851 = vpop.f32.mrb[0].mxu0
      %v4852 = vpop.f32.mrb[0].mxu0
      %v4853 = vadd.f32 0.0, %v4852
      %v4854 = vpop.f32.mrb[0].mxu0
      %4855 = vmatprep.mubr.bf16.mxu0 0
      %4856 = vmatmul.mubr.bf16.gmra.mrb[0].mxu0 %v4763
      %v4857 = vpop.f32.mrb[0].mxu0
      %v4858 = vadd.f32 0.0, %v4857
      %v4859 = vpop.f32.mrb[0].mxu0
      %v4860 = vpop.f32.mrb[0].mxu0
      %v4861 = vadd.f32 0.0, %v4860
      %v4862 = vpop.f32.mrb[0].mxu0
      %4863 = vmatprep.mubr.bf16.mxu0 0
      %4864 = vmatmul.mubr.bf16.gmra.mrb[0].mxu0 %v4766
      %v4865 = vpop.f32.mrb[0].mxu0
      %v4866 = vadd.f32 0.0, %v4865
      %v4867 = vpop.f32.mrb[0].mxu0
      %v4868 = vpop.f32.mrb[0].mxu0
      %v4869 = vadd.f32 0.0, %v4868
      %v4870 = vpop.f32.mrb[0].mxu0
      %4871 = vmatprep.mubr.bf16.mxu0 0
      %4872 = vmatmul.mubr.bf16.gmra.mrb[0].mxu0 %v4769
      %v4873 = vpop.f32.mrb[0].mxu0
      %v4874 = vadd.f32 0.0, %v4873
      %v4875 = vpop.f32.mrb[0].mxu0
      %v4876 = vpop.f32.mrb[0].mxu0
      %v4877 = vadd.f32 0.0, %v4876
      %v4878 = vpop.f32.mrb[0].mxu0
      %4879 = vmatprep.mubr.bf16.mxu0 0
      %4880 = vmatmul.mubr.bf16.gmra.mrb[0].mxu0 %v4772
      %v4881 = vpop.f32.mrb[0].mxu0
      %v4882 = vadd.f32 0.0, %v4881
      %v4883 = vpop.f32.mrb[0].mxu0
      %v4884 = vpop.f32.mrb[0].mxu0
      %v4885 = vadd.f32 0.0, %v4884
      %v4886 = vpop.f32.mrb[0].mxu0
      %4887 = vmatprep.mubr.bf16.mxu0 0
      %4888 = vmatmul.mubr.bf16.gmra.mrb[0].mxu0 %v4775
      %v4889 = vpop.f32.mrb[0].mxu0
      %v4890 = vadd.f32 0.0, %v4889
      %v4891 = vpop.f32.mrb[0].mxu0
      %v4892 = vpop.f32.mrb[0].mxu0
      %v4893 = vadd.f32 0.0, %v4892
      %v4894 = vpop.f32.mrb[0].mxu0
      %4895 = vmatprep.mubr.bf16.mxu0 0
      %4896 = vmatmul.mubr.bf16.gmra.mrb[0].mxu0 %v4778
      %v4897 = vpop.f32.mrb[0].mxu0
      %v4898 = vadd.f32 0.0, %v4897
      %v4899 = vpop.f32.mrb[0].mxu0
      %v4900 = vpop.f32.mrb[0].mxu0
      %v4901 = vadd.f32 0.0, %v4900
      %v4902 = vpop.f32.mrb[0].mxu0
      %4903 = vmatprep.mubr.bf16.mxu0 0
      %4904 = vmatmul.mubr.bf16.gmra.mrb[0].mxu0 %v4781
      %v4905 = vpop.f32.mrb[0].mxu0
      %v4906 = vadd.f32 0.0, %v4905
      %v4907 = vpop.f32.mrb[0].mxu0
      %v4908 = vpop.f32.mrb[0].mxu0
      %v4909 = vadd.f32 0.0, %v4908
      %v4910 = vpop.f32.mrb[0].mxu0
      %4911 = vmatprep.mubr.bf16.mxu0 0
      %4912 = vmatmul.mubr.bf16.gmra.mrb[0].mxu0 %v4784
      %v4913 = vpop.f32.mrb[0].mxu0
      %v4914 = vadd.f32 0.0, %v4913
      %v4915 = vpop.f32.mrb[0].mxu0
      %v4916 = vpop.f32.mrb[0].mxu0
      %v4917 = vadd.f32 0.0, %v4916
      %v4918 = vpop.f32.mrb[0].mxu0
      %4919 = vmatprep.mubr.bf16.mxu0 0
      %4920 = vmatmul.mubr.bf16.gmra.mrb[0].mxu0 %v4787
      %v4921 = vpop.f32.mrb[0].mxu0
      %v4922 = vadd.f32 0.0, %v4921
      %v4923 = vpop.f32.mrb[0].mxu0
      %v4924 = vpop.f32.mrb[0].mxu0
      %v4925 = vadd.f32 0.0, %v4924
      %v4926 = vpop.f32.mrb[0].mxu0
      %4927 = vmatprep.mubr.bf16.mxu0 0
      %4928 = vmatmul.mubr.bf16.gmra.mrb[0].mxu0 %v4790
      %v4929 = vpop.f32.mrb[0].mxu0
      %v4930 = vadd.f32 0.0, %v4929
      %v4931 = vpop.f32.mrb[0].mxu0
      %v4932 = vpop.f32.mrb[0].mxu0
      %v4933 = vadd.f32 0.0, %v4932
      %v4934 = vpop.f32.mrb[0].mxu0
      %4935 = vmatprep.mubr.bf16.mxu0 0
      %4936 = vmatmul.mubr.bf16.gmra.mrb[0].mxu0 %v4793
      %v4937 = vpop.f32.mrb[0].mxu0
      %v4938 = vadd.f32 0.0, %v4937
      %v4939 = vpop.f32.mrb[0].mxu0
      %v4940 = vpop.f32.mrb[0].mxu0
      %v4941 = vadd.f32 0.0, %v4940
      %v4942 = vpop.f32.mrb[0].mxu0
      %4943 = vmatprep.mubr.bf16.mxu0 0
      %4944 = vmatmul.mubr.bf16.gmra.mrb[0].mxu0 %v4796
      %v4945 = vpop.f32.mrb[0].mxu0
      %v4946 = vadd.f32 0.0, %v4945
      %v4947 = vpop.f32.mrb[0].mxu0
      %v4948 = vpop.f32.mrb[0].mxu0
      %v4949 = vadd.f32 0.0, %v4948
      %v4950 = vpop.f32.mrb[0].mxu0
      %4951 = vmatprep.mubr.bf16.mxu0 0
      %4952 = vmatmul.mubr.bf16.gmra.mrb[0].mxu0 %v4799
      %v4953 = vpop.f32.mrb[0].mxu0
      %v4954 = vadd.f32 0.0, %v4953
      %v4955 = vpop.f32.mrb[0].mxu0
      %v4956 = vpop.f32.mrb[0].mxu0
      %v4957 = vadd.f32 0.0, %v4956
      %v4958 = vpop.f32.mrb[0].mxu0
      %4959 = vmatprep.mubr.bf16.mxu0 0
      %4960 = vmatmul.mubr.bf16.gmra.mrb[0].mxu0 %v4802
      %v4961 = vpop.f32.mrb[0].mxu0
      %v4962 = vadd.f32 0.0, %v4961
      %v4963 = vpop.f32.mrb[0].mxu0
      %v4964 = vpop.f32.mrb[0].mxu0
      %v4965 = vadd.f32 0.0, %v4964
      %v4966 = vpop.f32.mrb[0].mxu0
      %4967 = vdwg.mxu0
      %v4968 = vadd.f32 %v4674, %v4842
      %v4969 = vadd.f32 %v4675, %v4845
      %v4970 = vadd.f32 %v4676, %v4850
      %v4971 = vadd.f32 %v4677, %v4853
      %v4972 = vadd.f32 %v4678, %v4858
      %v4973 = vadd.f32 %v4679, %v4861
      %v4974 = vadd.f32 %v4680, %v4866
      %v4975 = vadd.f32 %v4681, %v4869
      %v4976 = vadd.f32 %v4682, %v4874
      %v4977 = vadd.f32 %v4683, %v4877
      %v4978 = vadd.f32 %v4684, %v4882
      %v4979 = vadd.f32 %v4685, %v4885
      %v4980 = vadd.f32 %v4686, %v4890
      %v4981 = vadd.f32 %v4687, %v4893
      %v4982 = vadd.f32 %v4688, %v4898
      %v4983 = vadd.f32 %v4689, %v4901
      %v4984 = vadd.f32 %v4690, %v4906
      %v4985 = vadd.f32 %v4691, %v4909
      %v4986 = vadd.f32 %v4692, %v4914
      %v4987 = vadd.f32 %v4693, %v4917
      %v4988 = vadd.f32 %v4694, %v4922
      %v4989 = vadd.f32 %v4695, %v4925
      %v4990 = vadd.f32 %v4696, %v4930
      %v4991 = vadd.f32 %v4697, %v4933
      %v4992 = vadd.f32 %v4698, %v4938
      %v4993 = vadd.f32 %v4699, %v4941
      %v4994 = vadd.f32 %v4700, %v4946
      %v4995 = vadd.f32 %v4701, %v4949
      %v4996 = vadd.f32 %v4702, %v4954
      %v4997 = vadd.f32 %v4703, %v4957
      %v4998 = vadd.f32 %v4704, %v4962
      %v4999 = vadd.f32 %v4705, %v4965
      %s5000 = scalar_lea.vmem [#allocation3], 48
      %v5001 = vld [vmem:[%s5000] sm:$0xff]
      %v5002 = vld [vmem:[%s5000 + $0x8] sm:$0xff]
      %v5003 = vld [vmem:[%s5000 + $0x18] sm:$0xff]
      %v5004 = vld [vmem:[%s5000 + $0x20] sm:$0xff]
      %v5005 = vld [vmem:[%s5000 + $0x30] sm:$0xff]
      %v5006 = vld [vmem:[%s5000 + $0x38] sm:$0xff]
      %v5007 = vld [vmem:[%s5000 + $0x48] sm:$0xff]
      %v5008 = vld [vmem:[%s5000 + $0x50] sm:$0xff]
      %v5009 = vld [vmem:[%s5000 + $0x60] sm:$0xff]
      %v5010 = vld [vmem:[%s5000 + $0x68] sm:$0xff]
      %v5011 = vld [vmem:[%s5000 + $0x78] sm:$0xff]
      %v5012 = vld [vmem:[%s5000 + $0x80] sm:$0xff]
      %v5013 = vld [vmem:[%s5000 + $0x90] sm:$0xff]
      %v5014 = vld [vmem:[%s5000 + $0x98] sm:$0xff]
      %v5015 = vld [vmem:[%s5000 + $0xa8] sm:$0xff]
      %v5016 = vld [vmem:[%s5000 + $0xb0] sm:$0xff]
      %v5017 = vld [vmem:[%s5000 + $0xc0] sm:$0xff]
      %v5018 = vld [vmem:[%s5000 + $0xc8] sm:$0xff]
      %v5019 = vld [vmem:[%s5000 + $0xd8] sm:$0xff]
      %v5020 = vld [vmem:[%s5000 + $0xe0] sm:$0xff]
      %v5021 = vld [vmem:[%s5000 + $0xf0] sm:$0xff]
      %v5022 = vld [vmem:[%s5000 + $0xf8] sm:$0xff]
      %v5023 = vld [vmem:[%s5000 + $0x108] sm:$0xff]
      %v5024 = vld [vmem:[%s5000 + $0x110] sm:$0xff]
      %v5025 = vld [vmem:[%s5000 + $0x120] sm:$0xff]
      %v5026 = vld [vmem:[%s5000 + $0x128] sm:$0xff]
      %v5027 = vld [vmem:[%s5000 + $0x138] sm:$0xff]
      %v5028 = vld [vmem:[%s5000 + $0x140] sm:$0xff]
      %v5029 = vld [vmem:[%s5000 + $0x150] sm:$0xff]
      %v5030 = vld [vmem:[%s5000 + $0x158] sm:$0xff]
      %v5031 = vld [vmem:[%s5000 + $0x168] sm:$0xff]
      %v5032 = vld [vmem:[%s5000 + $0x170] sm:$0xff]
      %v5033 = vpack.c.bf16 %v5002, %v5001
      %v5034 = vpack.c.bf16 %v5004, %v5003
      %v5035 = vpack.c.bf16 %v5006, %v5005
      %v5036 = vpack.c.bf16 %v5008, %v5007
      %v5037 = vpack.c.bf16 %v5010, %v5009
      %v5038 = vpack.c.bf16 %v5012, %v5011
      %v5039 = vpack.c.bf16 %v5014, %v5013
      %v5040 = vpack.c.bf16 %v5016, %v5015
      %v5041 = vpack.c.bf16 %v5018, %v5017
      %v5042 = vpack.c.bf16 %v5020, %v5019
      %v5043 = vpack.c.bf16 %v5022, %v5021
      %v5044 = vpack.c.bf16 %v5024, %v5023
      %v5045 = vpack.c.bf16 %v5026, %v5025
      %v5046 = vpack.c.bf16 %v5028, %v5027
      %v5047 = vpack.c.bf16 %v5030, %v5029
      %v5048 = vpack.c.bf16 %v5032, %v5031
      %s5049 = scalar_lea.vmem %s3, 12
      %v5050 = vld [vmem:[%s5049] sm:$0x3]
      %v5052 = vsel %vm531, %v5033, 0
      %v5055 = vsel %vm531, %v5034, 0
      %v5058 = vsel %vm531, %v5035, 0
      %v5061 = vsel %vm531, %v5036, 0
      %v5064 = vsel %vm531, %v5037, 0
      %v5067 = vsel %vm531, %v5038, 0
      %v5070 = vsel %vm531, %v5039, 0
      %v5073 = vsel %vm531, %v5040, 0
      %v5076 = vsel %vm531, %v5041, 0
      %v5079 = vsel %vm531, %v5042, 0
      %v5082 = vsel %vm531, %v5043, 0
      %v5085 = vsel %vm531, %v5044, 0
      %v5088 = vsel %vm531, %v5045, 0
      %v5091 = vsel %vm531, %v5046, 0
      %v5094 = vsel %vm531, %v5047, 0
      %v5097 = vsel %vm531, %v5048, 0
      %v5100 = vsel %vm3447, %v5050, 0
      %5102 = vmatprep.subr.bf16.mxu0 0
      %5103 = vmatpush1.bf16.msra.mxu0 %v5100
      %5104 = vmatprep.subr.bf16.mxu0 0
      %5105 = vmatpush1.bf16.msra.mxu0 0
      %5106 = vmatprep.subr.bf16.mxu0 0
      %5107 = vmatpush1.bf16.msra.mxu0 0
      %5108 = vmatprep.subr.bf16.mxu0 0
      %5109 = vmatpush1.bf16.msra.mxu0 0
      %5110 = vmatprep.subr.bf16.mxu0 0
      %5111 = vmatpush1.bf16.msra.mxu0 0
      %5112 = vmatprep.subr.bf16.mxu0 0
      %5113 = vmatpush1.bf16.msra.mxu0 0
      %5114 = vmatprep.subr.bf16.mxu0 0
      %5115 = vmatpush1.bf16.msra.mxu0 0
      %5116 = vmatprep.subr.bf16.mxu0 0
      %5117 = vmatpush1.bf16.msra.mxu0 0
      %5118 = vmatprep.subr.bf16.mxu0 0
      %5119 = vmatpush1.bf16.msra.mxu0 0
      %5120 = vmatprep.subr.bf16.mxu0 0
      %5121 = vmatpush1.bf16.msra.mxu0 0
      %5122 = vmatprep.subr.bf16.mxu0 0
      %5123 = vmatpush1.bf16.msra.mxu0 0
      %5124 = vmatprep.subr.bf16.mxu0 0
      %5125 = vmatpush1.bf16.msra.mxu0 0
      %5126 = vmatprep.subr.bf16.mxu0 0
      %5127 = vmatpush1.bf16.msra.mxu0 0
      %5128 = vmatprep.subr.bf16.mxu0 0
      %5129 = vmatpush1.bf16.msra.mxu0 0
      %5130 = vmatprep.subr.bf16.mxu0 0
      %5131 = vmatpush1.bf16.msra.mxu0 0
      %5132 = vmatprep.subr.bf16.mxu0 0
      %5133 = vmatpush1.bf16.msra.mxu0 0
      %5134 = vmatprep.mubr.bf16.mxu0 0
      %5135 = vmatmul.mubr.bf16.gmra.mrb[0].mxu0 %v5052
      %v5136 = vpop.f32.mrb[0].mxu0
      %v5137 = vadd.f32 0.0, %v5136
      %v5138 = vpop.f32.mrb[0].mxu0
      %v5139 = vpop.f32.mrb[0].mxu0
      %v5140 = vadd.f32 0.0, %v5139
      %v5141 = vpop.f32.mrb[0].mxu0
      %5142 = vmatprep.mubr.bf16.mxu0 0
      %5143 = vmatmul.mubr.bf16.gmra.mrb[0].mxu0 %v5055
      %v5144 = vpop.f32.mrb[0].mxu0
      %v5145 = vadd.f32 0.0, %v5144
      %v5146 = vpop.f32.mrb[0].mxu0
      %v5147 = vpop.f32.mrb[0].mxu0
      %v5148 = vadd.f32 0.0, %v5147
      %v5149 = vpop.f32.mrb[0].mxu0
      %5150 = vmatprep.mubr.bf16.mxu0 0
      %5151 = vmatmul.mubr.bf16.gmra.mrb[0].mxu0 %v5058
      %v5152 = vpop.f32.mrb[0].mxu0
      %v5153 = vadd.f32 0.0, %v5152
      %v5154 = vpop.f32.mrb[0].mxu0
      %v5155 = vpop.f32.mrb[0].mxu0
      %v5156 = vadd.f32 0.0, %v5155
      %v5157 = vpop.f32.mrb[0].mxu0
      %5158 = vmatprep.mubr.bf16.mxu0 0
      %5159 = vmatmul.mubr.bf16.gmra.mrb[0].mxu0 %v5061
      %v5160 = vpop.f32.mrb[0].mxu0
      %v5161 = vadd.f32 0.0, %v5160
      %v5162 = vpop.f32.mrb[0].mxu0
      %v5163 = vpop.f32.mrb[0].mxu0
      %v5164 = vadd.f32 0.0, %v5163
      %v5165 = vpop.f32.mrb[0].mxu0
      %5166 = vmatprep.mubr.bf16.mxu0 0
      %5167 = vmatmul.mubr.bf16.gmra.mrb[0].mxu0 %v5064
      %v5168 = vpop.f32.mrb[0].mxu0
      %v5169 = vadd.f32 0.0, %v5168
      %v5170 = vpop.f32.mrb[0].mxu0
      %v5171 = vpop.f32.mrb[0].mxu0
      %v5172 = vadd.f32 0.0, %v5171
      %v5173 = vpop.f32.mrb[0].mxu0
      %5174 = vmatprep.mubr.bf16.mxu0 0
      %5175 = vmatmul.mubr.bf16.gmra.mrb[0].mxu0 %v5067
      %v5176 = vpop.f32.mrb[0].mxu0
      %v5177 = vadd.f32 0.0, %v5176
      %v5178 = vpop.f32.mrb[0].mxu0
      %v5179 = vpop.f32.mrb[0].mxu0
      %v5180 = vadd.f32 0.0, %v5179
      %v5181 = vpop.f32.mrb[0].mxu0
      %5182 = vmatprep.mubr.bf16.mxu0 0
      %5183 = vmatmul.mubr.bf16.gmra.mrb[0].mxu0 %v5070
      %v5184 = vpop.f32.mrb[0].mxu0
      %v5185 = vadd.f32 0.0, %v5184
      %v5186 = vpop.f32.mrb[0].mxu0
      %v5187 = vpop.f32.mrb[0].mxu0
      %v5188 = vadd.f32 0.0, %v5187
      %v5189 = vpop.f32.mrb[0].mxu0
      %5190 = vmatprep.mubr.bf16.mxu0 0
      %5191 = vmatmul.mubr.bf16.gmra.mrb[0].mxu0 %v5073
      %v5192 = vpop.f32.mrb[0].mxu0
      %v5193 = vadd.f32 0.0, %v5192
      %v5194 = vpop.f32.mrb[0].mxu0
      %v5195 = vpop.f32.mrb[0].mxu0
      %v5196 = vadd.f32 0.0, %v5195
      %v5197 = vpop.f32.mrb[0].mxu0
      %5198 = vmatprep.mubr.bf16.mxu0 0
      %5199 = vmatmul.mubr.bf16.gmra.mrb[0].mxu0 %v5076
      %v5200 = vpop.f32.mrb[0].mxu0
      %v5201 = vadd.f32 0.0, %v5200
      %v5202 = vpop.f32.mrb[0].mxu0
      %v5203 = vpop.f32.mrb[0].mxu0
      %v5204 = vadd.f32 0.0, %v5203
      %v5205 = vpop.f32.mrb[0].mxu0
      %5206 = vmatprep.mubr.bf16.mxu0 0
      %5207 = vmatmul.mubr.bf16.gmra.mrb[0].mxu0 %v5079
      %v5208 = vpop.f32.mrb[0].mxu0
      %v5209 = vadd.f32 0.0, %v5208
      %v5210 = vpop.f32.mrb[0].mxu0
      %v5211 = vpop.f32.mrb[0].mxu0
      %v5212 = vadd.f32 0.0, %v5211
      %v5213 = vpop.f32.mrb[0].mxu0
      %5214 = vmatprep.mubr.bf16.mxu0 0
      %5215 = vmatmul.mubr.bf16.gmra.mrb[0].mxu0 %v5082
      %v5216 = vpop.f32.mrb[0].mxu0
      %v5217 = vadd.f32 0.0, %v5216
      %v5218 = vpop.f32.mrb[0].mxu0
      %v5219 = vpop.f32.mrb[0].mxu0
      %v5220 = vadd.f32 0.0, %v5219
      %v5221 = vpop.f32.mrb[0].mxu0
      %5222 = vmatprep.mubr.bf16.mxu0 0
      %5223 = vmatmul.mubr.bf16.gmra.mrb[0].mxu0 %v5085
      %v5224 = vpop.f32.mrb[0].mxu0
      %v5225 = vadd.f32 0.0, %v5224
      %v5226 = vpop.f32.mrb[0].mxu0
      %v5227 = vpop.f32.mrb[0].mxu0
      %v5228 = vadd.f32 0.0, %v5227
      %v5229 = vpop.f32.mrb[0].mxu0
      %5230 = vmatprep.mubr.bf16.mxu0 0
      %5231 = vmatmul.mubr.bf16.gmra.mrb[0].mxu0 %v5088
      %v5232 = vpop.f32.mrb[0].mxu0
      %v5233 = vadd.f32 0.0, %v5232
      %v5234 = vpop.f32.mrb[0].mxu0
      %v5235 = vpop.f32.mrb[0].mxu0
      %v5236 = vadd.f32 0.0, %v5235
      %v5237 = vpop.f32.mrb[0].mxu0
      %5238 = vmatprep.mubr.bf16.mxu0 0
      %5239 = vmatmul.mubr.bf16.gmra.mrb[0].mxu0 %v5091
      %v5240 = vpop.f32.mrb[0].mxu0
      %v5241 = vadd.f32 0.0, %v5240
      %v5242 = vpop.f32.mrb[0].mxu0
      %v5243 = vpop.f32.mrb[0].mxu0
      %v5244 = vadd.f32 0.0, %v5243
      %v5245 = vpop.f32.mrb[0].mxu0
      %5246 = vmatprep.mubr.bf16.mxu0 0
      %5247 = vmatmul.mubr.bf16.gmra.mrb[0].mxu0 %v5094
      %v5248 = vpop.f32.mrb[0].mxu0
      %v5249 = vadd.f32 0.0, %v5248
      %v5250 = vpop.f32.mrb[0].mxu0
      %v5251 = vpop.f32.mrb[0].mxu0
      %v5252 = vadd.f32 0.0, %v5251
      %v5253 = vpop.f32.mrb[0].mxu0
      %5254 = vmatprep.mubr.bf16.mxu0 0
      %5255 = vmatmul.mubr.bf16.gmra.mrb[0].mxu0 %v5097
      %v5256 = vpop.f32.mrb[0].mxu0
      %v5257 = vadd.f32 0.0, %v5256
      %v5258 = vpop.f32.mrb[0].mxu0
      %v5259 = vpop.f32.mrb[0].mxu0
      %v5260 = vadd.f32 0.0, %v5259
      %v5261 = vpop.f32.mrb[0].mxu0
      %5262 = vdwg.mxu0
      %v5263 = vadd.f32 %v4968, %v5137
      %v5264 = vadd.f32 %v4969, %v5140
      %v5265 = vadd.f32 %v4970, %v5145
      %v5266 = vadd.f32 %v4971, %v5148
      %v5267 = vadd.f32 %v4972, %v5153
      %v5268 = vadd.f32 %v4973, %v5156
      %v5269 = vadd.f32 %v4974, %v5161
      %v5270 = vadd.f32 %v4975, %v5164
      %v5271 = vadd.f32 %v4976, %v5169
      %v5272 = vadd.f32 %v4977, %v5172
      %v5273 = vadd.f32 %v4978, %v5177
      %v5274 = vadd.f32 %v4979, %v5180
      %v5275 = vadd.f32 %v4980, %v5185
      %v5276 = vadd.f32 %v4981, %v5188
      %v5277 = vadd.f32 %v4982, %v5193
      %v5278 = vadd.f32 %v4983, %v5196
      %v5279 = vadd.f32 %v4984, %v5201
      %v5280 = vadd.f32 %v4985, %v5204
      %v5281 = vadd.f32 %v4986, %v5209
      %v5282 = vadd.f32 %v4987, %v5212
      %v5283 = vadd.f32 %v4988, %v5217
      %v5284 = vadd.f32 %v4989, %v5220
      %v5285 = vadd.f32 %v4990, %v5225
      %v5286 = vadd.f32 %v4991, %v5228
      %v5287 = vadd.f32 %v4992, %v5233
      %v5288 = vadd.f32 %v4993, %v5236
      %v5289 = vadd.f32 %v4994, %v5241
      %v5290 = vadd.f32 %v4995, %v5244
      %v5291 = vadd.f32 %v4996, %v5249
      %v5292 = vadd.f32 %v4997, %v5252
      %v5293 = vadd.f32 %v4998, %v5257
      %v5294 = vadd.f32 %v4999, %v5260
      %v5295 = vld [vmem:[%s5000 + $0x1] sm:$0xff]
      %v5296 = vld [vmem:[%s5000 + $0x9] sm:$0xff]
      %v5297 = vld [vmem:[%s5000 + $0x19] sm:$0xff]
      %v5298 = vld [vmem:[%s5000 + $0x21] sm:$0xff]
      %v5299 = vld [vmem:[%s5000 + $0x31] sm:$0xff]
      %v5300 = vld [vmem:[%s5000 + $0x39] sm:$0xff]
      %v5301 = vld [vmem:[%s5000 + $0x49] sm:$0xff]
      %v5302 = vld [vmem:[%s5000 + $0x51] sm:$0xff]
      %v5303 = vld [vmem:[%s5000 + $0x61] sm:$0xff]
      %v5304 = vld [vmem:[%s5000 + $0x69] sm:$0xff]
      %v5305 = vld [vmem:[%s5000 + $0x79] sm:$0xff]
      %v5306 = vld [vmem:[%s5000 + $0x81] sm:$0xff]
      %v5307 = vld [vmem:[%s5000 + $0x91] sm:$0xff]
      %v5308 = vld [vmem:[%s5000 + $0x99] sm:$0xff]
      %v5309 = vld [vmem:[%s5000 + $0xa9] sm:$0xff]
      %v5310 = vld [vmem:[%s5000 + $0xb1] sm:$0xff]
      %v5311 = vld [vmem:[%s5000 + $0xc1] sm:$0xff]
      %v5312 = vld [vmem:[%s5000 + $0xc9] sm:$0xff]
      %v5313 = vld [vmem:[%s5000 + $0xd9] sm:$0xff]
      %v5314 = vld [vmem:[%s5000 + $0xe1] sm:$0xff]
      %v5315 = vld [vmem:[%s5000 + $0xf1] sm:$0xff]
      %v5316 = vld [vmem:[%s5000 + $0xf9] sm:$0xff]
      %v5317 = vld [vmem:[%s5000 + $0x109] sm:$0xff]
      %v5318 = vld [vmem:[%s5000 + $0x111] sm:$0xff]
      %v5319 = vld [vmem:[%s5000 + $0x121] sm:$0xff]
      %v5320 = vld [vmem:[%s5000 + $0x129] sm:$0xff]
      %v5321 = vld [vmem:[%s5000 + $0x139] sm:$0xff]
      %v5322 = vld [vmem:[%s5000 + $0x141] sm:$0xff]
      %v5323 = vld [vmem:[%s5000 + $0x151] sm:$0xff]
      %v5324 = vld [vmem:[%s5000 + $0x159] sm:$0xff]
      %v5325 = vld [vmem:[%s5000 + $0x169] sm:$0xff]
      %v5326 = vld [vmem:[%s5000 + $0x171] sm:$0xff]
      %v5327 = vpack.c.bf16 %v5296, %v5295
      %v5328 = vpack.c.bf16 %v5298, %v5297
      %v5329 = vpack.c.bf16 %v5300, %v5299
      %v5330 = vpack.c.bf16 %v5302, %v5301
      %v5331 = vpack.c.bf16 %v5304, %v5303
      %v5332 = vpack.c.bf16 %v5306, %v5305
      %v5333 = vpack.c.bf16 %v5308, %v5307
      %v5334 = vpack.c.bf16 %v5310, %v5309
      %v5335 = vpack.c.bf16 %v5312, %v5311
      %v5336 = vpack.c.bf16 %v5314, %v5313
      %v5337 = vpack.c.bf16 %v5316, %v5315
      %v5338 = vpack.c.bf16 %v5318, %v5317
      %v5339 = vpack.c.bf16 %v5320, %v5319
      %v5340 = vpack.c.bf16 %v5322, %v5321
      %v5341 = vpack.c.bf16 %v5324, %v5323
      %v5342 = vpack.c.bf16 %v5326, %v5325
      %s5343 = scalar_lea.vmem %s3, 14
      %v5344 = vld [vmem:[%s5343] sm:$0x3]
      %v5346 = vsel %vm531, %v5327, 0
      %v5349 = vsel %vm531, %v5328, 0
      %v5352 = vsel %vm531, %v5329, 0
      %v5355 = vsel %vm531, %v5330, 0
      %v5358 = vsel %vm531, %v5331, 0
      %v5361 = vsel %vm531, %v5332, 0
      %v5364 = vsel %vm531, %v5333, 0
      %v5367 = vsel %vm531, %v5334, 0
      %v5370 = vsel %vm531, %v5335, 0
      %v5373 = vsel %vm531, %v5336, 0
      %v5376 = vsel %vm531, %v5337, 0
      %v5379 = vsel %vm531, %v5338, 0
      %v5382 = vsel %vm531, %v5339, 0
      %v5385 = vsel %vm531, %v5340, 0
      %v5388 = vsel %vm531, %v5341, 0
      %v5391 = vsel %vm531, %v5342, 0
      %v5394 = vsel %vm3447, %v5344, 0
      %5396 = vmatprep.subr.bf16.mxu0 0
      %5397 = vmatpush1.bf16.msra.mxu0 %v5394
      %5398 = vmatprep.subr.bf16.mxu0 0
      %5399 = vmatpush1.bf16.msra.mxu0 0
      %5400 = vmatprep.subr.bf16.mxu0 0
      %5401 = vmatpush1.bf16.msra.mxu0 0
      %5402 = vmatprep.subr.bf16.mxu0 0
      %5403 = vmatpush1.bf16.msra.mxu0 0
      %5404 = vmatprep.subr.bf16.mxu0 0
      %5405 = vmatpush1.bf16.msra.mxu0 0
      %5406 = vmatprep.subr.bf16.mxu0 0
      %5407 = vmatpush1.bf16.msra.mxu0 0
      %5408 = vmatprep.subr.bf16.mxu0 0
      %5409 = vmatpush1.bf16.msra.mxu0 0
      %5410 = vmatprep.subr.bf16.mxu0 0
      %5411 = vmatpush1.bf16.msra.mxu0 0
      %5412 = vmatprep.subr.bf16.mxu0 0
      %5413 = vmatpush1.bf16.msra.mxu0 0
      %5414 = vmatprep.subr.bf16.mxu0 0
      %5415 = vmatpush1.bf16.msra.mxu0 0
      %5416 = vmatprep.subr.bf16.mxu0 0
      %5417 = vmatpush1.bf16.msra.mxu0 0
      %5418 = vmatprep.subr.bf16.mxu0 0
      %5419 = vmatpush1.bf16.msra.mxu0 0
      %5420 = vmatprep.subr.bf16.mxu0 0
      %5421 = vmatpush1.bf16.msra.mxu0 0
      %5422 = vmatprep.subr.bf16.mxu0 0
      %5423 = vmatpush1.bf16.msra.mxu0 0
      %5424 = vmatprep.subr.bf16.mxu0 0
      %5425 = vmatpush1.bf16.msra.mxu0 0
      %5426 = vmatprep.subr.bf16.mxu0 0
      %5427 = vmatpush1.bf16.msra.mxu0 0
      %5428 = vmatprep.mubr.bf16.mxu0 0
      %5429 = vmatmul.mubr.bf16.gmra.mrb[0].mxu0 %v5346
      %v5430 = vpop.f32.mrb[0].mxu0
      %v5431 = vadd.f32 0.0, %v5430
      %v5432 = vpop.f32.mrb[0].mxu0
      %v5433 = vpop.f32.mrb[0].mxu0
      %v5434 = vadd.f32 0.0, %v5433
      %v5435 = vpop.f32.mrb[0].mxu0
      %5436 = vmatprep.mubr.bf16.mxu0 0
      %5437 = vmatmul.mubr.bf16.gmra.mrb[0].mxu0 %v5349
      %v5438 = vpop.f32.mrb[0].mxu0
      %v5439 = vadd.f32 0.0, %v5438
      %v5440 = vpop.f32.mrb[0].mxu0
      %v5441 = vpop.f32.mrb[0].mxu0
      %v5442 = vadd.f32 0.0, %v5441
      %v5443 = vpop.f32.mrb[0].mxu0
      %5444 = vmatprep.mubr.bf16.mxu0 0
      %5445 = vmatmul.mubr.bf16.gmra.mrb[0].mxu0 %v5352
      %v5446 = vpop.f32.mrb[0].mxu0
      %v5447 = vadd.f32 0.0, %v5446
      %v5448 = vpop.f32.mrb[0].mxu0
      %v5449 = vpop.f32.mrb[0].mxu0
      %v5450 = vadd.f32 0.0, %v5449
      %v5451 = vpop.f32.mrb[0].mxu0
      %5452 = vmatprep.mubr.bf16.mxu0 0
      %5453 = vmatmul.mubr.bf16.gmra.mrb[0].mxu0 %v5355
      %v5454 = vpop.f32.mrb[0].mxu0
      %v5455 = vadd.f32 0.0, %v5454
      %v5456 = vpop.f32.mrb[0].mxu0
      %v5457 = vpop.f32.mrb[0].mxu0
      %v5458 = vadd.f32 0.0, %v5457
      %v5459 = vpop.f32.mrb[0].mxu0
      %5460 = vmatprep.mubr.bf16.mxu0 0
      %5461 = vmatmul.mubr.bf16.gmra.mrb[0].mxu0 %v5358
      %v5462 = vpop.f32.mrb[0].mxu0
      %v5463 = vadd.f32 0.0, %v5462
      %v5464 = vpop.f32.mrb[0].mxu0
      %v5465 = vpop.f32.mrb[0].mxu0
      %v5466 = vadd.f32 0.0, %v5465
      %v5467 = vpop.f32.mrb[0].mxu0
      %5468 = vmatprep.mubr.bf16.mxu0 0
      %5469 = vmatmul.mubr.bf16.gmra.mrb[0].mxu0 %v5361
      %v5470 = vpop.f32.mrb[0].mxu0
      %v5471 = vadd.f32 0.0, %v5470
      %v5472 = vpop.f32.mrb[0].mxu0
      %v5473 = vpop.f32.mrb[0].mxu0
      %v5474 = vadd.f32 0.0, %v5473
      %v5475 = vpop.f32.mrb[0].mxu0
      %5476 = vmatprep.mubr.bf16.mxu0 0
      %5477 = vmatmul.mubr.bf16.gmra.mrb[0].mxu0 %v5364
      %v5478 = vpop.f32.mrb[0].mxu0
      %v5479 = vadd.f32 0.0, %v5478
      %v5480 = vpop.f32.mrb[0].mxu0
      %v5481 = vpop.f32.mrb[0].mxu0
      %v5482 = vadd.f32 0.0, %v5481
      %v5483 = vpop.f32.mrb[0].mxu0
      %5484 = vmatprep.mubr.bf16.mxu0 0
      %5485 = vmatmul.mubr.bf16.gmra.mrb[0].mxu0 %v5367
      %v5486 = vpop.f32.mrb[0].mxu0
      %v5487 = vadd.f32 0.0, %v5486
      %v5488 = vpop.f32.mrb[0].mxu0
      %v5489 = vpop.f32.mrb[0].mxu0
      %v5490 = vadd.f32 0.0, %v5489
      %v5491 = vpop.f32.mrb[0].mxu0
      %5492 = vmatprep.mubr.bf16.mxu0 0
      %5493 = vmatmul.mubr.bf16.gmra.mrb[0].mxu0 %v5370
      %v5494 = vpop.f32.mrb[0].mxu0
      %v5495 = vadd.f32 0.0, %v5494
      %v5496 = vpop.f32.mrb[0].mxu0
      %v5497 = vpop.f32.mrb[0].mxu0
      %v5498 = vadd.f32 0.0, %v5497
      %v5499 = vpop.f32.mrb[0].mxu0
      %5500 = vmatprep.mubr.bf16.mxu0 0
      %5501 = vmatmul.mubr.bf16.gmra.mrb[0].mxu0 %v5373
      %v5502 = vpop.f32.mrb[0].mxu0
      %v5503 = vadd.f32 0.0, %v5502
      %v5504 = vpop.f32.mrb[0].mxu0
      %v5505 = vpop.f32.mrb[0].mxu0
      %v5506 = vadd.f32 0.0, %v5505
      %v5507 = vpop.f32.mrb[0].mxu0
      %5508 = vmatprep.mubr.bf16.mxu0 0
      %5509 = vmatmul.mubr.bf16.gmra.mrb[0].mxu0 %v5376
      %v5510 = vpop.f32.mrb[0].mxu0
      %v5511 = vadd.f32 0.0, %v5510
      %v5512 = vpop.f32.mrb[0].mxu0
      %v5513 = vpop.f32.mrb[0].mxu0
      %v5514 = vadd.f32 0.0, %v5513
      %v5515 = vpop.f32.mrb[0].mxu0
      %5516 = vmatprep.mubr.bf16.mxu0 0
      %5517 = vmatmul.mubr.bf16.gmra.mrb[0].mxu0 %v5379
      %v5518 = vpop.f32.mrb[0].mxu0
      %v5519 = vadd.f32 0.0, %v5518
      %v5520 = vpop.f32.mrb[0].mxu0
      %v5521 = vpop.f32.mrb[0].mxu0
      %v5522 = vadd.f32 0.0, %v5521
      %v5523 = vpop.f32.mrb[0].mxu0
      %5524 = vmatprep.mubr.bf16.mxu0 0
      %5525 = vmatmul.mubr.bf16.gmra.mrb[0].mxu0 %v5382
      %v5526 = vpop.f32.mrb[0].mxu0
      %v5527 = vadd.f32 0.0, %v5526
      %v5528 = vpop.f32.mrb[0].mxu0
      %v5529 = vpop.f32.mrb[0].mxu0
      %v5530 = vadd.f32 0.0, %v5529
      %v5531 = vpop.f32.mrb[0].mxu0
      %5532 = vmatprep.mubr.bf16.mxu0 0
      %5533 = vmatmul.mubr.bf16.gmra.mrb[0].mxu0 %v5385
      %v5534 = vpop.f32.mrb[0].mxu0
      %v5535 = vadd.f32 0.0, %v5534
      %v5536 = vpop.f32.mrb[0].mxu0
      %v5537 = vpop.f32.mrb[0].mxu0
      %v5538 = vadd.f32 0.0, %v5537
      %v5539 = vpop.f32.mrb[0].mxu0
      %5540 = vmatprep.mubr.bf16.mxu0 0
      %5541 = vmatmul.mubr.bf16.gmra.mrb[0].mxu0 %v5388
      %v5542 = vpop.f32.mrb[0].mxu0
      %v5543 = vadd.f32 0.0, %v5542
      %v5544 = vpop.f32.mrb[0].mxu0
      %v5545 = vpop.f32.mrb[0].mxu0
      %v5546 = vadd.f32 0.0, %v5545
      %v5547 = vpop.f32.mrb[0].mxu0
      %5548 = vmatprep.mubr.bf16.mxu0 0
      %5549 = vmatmul.mubr.bf16.gmra.mrb[0].mxu0 %v5391
      %v5550 = vpop.f32.mrb[0].mxu0
      %v5551 = vadd.f32 0.0, %v5550
      %v5552 = vpop.f32.mrb[0].mxu0
      %v5553 = vpop.f32.mrb[0].mxu0
      %v5554 = vadd.f32 0.0, %v5553
      %v5555 = vpop.f32.mrb[0].mxu0
      %5556 = vdwg.mxu0
      %v5557 = vadd.f32 %v5263, %v5431
      %v5558 = vadd.f32 %v5264, %v5434
      %v5559 = vadd.f32 %v5265, %v5439
      %v5560 = vadd.f32 %v5266, %v5442
      %v5561 = vadd.f32 %v5267, %v5447
      %v5562 = vadd.f32 %v5268, %v5450
      %v5563 = vadd.f32 %v5269, %v5455
      %v5564 = vadd.f32 %v5270, %v5458
      %v5565 = vadd.f32 %v5271, %v5463
      %v5566 = vadd.f32 %v5272, %v5466
      %v5567 = vadd.f32 %v5273, %v5471
      %v5568 = vadd.f32 %v5274, %v5474
      %v5569 = vadd.f32 %v5275, %v5479
      %v5570 = vadd.f32 %v5276, %v5482
      %v5571 = vadd.f32 %v5277, %v5487
      %v5572 = vadd.f32 %v5278, %v5490
      %v5573 = vadd.f32 %v5279, %v5495
      %v5574 = vadd.f32 %v5280, %v5498
      %v5575 = vadd.f32 %v5281, %v5503
      %v5576 = vadd.f32 %v5282, %v5506
      %v5577 = vadd.f32 %v5283, %v5511
      %v5578 = vadd.f32 %v5284, %v5514
      %v5579 = vadd.f32 %v5285, %v5519
      %v5580 = vadd.f32 %v5286, %v5522
      %v5581 = vadd.f32 %v5287, %v5527
      %v5582 = vadd.f32 %v5288, %v5530
      %v5583 = vadd.f32 %v5289, %v5535
      %v5584 = vadd.f32 %v5290, %v5538
      %v5585 = vadd.f32 %v5291, %v5543
      %v5586 = vadd.f32 %v5292, %v5546
      %v5587 = vadd.f32 %v5293, %v5551
      %v5588 = vadd.f32 %v5294, %v5554
      %v5589 = vld [vmem:[%s5000 + $0x2] sm:$0xff]
      %v5590 = vld [vmem:[%s5000 + $0xa] sm:$0xff]
      %v5591 = vld [vmem:[%s5000 + $0x1a] sm:$0xff]
      %v5592 = vld [vmem:[%s5000 + $0x22] sm:$0xff]
      %v5593 = vld [vmem:[%s5000 + $0x32] sm:$0xff]
      %v5594 = vld [vmem:[%s5000 + $0x3a] sm:$0xff]
      %v5595 = vld [vmem:[%s5000 + $0x4a] sm:$0xff]
      %v5596 = vld [vmem:[%s5000 + $0x52] sm:$0xff]
      %v5597 = vld [vmem:[%s5000 + $0x62] sm:$0xff]
      %v5598 = vld [vmem:[%s5000 + $0x6a] sm:$0xff]
      %v5599 = vld [vmem:[%s5000 + $0x7a] sm:$0xff]
      %v5600 = vld [vmem:[%s5000 + $0x82] sm:$0xff]
      %v5601 = vld [vmem:[%s5000 + $0x92] sm:$0xff]
      %v5602 = vld [vmem:[%s5000 + $0x9a] sm:$0xff]
      %v5603 = vld [vmem:[%s5000 + $0xaa] sm:$0xff]
      %v5604 = vld [vmem:[%s5000 + $0xb2] sm:$0xff]
      %v5605 = vld [vmem:[%s5000 + $0xc2] sm:$0xff]
      %v5606 = vld [vmem:[%s5000 + $0xca] sm:$0xff]
      %v5607 = vld [vmem:[%s5000 + $0xda] sm:$0xff]
      %v5608 = vld [vmem:[%s5000 + $0xe2] sm:$0xff]
      %v5609 = vld [vmem:[%s5000 + $0xf2] sm:$0xff]
      %v5610 = vld [vmem:[%s5000 + $0xfa] sm:$0xff]
      %v5611 = vld [vmem:[%s5000 + $0x10a] sm:$0xff]
      %v5612 = vld [vmem:[%s5000 + $0x112] sm:$0xff]
      %v5613 = vld [vmem:[%s5000 + $0x122] sm:$0xff]
      %v5614 = vld [vmem:[%s5000 + $0x12a] sm:$0xff]
      %v5615 = vld [vmem:[%s5000 + $0x13a] sm:$0xff]
      %v5616 = vld [vmem:[%s5000 + $0x142] sm:$0xff]
      %v5617 = vld [vmem:[%s5000 + $0x152] sm:$0xff]
      %v5618 = vld [vmem:[%s5000 + $0x15a] sm:$0xff]
      %v5619 = vld [vmem:[%s5000 + $0x16a] sm:$0xff]
      %v5620 = vld [vmem:[%s5000 + $0x172] sm:$0xff]
      %v5621 = vpack.c.bf16 %v5590, %v5589
      %v5622 = vpack.c.bf16 %v5592, %v5591
      %v5623 = vpack.c.bf16 %v5594, %v5593
      %v5624 = vpack.c.bf16 %v5596, %v5595
      %v5625 = vpack.c.bf16 %v5598, %v5597
      %v5626 = vpack.c.bf16 %v5600, %v5599
      %v5627 = vpack.c.bf16 %v5602, %v5601
      %v5628 = vpack.c.bf16 %v5604, %v5603
      %v5629 = vpack.c.bf16 %v5606, %v5605
      %v5630 = vpack.c.bf16 %v5608, %v5607
      %v5631 = vpack.c.bf16 %v5610, %v5609
      %v5632 = vpack.c.bf16 %v5612, %v5611
      %v5633 = vpack.c.bf16 %v5614, %v5613
      %v5634 = vpack.c.bf16 %v5616, %v5615
      %v5635 = vpack.c.bf16 %v5618, %v5617
      %v5636 = vpack.c.bf16 %v5620, %v5619
      %s5637 = scalar_lea.vmem %s3, 16
      %v5638 = vld [vmem:[%s5637] sm:$0x3]
      %v5640 = vsel %vm531, %v5621, 0
      %v5643 = vsel %vm531, %v5622, 0
      %v5646 = vsel %vm531, %v5623, 0
      %v5649 = vsel %vm531, %v5624, 0
      %v5652 = vsel %vm531, %v5625, 0
      %v5655 = vsel %vm531, %v5626, 0
      %v5658 = vsel %vm531, %v5627, 0
      %v5661 = vsel %vm531, %v5628, 0
      %v5664 = vsel %vm531, %v5629, 0
      %v5667 = vsel %vm531, %v5630, 0
      %v5670 = vsel %vm531, %v5631, 0
      %v5673 = vsel %vm531, %v5632, 0
      %v5676 = vsel %vm531, %v5633, 0
      %v5679 = vsel %vm531, %v5634, 0
      %v5682 = vsel %vm531, %v5635, 0
      %v5685 = vsel %vm531, %v5636, 0
      %v5688 = vsel %vm3447, %v5638, 0
      %5690 = vmatprep.subr.bf16.mxu0 0
      %5691 = vmatpush1.bf16.msra.mxu0 %v5688
      %5692 = vmatprep.subr.bf16.mxu0 0
      %5693 = vmatpush1.bf16.msra.mxu0 0
      %5694 = vmatprep.subr.bf16.mxu0 0
      %5695 = vmatpush1.bf16.msra.mxu0 0
      %5696 = vmatprep.subr.bf16.mxu0 0
      %5697 = vmatpush1.bf16.msra.mxu0 0
      %5698 = vmatprep.subr.bf16.mxu0 0
      %5699 = vmatpush1.bf16.msra.mxu0 0
      %5700 = vmatprep.subr.bf16.mxu0 0
      %5701 = vmatpush1.bf16.msra.mxu0 0
      %5702 = vmatprep.subr.bf16.mxu0 0
      %5703 = vmatpush1.bf16.msra.mxu0 0
      %5704 = vmatprep.subr.bf16.mxu0 0
      %5705 = vmatpush1.bf16.msra.mxu0 0
      %5706 = vmatprep.subr.bf16.mxu0 0
      %5707 = vmatpush1.bf16.msra.mxu0 0
      %5708 = vmatprep.subr.bf16.mxu0 0
      %5709 = vmatpush1.bf16.msra.mxu0 0
      %5710 = vmatprep.subr.bf16.mxu0 0
      %5711 = vmatpush1.bf16.msra.mxu0 0
      %5712 = vmatprep.subr.bf16.mxu0 0
      %5713 = vmatpush1.bf16.msra.mxu0 0
      %5714 = vmatprep.subr.bf16.mxu0 0
      %5715 = vmatpush1.bf16.msra.mxu0 0
      %5716 = vmatprep.subr.bf16.mxu0 0
      %5717 = vmatpush1.bf16.msra.mxu0 0
      %5718 = vmatprep.subr.bf16.mxu0 0
      %5719 = vmatpush1.bf16.msra.mxu0 0
      %5720 = vmatprep.subr.bf16.mxu0 0
      %5721 = vmatpush1.bf16.msra.mxu0 0
      %5722 = vmatprep.mubr.bf16.mxu0 0
      %5723 = vmatmul.mubr.bf16.gmra.mrb[0].mxu0 %v5640
      %v5724 = vpop.f32.mrb[0].mxu0
      %v5725 = vadd.f32 0.0, %v5724
      %v5726 = vpop.f32.mrb[0].mxu0
      %v5727 = vpop.f32.mrb[0].mxu0
      %v5728 = vadd.f32 0.0, %v5727
      %v5729 = vpop.f32.mrb[0].mxu0
      %5730 = vmatprep.mubr.bf16.mxu0 0
      %5731 = vmatmul.mubr.bf16.gmra.mrb[0].mxu0 %v5643
      %v5732 = vpop.f32.mrb[0].mxu0
      %v5733 = vadd.f32 0.0, %v5732
      %v5734 = vpop.f32.mrb[0].mxu0
      %v5735 = vpop.f32.mrb[0].mxu0
      %v5736 = vadd.f32 0.0, %v5735
      %v5737 = vpop.f32.mrb[0].mxu0
      %5738 = vmatprep.mubr.bf16.mxu0 0
      %5739 = vmatmul.mubr.bf16.gmra.mrb[0].mxu0 %v5646
      %v5740 = vpop.f32.mrb[0].mxu0
      %v5741 = vadd.f32 0.0, %v5740
      %v5742 = vpop.f32.mrb[0].mxu0
      %v5743 = vpop.f32.mrb[0].mxu0
      %v5744 = vadd.f32 0.0, %v5743
      %v5745 = vpop.f32.mrb[0].mxu0
      %5746 = vmatprep.mubr.bf16.mxu0 0
      %5747 = vmatmul.mubr.bf16.gmra.mrb[0].mxu0 %v5649
      %v5748 = vpop.f32.mrb[0].mxu0
      %v5749 = vadd.f32 0.0, %v5748
      %v5750 = vpop.f32.mrb[0].mxu0
      %v5751 = vpop.f32.mrb[0].mxu0
      %v5752 = vadd.f32 0.0, %v5751
      %v5753 = vpop.f32.mrb[0].mxu0
      %5754 = vmatprep.mubr.bf16.mxu0 0
      %5755 = vmatmul.mubr.bf16.gmra.mrb[0].mxu0 %v5652
      %v5756 = vpop.f32.mrb[0].mxu0
      %v5757 = vadd.f32 0.0, %v5756
      %v5758 = vpop.f32.mrb[0].mxu0
      %v5759 = vpop.f32.mrb[0].mxu0
      %v5760 = vadd.f32 0.0, %v5759
      %v5761 = vpop.f32.mrb[0].mxu0
      %5762 = vmatprep.mubr.bf16.mxu0 0
      %5763 = vmatmul.mubr.bf16.gmra.mrb[0].mxu0 %v5655
      %v5764 = vpop.f32.mrb[0].mxu0
      %v5765 = vadd.f32 0.0, %v5764
      %v5766 = vpop.f32.mrb[0].mxu0
      %v5767 = vpop.f32.mrb[0].mxu0
      %v5768 = vadd.f32 0.0, %v5767
      %v5769 = vpop.f32.mrb[0].mxu0
      %5770 = vmatprep.mubr.bf16.mxu0 0
      %5771 = vmatmul.mubr.bf16.gmra.mrb[0].mxu0 %v5658
      %v5772 = vpop.f32.mrb[0].mxu0
      %v5773 = vadd.f32 0.0, %v5772
      %v5774 = vpop.f32.mrb[0].mxu0
      %v5775 = vpop.f32.mrb[0].mxu0
      %v5776 = vadd.f32 0.0, %v5775
      %v5777 = vpop.f32.mrb[0].mxu0
      %5778 = vmatprep.mubr.bf16.mxu0 0
      %5779 = vmatmul.mubr.bf16.gmra.mrb[0].mxu0 %v5661
      %v5780 = vpop.f32.mrb[0].mxu0
      %v5781 = vadd.f32 0.0, %v5780
      %v5782 = vpop.f32.mrb[0].mxu0
      %v5783 = vpop.f32.mrb[0].mxu0
      %v5784 = vadd.f32 0.0, %v5783
      %v5785 = vpop.f32.mrb[0].mxu0
      %5786 = vmatprep.mubr.bf16.mxu0 0
      %5787 = vmatmul.mubr.bf16.gmra.mrb[0].mxu0 %v5664
      %v5788 = vpop.f32.mrb[0].mxu0
      %v5789 = vadd.f32 0.0, %v5788
      %v5790 = vpop.f32.mrb[0].mxu0
      %v5791 = vpop.f32.mrb[0].mxu0
      %v5792 = vadd.f32 0.0, %v5791
      %v5793 = vpop.f32.mrb[0].mxu0
      %5794 = vmatprep.mubr.bf16.mxu0 0
      %5795 = vmatmul.mubr.bf16.gmra.mrb[0].mxu0 %v5667
      %v5796 = vpop.f32.mrb[0].mxu0
      %v5797 = vadd.f32 0.0, %v5796
      %v5798 = vpop.f32.mrb[0].mxu0
      %v5799 = vpop.f32.mrb[0].mxu0
      %v5800 = vadd.f32 0.0, %v5799
      %v5801 = vpop.f32.mrb[0].mxu0
      %5802 = vmatprep.mubr.bf16.mxu0 0
      %5803 = vmatmul.mubr.bf16.gmra.mrb[0].mxu0 %v5670
      %v5804 = vpop.f32.mrb[0].mxu0
      %v5805 = vadd.f32 0.0, %v5804
      %v5806 = vpop.f32.mrb[0].mxu0
      %v5807 = vpop.f32.mrb[0].mxu0
      %v5808 = vadd.f32 0.0, %v5807
      %v5809 = vpop.f32.mrb[0].mxu0
      %5810 = vmatprep.mubr.bf16.mxu0 0
      %5811 = vmatmul.mubr.bf16.gmra.mrb[0].mxu0 %v5673
      %v5812 = vpop.f32.mrb[0].mxu0
      %v5813 = vadd.f32 0.0, %v5812
      %v5814 = vpop.f32.mrb[0].mxu0
      %v5815 = vpop.f32.mrb[0].mxu0
      %v5816 = vadd.f32 0.0, %v5815
      %v5817 = vpop.f32.mrb[0].mxu0
      %5818 = vmatprep.mubr.bf16.mxu0 0
      %5819 = vmatmul.mubr.bf16.gmra.mrb[0].mxu0 %v5676
      %v5820 = vpop.f32.mrb[0].mxu0
      %v5821 = vadd.f32 0.0, %v5820
      %v5822 = vpop.f32.mrb[0].mxu0
      %v5823 = vpop.f32.mrb[0].mxu0
      %v5824 = vadd.f32 0.0, %v5823
      %v5825 = vpop.f32.mrb[0].mxu0
      %5826 = vmatprep.mubr.bf16.mxu0 0
      %5827 = vmatmul.mubr.bf16.gmra.mrb[0].mxu0 %v5679
      %v5828 = vpop.f32.mrb[0].mxu0
      %v5829 = vadd.f32 0.0, %v5828
      %v5830 = vpop.f32.mrb[0].mxu0
      %v5831 = vpop.f32.mrb[0].mxu0
      %v5832 = vadd.f32 0.0, %v5831
      %v5833 = vpop.f32.mrb[0].mxu0
      %5834 = vmatprep.mubr.bf16.mxu0 0
      %5835 = vmatmul.mubr.bf16.gmra.mrb[0].mxu0 %v5682
      %v5836 = vpop.f32.mrb[0].mxu0
      %v5837 = vadd.f32 0.0, %v5836
      %v5838 = vpop.f32.mrb[0].mxu0
      %v5839 = vpop.f32.mrb[0].mxu0
      %v5840 = vadd.f32 0.0, %v5839
      %v5841 = vpop.f32.mrb[0].mxu0
      %5842 = vmatprep.mubr.bf16.mxu0 0
      %5843 = vmatmul.mubr.bf16.gmra.mrb[0].mxu0 %v5685
      %v5844 = vpop.f32.mrb[0].mxu0
      %v5845 = vadd.f32 0.0, %v5844
      %v5846 = vpop.f32.mrb[0].mxu0
      %v5847 = vpop.f32.mrb[0].mxu0
      %v5848 = vadd.f32 0.0, %v5847
      %v5849 = vpop.f32.mrb[0].mxu0
      %5850 = vdwg.mxu0
      %v5851 = vadd.f32 %v5557, %v5725
      %v5852 = vadd.f32 %v5558, %v5728
      %v5853 = vadd.f32 %v5559, %v5733
      %v5854 = vadd.f32 %v5560, %v5736
      %v5855 = vadd.f32 %v5561, %v5741
      %v5856 = vadd.f32 %v5562, %v5744
      %v5857 = vadd.f32 %v5563, %v5749
      %v5858 = vadd.f32 %v5564, %v5752
      %v5859 = vadd.f32 %v5565, %v5757
      %v5860 = vadd.f32 %v5566, %v5760
      %v5861 = vadd.f32 %v5567, %v5765
      %v5862 = vadd.f32 %v5568, %v5768
      %v5863 = vadd.f32 %v5569, %v5773
      %v5864 = vadd.f32 %v5570, %v5776
      %v5865 = vadd.f32 %v5571, %v5781
      %v5866 = vadd.f32 %v5572, %v5784
      %v5867 = vadd.f32 %v5573, %v5789
      %v5868 = vadd.f32 %v5574, %v5792
      %v5869 = vadd.f32 %v5575, %v5797
      %v5870 = vadd.f32 %v5576, %v5800
      %v5871 = vadd.f32 %v5577, %v5805
      %v5872 = vadd.f32 %v5578, %v5808
      %v5873 = vadd.f32 %v5579, %v5813
      %v5874 = vadd.f32 %v5580, %v5816
      %v5875 = vadd.f32 %v5581, %v5821
      %v5876 = vadd.f32 %v5582, %v5824
      %v5877 = vadd.f32 %v5583, %v5829
      %v5878 = vadd.f32 %v5584, %v5832
      %v5879 = vadd.f32 %v5585, %v5837
      %v5880 = vadd.f32 %v5586, %v5840
      %v5881 = vadd.f32 %v5587, %v5845
      %v5882 = vadd.f32 %v5588, %v5848
      %v5883 = vmax.f32 %v5851, 0.0
      %v5884 = vmax.f32 %v5852, 0.0
      %v5885 = vmax.f32 %v5853, 0.0
      %v5886 = vmax.f32 %v5854, 0.0
      %v5887 = vmax.f32 %v5855, 0.0
      %v5888 = vmax.f32 %v5856, 0.0
      %v5889 = vmax.f32 %v5857, 0.0
      %v5890 = vmax.f32 %v5858, 0.0
      %v5891 = vmax.f32 %v5859, 0.0
      %v5892 = vmax.f32 %v5860, 0.0
      %v5893 = vmax.f32 %v5861, 0.0
      %v5894 = vmax.f32 %v5862, 0.0
      %v5895 = vmax.f32 %v5863, 0.0
      %v5896 = vmax.f32 %v5864, 0.0
      %v5897 = vmax.f32 %v5865, 0.0
      %v5898 = vmax.f32 %v5866, 0.0
      %v5899 = vmax.f32 %v5867, 0.0
      %v5900 = vmax.f32 %v5868, 0.0
      %v5901 = vmax.f32 %v5869, 0.0
      %v5902 = vmax.f32 %v5870, 0.0
      %v5903 = vmax.f32 %v5871, 0.0
      %v5904 = vmax.f32 %v5872, 0.0
      %v5905 = vmax.f32 %v5873, 0.0
      %v5906 = vmax.f32 %v5874, 0.0
      %v5907 = vmax.f32 %v5875, 0.0
      %v5908 = vmax.f32 %v5876, 0.0
      %v5909 = vmax.f32 %v5877, 0.0
      %v5910 = vmax.f32 %v5878, 0.0
      %v5911 = vmax.f32 %v5879, 0.0
      %v5912 = vmax.f32 %v5880, 0.0
      %v5913 = vmax.f32 %v5881, 0.0
      %v5914 = vmax.f32 %v5882, 0.0
      %5915 = vst.msk [vmem:[%s217] sm:$0xff] %vm531, %v5883
      %5916 = vst.msk [vmem:[%s217 + $0x8] sm:$0xff] %vm531, %v5884
      %5917 = vst.msk [vmem:[%s217 + $0x10] sm:$0xff] %vm531, %v5885
      %5918 = vst.msk [vmem:[%s217 + $0x18] sm:$0xff] %vm531, %v5886
      %5919 = vst.msk [vmem:[%s217 + $0x20] sm:$0xff] %vm531, %v5887
      %5920 = vst.msk [vmem:[%s217 + $0x28] sm:$0xff] %vm531, %v5888
      %5921 = vst.msk [vmem:[%s217 + $0x30] sm:$0xff] %vm531, %v5889
      %5922 = vst.msk [vmem:[%s217 + $0x38] sm:$0xff] %vm531, %v5890
      %5923 = vst.msk [vmem:[%s217 + $0x40] sm:$0xff] %vm531, %v5891
      %5924 = vst.msk [vmem:[%s217 + $0x48] sm:$0xff] %vm531, %v5892
      %5925 = vst.msk [vmem:[%s217 + $0x50] sm:$0xff] %vm531, %v5893
      %5926 = vst.msk [vmem:[%s217 + $0x58] sm:$0xff] %vm531, %v5894
      %5927 = vst.msk [vmem:[%s217 + $0x60] sm:$0xff] %vm531, %v5895
      %5928 = vst.msk [vmem:[%s217 + $0x68] sm:$0xff] %vm531, %v5896
      %5929 = vst.msk [vmem:[%s217 + $0x70] sm:$0xff] %vm531, %v5897
      %5930 = vst.msk [vmem:[%s217 + $0x78] sm:$0xff] %vm531, %v5898
      %5931 = vst.msk [vmem:[%s217 + $0x80] sm:$0xff] %vm531, %v5899
      %5932 = vst.msk [vmem:[%s217 + $0x88] sm:$0xff] %vm531, %v5900
      %5933 = vst.msk [vmem:[%s217 + $0x90] sm:$0xff] %vm531, %v5901
      %5934 = vst.msk [vmem:[%s217 + $0x98] sm:$0xff] %vm531, %v5902
      %5935 = vst.msk [vmem:[%s217 + $0xa0] sm:$0xff] %vm531, %v5903
      %5936 = vst.msk [vmem:[%s217 + $0xa8] sm:$0xff] %vm531, %v5904
      %5937 = vst.msk [vmem:[%s217 + $0xb0] sm:$0xff] %vm531, %v5905
      %5938 = vst.msk [vmem:[%s217 + $0xb8] sm:$0xff] %vm531, %v5906
      %5939 = vst.msk [vmem:[%s217 + $0xc0] sm:$0xff] %vm531, %v5907
      %5940 = vst.msk [vmem:[%s217 + $0xc8] sm:$0xff] %vm531, %v5908
      %5941 = vst.msk [vmem:[%s217 + $0xd0] sm:$0xff] %vm531, %v5909
      %5942 = vst.msk [vmem:[%s217 + $0xd8] sm:$0xff] %vm531, %v5910
      %5943 = vst.msk [vmem:[%s217 + $0xe0] sm:$0xff] %vm531, %v5911
      %5944 = vst.msk [vmem:[%s217 + $0xe8] sm:$0xff] %vm531, %v5912
      %5945 = vst.msk [vmem:[%s217 + $0xf0] sm:$0xff] %vm531, %v5913
      %5946 = vst.msk [vmem:[%s217 + $0xf8] sm:$0xff] %vm531, %v5914
      %p5947 = scmp.lt.s32.totalorder %s15, 1
      %s5948 = scalar_select %p5947, %s15, 1
      %s5949 = smul.addr %s5948, 32
      %s5950 = smul.addr %s5949, 8
      %s5951 = scalar_lea.vmem %s4, %s5950
      // Predicated region
      $region37: #{up_forward.3} parent=35 // pred_check
        %p5952 = pneg %p127
      $region38: #{up_forward.3} parent=35 // pred_check_branch
        %5954 = sbr.rel (%p5952) target = $region40
      $region39: #{up_forward.3} parent=35 // pred_region
        _
      $region40: #{up_forward.3} parent=35 // pred_fallthru
        _
    $region36: #{up_forward.3} parent=5 // pred_fallthru
      _
    %p5955 = scmp.le.s32.totalorder 2, %s10
    // Predicated region
    $region41: #{up_forward.3} parent=5 // pred_check
      %p5956 = pneg %p5955
    $region42: #{up_forward.3} parent=5 // pred_check_branch
      %5958 = sbr.rel (%p5956) target = $region44
    $region43: #{up_forward.3} parent=5 // pred_region
      %s5959 = ssub.s32 %s10, 2
      // Predicated region
      $region45: #{up_forward.3} parent=43 // pred_check
        %p5960 = pneg %p133
      $region46: #{up_forward.3} parent=43 // pred_check_branch
        %5962 = sbr.rel (%p5960) target = $region48
      $region47: #{up_forward.3} parent=43 // pred_region
        %p5963 = scmp.lt.s32.totalorder %s16, 1
        %s5964 = scalar_select %p5963, %s16, 1
        %s5965 = smul.addr %s5964, 32
        %s5966 = smul.addr %s5965, 8
        %s5967 = scalar_lea.vmem %s4, %s5966
      $region48: #{up_forward.3} parent=43 // pred_fallthru
        _
    $region44: #{up_forward.3} parent=5 // pred_fallthru
      _
  $region6: #{up_forward.3} parent=0 // loop_footer
    %s14 = sadd.s32 1, %s10
  $region7: #{up_forward.3} parent=0 // loop_footer_branch
    %9 = sbr.rel target = $region3
  $region8: #{up_forward.3} parent=0 // loop_exit
    _

</llo_original>
